<compile_context>
chip_gen: v7x
topology: tpu7x:2x2x1
jax: 0.10.0
libtpu: 0.0.40
codegen_flags: <defaults>
</compile_context>

<pallas_src>
import functools
import math

import jax
import jax.numpy as jnp
import numpy as np
from jax.experimental import pallas as pl
from jax.experimental.pallas import tpu as pltpu


# ----------------------------------------------------------------------------- fused kernel

def _layer_norm(y, g, b, eps=1e-5):
    mean = jnp.mean(y, axis=-1, keepdims=True)
    var = jnp.mean((y - mean) ** 2, axis=-1, keepdims=True)
    return (y - mean) * jax.lax.rsqrt(var + eps) * g + b


def _fused_model_kernel(
    x_ref, pe_ref, embw_ref, embb_ref,
    wq_ref, wk_ref, wv_ref, bq_ref, bk_ref, bv_ref,
    ow_ref, ob_ref, w1_ref, b1_ref, w2_ref, b2_ref,
    ln1g_ref, ln1b_ref, ln2g_ref, ln2b_ref,
    fcw_ref, fcb_ref,
    o_ref,
    attn_sc,
    *, num_layers, num_heads, S, B,
):
    f32 = jnp.float32
    Dh = wq_ref.shape[-1]
    scale = 1.0 / math.sqrt(Dh)

    # --- embedding + positional-encoding add (pe already broadcast host-side)
    h = (jnp.dot(x_ref[...], embw_ref[...], preferred_element_type=f32)
         + embb_ref[...] + pe_ref[...])                                   # (B*S, E)

    for l in range(num_layers):
        # ---------------- multi-head self attention (all VMEM-resident) ----------------
        q_heads, k_heads, v_heads = [], [], []
        for hh in range(num_heads):
            q_heads.append(jnp.dot(h, wq_ref[l, hh], preferred_element_type=f32)
                           + bq_ref[l, hh])                               # (B*S, Dh)
            k_heads.append(jnp.dot(h, wk_ref[l, hh], preferred_element_type=f32)
                           + bk_ref[l, hh])
            v_heads.append(jnp.dot(h, wv_ref[l, hh], preferred_element_type=f32)
                           + bv_ref[l, hh])

        for b in range(B):
            acc = None
            for hh in range(num_heads):
                qb = q_heads[hh][b * S:(b + 1) * S, :] * scale            # (S, Dh)
                kb = k_heads[hh][b * S:(b + 1) * S, :]
                vb = v_heads[hh][b * S:(b + 1) * S, :]
                # scores = q @ k^T  (no explicit transpose: contract on dim 1 of both)
                s = jax.lax.dot_general(qb, kb, (((1,), (1,)), ((), ())),
                                        preferred_element_type=f32)       # (S, S)
                m = jnp.max(s, axis=-1, keepdims=True)
                p = jnp.exp(s - m)
                p = p * pl.reciprocal(jnp.sum(p, axis=-1, keepdims=True), approx=True)
                o_bh = jnp.dot(p, vb, preferred_element_type=f32)          # (S, Dh)
                # per-head slice of out_proj rows -> accumulate full-E contribution
                c = jnp.dot(o_bh, ow_ref[l, hh], preferred_element_type=f32)  # (S, E)
                acc = c if acc is None else acc + c
            attn_sc[pl.ds(b * S, S), :] = acc + ob_ref[l]

        h = _layer_norm(h + attn_sc[...], ln1g_ref[l], ln1b_ref[l])        # norm1(x + attn)

        # ---------------- feed-forward (back-to-back MXU work, VMEM resident) ----------
        ff = jnp.maximum(jnp.dot(h, w1_ref[l], preferred_element_type=f32)
                         + b1_ref[l], 0.0)                                 # (B*S, dim_ff)
        ff = jnp.dot(ff, w2_ref[l], preferred_element_type=f32) + b2_ref[l]
        h = _layer_norm(h + ff, ln2g_ref[l], ln2b_ref[l])                  # norm2(h + ff)

    # --- final fc (lane-padded to 128 -> lane-dense store)
    o_ref[...] = (jnp.dot(h, fcw_ref[...], preferred_element_type=f32)
                  + fcb_ref[...])


# ----------------------------------------------------------------------------- wrapper

def _full_spec(shape):
    n = len(shape)
    return pl.BlockSpec(shape, lambda i, n=n: (0,) * n)


def trajectory_transformer_forward(x, params, num_heads):
    # x: (S, B, input_dim)
    S, B, Din = x.shape
    E = params["emb_w"].shape[1]
    L = len(params["layers"])
    H = num_heads
    Dh = E // H
    F = params["layers"][0]["w1"].shape[1]
    M = B * S
    N = params["fc_w"].shape[1]
    Np = ((N + 127) // 128) * 128  # lane-dense output width

    # batch-major rows inside the kernel: row = b*S + s
    x2 = jnp.transpose(x, (1, 0, 2)).reshape(M, Din)

    # reproduce original quirk: x + pe[:x.size(1)] (indexed by BATCH dim, broadcast over seq)
    pe_add = jnp.broadcast_to(params["pe"][:B][:, None, :], (B, S, E)).reshape(M, E)

    def stack(key):
        return jnp.stack([lp[key] for lp in params["layers"]], axis=0)

    in_w = stack("in_proj_w")                 # (L, E, 3E)
    in_b = stack("in_proj_b")                 # (L, 3E)
    wq = in_w[:, :, 0:E].reshape(L, E, H, Dh).transpose(0, 2, 1, 3)       # (L, H, E, Dh)
    wk = in_w[:, :, E:2 * E].reshape(L, E, H, Dh).transpose(0, 2, 1, 3)
    wv = in_w[:, :, 2 * E:3 * E].reshape(L, E, H, Dh).transpose(0, 2, 1, 3)
    bq = in_b[:, 0:E].reshape(L, H, 1, Dh)
    bk = in_b[:, E:2 * E].reshape(L, H, 1, Dh)
    bv = in_b[:, 2 * E:3 * E].reshape(L, H, 1, Dh)
    ow = stack("out_proj_w").reshape(L, H, Dh, E)                          # rows per head
    ob = stack("out_proj_b").reshape(L, 1, E)
    w1 = stack("w1")                          # (L, E, F)
    b1 = stack("b1").reshape(L, 1, F)
    w2 = stack("w2")                          # (L, F, E)
    b2 = stack("b2").reshape(L, 1, E)
    ln1g = stack("ln1_g").reshape(L, 1, E)
    ln1b = stack("ln1_b").reshape(L, 1, E)
    ln2g = stack("ln2_g").reshape(L, 1, E)
    ln2b = stack("ln2_b").reshape(L, 1, E)

    fcw_p = jnp.zeros((E, Np), jnp.float32).at[:, :N].set(params["fc_w"])
    fcb_p = jnp.zeros((1, Np), jnp.float32).at[:, :N].set(params["fc_b"].reshape(1, N))
    emb_b2 = params["emb_b"].reshape(1, E)

    operands = (x2, pe_add, params["emb_w"], emb_b2,
                wq, wk, wv, bq, bk, bv,
                ow, ob, w1, b1, w2, b2,
                ln1g, ln1b, ln2g, ln2b,
                fcw_p, fcb_p)
    in_specs = [_full_spec(op.shape) for op in operands]

    kern = functools.partial(_fused_model_kernel,
                             num_layers=L, num_heads=H, S=S, B=B)

    out_pad = pl.pallas_call(
        kern,
        out_shape=jax.ShapeDtypeStruct((M, Np), jnp.float32),
        grid=(1,),
        in_specs=in_specs,
        out_specs=_full_spec((M, Np)),
        scratch_shapes=[pltpu.VMEM((M, E), jnp.float32)],
        compiler_params=pltpu.CompilerParams(dimension_semantics=("arbitrary",)),
    )(*operands)

    # slice off lane padding and return to (S, B, num_nodes)
    out = out_pad[:, :N].reshape(B, S, N)
    return jnp.transpose(out, (1, 0, 2))


# ----------------------------------------------------------------------------- params

def make_positional_encoding(embed_dim, max_seq_len):
    position = jnp.arange(max_seq_len, dtype=jnp.float32)[:, None]
    div_term = jnp.exp(jnp.arange(0, embed_dim, 2, dtype=jnp.float32)
                       * (-jnp.log(10000.0) / embed_dim))
    pe = jnp.zeros((max_seq_len, embed_dim), jnp.float32)
    pe = pe.at[:, 0::2].set(jnp.sin(position * div_term))
    pe = pe.at[:, 1::2].set(jnp.cos(position * div_term))
    return pe


def init_params(key, input_dim, embed_dim, num_heads, num_layers, dim_ff,
                num_nodes, max_seq_len):
    def w(k, shape):
        return (jax.random.normal(k, shape, jnp.float32) * 0.02).astype(jnp.float32)

    keys = iter(jax.random.split(key, 4 + 8 * num_layers))
    params = {
        "emb_w": w(next(keys), (input_dim, embed_dim)),
        "emb_b": w(next(keys), (embed_dim,)),
        "pe": make_positional_encoding(embed_dim, max_seq_len),
        "fc_w": w(next(keys), (embed_dim, num_nodes)),
        "fc_b": w(next(keys), (num_nodes,)),
        "layers": [],
    }
    for _ in range(num_layers):
        params["layers"].append({
            "in_proj_w": w(next(keys), (embed_dim, 3 * embed_dim)),
            "in_proj_b": w(next(keys), (3 * embed_dim,)),
            "out_proj_w": w(next(keys), (embed_dim, embed_dim)),
            "out_proj_b": w(next(keys), (embed_dim,)),
            "w1": w(next(keys), (embed_dim, dim_ff)),
            "b1": w(next(keys), (dim_ff,)),
            "w2": w(next(keys), (dim_ff, embed_dim)),
            "b2": w(next(keys), (embed_dim,)),
            "ln1_g": jnp.ones((embed_dim,), jnp.float32),
            "ln1_b": jnp.zeros((embed_dim,), jnp.float32),
            "ln2_g": jnp.ones((embed_dim,), jnp.float32),
            "ln2_b": jnp.zeros((embed_dim,), jnp.float32),
        })
    return params


# ----------------------------------------------------------------------------- reference

def _ref_ln(y, g, b, eps=1e-5):
    mean = jnp.mean(y, axis=-1, keepdims=True)
    var = jnp.mean((y - mean) ** 2, axis=-1, keepdims=True)
    return (y - mean) * jax.lax.rsqrt(var + eps) * g + b


def reference_forward(x, params, num_heads):
    S, B, _ = x.shape
    E = params["emb_w"].shape[1]
    hp = jax.lax.Precision.HIGHEST
    h = jnp.dot(x, params["emb_w"], precision=hp) + params["emb_b"]
    h = h + params["pe"][:B][None, :, :]
    for p in params["layers"]:
        Dh = E // num_heads
        qkv = jnp.dot(h, p["in_proj_w"], precision=hp) + p["in_proj_b"]
        qkv = qkv.reshape(S, B, 3, num_heads, Dh)
        q = jnp.transpose(qkv[:, :, 0], (1, 2, 0, 3))
        k = jnp.transpose(qkv[:, :, 1], (1, 2, 0, 3))
        v = jnp.transpose(qkv[:, :, 2], (1, 2, 0, 3))
        s = jnp.einsum("bhqd,bhkd->bhqk", q, k, precision=hp) * (Dh ** -0.5)
        a = jax.nn.softmax(s, axis=-1)
        o = jnp.einsum("bhqk,bhkd->bhqd", a, v, precision=hp)
        o = jnp.transpose(o, (2, 0, 1, 3)).reshape(S, B, E)
        o = jnp.dot(o, p["out_proj_w"], precision=hp) + p["out_proj_b"]
        h = _ref_ln(h + o, p["ln1_g"], p["ln1_b"])
        ff = jnp.maximum(jnp.dot(h, p["w1"], precision=hp) + p["b1"], 0.0)
        ff = jnp.dot(ff, p["w2"], precision=hp) + p["b2"]
        h = _ref_ln(h + ff, p["ln2_g"], p["ln2_b"])
    return jnp.dot(h, params["fc_w"], precision=hp) + params["fc_b"]


# ----------------------------------------------------------------------------- main

if __name__ == "__main__":
    config = {"model": {"input_dim": 4, "embed_dim": 32, "num_heads": 4,
                        "num_layers": 2, "dropout": 0.1}}
    num_nodes = 10
    max_seq_len = 16
    dim_ff = 2048          # nn.TransformerEncoderLayer default dim_feedforward
    S, B = 8, 2            # (seq_len, batch)

    key = jax.random.PRNGKey(0)
    k_param, k_x = jax.random.split(key)
    params = init_params(k_param,
                         input_dim=config["model"]["input_dim"],
                         embed_dim=config["model"]["embed_dim"],
                         num_heads=config["model"]["num_heads"],
                         num_layers=config["model"]["num_layers"],
                         dim_ff=dim_ff,
                         num_nodes=num_nodes,
                         max_seq_len=max_seq_len)

    x = jax.random.normal(k_x, (S, B, config["model"]["input_dim"]), jnp.float32)

    out = trajectory_transformer_forward(x, params, config["model"]["num_heads"])
    out = jax.block_until_ready(out)

    ref = jax.block_until_ready(reference_forward(x, params, config["model"]["num_heads"]))
    np.testing.assert_allclose(np.asarray(out), np.asarray(ref), rtol=5e-2, atol=5e-3)

    assert out.shape == (S, B, num_nodes)
    print("KERNEL_OK")
</pallas_src>

<mosaic_0001>
module attributes {stable_mosaic.version = 11 : i64} {
  func.func @_fused_model_kernel(%arg0: i32, %arg1: memref<16x4xf32, #tpu.memory_space<vmem>>, %arg2: memref<16x32xf32, #tpu.memory_space<vmem>>, %arg3: memref<4x32xf32, #tpu.memory_space<vmem>>, %arg4: memref<1x32xf32, #tpu.memory_space<vmem>>, %arg5: memref<2x4x32x8xf32, #tpu.memory_space<vmem>>, %arg6: memref<2x4x32x8xf32, #tpu.memory_space<vmem>>, %arg7: memref<2x4x32x8xf32, #tpu.memory_space<vmem>>, %arg8: memref<2x4x1x8xf32, #tpu.memory_space<vmem>>, %arg9: memref<2x4x1x8xf32, #tpu.memory_space<vmem>>, %arg10: memref<2x4x1x8xf32, #tpu.memory_space<vmem>>, %arg11: memref<2x4x8x32xf32, #tpu.memory_space<vmem>>, %arg12: memref<2x1x32xf32, #tpu.memory_space<vmem>>, %arg13: memref<2x32x2048xf32, #tpu.memory_space<vmem>>, %arg14: memref<2x1x2048xf32, #tpu.memory_space<vmem>>, %arg15: memref<2x2048x32xf32, #tpu.memory_space<vmem>>, %arg16: memref<2x1x32xf32, #tpu.memory_space<vmem>>, %arg17: memref<2x1x32xf32, #tpu.memory_space<vmem>>, %arg18: memref<2x1x32xf32, #tpu.memory_space<vmem>>, %arg19: memref<2x1x32xf32, #tpu.memory_space<vmem>>, %arg20: memref<2x1x32xf32, #tpu.memory_space<vmem>>, %arg21: memref<32x128xf32, #tpu.memory_space<vmem>>, %arg22: memref<1x128xf32, #tpu.memory_space<vmem>>, %arg23: memref<16x128xf32, #tpu.memory_space<vmem>>, %arg24: memref<16x32xf32, #tpu.memory_space<vmem>>) attributes {dimension_semantics = [#tpu.dimension_semantics<arbitrary>], iteration_bounds = array<i64: 1>, scalar_prefetch = 0 : i64, scratch_operands = 1 : i64, tpu.core_type = #tpu.core_type<tc>, window_params = [{pipeline_mode = #tpu.pipeline_mode<synchronous>, transform_indices = @transform_0, window_bounds = array<i64: 16, 4>}, {pipeline_mode = #tpu.pipeline_mode<synchronous>, transform_indices = @transform_1, window_bounds = array<i64: 16, 32>}, {pipeline_mode = #tpu.pipeline_mode<synchronous>, transform_indices = @transform_2, window_bounds = array<i64: 4, 32>}, {pipeline_mode = #tpu.pipeline_mode<synchronous>, transform_indices = @transform_3, window_bounds = array<i64: 1, 32>}, {pipeline_mode = #tpu.pipeline_mode<synchronous>, transform_indices = @transform_4, window_bounds = array<i64: 2, 4, 32, 8>}, {pipeline_mode = #tpu.pipeline_mode<synchronous>, transform_indices = @transform_5, window_bounds = array<i64: 2, 4, 32, 8>}, {pipeline_mode = #tpu.pipeline_mode<synchronous>, transform_indices = @transform_6, window_bounds = array<i64: 2, 4, 32, 8>}, {pipeline_mode = #tpu.pipeline_mode<synchronous>, transform_indices = @transform_7, window_bounds = array<i64: 2, 4, 1, 8>}, {pipeline_mode = #tpu.pipeline_mode<synchronous>, transform_indices = @transform_8, window_bounds = array<i64: 2, 4, 1, 8>}, {pipeline_mode = #tpu.pipeline_mode<synchronous>, transform_indices = @transform_9, window_bounds = array<i64: 2, 4, 1, 8>}, {pipeline_mode = #tpu.pipeline_mode<synchronous>, transform_indices = @transform_10, window_bounds = array<i64: 2, 4, 8, 32>}, {pipeline_mode = #tpu.pipeline_mode<synchronous>, transform_indices = @transform_11, window_bounds = array<i64: 2, 1, 32>}, {pipeline_mode = #tpu.pipeline_mode<synchronous>, transform_indices = @transform_12, window_bounds = array<i64: 2, 32, 2048>}, {pipeline_mode = #tpu.pipeline_mode<synchronous>, transform_indices = @transform_13, window_bounds = array<i64: 2, 1, 2048>}, {pipeline_mode = #tpu.pipeline_mode<synchronous>, transform_indices = @transform_14, window_bounds = array<i64: 2, 2048, 32>}, {pipeline_mode = #tpu.pipeline_mode<synchronous>, transform_indices = @transform_15, window_bounds = array<i64: 2, 1, 32>}, {pipeline_mode = #tpu.pipeline_mode<synchronous>, transform_indices = @transform_16, window_bounds = array<i64: 2, 1, 32>}, {pipeline_mode = #tpu.pipeline_mode<synchronous>, transform_indices = @transform_17, window_bounds = array<i64: 2, 1, 32>}, {pipeline_mode = #tpu.pipeline_mode<synchronous>, transform_indices = @transform_18, window_bounds = array<i64: 2, 1, 32>}, {pipeline_mode = #tpu.pipeline_mode<synchronous>, transform_indices = @transform_19, window_bounds = array<i64: 2, 1, 32>}, {pipeline_mode = #tpu.pipeline_mode<synchronous>, transform_indices = @transform_20, window_bounds = array<i64: 32, 128>}, {pipeline_mode = #tpu.pipeline_mode<synchronous>, transform_indices = @transform_21, window_bounds = array<i64: 1, 128>}, {pipeline_mode = #tpu.pipeline_mode<synchronous>, transform_indices = @transform_22, window_bounds = array<i64: 16, 128>}]} {
    %c0 = arith.constant 0 : index
    %c0_0 = arith.constant 0 : index
    %0 = vector.load %arg1[%c0, %c0_0] : memref<16x4xf32, #tpu.memory_space<vmem>>, vector<16x4xf32>
    %c0_1 = arith.constant 0 : index
    %c0_2 = arith.constant 0 : index
    %1 = vector.load %arg3[%c0_1, %c0_2] : memref<4x32xf32, #tpu.memory_space<vmem>>, vector<4x32xf32>
    %cst = arith.constant dense<0.000000e+00> : vector<16x32xf32>
    %2 = tpu.matmul %0, %1, %cst {dimension_numbers = #tpu.dot_dimension_numbers<[1], [0], [0], [1], [0, 0, 1, 1], [], []>} : vector<16x4xf32>, vector<4x32xf32>, vector<16x32xf32> -> vector<16x32xf32>
    %c0_3 = arith.constant 0 : index
    %c0_4 = arith.constant 0 : index
    %3 = vector.load %arg4[%c0_3, %c0_4] : memref<1x32xf32, #tpu.memory_space<vmem>>, vector<1x32xf32>
    %4 = vector.broadcast %3 : vector<1x32xf32> to vector<16x32xf32>
    %5 = arith.addf %2, %4 : vector<16x32xf32>
    %c0_5 = arith.constant 0 : index
    %c0_6 = arith.constant 0 : index
    %6 = vector.load %arg2[%c0_5, %c0_6] : memref<16x32xf32, #tpu.memory_space<vmem>>, vector<16x32xf32>
    %7 = arith.addf %5, %6 : vector<16x32xf32>
    %c0_7 = arith.constant 0 : index
    %c0_8 = arith.constant 0 : index
    %c0_9 = arith.constant 0 : index
    %c0_10 = arith.constant 0 : index
    %8 = vector.load %arg5[%c0_7, %c0_8, %c0_9, %c0_10] : memref<2x4x32x8xf32, #tpu.memory_space<vmem>>, vector<1x1x32x8xf32>
    %9 = vector.shape_cast %8 : vector<1x1x32x8xf32> to vector<32x8xf32>
    %cst_11 = arith.constant dense<0.000000e+00> : vector<16x8xf32>
    %10 = tpu.matmul %7, %9, %cst_11 {dimension_numbers = #tpu.dot_dimension_numbers<[1], [0], [0], [1], [0, 0, 1, 1], [], []>} : vector<16x32xf32>, vector<32x8xf32>, vector<16x8xf32> -> vector<16x8xf32>
    %c0_12 = arith.constant 0 : index
    %c0_13 = arith.constant 0 : index
    %c0_14 = arith.constant 0 : index
    %c0_15 = arith.constant 0 : index
    %11 = vector.load %arg8[%c0_12, %c0_13, %c0_14, %c0_15] : memref<2x4x1x8xf32, #tpu.memory_space<vmem>>, vector<1x1x1x8xf32>
    %12 = vector.shape_cast %11 : vector<1x1x1x8xf32> to vector<1x8xf32>
    %13 = vector.broadcast %12 : vector<1x8xf32> to vector<16x8xf32>
    %14 = arith.addf %10, %13 : vector<16x8xf32>
    %c0_16 = arith.constant 0 : index
    %c0_17 = arith.constant 0 : index
    %c0_18 = arith.constant 0 : index
    %c0_19 = arith.constant 0 : index
    %15 = vector.load %arg6[%c0_16, %c0_17, %c0_18, %c0_19] : memref<2x4x32x8xf32, #tpu.memory_space<vmem>>, vector<1x1x32x8xf32>
    %16 = vector.shape_cast %15 : vector<1x1x32x8xf32> to vector<32x8xf32>
    %cst_20 = arith.constant dense<0.000000e+00> : vector<16x8xf32>
    %17 = tpu.matmul %7, %16, %cst_20 {dimension_numbers = #tpu.dot_dimension_numbers<[1], [0], [0], [1], [0, 0, 1, 1], [], []>} : vector<16x32xf32>, vector<32x8xf32>, vector<16x8xf32> -> vector<16x8xf32>
    %c0_21 = arith.constant 0 : index
    %c0_22 = arith.constant 0 : index
    %c0_23 = arith.constant 0 : index
    %c0_24 = arith.constant 0 : index
    %18 = vector.load %arg9[%c0_21, %c0_22, %c0_23, %c0_24] : memref<2x4x1x8xf32, #tpu.memory_space<vmem>>, vector<1x1x1x8xf32>
    %19 = vector.shape_cast %18 : vector<1x1x1x8xf32> to vector<1x8xf32>
    %20 = vector.broadcast %19 : vector<1x8xf32> to vector<16x8xf32>
    %21 = arith.addf %17, %20 : vector<16x8xf32>
    %c0_25 = arith.constant 0 : index
    %c0_26 = arith.constant 0 : index
    %c0_27 = arith.constant 0 : index
    %c0_28 = arith.constant 0 : index
    %22 = vector.load %arg7[%c0_25, %c0_26, %c0_27, %c0_28] : memref<2x4x32x8xf32, #tpu.memory_space<vmem>>, vector<1x1x32x8xf32>
    %23 = vector.shape_cast %22 : vector<1x1x32x8xf32> to vector<32x8xf32>
    %cst_29 = arith.constant dense<0.000000e+00> : vector<16x8xf32>
    %24 = tpu.matmul %7, %23, %cst_29 {dimension_numbers = #tpu.dot_dimension_numbers<[1], [0], [0], [1], [0, 0, 1, 1], [], []>} : vector<16x32xf32>, vector<32x8xf32>, vector<16x8xf32> -> vector<16x8xf32>
    %c0_30 = arith.constant 0 : index
    %c0_31 = arith.constant 0 : index
    %c0_32 = arith.constant 0 : index
    %c0_33 = arith.constant 0 : index
    %25 = vector.load %arg10[%c0_30, %c0_31, %c0_32, %c0_33] : memref<2x4x1x8xf32, #tpu.memory_space<vmem>>, vector<1x1x1x8xf32>
    %26 = vector.shape_cast %25 : vector<1x1x1x8xf32> to vector<1x8xf32>
    %27 = vector.broadcast %26 : vector<1x8xf32> to vector<16x8xf32>
    %28 = arith.addf %24, %27 : vector<16x8xf32>
    %c0_34 = arith.constant 0 : index
    %c1 = arith.constant 1 : index
    %c0_35 = arith.constant 0 : index
    %c0_36 = arith.constant 0 : index
    %29 = vector.load %arg5[%c0_34, %c1, %c0_35, %c0_36] : memref<2x4x32x8xf32, #tpu.memory_space<vmem>>, vector<1x1x32x8xf32>
    %30 = vector.shape_cast %29 : vector<1x1x32x8xf32> to vector<32x8xf32>
    %cst_37 = arith.constant dense<0.000000e+00> : vector<16x8xf32>
    %31 = tpu.matmul %7, %30, %cst_37 {dimension_numbers = #tpu.dot_dimension_numbers<[1], [0], [0], [1], [0, 0, 1, 1], [], []>} : vector<16x32xf32>, vector<32x8xf32>, vector<16x8xf32> -> vector<16x8xf32>
    %c0_38 = arith.constant 0 : index
    %c1_39 = arith.constant 1 : index
    %c0_40 = arith.constant 0 : index
    %c0_41 = arith.constant 0 : index
    %32 = vector.load %arg8[%c0_38, %c1_39, %c0_40, %c0_41] : memref<2x4x1x8xf32, #tpu.memory_space<vmem>>, vector<1x1x1x8xf32>
    %33 = vector.shape_cast %32 : vector<1x1x1x8xf32> to vector<1x8xf32>
    %34 = vector.broadcast %33 : vector<1x8xf32> to vector<16x8xf32>
    %35 = arith.addf %31, %34 : vector<16x8xf32>
    %c0_42 = arith.constant 0 : index
    %c1_43 = arith.constant 1 : index
    %c0_44 = arith.constant 0 : index
    %c0_45 = arith.constant 0 : index
    %36 = vector.load %arg6[%c0_42, %c1_43, %c0_44, %c0_45] : memref<2x4x32x8xf32, #tpu.memory_space<vmem>>, vector<1x1x32x8xf32>
    %37 = vector.shape_cast %36 : vector<1x1x32x8xf32> to vector<32x8xf32>
    %cst_46 = arith.constant dense<0.000000e+00> : vector<16x8xf32>
    %38 = tpu.matmul %7, %37, %cst_46 {dimension_numbers = #tpu.dot_dimension_numbers<[1], [0], [0], [1], [0, 0, 1, 1], [], []>} : vector<16x32xf32>, vector<32x8xf32>, vector<16x8xf32> -> vector<16x8xf32>
    %c0_47 = arith.constant 0 : index
    %c1_48 = arith.constant 1 : index
    %c0_49 = arith.constant 0 : index
    %c0_50 = arith.constant 0 : index
    %39 = vector.load %arg9[%c0_47, %c1_48, %c0_49, %c0_50] : memref<2x4x1x8xf32, #tpu.memory_space<vmem>>, vector<1x1x1x8xf32>
    %40 = vector.shape_cast %39 : vector<1x1x1x8xf32> to vector<1x8xf32>
    %41 = vector.broadcast %40 : vector<1x8xf32> to vector<16x8xf32>
    %42 = arith.addf %38, %41 : vector<16x8xf32>
    %c0_51 = arith.constant 0 : index
    %c1_52 = arith.constant 1 : index
    %c0_53 = arith.constant 0 : index
    %c0_54 = arith.constant 0 : index
    %43 = vector.load %arg7[%c0_51, %c1_52, %c0_53, %c0_54] : memref<2x4x32x8xf32, #tpu.memory_space<vmem>>, vector<1x1x32x8xf32>
    %44 = vector.shape_cast %43 : vector<1x1x32x8xf32> to vector<32x8xf32>
    %cst_55 = arith.constant dense<0.000000e+00> : vector<16x8xf32>
    %45 = tpu.matmul %7, %44, %cst_55 {dimension_numbers = #tpu.dot_dimension_numbers<[1], [0], [0], [1], [0, 0, 1, 1], [], []>} : vector<16x32xf32>, vector<32x8xf32>, vector<16x8xf32> -> vector<16x8xf32>
    %c0_56 = arith.constant 0 : index
    %c1_57 = arith.constant 1 : index
    %c0_58 = arith.constant 0 : index
    %c0_59 = arith.constant 0 : index
    %46 = vector.load %arg10[%c0_56, %c1_57, %c0_58, %c0_59] : memref<2x4x1x8xf32, #tpu.memory_space<vmem>>, vector<1x1x1x8xf32>
    %47 = vector.shape_cast %46 : vector<1x1x1x8xf32> to vector<1x8xf32>
    %48 = vector.broadcast %47 : vector<1x8xf32> to vector<16x8xf32>
    %49 = arith.addf %45, %48 : vector<16x8xf32>
    %c0_60 = arith.constant 0 : index
    %c2 = arith.constant 2 : index
    %c0_61 = arith.constant 0 : index
    %c0_62 = arith.constant 0 : index
    %50 = vector.load %arg5[%c0_60, %c2, %c0_61, %c0_62] : memref<2x4x32x8xf32, #tpu.memory_space<vmem>>, vector<1x1x32x8xf32>
    %51 = vector.shape_cast %50 : vector<1x1x32x8xf32> to vector<32x8xf32>
    %cst_63 = arith.constant dense<0.000000e+00> : vector<16x8xf32>
    %52 = tpu.matmul %7, %51, %cst_63 {dimension_numbers = #tpu.dot_dimension_numbers<[1], [0], [0], [1], [0, 0, 1, 1], [], []>} : vector<16x32xf32>, vector<32x8xf32>, vector<16x8xf32> -> vector<16x8xf32>
    %c0_64 = arith.constant 0 : index
    %c2_65 = arith.constant 2 : index
    %c0_66 = arith.constant 0 : index
    %c0_67 = arith.constant 0 : index
    %53 = vector.load %arg8[%c0_64, %c2_65, %c0_66, %c0_67] : memref<2x4x1x8xf32, #tpu.memory_space<vmem>>, vector<1x1x1x8xf32>
    %54 = vector.shape_cast %53 : vector<1x1x1x8xf32> to vector<1x8xf32>
    %55 = vector.broadcast %54 : vector<1x8xf32> to vector<16x8xf32>
    %56 = arith.addf %52, %55 : vector<16x8xf32>
    %c0_68 = arith.constant 0 : index
    %c2_69 = arith.constant 2 : index
    %c0_70 = arith.constant 0 : index
    %c0_71 = arith.constant 0 : index
    %57 = vector.load %arg6[%c0_68, %c2_69, %c0_70, %c0_71] : memref<2x4x32x8xf32, #tpu.memory_space<vmem>>, vector<1x1x32x8xf32>
    %58 = vector.shape_cast %57 : vector<1x1x32x8xf32> to vector<32x8xf32>
    %cst_72 = arith.constant dense<0.000000e+00> : vector<16x8xf32>
    %59 = tpu.matmul %7, %58, %cst_72 {dimension_numbers = #tpu.dot_dimension_numbers<[1], [0], [0], [1], [0, 0, 1, 1], [], []>} : vector<16x32xf32>, vector<32x8xf32>, vector<16x8xf32> -> vector<16x8xf32>
    %c0_73 = arith.constant 0 : index
    %c2_74 = arith.constant 2 : index
    %c0_75 = arith.constant 0 : index
    %c0_76 = arith.constant 0 : index
    %60 = vector.load %arg9[%c0_73, %c2_74, %c0_75, %c0_76] : memref<2x4x1x8xf32, #tpu.memory_space<vmem>>, vector<1x1x1x8xf32>
    %61 = vector.shape_cast %60 : vector<1x1x1x8xf32> to vector<1x8xf32>
    %62 = vector.broadcast %61 : vector<1x8xf32> to vector<16x8xf32>
    %63 = arith.addf %59, %62 : vector<16x8xf32>
    %c0_77 = arith.constant 0 : index
    %c2_78 = arith.constant 2 : index
    %c0_79 = arith.constant 0 : index
    %c0_80 = arith.constant 0 : index
    %64 = vector.load %arg7[%c0_77, %c2_78, %c0_79, %c0_80] : memref<2x4x32x8xf32, #tpu.memory_space<vmem>>, vector<1x1x32x8xf32>
    %65 = vector.shape_cast %64 : vector<1x1x32x8xf32> to vector<32x8xf32>
    %cst_81 = arith.constant dense<0.000000e+00> : vector<16x8xf32>
    %66 = tpu.matmul %7, %65, %cst_81 {dimension_numbers = #tpu.dot_dimension_numbers<[1], [0], [0], [1], [0, 0, 1, 1], [], []>} : vector<16x32xf32>, vector<32x8xf32>, vector<16x8xf32> -> vector<16x8xf32>
    %c0_82 = arith.constant 0 : index
    %c2_83 = arith.constant 2 : index
    %c0_84 = arith.constant 0 : index
    %c0_85 = arith.constant 0 : index
    %67 = vector.load %arg10[%c0_82, %c2_83, %c0_84, %c0_85] : memref<2x4x1x8xf32, #tpu.memory_space<vmem>>, vector<1x1x1x8xf32>
    %68 = vector.shape_cast %67 : vector<1x1x1x8xf32> to vector<1x8xf32>
    %69 = vector.broadcast %68 : vector<1x8xf32> to vector<16x8xf32>
    %70 = arith.addf %66, %69 : vector<16x8xf32>
    %c0_86 = arith.constant 0 : index
    %c3 = arith.constant 3 : index
    %c0_87 = arith.constant 0 : index
    %c0_88 = arith.constant 0 : index
    %71 = vector.load %arg5[%c0_86, %c3, %c0_87, %c0_88] : memref<2x4x32x8xf32, #tpu.memory_space<vmem>>, vector<1x1x32x8xf32>
    %72 = vector.shape_cast %71 : vector<1x1x32x8xf32> to vector<32x8xf32>
    %cst_89 = arith.constant dense<0.000000e+00> : vector<16x8xf32>
    %73 = tpu.matmul %7, %72, %cst_89 {dimension_numbers = #tpu.dot_dimension_numbers<[1], [0], [0], [1], [0, 0, 1, 1], [], []>} : vector<16x32xf32>, vector<32x8xf32>, vector<16x8xf32> -> vector<16x8xf32>
    %c0_90 = arith.constant 0 : index
    %c3_91 = arith.constant 3 : index
    %c0_92 = arith.constant 0 : index
    %c0_93 = arith.constant 0 : index
    %74 = vector.load %arg8[%c0_90, %c3_91, %c0_92, %c0_93] : memref<2x4x1x8xf32, #tpu.memory_space<vmem>>, vector<1x1x1x8xf32>
    %75 = vector.shape_cast %74 : vector<1x1x1x8xf32> to vector<1x8xf32>
    %76 = vector.broadcast %75 : vector<1x8xf32> to vector<16x8xf32>
    %77 = arith.addf %73, %76 : vector<16x8xf32>
    %c0_94 = arith.constant 0 : index
    %c3_95 = arith.constant 3 : index
    %c0_96 = arith.constant 0 : index
    %c0_97 = arith.constant 0 : index
    %78 = vector.load %arg6[%c0_94, %c3_95, %c0_96, %c0_97] : memref<2x4x32x8xf32, #tpu.memory_space<vmem>>, vector<1x1x32x8xf32>
    %79 = vector.shape_cast %78 : vector<1x1x32x8xf32> to vector<32x8xf32>
    %cst_98 = arith.constant dense<0.000000e+00> : vector<16x8xf32>
    %80 = tpu.matmul %7, %79, %cst_98 {dimension_numbers = #tpu.dot_dimension_numbers<[1], [0], [0], [1], [0, 0, 1, 1], [], []>} : vector<16x32xf32>, vector<32x8xf32>, vector<16x8xf32> -> vector<16x8xf32>
    %c0_99 = arith.constant 0 : index
    %c3_100 = arith.constant 3 : index
    %c0_101 = arith.constant 0 : index
    %c0_102 = arith.constant 0 : index
    %81 = vector.load %arg9[%c0_99, %c3_100, %c0_101, %c0_102] : memref<2x4x1x8xf32, #tpu.memory_space<vmem>>, vector<1x1x1x8xf32>
    %82 = vector.shape_cast %81 : vector<1x1x1x8xf32> to vector<1x8xf32>
    %83 = vector.broadcast %82 : vector<1x8xf32> to vector<16x8xf32>
    %84 = arith.addf %80, %83 : vector<16x8xf32>
    %c0_103 = arith.constant 0 : index
    %c3_104 = arith.constant 3 : index
    %c0_105 = arith.constant 0 : index
    %c0_106 = arith.constant 0 : index
    %85 = vector.load %arg7[%c0_103, %c3_104, %c0_105, %c0_106] : memref<2x4x32x8xf32, #tpu.memory_space<vmem>>, vector<1x1x32x8xf32>
    %86 = vector.shape_cast %85 : vector<1x1x32x8xf32> to vector<32x8xf32>
    %cst_107 = arith.constant dense<0.000000e+00> : vector<16x8xf32>
    %87 = tpu.matmul %7, %86, %cst_107 {dimension_numbers = #tpu.dot_dimension_numbers<[1], [0], [0], [1], [0, 0, 1, 1], [], []>} : vector<16x32xf32>, vector<32x8xf32>, vector<16x8xf32> -> vector<16x8xf32>
    %c0_108 = arith.constant 0 : index
    %c3_109 = arith.constant 3 : index
    %c0_110 = arith.constant 0 : index
    %c0_111 = arith.constant 0 : index
    %88 = vector.load %arg10[%c0_108, %c3_109, %c0_110, %c0_111] : memref<2x4x1x8xf32, #tpu.memory_space<vmem>>, vector<1x1x1x8xf32>
    %89 = vector.shape_cast %88 : vector<1x1x1x8xf32> to vector<1x8xf32>
    %90 = vector.broadcast %89 : vector<1x8xf32> to vector<16x8xf32>
    %91 = arith.addf %87, %90 : vector<16x8xf32>
    %92 = vector.extract_strided_slice %14 {offsets = [0, 0], sizes = [8, 8], strides = [1, 1]} : vector<16x8xf32> to vector<8x8xf32>
    %cst_112 = arith.constant 0.353553385 : f32
    %93 = vector.broadcast %cst_112 : f32 to vector<8x8xf32>
    %94 = arith.mulf %92, %93 : vector<8x8xf32>
    %95 = vector.extract_strided_slice %21 {offsets = [0, 0], sizes = [8, 8], strides = [1, 1]} : vector<16x8xf32> to vector<8x8xf32>
    %96 = vector.extract_strided_slice %28 {offsets = [0, 0], sizes = [8, 8], strides = [1, 1]} : vector<16x8xf32> to vector<8x8xf32>
    %cst_113 = arith.constant dense<0.000000e+00> : vector<8x8xf32>
    %97 = tpu.matmul %94, %95, %cst_113 {dimension_numbers = #tpu.dot_dimension_numbers<[1], [1], [0], [0], [0, 0, 1, 0], [], []>} : vector<8x8xf32>, vector<8x8xf32>, vector<8x8xf32> -> vector<8x8xf32>
    %cst_114 = arith.constant dense<0xFF800000> : vector<8xf32>
    %98 = vector.multi_reduction <maximumf>, %97, %cst_114 [1] : vector<8x8xf32> to vector<8xf32>
    %99 = vector.shape_cast %98 : vector<8xf32> to vector<8x1xf32>
    %100 = vector.broadcast %99 : vector<8x1xf32> to vector<8x8xf32>
    %101 = arith.subf %97, %100 : vector<8x8xf32>
    %102 = math.exp %101 : vector<8x8xf32>
    %cst_115 = arith.constant dense<0.000000e+00> : vector<8xf32>
    %103 = vector.multi_reduction <add>, %102, %cst_115 [1] : vector<8x8xf32> to vector<8xf32>
    %104 = vector.shape_cast %103 : vector<8xf32> to vector<8x1xf32>
    %105 = tpu.reciprocal %104 {approx = true} : vector<8x1xf32> -> vector<8x1xf32>
    %106 = vector.broadcast %105 : vector<8x1xf32> to vector<8x8xf32>
    %107 = arith.mulf %102, %106 : vector<8x8xf32>
    %cst_116 = arith.constant dense<0.000000e+00> : vector<8x8xf32>
    %108 = tpu.matmul %107, %96, %cst_116 {dimension_numbers = #tpu.dot_dimension_numbers<[1], [0], [0], [1], [0, 0, 1, 1], [], []>} : vector<8x8xf32>, vector<8x8xf32>, vector<8x8xf32> -> vector<8x8xf32>
    %c0_117 = arith.constant 0 : index
    %c0_118 = arith.constant 0 : index
    %c0_119 = arith.constant 0 : index
    %c0_120 = arith.constant 0 : index
    %109 = vector.load %arg11[%c0_117, %c0_118, %c0_119, %c0_120] : memref<2x4x8x32xf32, #tpu.memory_space<vmem>>, vector<1x1x8x32xf32>
    %110 = vector.shape_cast %109 : vector<1x1x8x32xf32> to vector<8x32xf32>
    %cst_121 = arith.constant dense<0.000000e+00> : vector<8x32xf32>
    %111 = tpu.matmul %108, %110, %cst_121 {dimension_numbers = #tpu.dot_dimension_numbers<[1], [0], [0], [1], [0, 0, 1, 1], [], []>} : vector<8x8xf32>, vector<8x32xf32>, vector<8x32xf32> -> vector<8x32xf32>
    %112 = vector.extract_strided_slice %35 {offsets = [0, 0], sizes = [8, 8], strides = [1, 1]} : vector<16x8xf32> to vector<8x8xf32>
    %cst_122 = arith.constant 0.353553385 : f32
    %113 = vector.broadcast %cst_122 : f32 to vector<8x8xf32>
    %114 = arith.mulf %112, %113 : vector<8x8xf32>
    %115 = vector.extract_strided_slice %42 {offsets = [0, 0], sizes = [8, 8], strides = [1, 1]} : vector<16x8xf32> to vector<8x8xf32>
    %116 = vector.extract_strided_slice %49 {offsets = [0, 0], sizes = [8, 8], strides = [1, 1]} : vector<16x8xf32> to vector<8x8xf32>
    %cst_123 = arith.constant dense<0.000000e+00> : vector<8x8xf32>
    %117 = tpu.matmul %114, %115, %cst_123 {dimension_numbers = #tpu.dot_dimension_numbers<[1], [1], [0], [0], [0, 0, 1, 0], [], []>} : vector<8x8xf32>, vector<8x8xf32>, vector<8x8xf32> -> vector<8x8xf32>
    %cst_124 = arith.constant dense<0xFF800000> : vector<8xf32>
    %118 = vector.multi_reduction <maximumf>, %117, %cst_124 [1] : vector<8x8xf32> to vector<8xf32>
    %119 = vector.shape_cast %118 : vector<8xf32> to vector<8x1xf32>
    %120 = vector.broadcast %119 : vector<8x1xf32> to vector<8x8xf32>
    %121 = arith.subf %117, %120 : vector<8x8xf32>
    %122 = math.exp %121 : vector<8x8xf32>
    %cst_125 = arith.constant dense<0.000000e+00> : vector<8xf32>
    %123 = vector.multi_reduction <add>, %122, %cst_125 [1] : vector<8x8xf32> to vector<8xf32>
    %124 = vector.shape_cast %123 : vector<8xf32> to vector<8x1xf32>
    %125 = tpu.reciprocal %124 {approx = true} : vector<8x1xf32> -> vector<8x1xf32>
    %126 = vector.broadcast %125 : vector<8x1xf32> to vector<8x8xf32>
    %127 = arith.mulf %122, %126 : vector<8x8xf32>
    %cst_126 = arith.constant dense<0.000000e+00> : vector<8x8xf32>
    %128 = tpu.matmul %127, %116, %cst_126 {dimension_numbers = #tpu.dot_dimension_numbers<[1], [0], [0], [1], [0, 0, 1, 1], [], []>} : vector<8x8xf32>, vector<8x8xf32>, vector<8x8xf32> -> vector<8x8xf32>
    %c0_127 = arith.constant 0 : index
    %c1_128 = arith.constant 1 : index
    %c0_129 = arith.constant 0 : index
    %c0_130 = arith.constant 0 : index
    %129 = vector.load %arg11[%c0_127, %c1_128, %c0_129, %c0_130] : memref<2x4x8x32xf32, #tpu.memory_space<vmem>>, vector<1x1x8x32xf32>
    %130 = vector.shape_cast %129 : vector<1x1x8x32xf32> to vector<8x32xf32>
    %cst_131 = arith.constant dense<0.000000e+00> : vector<8x32xf32>
    %131 = tpu.matmul %128, %130, %cst_131 {dimension_numbers = #tpu.dot_dimension_numbers<[1], [0], [0], [1], [0, 0, 1, 1], [], []>} : vector<8x8xf32>, vector<8x32xf32>, vector<8x32xf32> -> vector<8x32xf32>
    %132 = arith.addf %111, %131 : vector<8x32xf32>
    %133 = vector.extract_strided_slice %56 {offsets = [0, 0], sizes = [8, 8], strides = [1, 1]} : vector<16x8xf32> to vector<8x8xf32>
    %cst_132 = arith.constant 0.353553385 : f32
    %134 = vector.broadcast %cst_132 : f32 to vector<8x8xf32>
    %135 = arith.mulf %133, %134 : vector<8x8xf32>
    %136 = vector.extract_strided_slice %63 {offsets = [0, 0], sizes = [8, 8], strides = [1, 1]} : vector<16x8xf32> to vector<8x8xf32>
    %137 = vector.extract_strided_slice %70 {offsets = [0, 0], sizes = [8, 8], strides = [1, 1]} : vector<16x8xf32> to vector<8x8xf32>
    %cst_133 = arith.constant dense<0.000000e+00> : vector<8x8xf32>
    %138 = tpu.matmul %135, %136, %cst_133 {dimension_numbers = #tpu.dot_dimension_numbers<[1], [1], [0], [0], [0, 0, 1, 0], [], []>} : vector<8x8xf32>, vector<8x8xf32>, vector<8x8xf32> -> vector<8x8xf32>
    %cst_134 = arith.constant dense<0xFF800000> : vector<8xf32>
    %139 = vector.multi_reduction <maximumf>, %138, %cst_134 [1] : vector<8x8xf32> to vector<8xf32>
    %140 = vector.shape_cast %139 : vector<8xf32> to vector<8x1xf32>
    %141 = vector.broadcast %140 : vector<8x1xf32> to vector<8x8xf32>
    %142 = arith.subf %138, %141 : vector<8x8xf32>
    %143 = math.exp %142 : vector<8x8xf32>
    %cst_135 = arith.constant dense<0.000000e+00> : vector<8xf32>
    %144 = vector.multi_reduction <add>, %143, %cst_135 [1] : vector<8x8xf32> to vector<8xf32>
    %145 = vector.shape_cast %144 : vector<8xf32> to vector<8x1xf32>
    %146 = tpu.reciprocal %145 {approx = true} : vector<8x1xf32> -> vector<8x1xf32>
    %147 = vector.broadcast %146 : vector<8x1xf32> to vector<8x8xf32>
    %148 = arith.mulf %143, %147 : vector<8x8xf32>
    %cst_136 = arith.constant dense<0.000000e+00> : vector<8x8xf32>
    %149 = tpu.matmul %148, %137, %cst_136 {dimension_numbers = #tpu.dot_dimension_numbers<[1], [0], [0], [1], [0, 0, 1, 1], [], []>} : vector<8x8xf32>, vector<8x8xf32>, vector<8x8xf32> -> vector<8x8xf32>
    %c0_137 = arith.constant 0 : index
    %c2_138 = arith.constant 2 : index
    %c0_139 = arith.constant 0 : index
    %c0_140 = arith.constant 0 : index
    %150 = vector.load %arg11[%c0_137, %c2_138, %c0_139, %c0_140] : memref<2x4x8x32xf32, #tpu.memory_space<vmem>>, vector<1x1x8x32xf32>
    %151 = vector.shape_cast %150 : vector<1x1x8x32xf32> to vector<8x32xf32>
    %cst_141 = arith.constant dense<0.000000e+00> : vector<8x32xf32>
    %152 = tpu.matmul %149, %151, %cst_141 {dimension_numbers = #tpu.dot_dimension_numbers<[1], [0], [0], [1], [0, 0, 1, 1], [], []>} : vector<8x8xf32>, vector<8x32xf32>, vector<8x32xf32> -> vector<8x32xf32>
    %153 = arith.addf %132, %152 : vector<8x32xf32>
    %154 = vector.extract_strided_slice %77 {offsets = [0, 0], sizes = [8, 8], strides = [1, 1]} : vector<16x8xf32> to vector<8x8xf32>
    %cst_142 = arith.constant 0.353553385 : f32
    %155 = vector.broadcast %cst_142 : f32 to vector<8x8xf32>
    %156 = arith.mulf %154, %155 : vector<8x8xf32>
    %157 = vector.extract_strided_slice %84 {offsets = [0, 0], sizes = [8, 8], strides = [1, 1]} : vector<16x8xf32> to vector<8x8xf32>
    %158 = vector.extract_strided_slice %91 {offsets = [0, 0], sizes = [8, 8], strides = [1, 1]} : vector<16x8xf32> to vector<8x8xf32>
    %cst_143 = arith.constant dense<0.000000e+00> : vector<8x8xf32>
    %159 = tpu.matmul %156, %157, %cst_143 {dimension_numbers = #tpu.dot_dimension_numbers<[1], [1], [0], [0], [0, 0, 1, 0], [], []>} : vector<8x8xf32>, vector<8x8xf32>, vector<8x8xf32> -> vector<8x8xf32>
    %cst_144 = arith.constant dense<0xFF800000> : vector<8xf32>
    %160 = vector.multi_reduction <maximumf>, %159, %cst_144 [1] : vector<8x8xf32> to vector<8xf32>
    %161 = vector.shape_cast %160 : vector<8xf32> to vector<8x1xf32>
    %162 = vector.broadcast %161 : vector<8x1xf32> to vector<8x8xf32>
    %163 = arith.subf %159, %162 : vector<8x8xf32>
    %164 = math.exp %163 : vector<8x8xf32>
    %cst_145 = arith.constant dense<0.000000e+00> : vector<8xf32>
    %165 = vector.multi_reduction <add>, %164, %cst_145 [1] : vector<8x8xf32> to vector<8xf32>
    %166 = vector.shape_cast %165 : vector<8xf32> to vector<8x1xf32>
    %167 = tpu.reciprocal %166 {approx = true} : vector<8x1xf32> -> vector<8x1xf32>
    %168 = vector.broadcast %167 : vector<8x1xf32> to vector<8x8xf32>
    %169 = arith.mulf %164, %168 : vector<8x8xf32>
    %cst_146 = arith.constant dense<0.000000e+00> : vector<8x8xf32>
    %170 = tpu.matmul %169, %158, %cst_146 {dimension_numbers = #tpu.dot_dimension_numbers<[1], [0], [0], [1], [0, 0, 1, 1], [], []>} : vector<8x8xf32>, vector<8x8xf32>, vector<8x8xf32> -> vector<8x8xf32>
    %c0_147 = arith.constant 0 : index
    %c3_148 = arith.constant 3 : index
    %c0_149 = arith.constant 0 : index
    %c0_150 = arith.constant 0 : index
    %171 = vector.load %arg11[%c0_147, %c3_148, %c0_149, %c0_150] : memref<2x4x8x32xf32, #tpu.memory_space<vmem>>, vector<1x1x8x32xf32>
    %172 = vector.shape_cast %171 : vector<1x1x8x32xf32> to vector<8x32xf32>
    %cst_151 = arith.constant dense<0.000000e+00> : vector<8x32xf32>
    %173 = tpu.matmul %170, %172, %cst_151 {dimension_numbers = #tpu.dot_dimension_numbers<[1], [0], [0], [1], [0, 0, 1, 1], [], []>} : vector<8x8xf32>, vector<8x32xf32>, vector<8x32xf32> -> vector<8x32xf32>
    %174 = arith.addf %153, %173 : vector<8x32xf32>
    %c0_152 = arith.constant 0 : index
    %c0_153 = arith.constant 0 : index
    %c0_154 = arith.constant 0 : index
    %175 = vector.load %arg12[%c0_152, %c0_153, %c0_154] : memref<2x1x32xf32, #tpu.memory_space<vmem>>, vector<1x1x32xf32>
    %176 = vector.shape_cast %175 : vector<1x1x32xf32> to vector<1x32xf32>
    %177 = vector.broadcast %176 : vector<1x32xf32> to vector<8x32xf32>
    %178 = arith.addf %174, %177 : vector<8x32xf32>
    %c0_155 = arith.constant 0 : index
    %c0_156 = arith.constant 0 : index
    %179 = vector.load %arg24[%c0_155, %c0_156] : memref<16x32xf32, #tpu.memory_space<vmem>>, vector<8x32xf32>
    tpu.vector_store %arg24[%c0_155, %c0_156], %178 {strides = array<i32>} : memref<16x32xf32, #tpu.memory_space<vmem>>, vector<8x32xf32>,
    %180 = vector.extract_strided_slice %14 {offsets = [8, 0], sizes = [8, 8], strides = [1, 1]} : vector<16x8xf32> to vector<8x8xf32>
    %cst_157 = arith.constant 0.353553385 : f32
    %181 = vector.broadcast %cst_157 : f32 to vector<8x8xf32>
    %182 = arith.mulf %180, %181 : vector<8x8xf32>
    %183 = vector.extract_strided_slice %21 {offsets = [8, 0], sizes = [8, 8], strides = [1, 1]} : vector<16x8xf32> to vector<8x8xf32>
    %184 = vector.extract_strided_slice %28 {offsets = [8, 0], sizes = [8, 8], strides = [1, 1]} : vector<16x8xf32> to vector<8x8xf32>
    %cst_158 = arith.constant dense<0.000000e+00> : vector<8x8xf32>
    %185 = tpu.matmul %182, %183, %cst_158 {dimension_numbers = #tpu.dot_dimension_numbers<[1], [1], [0], [0], [0, 0, 1, 0], [], []>} : vector<8x8xf32>, vector<8x8xf32>, vector<8x8xf32> -> vector<8x8xf32>
    %cst_159 = arith.constant dense<0xFF800000> : vector<8xf32>
    %186 = vector.multi_reduction <maximumf>, %185, %cst_159 [1] : vector<8x8xf32> to vector<8xf32>
    %187 = vector.shape_cast %186 : vector<8xf32> to vector<8x1xf32>
    %188 = vector.broadcast %187 : vector<8x1xf32> to vector<8x8xf32>
    %189 = arith.subf %185, %188 : vector<8x8xf32>
    %190 = math.exp %189 : vector<8x8xf32>
    %cst_160 = arith.constant dense<0.000000e+00> : vector<8xf32>
    %191 = vector.multi_reduction <add>, %190, %cst_160 [1] : vector<8x8xf32> to vector<8xf32>
    %192 = vector.shape_cast %191 : vector<8xf32> to vector<8x1xf32>
    %193 = tpu.reciprocal %192 {approx = true} : vector<8x1xf32> -> vector<8x1xf32>
    %194 = vector.broadcast %193 : vector<8x1xf32> to vector<8x8xf32>
    %195 = arith.mulf %190, %194 : vector<8x8xf32>
    %cst_161 = arith.constant dense<0.000000e+00> : vector<8x8xf32>
    %196 = tpu.matmul %195, %184, %cst_161 {dimension_numbers = #tpu.dot_dimension_numbers<[1], [0], [0], [1], [0, 0, 1, 1], [], []>} : vector<8x8xf32>, vector<8x8xf32>, vector<8x8xf32> -> vector<8x8xf32>
    %c0_162 = arith.constant 0 : index
    %c0_163 = arith.constant 0 : index
    %c0_164 = arith.constant 0 : index
    %c0_165 = arith.constant 0 : index
    %197 = vector.load %arg11[%c0_162, %c0_163, %c0_164, %c0_165] : memref<2x4x8x32xf32, #tpu.memory_space<vmem>>, vector<1x1x8x32xf32>
    %198 = vector.shape_cast %197 : vector<1x1x8x32xf32> to vector<8x32xf32>
    %cst_166 = arith.constant dense<0.000000e+00> : vector<8x32xf32>
    %199 = tpu.matmul %196, %198, %cst_166 {dimension_numbers = #tpu.dot_dimension_numbers<[1], [0], [0], [1], [0, 0, 1, 1], [], []>} : vector<8x8xf32>, vector<8x32xf32>, vector<8x32xf32> -> vector<8x32xf32>
    %200 = vector.extract_strided_slice %35 {offsets = [8, 0], sizes = [8, 8], strides = [1, 1]} : vector<16x8xf32> to vector<8x8xf32>
    %cst_167 = arith.constant 0.353553385 : f32
    %201 = vector.broadcast %cst_167 : f32 to vector<8x8xf32>
    %202 = arith.mulf %200, %201 : vector<8x8xf32>
    %203 = vector.extract_strided_slice %42 {offsets = [8, 0], sizes = [8, 8], strides = [1, 1]} : vector<16x8xf32> to vector<8x8xf32>
    %204 = vector.extract_strided_slice %49 {offsets = [8, 0], sizes = [8, 8], strides = [1, 1]} : vector<16x8xf32> to vector<8x8xf32>
    %cst_168 = arith.constant dense<0.000000e+00> : vector<8x8xf32>
    %205 = tpu.matmul %202, %203, %cst_168 {dimension_numbers = #tpu.dot_dimension_numbers<[1], [1], [0], [0], [0, 0, 1, 0], [], []>} : vector<8x8xf32>, vector<8x8xf32>, vector<8x8xf32> -> vector<8x8xf32>
    %cst_169 = arith.constant dense<0xFF800000> : vector<8xf32>
    %206 = vector.multi_reduction <maximumf>, %205, %cst_169 [1] : vector<8x8xf32> to vector<8xf32>
    %207 = vector.shape_cast %206 : vector<8xf32> to vector<8x1xf32>
    %208 = vector.broadcast %207 : vector<8x1xf32> to vector<8x8xf32>
    %209 = arith.subf %205, %208 : vector<8x8xf32>
    %210 = math.exp %209 : vector<8x8xf32>
    %cst_170 = arith.constant dense<0.000000e+00> : vector<8xf32>
    %211 = vector.multi_reduction <add>, %210, %cst_170 [1] : vector<8x8xf32> to vector<8xf32>
    %212 = vector.shape_cast %211 : vector<8xf32> to vector<8x1xf32>
    %213 = tpu.reciprocal %212 {approx = true} : vector<8x1xf32> -> vector<8x1xf32>
    %214 = vector.broadcast %213 : vector<8x1xf32> to vector<8x8xf32>
    %215 = arith.mulf %210, %214 : vector<8x8xf32>
    %cst_171 = arith.constant dense<0.000000e+00> : vector<8x8xf32>
    %216 = tpu.matmul %215, %204, %cst_171 {dimension_numbers = #tpu.dot_dimension_numbers<[1], [0], [0], [1], [0, 0, 1, 1], [], []>} : vector<8x8xf32>, vector<8x8xf32>, vector<8x8xf32> -> vector<8x8xf32>
    %c0_172 = arith.constant 0 : index
    %c1_173 = arith.constant 1 : index
    %c0_174 = arith.constant 0 : index
    %c0_175 = arith.constant 0 : index
    %217 = vector.load %arg11[%c0_172, %c1_173, %c0_174, %c0_175] : memref<2x4x8x32xf32, #tpu.memory_space<vmem>>, vector<1x1x8x32xf32>
    %218 = vector.shape_cast %217 : vector<1x1x8x32xf32> to vector<8x32xf32>
    %cst_176 = arith.constant dense<0.000000e+00> : vector<8x32xf32>
    %219 = tpu.matmul %216, %218, %cst_176 {dimension_numbers = #tpu.dot_dimension_numbers<[1], [0], [0], [1], [0, 0, 1, 1], [], []>} : vector<8x8xf32>, vector<8x32xf32>, vector<8x32xf32> -> vector<8x32xf32>
    %220 = arith.addf %199, %219 : vector<8x32xf32>
    %221 = vector.extract_strided_slice %56 {offsets = [8, 0], sizes = [8, 8], strides = [1, 1]} : vector<16x8xf32> to vector<8x8xf32>
    %cst_177 = arith.constant 0.353553385 : f32
    %222 = vector.broadcast %cst_177 : f32 to vector<8x8xf32>
    %223 = arith.mulf %221, %222 : vector<8x8xf32>
    %224 = vector.extract_strided_slice %63 {offsets = [8, 0], sizes = [8, 8], strides = [1, 1]} : vector<16x8xf32> to vector<8x8xf32>
    %225 = vector.extract_strided_slice %70 {offsets = [8, 0], sizes = [8, 8], strides = [1, 1]} : vector<16x8xf32> to vector<8x8xf32>
    %cst_178 = arith.constant dense<0.000000e+00> : vector<8x8xf32>
    %226 = tpu.matmul %223, %224, %cst_178 {dimension_numbers = #tpu.dot_dimension_numbers<[1], [1], [0], [0], [0, 0, 1, 0], [], []>} : vector<8x8xf32>, vector<8x8xf32>, vector<8x8xf32> -> vector<8x8xf32>
    %cst_179 = arith.constant dense<0xFF800000> : vector<8xf32>
    %227 = vector.multi_reduction <maximumf>, %226, %cst_179 [1] : vector<8x8xf32> to vector<8xf32>
    %228 = vector.shape_cast %227 : vector<8xf32> to vector<8x1xf32>
    %229 = vector.broadcast %228 : vector<8x1xf32> to vector<8x8xf32>
    %230 = arith.subf %226, %229 : vector<8x8xf32>
    %231 = math.exp %230 : vector<8x8xf32>
    %cst_180 = arith.constant dense<0.000000e+00> : vector<8xf32>
    %232 = vector.multi_reduction <add>, %231, %cst_180 [1] : vector<8x8xf32> to vector<8xf32>
    %233 = vector.shape_cast %232 : vector<8xf32> to vector<8x1xf32>
    %234 = tpu.reciprocal %233 {approx = true} : vector<8x1xf32> -> vector<8x1xf32>
    %235 = vector.broadcast %234 : vector<8x1xf32> to vector<8x8xf32>
    %236 = arith.mulf %231, %235 : vector<8x8xf32>
    %cst_181 = arith.constant dense<0.000000e+00> : vector<8x8xf32>
    %237 = tpu.matmul %236, %225, %cst_181 {dimension_numbers = #tpu.dot_dimension_numbers<[1], [0], [0], [1], [0, 0, 1, 1], [], []>} : vector<8x8xf32>, vector<8x8xf32>, vector<8x8xf32> -> vector<8x8xf32>
    %c0_182 = arith.constant 0 : index
    %c2_183 = arith.constant 2 : index
    %c0_184 = arith.constant 0 : index
    %c0_185 = arith.constant 0 : index
    %238 = vector.load %arg11[%c0_182, %c2_183, %c0_184, %c0_185] : memref<2x4x8x32xf32, #tpu.memory_space<vmem>>, vector<1x1x8x32xf32>
    %239 = vector.shape_cast %238 : vector<1x1x8x32xf32> to vector<8x32xf32>
    %cst_186 = arith.constant dense<0.000000e+00> : vector<8x32xf32>
    %240 = tpu.matmul %237, %239, %cst_186 {dimension_numbers = #tpu.dot_dimension_numbers<[1], [0], [0], [1], [0, 0, 1, 1], [], []>} : vector<8x8xf32>, vector<8x32xf32>, vector<8x32xf32> -> vector<8x32xf32>
    %241 = arith.addf %220, %240 : vector<8x32xf32>
    %242 = vector.extract_strided_slice %77 {offsets = [8, 0], sizes = [8, 8], strides = [1, 1]} : vector<16x8xf32> to vector<8x8xf32>
    %cst_187 = arith.constant 0.353553385 : f32
    %243 = vector.broadcast %cst_187 : f32 to vector<8x8xf32>
    %244 = arith.mulf %242, %243 : vector<8x8xf32>
    %245 = vector.extract_strided_slice %84 {offsets = [8, 0], sizes = [8, 8], strides = [1, 1]} : vector<16x8xf32> to vector<8x8xf32>
    %246 = vector.extract_strided_slice %91 {offsets = [8, 0], sizes = [8, 8], strides = [1, 1]} : vector<16x8xf32> to vector<8x8xf32>
    %cst_188 = arith.constant dense<0.000000e+00> : vector<8x8xf32>
    %247 = tpu.matmul %244, %245, %cst_188 {dimension_numbers = #tpu.dot_dimension_numbers<[1], [1], [0], [0], [0, 0, 1, 0], [], []>} : vector<8x8xf32>, vector<8x8xf32>, vector<8x8xf32> -> vector<8x8xf32>
    %cst_189 = arith.constant dense<0xFF800000> : vector<8xf32>
    %248 = vector.multi_reduction <maximumf>, %247, %cst_189 [1] : vector<8x8xf32> to vector<8xf32>
    %249 = vector.shape_cast %248 : vector<8xf32> to vector<8x1xf32>
    %250 = vector.broadcast %249 : vector<8x1xf32> to vector<8x8xf32>
    %251 = arith.subf %247, %250 : vector<8x8xf32>
    %252 = math.exp %251 : vector<8x8xf32>
    %cst_190 = arith.constant dense<0.000000e+00> : vector<8xf32>
    %253 = vector.multi_reduction <add>, %252, %cst_190 [1] : vector<8x8xf32> to vector<8xf32>
    %254 = vector.shape_cast %253 : vector<8xf32> to vector<8x1xf32>
    %255 = tpu.reciprocal %254 {approx = true} : vector<8x1xf32> -> vector<8x1xf32>
    %256 = vector.broadcast %255 : vector<8x1xf32> to vector<8x8xf32>
    %257 = arith.mulf %252, %256 : vector<8x8xf32>
    %cst_191 = arith.constant dense<0.000000e+00> : vector<8x8xf32>
    %258 = tpu.matmul %257, %246, %cst_191 {dimension_numbers = #tpu.dot_dimension_numbers<[1], [0], [0], [1], [0, 0, 1, 1], [], []>} : vector<8x8xf32>, vector<8x8xf32>, vector<8x8xf32> -> vector<8x8xf32>
    %c0_192 = arith.constant 0 : index
    %c3_193 = arith.constant 3 : index
    %c0_194 = arith.constant 0 : index
    %c0_195 = arith.constant 0 : index
    %259 = vector.load %arg11[%c0_192, %c3_193, %c0_194, %c0_195] : memref<2x4x8x32xf32, #tpu.memory_space<vmem>>, vector<1x1x8x32xf32>
    %260 = vector.shape_cast %259 : vector<1x1x8x32xf32> to vector<8x32xf32>
    %cst_196 = arith.constant dense<0.000000e+00> : vector<8x32xf32>
    %261 = tpu.matmul %258, %260, %cst_196 {dimension_numbers = #tpu.dot_dimension_numbers<[1], [0], [0], [1], [0, 0, 1, 1], [], []>} : vector<8x8xf32>, vector<8x32xf32>, vector<8x32xf32> -> vector<8x32xf32>
    %262 = arith.addf %241, %261 : vector<8x32xf32>
    %c0_197 = arith.constant 0 : index
    %c0_198 = arith.constant 0 : index
    %c0_199 = arith.constant 0 : index
    %263 = vector.load %arg12[%c0_197, %c0_198, %c0_199] : memref<2x1x32xf32, #tpu.memory_space<vmem>>, vector<1x1x32xf32>
    %264 = vector.shape_cast %263 : vector<1x1x32xf32> to vector<1x32xf32>
    %265 = vector.broadcast %264 : vector<1x32xf32> to vector<8x32xf32>
    %266 = arith.addf %262, %265 : vector<8x32xf32>
    %c8 = arith.constant 8 : index
    %c0_200 = arith.constant 0 : index
    %267 = vector.load %arg24[%c8, %c0_200] : memref<16x32xf32, #tpu.memory_space<vmem>>, vector<8x32xf32>
    tpu.vector_store %arg24[%c8, %c0_200], %266 {strides = array<i32>} : memref<16x32xf32, #tpu.memory_space<vmem>>, vector<8x32xf32>,
    %c0_201 = arith.constant 0 : index
    %c0_202 = arith.constant 0 : index
    %268 = vector.load %arg24[%c0_201, %c0_202] : memref<16x32xf32, #tpu.memory_space<vmem>>, vector<16x32xf32>
    %269 = arith.addf %7, %268 : vector<16x32xf32>
    %c0_203 = arith.constant 0 : index
    %c0_204 = arith.constant 0 : index
    %c0_205 = arith.constant 0 : index
    %270 = vector.load %arg17[%c0_203, %c0_204, %c0_205] : memref<2x1x32xf32, #tpu.memory_space<vmem>>, vector<1x1x32xf32>
    %271 = vector.shape_cast %270 : vector<1x1x32xf32> to vector<1x32xf32>
    %c0_206 = arith.constant 0 : index
    %c0_207 = arith.constant 0 : index
    %c0_208 = arith.constant 0 : index
    %272 = vector.load %arg18[%c0_206, %c0_207, %c0_208] : memref<2x1x32xf32, #tpu.memory_space<vmem>>, vector<1x1x32xf32>
    %273 = vector.shape_cast %272 : vector<1x1x32xf32> to vector<1x32xf32>
    %cst_209 = arith.constant dense<0.000000e+00> : vector<16xf32>
    %274 = vector.multi_reduction <add>, %269, %cst_209 [1] : vector<16x32xf32> to vector<16xf32>
    %275 = vector.shape_cast %274 : vector<16xf32> to vector<16x1xf32>
    %cst_210 = arith.constant 3.200000e+01 : f32
    %276 = vector.broadcast %cst_210 : f32 to vector<16x1xf32>
    %277 = arith.divf %275, %276 : vector<16x1xf32>
    %278 = vector.broadcast %277 : vector<16x1xf32> to vector<16x32xf32>
    %279 = arith.subf %269, %278 : vector<16x32xf32>
    %280 = arith.mulf %279, %279 : vector<16x32xf32>
    %cst_211 = arith.constant dense<0.000000e+00> : vector<16xf32>
    %281 = vector.multi_reduction <add>, %280, %cst_211 [1] : vector<16x32xf32> to vector<16xf32>
    %282 = vector.shape_cast %281 : vector<16xf32> to vector<16x1xf32>
    %cst_212 = arith.constant 3.200000e+01 : f32
    %283 = vector.broadcast %cst_212 : f32 to vector<16x1xf32>
    %284 = arith.divf %282, %283 : vector<16x1xf32>
    %285 = vector.broadcast %277 : vector<16x1xf32> to vector<16x32xf32>
    %286 = arith.subf %269, %285 : vector<16x32xf32>
    %cst_213 = arith.constant 9.99999974E-6 : f32
    %287 = vector.broadcast %cst_213 : f32 to vector<16x1xf32>
    %288 = arith.addf %284, %287 : vector<16x1xf32>
    %289 = math.rsqrt %288 : vector<16x1xf32>
    %290 = vector.broadcast %289 : vector<16x1xf32> to vector<16x32xf32>
    %291 = arith.mulf %286, %290 : vector<16x32xf32>
    %292 = vector.broadcast %271 : vector<1x32xf32> to vector<16x32xf32>
    %293 = arith.mulf %291, %292 : vector<16x32xf32>
    %294 = vector.broadcast %273 : vector<1x32xf32> to vector<16x32xf32>
    %295 = arith.addf %293, %294 : vector<16x32xf32>
    %c0_214 = arith.constant 0 : index
    %c0_215 = arith.constant 0 : index
    %c0_216 = arith.constant 0 : index
    %296 = vector.load %arg13[%c0_214, %c0_215, %c0_216] : memref<2x32x2048xf32, #tpu.memory_space<vmem>>, vector<1x32x2048xf32>
    %297 = vector.shape_cast %296 : vector<1x32x2048xf32> to vector<32x2048xf32>
    %cst_217 = arith.constant dense<0.000000e+00> : vector<16x2048xf32>
    %298 = tpu.matmul %295, %297, %cst_217 {dimension_numbers = #tpu.dot_dimension_numbers<[1], [0], [0], [1], [0, 0, 1, 1], [], []>} : vector<16x32xf32>, vector<32x2048xf32>, vector<16x2048xf32> -> vector<16x2048xf32>
    %c0_218 = arith.constant 0 : index
    %c0_219 = arith.constant 0 : index
    %c0_220 = arith.constant 0 : index
    %299 = vector.load %arg14[%c0_218, %c0_219, %c0_220] : memref<2x1x2048xf32, #tpu.memory_space<vmem>>, vector<1x1x2048xf32>
    %300 = vector.shape_cast %299 : vector<1x1x2048xf32> to vector<1x2048xf32>
    %301 = vector.broadcast %300 : vector<1x2048xf32> to vector<16x2048xf32>
    %302 = arith.addf %298, %301 : vector<16x2048xf32>
    %cst_221 = arith.constant 0.000000e+00 : f32
    %303 = vector.broadcast %cst_221 : f32 to vector<16x2048xf32>
    %304 = arith.maximumf %302, %303 : vector<16x2048xf32>
    %c0_222 = arith.constant 0 : index
    %c0_223 = arith.constant 0 : index
    %c0_224 = arith.constant 0 : index
    %305 = vector.load %arg15[%c0_222, %c0_223, %c0_224] : memref<2x2048x32xf32, #tpu.memory_space<vmem>>, vector<1x2048x32xf32>
    %306 = vector.shape_cast %305 : vector<1x2048x32xf32> to vector<2048x32xf32>
    %cst_225 = arith.constant dense<0.000000e+00> : vector<16x32xf32>
    %307 = tpu.matmul %304, %306, %cst_225 {dimension_numbers = #tpu.dot_dimension_numbers<[1], [0], [0], [1], [0, 0, 1, 1], [], []>} : vector<16x2048xf32>, vector<2048x32xf32>, vector<16x32xf32> -> vector<16x32xf32>
    %c0_226 = arith.constant 0 : index
    %c0_227 = arith.constant 0 : index
    %c0_228 = arith.constant 0 : index
    %308 = vector.load %arg16[%c0_226, %c0_227, %c0_228] : memref<2x1x32xf32, #tpu.memory_space<vmem>>, vector<1x1x32xf32>
    %309 = vector.shape_cast %308 : vector<1x1x32xf32> to vector<1x32xf32>
    %310 = vector.broadcast %309 : vector<1x32xf32> to vector<16x32xf32>
    %311 = arith.addf %307, %310 : vector<16x32xf32>
    %312 = arith.addf %295, %311 : vector<16x32xf32>
    %c0_229 = arith.constant 0 : index
    %c0_230 = arith.constant 0 : index
    %c0_231 = arith.constant 0 : index
    %313 = vector.load %arg19[%c0_229, %c0_230, %c0_231] : memref<2x1x32xf32, #tpu.memory_space<vmem>>, vector<1x1x32xf32>
    %314 = vector.shape_cast %313 : vector<1x1x32xf32> to vector<1x32xf32>
    %c0_232 = arith.constant 0 : index
    %c0_233 = arith.constant 0 : index
    %c0_234 = arith.constant 0 : index
    %315 = vector.load %arg20[%c0_232, %c0_233, %c0_234] : memref<2x1x32xf32, #tpu.memory_space<vmem>>, vector<1x1x32xf32>
    %316 = vector.shape_cast %315 : vector<1x1x32xf32> to vector<1x32xf32>
    %cst_235 = arith.constant dense<0.000000e+00> : vector<16xf32>
    %317 = vector.multi_reduction <add>, %312, %cst_235 [1] : vector<16x32xf32> to vector<16xf32>
    %318 = vector.shape_cast %317 : vector<16xf32> to vector<16x1xf32>
    %cst_236 = arith.constant 3.200000e+01 : f32
    %319 = vector.broadcast %cst_236 : f32 to vector<16x1xf32>
    %320 = arith.divf %318, %319 : vector<16x1xf32>
    %321 = vector.broadcast %320 : vector<16x1xf32> to vector<16x32xf32>
    %322 = arith.subf %312, %321 : vector<16x32xf32>
    %323 = arith.mulf %322, %322 : vector<16x32xf32>
    %cst_237 = arith.constant dense<0.000000e+00> : vector<16xf32>
    %324 = vector.multi_reduction <add>, %323, %cst_237 [1] : vector<16x32xf32> to vector<16xf32>
    %325 = vector.shape_cast %324 : vector<16xf32> to vector<16x1xf32>
    %cst_238 = arith.constant 3.200000e+01 : f32
    %326 = vector.broadcast %cst_238 : f32 to vector<16x1xf32>
    %327 = arith.divf %325, %326 : vector<16x1xf32>
    %328 = vector.broadcast %320 : vector<16x1xf32> to vector<16x32xf32>
    %329 = arith.subf %312, %328 : vector<16x32xf32>
    %cst_239 = arith.constant 9.99999974E-6 : f32
    %330 = vector.broadcast %cst_239 : f32 to vector<16x1xf32>
    %331 = arith.addf %327, %330 : vector<16x1xf32>
    %332 = math.rsqrt %331 : vector<16x1xf32>
    %333 = vector.broadcast %332 : vector<16x1xf32> to vector<16x32xf32>
    %334 = arith.mulf %329, %333 : vector<16x32xf32>
    %335 = vector.broadcast %314 : vector<1x32xf32> to vector<16x32xf32>
    %336 = arith.mulf %334, %335 : vector<16x32xf32>
    %337 = vector.broadcast %316 : vector<1x32xf32> to vector<16x32xf32>
    %338 = arith.addf %336, %337 : vector<16x32xf32>
    %c1_240 = arith.constant 1 : index
    %c0_241 = arith.constant 0 : index
    %c0_242 = arith.constant 0 : index
    %c0_243 = arith.constant 0 : index
    %339 = vector.load %arg5[%c1_240, %c0_241, %c0_242, %c0_243] : memref<2x4x32x8xf32, #tpu.memory_space<vmem>>, vector<1x1x32x8xf32>
    %340 = vector.shape_cast %339 : vector<1x1x32x8xf32> to vector<32x8xf32>
    %cst_244 = arith.constant dense<0.000000e+00> : vector<16x8xf32>
    %341 = tpu.matmul %338, %340, %cst_244 {dimension_numbers = #tpu.dot_dimension_numbers<[1], [0], [0], [1], [0, 0, 1, 1], [], []>} : vector<16x32xf32>, vector<32x8xf32>, vector<16x8xf32> -> vector<16x8xf32>
    %c1_245 = arith.constant 1 : index
    %c0_246 = arith.constant 0 : index
    %c0_247 = arith.constant 0 : index
    %c0_248 = arith.constant 0 : index
    %342 = vector.load %arg8[%c1_245, %c0_246, %c0_247, %c0_248] : memref<2x4x1x8xf32, #tpu.memory_space<vmem>>, vector<1x1x1x8xf32>
    %343 = vector.shape_cast %342 : vector<1x1x1x8xf32> to vector<1x8xf32>
    %344 = vector.broadcast %343 : vector<1x8xf32> to vector<16x8xf32>
    %345 = arith.addf %341, %344 : vector<16x8xf32>
    %c1_249 = arith.constant 1 : index
    %c0_250 = arith.constant 0 : index
    %c0_251 = arith.constant 0 : index
    %c0_252 = arith.constant 0 : index
    %346 = vector.load %arg6[%c1_249, %c0_250, %c0_251, %c0_252] : memref<2x4x32x8xf32, #tpu.memory_space<vmem>>, vector<1x1x32x8xf32>
    %347 = vector.shape_cast %346 : vector<1x1x32x8xf32> to vector<32x8xf32>
    %cst_253 = arith.constant dense<0.000000e+00> : vector<16x8xf32>
    %348 = tpu.matmul %338, %347, %cst_253 {dimension_numbers = #tpu.dot_dimension_numbers<[1], [0], [0], [1], [0, 0, 1, 1], [], []>} : vector<16x32xf32>, vector<32x8xf32>, vector<16x8xf32> -> vector<16x8xf32>
    %c1_254 = arith.constant 1 : index
    %c0_255 = arith.constant 0 : index
    %c0_256 = arith.constant 0 : index
    %c0_257 = arith.constant 0 : index
    %349 = vector.load %arg9[%c1_254, %c0_255, %c0_256, %c0_257] : memref<2x4x1x8xf32, #tpu.memory_space<vmem>>, vector<1x1x1x8xf32>
    %350 = vector.shape_cast %349 : vector<1x1x1x8xf32> to vector<1x8xf32>
    %351 = vector.broadcast %350 : vector<1x8xf32> to vector<16x8xf32>
    %352 = arith.addf %348, %351 : vector<16x8xf32>
    %c1_258 = arith.constant 1 : index
    %c0_259 = arith.constant 0 : index
    %c0_260 = arith.constant 0 : index
    %c0_261 = arith.constant 0 : index
    %353 = vector.load %arg7[%c1_258, %c0_259, %c0_260, %c0_261] : memref<2x4x32x8xf32, #tpu.memory_space<vmem>>, vector<1x1x32x8xf32>
    %354 = vector.shape_cast %353 : vector<1x1x32x8xf32> to vector<32x8xf32>
    %cst_262 = arith.constant dense<0.000000e+00> : vector<16x8xf32>
    %355 = tpu.matmul %338, %354, %cst_262 {dimension_numbers = #tpu.dot_dimension_numbers<[1], [0], [0], [1], [0, 0, 1, 1], [], []>} : vector<16x32xf32>, vector<32x8xf32>, vector<16x8xf32> -> vector<16x8xf32>
    %c1_263 = arith.constant 1 : index
    %c0_264 = arith.constant 0 : index
    %c0_265 = arith.constant 0 : index
    %c0_266 = arith.constant 0 : index
    %356 = vector.load %arg10[%c1_263, %c0_264, %c0_265, %c0_266] : memref<2x4x1x8xf32, #tpu.memory_space<vmem>>, vector<1x1x1x8xf32>
    %357 = vector.shape_cast %356 : vector<1x1x1x8xf32> to vector<1x8xf32>
    %358 = vector.broadcast %357 : vector<1x8xf32> to vector<16x8xf32>
    %359 = arith.addf %355, %358 : vector<16x8xf32>
    %c1_267 = arith.constant 1 : index
    %c1_268 = arith.constant 1 : index
    %c0_269 = arith.constant 0 : index
    %c0_270 = arith.constant 0 : index
    %360 = vector.load %arg5[%c1_267, %c1_268, %c0_269, %c0_270] : memref<2x4x32x8xf32, #tpu.memory_space<vmem>>, vector<1x1x32x8xf32>
    %361 = vector.shape_cast %360 : vector<1x1x32x8xf32> to vector<32x8xf32>
    %cst_271 = arith.constant dense<0.000000e+00> : vector<16x8xf32>
    %362 = tpu.matmul %338, %361, %cst_271 {dimension_numbers = #tpu.dot_dimension_numbers<[1], [0], [0], [1], [0, 0, 1, 1], [], []>} : vector<16x32xf32>, vector<32x8xf32>, vector<16x8xf32> -> vector<16x8xf32>
    %c1_272 = arith.constant 1 : index
    %c1_273 = arith.constant 1 : index
    %c0_274 = arith.constant 0 : index
    %c0_275 = arith.constant 0 : index
    %363 = vector.load %arg8[%c1_272, %c1_273, %c0_274, %c0_275] : memref<2x4x1x8xf32, #tpu.memory_space<vmem>>, vector<1x1x1x8xf32>
    %364 = vector.shape_cast %363 : vector<1x1x1x8xf32> to vector<1x8xf32>
    %365 = vector.broadcast %364 : vector<1x8xf32> to vector<16x8xf32>
    %366 = arith.addf %362, %365 : vector<16x8xf32>
    %c1_276 = arith.constant 1 : index
    %c1_277 = arith.constant 1 : index
    %c0_278 = arith.constant 0 : index
    %c0_279 = arith.constant 0 : index
    %367 = vector.load %arg6[%c1_276, %c1_277, %c0_278, %c0_279] : memref<2x4x32x8xf32, #tpu.memory_space<vmem>>, vector<1x1x32x8xf32>
    %368 = vector.shape_cast %367 : vector<1x1x32x8xf32> to vector<32x8xf32>
    %cst_280 = arith.constant dense<0.000000e+00> : vector<16x8xf32>
    %369 = tpu.matmul %338, %368, %cst_280 {dimension_numbers = #tpu.dot_dimension_numbers<[1], [0], [0], [1], [0, 0, 1, 1], [], []>} : vector<16x32xf32>, vector<32x8xf32>, vector<16x8xf32> -> vector<16x8xf32>
    %c1_281 = arith.constant 1 : index
    %c1_282 = arith.constant 1 : index
    %c0_283 = arith.constant 0 : index
    %c0_284 = arith.constant 0 : index
    %370 = vector.load %arg9[%c1_281, %c1_282, %c0_283, %c0_284] : memref<2x4x1x8xf32, #tpu.memory_space<vmem>>, vector<1x1x1x8xf32>
    %371 = vector.shape_cast %370 : vector<1x1x1x8xf32> to vector<1x8xf32>
    %372 = vector.broadcast %371 : vector<1x8xf32> to vector<16x8xf32>
    %373 = arith.addf %369, %372 : vector<16x8xf32>
    %c1_285 = arith.constant 1 : index
    %c1_286 = arith.constant 1 : index
    %c0_287 = arith.constant 0 : index
    %c0_288 = arith.constant 0 : index
    %374 = vector.load %arg7[%c1_285, %c1_286, %c0_287, %c0_288] : memref<2x4x32x8xf32, #tpu.memory_space<vmem>>, vector<1x1x32x8xf32>
    %375 = vector.shape_cast %374 : vector<1x1x32x8xf32> to vector<32x8xf32>
    %cst_289 = arith.constant dense<0.000000e+00> : vector<16x8xf32>
    %376 = tpu.matmul %338, %375, %cst_289 {dimension_numbers = #tpu.dot_dimension_numbers<[1], [0], [0], [1], [0, 0, 1, 1], [], []>} : vector<16x32xf32>, vector<32x8xf32>, vector<16x8xf32> -> vector<16x8xf32>
    %c1_290 = arith.constant 1 : index
    %c1_291 = arith.constant 1 : index
    %c0_292 = arith.constant 0 : index
    %c0_293 = arith.constant 0 : index
    %377 = vector.load %arg10[%c1_290, %c1_291, %c0_292, %c0_293] : memref<2x4x1x8xf32, #tpu.memory_space<vmem>>, vector<1x1x1x8xf32>
    %378 = vector.shape_cast %377 : vector<1x1x1x8xf32> to vector<1x8xf32>
    %379 = vector.broadcast %378 : vector<1x8xf32> to vector<16x8xf32>
    %380 = arith.addf %376, %379 : vector<16x8xf32>
    %c1_294 = arith.constant 1 : index
    %c2_295 = arith.constant 2 : index
    %c0_296 = arith.constant 0 : index
    %c0_297 = arith.constant 0 : index
    %381 = vector.load %arg5[%c1_294, %c2_295, %c0_296, %c0_297] : memref<2x4x32x8xf32, #tpu.memory_space<vmem>>, vector<1x1x32x8xf32>
    %382 = vector.shape_cast %381 : vector<1x1x32x8xf32> to vector<32x8xf32>
    %cst_298 = arith.constant dense<0.000000e+00> : vector<16x8xf32>
    %383 = tpu.matmul %338, %382, %cst_298 {dimension_numbers = #tpu.dot_dimension_numbers<[1], [0], [0], [1], [0, 0, 1, 1], [], []>} : vector<16x32xf32>, vector<32x8xf32>, vector<16x8xf32> -> vector<16x8xf32>
    %c1_299 = arith.constant 1 : index
    %c2_300 = arith.constant 2 : index
    %c0_301 = arith.constant 0 : index
    %c0_302 = arith.constant 0 : index
    %384 = vector.load %arg8[%c1_299, %c2_300, %c0_301, %c0_302] : memref<2x4x1x8xf32, #tpu.memory_space<vmem>>, vector<1x1x1x8xf32>
    %385 = vector.shape_cast %384 : vector<1x1x1x8xf32> to vector<1x8xf32>
    %386 = vector.broadcast %385 : vector<1x8xf32> to vector<16x8xf32>
    %387 = arith.addf %383, %386 : vector<16x8xf32>
    %c1_303 = arith.constant 1 : index
    %c2_304 = arith.constant 2 : index
    %c0_305 = arith.constant 0 : index
    %c0_306 = arith.constant 0 : index
    %388 = vector.load %arg6[%c1_303, %c2_304, %c0_305, %c0_306] : memref<2x4x32x8xf32, #tpu.memory_space<vmem>>, vector<1x1x32x8xf32>
    %389 = vector.shape_cast %388 : vector<1x1x32x8xf32> to vector<32x8xf32>
    %cst_307 = arith.constant dense<0.000000e+00> : vector<16x8xf32>
    %390 = tpu.matmul %338, %389, %cst_307 {dimension_numbers = #tpu.dot_dimension_numbers<[1], [0], [0], [1], [0, 0, 1, 1], [], []>} : vector<16x32xf32>, vector<32x8xf32>, vector<16x8xf32> -> vector<16x8xf32>
    %c1_308 = arith.constant 1 : index
    %c2_309 = arith.constant 2 : index
    %c0_310 = arith.constant 0 : index
    %c0_311 = arith.constant 0 : index
    %391 = vector.load %arg9[%c1_308, %c2_309, %c0_310, %c0_311] : memref<2x4x1x8xf32, #tpu.memory_space<vmem>>, vector<1x1x1x8xf32>
    %392 = vector.shape_cast %391 : vector<1x1x1x8xf32> to vector<1x8xf32>
    %393 = vector.broadcast %392 : vector<1x8xf32> to vector<16x8xf32>
    %394 = arith.addf %390, %393 : vector<16x8xf32>
    %c1_312 = arith.constant 1 : index
    %c2_313 = arith.constant 2 : index
    %c0_314 = arith.constant 0 : index
    %c0_315 = arith.constant 0 : index
    %395 = vector.load %arg7[%c1_312, %c2_313, %c0_314, %c0_315] : memref<2x4x32x8xf32, #tpu.memory_space<vmem>>, vector<1x1x32x8xf32>
    %396 = vector.shape_cast %395 : vector<1x1x32x8xf32> to vector<32x8xf32>
    %cst_316 = arith.constant dense<0.000000e+00> : vector<16x8xf32>
    %397 = tpu.matmul %338, %396, %cst_316 {dimension_numbers = #tpu.dot_dimension_numbers<[1], [0], [0], [1], [0, 0, 1, 1], [], []>} : vector<16x32xf32>, vector<32x8xf32>, vector<16x8xf32> -> vector<16x8xf32>
    %c1_317 = arith.constant 1 : index
    %c2_318 = arith.constant 2 : index
    %c0_319 = arith.constant 0 : index
    %c0_320 = arith.constant 0 : index
    %398 = vector.load %arg10[%c1_317, %c2_318, %c0_319, %c0_320] : memref<2x4x1x8xf32, #tpu.memory_space<vmem>>, vector<1x1x1x8xf32>
    %399 = vector.shape_cast %398 : vector<1x1x1x8xf32> to vector<1x8xf32>
    %400 = vector.broadcast %399 : vector<1x8xf32> to vector<16x8xf32>
    %401 = arith.addf %397, %400 : vector<16x8xf32>
    %c1_321 = arith.constant 1 : index
    %c3_322 = arith.constant 3 : index
    %c0_323 = arith.constant 0 : index
    %c0_324 = arith.constant 0 : index
    %402 = vector.load %arg5[%c1_321, %c3_322, %c0_323, %c0_324] : memref<2x4x32x8xf32, #tpu.memory_space<vmem>>, vector<1x1x32x8xf32>
    %403 = vector.shape_cast %402 : vector<1x1x32x8xf32> to vector<32x8xf32>
    %cst_325 = arith.constant dense<0.000000e+00> : vector<16x8xf32>
    %404 = tpu.matmul %338, %403, %cst_325 {dimension_numbers = #tpu.dot_dimension_numbers<[1], [0], [0], [1], [0, 0, 1, 1], [], []>} : vector<16x32xf32>, vector<32x8xf32>, vector<16x8xf32> -> vector<16x8xf32>
    %c1_326 = arith.constant 1 : index
    %c3_327 = arith.constant 3 : index
    %c0_328 = arith.constant 0 : index
    %c0_329 = arith.constant 0 : index
    %405 = vector.load %arg8[%c1_326, %c3_327, %c0_328, %c0_329] : memref<2x4x1x8xf32, #tpu.memory_space<vmem>>, vector<1x1x1x8xf32>
    %406 = vector.shape_cast %405 : vector<1x1x1x8xf32> to vector<1x8xf32>
    %407 = vector.broadcast %406 : vector<1x8xf32> to vector<16x8xf32>
    %408 = arith.addf %404, %407 : vector<16x8xf32>
    %c1_330 = arith.constant 1 : index
    %c3_331 = arith.constant 3 : index
    %c0_332 = arith.constant 0 : index
    %c0_333 = arith.constant 0 : index
    %409 = vector.load %arg6[%c1_330, %c3_331, %c0_332, %c0_333] : memref<2x4x32x8xf32, #tpu.memory_space<vmem>>, vector<1x1x32x8xf32>
    %410 = vector.shape_cast %409 : vector<1x1x32x8xf32> to vector<32x8xf32>
    %cst_334 = arith.constant dense<0.000000e+00> : vector<16x8xf32>
    %411 = tpu.matmul %338, %410, %cst_334 {dimension_numbers = #tpu.dot_dimension_numbers<[1], [0], [0], [1], [0, 0, 1, 1], [], []>} : vector<16x32xf32>, vector<32x8xf32>, vector<16x8xf32> -> vector<16x8xf32>
    %c1_335 = arith.constant 1 : index
    %c3_336 = arith.constant 3 : index
    %c0_337 = arith.constant 0 : index
    %c0_338 = arith.constant 0 : index
    %412 = vector.load %arg9[%c1_335, %c3_336, %c0_337, %c0_338] : memref<2x4x1x8xf32, #tpu.memory_space<vmem>>, vector<1x1x1x8xf32>
    %413 = vector.shape_cast %412 : vector<1x1x1x8xf32> to vector<1x8xf32>
    %414 = vector.broadcast %413 : vector<1x8xf32> to vector<16x8xf32>
    %415 = arith.addf %411, %414 : vector<16x8xf32>
    %c1_339 = arith.constant 1 : index
    %c3_340 = arith.constant 3 : index
    %c0_341 = arith.constant 0 : index
    %c0_342 = arith.constant 0 : index
    %416 = vector.load %arg7[%c1_339, %c3_340, %c0_341, %c0_342] : memref<2x4x32x8xf32, #tpu.memory_space<vmem>>, vector<1x1x32x8xf32>
    %417 = vector.shape_cast %416 : vector<1x1x32x8xf32> to vector<32x8xf32>
    %cst_343 = arith.constant dense<0.000000e+00> : vector<16x8xf32>
    %418 = tpu.matmul %338, %417, %cst_343 {dimension_numbers = #tpu.dot_dimension_numbers<[1], [0], [0], [1], [0, 0, 1, 1], [], []>} : vector<16x32xf32>, vector<32x8xf32>, vector<16x8xf32> -> vector<16x8xf32>
    %c1_344 = arith.constant 1 : index
    %c3_345 = arith.constant 3 : index
    %c0_346 = arith.constant 0 : index
    %c0_347 = arith.constant 0 : index
    %419 = vector.load %arg10[%c1_344, %c3_345, %c0_346, %c0_347] : memref<2x4x1x8xf32, #tpu.memory_space<vmem>>, vector<1x1x1x8xf32>
    %420 = vector.shape_cast %419 : vector<1x1x1x8xf32> to vector<1x8xf32>
    %421 = vector.broadcast %420 : vector<1x8xf32> to vector<16x8xf32>
    %422 = arith.addf %418, %421 : vector<16x8xf32>
    %423 = vector.extract_strided_slice %345 {offsets = [0, 0], sizes = [8, 8], strides = [1, 1]} : vector<16x8xf32> to vector<8x8xf32>
    %cst_348 = arith.constant 0.353553385 : f32
    %424 = vector.broadcast %cst_348 : f32 to vector<8x8xf32>
    %425 = arith.mulf %423, %424 : vector<8x8xf32>
    %426 = vector.extract_strided_slice %352 {offsets = [0, 0], sizes = [8, 8], strides = [1, 1]} : vector<16x8xf32> to vector<8x8xf32>
    %427 = vector.extract_strided_slice %359 {offsets = [0, 0], sizes = [8, 8], strides = [1, 1]} : vector<16x8xf32> to vector<8x8xf32>
    %cst_349 = arith.constant dense<0.000000e+00> : vector<8x8xf32>
    %428 = tpu.matmul %425, %426, %cst_349 {dimension_numbers = #tpu.dot_dimension_numbers<[1], [1], [0], [0], [0, 0, 1, 0], [], []>} : vector<8x8xf32>, vector<8x8xf32>, vector<8x8xf32> -> vector<8x8xf32>
    %cst_350 = arith.constant dense<0xFF800000> : vector<8xf32>
    %429 = vector.multi_reduction <maximumf>, %428, %cst_350 [1] : vector<8x8xf32> to vector<8xf32>
    %430 = vector.shape_cast %429 : vector<8xf32> to vector<8x1xf32>
    %431 = vector.broadcast %430 : vector<8x1xf32> to vector<8x8xf32>
    %432 = arith.subf %428, %431 : vector<8x8xf32>
    %433 = math.exp %432 : vector<8x8xf32>
    %cst_351 = arith.constant dense<0.000000e+00> : vector<8xf32>
    %434 = vector.multi_reduction <add>, %433, %cst_351 [1] : vector<8x8xf32> to vector<8xf32>
    %435 = vector.shape_cast %434 : vector<8xf32> to vector<8x1xf32>
    %436 = tpu.reciprocal %435 {approx = true} : vector<8x1xf32> -> vector<8x1xf32>
    %437 = vector.broadcast %436 : vector<8x1xf32> to vector<8x8xf32>
    %438 = arith.mulf %433, %437 : vector<8x8xf32>
    %cst_352 = arith.constant dense<0.000000e+00> : vector<8x8xf32>
    %439 = tpu.matmul %438, %427, %cst_352 {dimension_numbers = #tpu.dot_dimension_numbers<[1], [0], [0], [1], [0, 0, 1, 1], [], []>} : vector<8x8xf32>, vector<8x8xf32>, vector<8x8xf32> -> vector<8x8xf32>
    %c1_353 = arith.constant 1 : index
    %c0_354 = arith.constant 0 : index
    %c0_355 = arith.constant 0 : index
    %c0_356 = arith.constant 0 : index
    %440 = vector.load %arg11[%c1_353, %c0_354, %c0_355, %c0_356] : memref<2x4x8x32xf32, #tpu.memory_space<vmem>>, vector<1x1x8x32xf32>
    %441 = vector.shape_cast %440 : vector<1x1x8x32xf32> to vector<8x32xf32>
    %cst_357 = arith.constant dense<0.000000e+00> : vector<8x32xf32>
    %442 = tpu.matmul %439, %441, %cst_357 {dimension_numbers = #tpu.dot_dimension_numbers<[1], [0], [0], [1], [0, 0, 1, 1], [], []>} : vector<8x8xf32>, vector<8x32xf32>, vector<8x32xf32> -> vector<8x32xf32>
    %443 = vector.extract_strided_slice %366 {offsets = [0, 0], sizes = [8, 8], strides = [1, 1]} : vector<16x8xf32> to vector<8x8xf32>
    %cst_358 = arith.constant 0.353553385 : f32
    %444 = vector.broadcast %cst_358 : f32 to vector<8x8xf32>
    %445 = arith.mulf %443, %444 : vector<8x8xf32>
    %446 = vector.extract_strided_slice %373 {offsets = [0, 0], sizes = [8, 8], strides = [1, 1]} : vector<16x8xf32> to vector<8x8xf32>
    %447 = vector.extract_strided_slice %380 {offsets = [0, 0], sizes = [8, 8], strides = [1, 1]} : vector<16x8xf32> to vector<8x8xf32>
    %cst_359 = arith.constant dense<0.000000e+00> : vector<8x8xf32>
    %448 = tpu.matmul %445, %446, %cst_359 {dimension_numbers = #tpu.dot_dimension_numbers<[1], [1], [0], [0], [0, 0, 1, 0], [], []>} : vector<8x8xf32>, vector<8x8xf32>, vector<8x8xf32> -> vector<8x8xf32>
    %cst_360 = arith.constant dense<0xFF800000> : vector<8xf32>
    %449 = vector.multi_reduction <maximumf>, %448, %cst_360 [1] : vector<8x8xf32> to vector<8xf32>
    %450 = vector.shape_cast %449 : vector<8xf32> to vector<8x1xf32>
    %451 = vector.broadcast %450 : vector<8x1xf32> to vector<8x8xf32>
    %452 = arith.subf %448, %451 : vector<8x8xf32>
    %453 = math.exp %452 : vector<8x8xf32>
    %cst_361 = arith.constant dense<0.000000e+00> : vector<8xf32>
    %454 = vector.multi_reduction <add>, %453, %cst_361 [1] : vector<8x8xf32> to vector<8xf32>
    %455 = vector.shape_cast %454 : vector<8xf32> to vector<8x1xf32>
    %456 = tpu.reciprocal %455 {approx = true} : vector<8x1xf32> -> vector<8x1xf32>
    %457 = vector.broadcast %456 : vector<8x1xf32> to vector<8x8xf32>
    %458 = arith.mulf %453, %457 : vector<8x8xf32>
    %cst_362 = arith.constant dense<0.000000e+00> : vector<8x8xf32>
    %459 = tpu.matmul %458, %447, %cst_362 {dimension_numbers = #tpu.dot_dimension_numbers<[1], [0], [0], [1], [0, 0, 1, 1], [], []>} : vector<8x8xf32>, vector<8x8xf32>, vector<8x8xf32> -> vector<8x8xf32>
    %c1_363 = arith.constant 1 : index
    %c1_364 = arith.constant 1 : index
    %c0_365 = arith.constant 0 : index
    %c0_366 = arith.constant 0 : index
    %460 = vector.load %arg11[%c1_363, %c1_364, %c0_365, %c0_366] : memref<2x4x8x32xf32, #tpu.memory_space<vmem>>, vector<1x1x8x32xf32>
    %461 = vector.shape_cast %460 : vector<1x1x8x32xf32> to vector<8x32xf32>
    %cst_367 = arith.constant dense<0.000000e+00> : vector<8x32xf32>
    %462 = tpu.matmul %459, %461, %cst_367 {dimension_numbers = #tpu.dot_dimension_numbers<[1], [0], [0], [1], [0, 0, 1, 1], [], []>} : vector<8x8xf32>, vector<8x32xf32>, vector<8x32xf32> -> vector<8x32xf32>
    %463 = arith.addf %442, %462 : vector<8x32xf32>
    %464 = vector.extract_strided_slice %387 {offsets = [0, 0], sizes = [8, 8], strides = [1, 1]} : vector<16x8xf32> to vector<8x8xf32>
    %cst_368 = arith.constant 0.353553385 : f32
    %465 = vector.broadcast %cst_368 : f32 to vector<8x8xf32>
    %466 = arith.mulf %464, %465 : vector<8x8xf32>
    %467 = vector.extract_strided_slice %394 {offsets = [0, 0], sizes = [8, 8], strides = [1, 1]} : vector<16x8xf32> to vector<8x8xf32>
    %468 = vector.extract_strided_slice %401 {offsets = [0, 0], sizes = [8, 8], strides = [1, 1]} : vector<16x8xf32> to vector<8x8xf32>
    %cst_369 = arith.constant dense<0.000000e+00> : vector<8x8xf32>
    %469 = tpu.matmul %466, %467, %cst_369 {dimension_numbers = #tpu.dot_dimension_numbers<[1], [1], [0], [0], [0, 0, 1, 0], [], []>} : vector<8x8xf32>, vector<8x8xf32>, vector<8x8xf32> -> vector<8x8xf32>
    %cst_370 = arith.constant dense<0xFF800000> : vector<8xf32>
    %470 = vector.multi_reduction <maximumf>, %469, %cst_370 [1] : vector<8x8xf32> to vector<8xf32>
    %471 = vector.shape_cast %470 : vector<8xf32> to vector<8x1xf32>
    %472 = vector.broadcast %471 : vector<8x1xf32> to vector<8x8xf32>
    %473 = arith.subf %469, %472 : vector<8x8xf32>
    %474 = math.exp %473 : vector<8x8xf32>
    %cst_371 = arith.constant dense<0.000000e+00> : vector<8xf32>
    %475 = vector.multi_reduction <add>, %474, %cst_371 [1] : vector<8x8xf32> to vector<8xf32>
    %476 = vector.shape_cast %475 : vector<8xf32> to vector<8x1xf32>
    %477 = tpu.reciprocal %476 {approx = true} : vector<8x1xf32> -> vector<8x1xf32>
    %478 = vector.broadcast %477 : vector<8x1xf32> to vector<8x8xf32>
    %479 = arith.mulf %474, %478 : vector<8x8xf32>
    %cst_372 = arith.constant dense<0.000000e+00> : vector<8x8xf32>
    %480 = tpu.matmul %479, %468, %cst_372 {dimension_numbers = #tpu.dot_dimension_numbers<[1], [0], [0], [1], [0, 0, 1, 1], [], []>} : vector<8x8xf32>, vector<8x8xf32>, vector<8x8xf32> -> vector<8x8xf32>
    %c1_373 = arith.constant 1 : index
    %c2_374 = arith.constant 2 : index
    %c0_375 = arith.constant 0 : index
    %c0_376 = arith.constant 0 : index
    %481 = vector.load %arg11[%c1_373, %c2_374, %c0_375, %c0_376] : memref<2x4x8x32xf32, #tpu.memory_space<vmem>>, vector<1x1x8x32xf32>
    %482 = vector.shape_cast %481 : vector<1x1x8x32xf32> to vector<8x32xf32>
    %cst_377 = arith.constant dense<0.000000e+00> : vector<8x32xf32>
    %483 = tpu.matmul %480, %482, %cst_377 {dimension_numbers = #tpu.dot_dimension_numbers<[1], [0], [0], [1], [0, 0, 1, 1], [], []>} : vector<8x8xf32>, vector<8x32xf32>, vector<8x32xf32> -> vector<8x32xf32>
    %484 = arith.addf %463, %483 : vector<8x32xf32>
    %485 = vector.extract_strided_slice %408 {offsets = [0, 0], sizes = [8, 8], strides = [1, 1]} : vector<16x8xf32> to vector<8x8xf32>
    %cst_378 = arith.constant 0.353553385 : f32
    %486 = vector.broadcast %cst_378 : f32 to vector<8x8xf32>
    %487 = arith.mulf %485, %486 : vector<8x8xf32>
    %488 = vector.extract_strided_slice %415 {offsets = [0, 0], sizes = [8, 8], strides = [1, 1]} : vector<16x8xf32> to vector<8x8xf32>
    %489 = vector.extract_strided_slice %422 {offsets = [0, 0], sizes = [8, 8], strides = [1, 1]} : vector<16x8xf32> to vector<8x8xf32>
    %cst_379 = arith.constant dense<0.000000e+00> : vector<8x8xf32>
    %490 = tpu.matmul %487, %488, %cst_379 {dimension_numbers = #tpu.dot_dimension_numbers<[1], [1], [0], [0], [0, 0, 1, 0], [], []>} : vector<8x8xf32>, vector<8x8xf32>, vector<8x8xf32> -> vector<8x8xf32>
    %cst_380 = arith.constant dense<0xFF800000> : vector<8xf32>
    %491 = vector.multi_reduction <maximumf>, %490, %cst_380 [1] : vector<8x8xf32> to vector<8xf32>
    %492 = vector.shape_cast %491 : vector<8xf32> to vector<8x1xf32>
    %493 = vector.broadcast %492 : vector<8x1xf32> to vector<8x8xf32>
    %494 = arith.subf %490, %493 : vector<8x8xf32>
    %495 = math.exp %494 : vector<8x8xf32>
    %cst_381 = arith.constant dense<0.000000e+00> : vector<8xf32>
    %496 = vector.multi_reduction <add>, %495, %cst_381 [1] : vector<8x8xf32> to vector<8xf32>
    %497 = vector.shape_cast %496 : vector<8xf32> to vector<8x1xf32>
    %498 = tpu.reciprocal %497 {approx = true} : vector<8x1xf32> -> vector<8x1xf32>
    %499 = vector.broadcast %498 : vector<8x1xf32> to vector<8x8xf32>
    %500 = arith.mulf %495, %499 : vector<8x8xf32>
    %cst_382 = arith.constant dense<0.000000e+00> : vector<8x8xf32>
    %501 = tpu.matmul %500, %489, %cst_382 {dimension_numbers = #tpu.dot_dimension_numbers<[1], [0], [0], [1], [0, 0, 1, 1], [], []>} : vector<8x8xf32>, vector<8x8xf32>, vector<8x8xf32> -> vector<8x8xf32>
    %c1_383 = arith.constant 1 : index
    %c3_384 = arith.constant 3 : index
    %c0_385 = arith.constant 0 : index
    %c0_386 = arith.constant 0 : index
    %502 = vector.load %arg11[%c1_383, %c3_384, %c0_385, %c0_386] : memref<2x4x8x32xf32, #tpu.memory_space<vmem>>, vector<1x1x8x32xf32>
    %503 = vector.shape_cast %502 : vector<1x1x8x32xf32> to vector<8x32xf32>
    %cst_387 = arith.constant dense<0.000000e+00> : vector<8x32xf32>
    %504 = tpu.matmul %501, %503, %cst_387 {dimension_numbers = #tpu.dot_dimension_numbers<[1], [0], [0], [1], [0, 0, 1, 1], [], []>} : vector<8x8xf32>, vector<8x32xf32>, vector<8x32xf32> -> vector<8x32xf32>
    %505 = arith.addf %484, %504 : vector<8x32xf32>
    %c1_388 = arith.constant 1 : index
    %c0_389 = arith.constant 0 : index
    %c0_390 = arith.constant 0 : index
    %506 = vector.load %arg12[%c1_388, %c0_389, %c0_390] : memref<2x1x32xf32, #tpu.memory_space<vmem>>, vector<1x1x32xf32>
    %507 = vector.shape_cast %506 : vector<1x1x32xf32> to vector<1x32xf32>
    %508 = vector.broadcast %507 : vector<1x32xf32> to vector<8x32xf32>
    %509 = arith.addf %505, %508 : vector<8x32xf32>
    %c0_391 = arith.constant 0 : index
    %c0_392 = arith.constant 0 : index
    %510 = vector.load %arg24[%c0_391, %c0_392] : memref<16x32xf32, #tpu.memory_space<vmem>>, vector<8x32xf32>
    tpu.vector_store %arg24[%c0_391, %c0_392], %509 {strides = array<i32>} : memref<16x32xf32, #tpu.memory_space<vmem>>, vector<8x32xf32>,
    %511 = vector.extract_strided_slice %345 {offsets = [8, 0], sizes = [8, 8], strides = [1, 1]} : vector<16x8xf32> to vector<8x8xf32>
    %cst_393 = arith.constant 0.353553385 : f32
    %512 = vector.broadcast %cst_393 : f32 to vector<8x8xf32>
    %513 = arith.mulf %511, %512 : vector<8x8xf32>
    %514 = vector.extract_strided_slice %352 {offsets = [8, 0], sizes = [8, 8], strides = [1, 1]} : vector<16x8xf32> to vector<8x8xf32>
    %515 = vector.extract_strided_slice %359 {offsets = [8, 0], sizes = [8, 8], strides = [1, 1]} : vector<16x8xf32> to vector<8x8xf32>
    %cst_394 = arith.constant dense<0.000000e+00> : vector<8x8xf32>
    %516 = tpu.matmul %513, %514, %cst_394 {dimension_numbers = #tpu.dot_dimension_numbers<[1], [1], [0], [0], [0, 0, 1, 0], [], []>} : vector<8x8xf32>, vector<8x8xf32>, vector<8x8xf32> -> vector<8x8xf32>
    %cst_395 = arith.constant dense<0xFF800000> : vector<8xf32>
    %517 = vector.multi_reduction <maximumf>, %516, %cst_395 [1] : vector<8x8xf32> to vector<8xf32>
    %518 = vector.shape_cast %517 : vector<8xf32> to vector<8x1xf32>
    %519 = vector.broadcast %518 : vector<8x1xf32> to vector<8x8xf32>
    %520 = arith.subf %516, %519 : vector<8x8xf32>
    %521 = math.exp %520 : vector<8x8xf32>
    %cst_396 = arith.constant dense<0.000000e+00> : vector<8xf32>
    %522 = vector.multi_reduction <add>, %521, %cst_396 [1] : vector<8x8xf32> to vector<8xf32>
    %523 = vector.shape_cast %522 : vector<8xf32> to vector<8x1xf32>
    %524 = tpu.reciprocal %523 {approx = true} : vector<8x1xf32> -> vector<8x1xf32>
    %525 = vector.broadcast %524 : vector<8x1xf32> to vector<8x8xf32>
    %526 = arith.mulf %521, %525 : vector<8x8xf32>
    %cst_397 = arith.constant dense<0.000000e+00> : vector<8x8xf32>
    %527 = tpu.matmul %526, %515, %cst_397 {dimension_numbers = #tpu.dot_dimension_numbers<[1], [0], [0], [1], [0, 0, 1, 1], [], []>} : vector<8x8xf32>, vector<8x8xf32>, vector<8x8xf32> -> vector<8x8xf32>
    %c1_398 = arith.constant 1 : index
    %c0_399 = arith.constant 0 : index
    %c0_400 = arith.constant 0 : index
    %c0_401 = arith.constant 0 : index
    %528 = vector.load %arg11[%c1_398, %c0_399, %c0_400, %c0_401] : memref<2x4x8x32xf32, #tpu.memory_space<vmem>>, vector<1x1x8x32xf32>
    %529 = vector.shape_cast %528 : vector<1x1x8x32xf32> to vector<8x32xf32>
    %cst_402 = arith.constant dense<0.000000e+00> : vector<8x32xf32>
    %530 = tpu.matmul %527, %529, %cst_402 {dimension_numbers = #tpu.dot_dimension_numbers<[1], [0], [0], [1], [0, 0, 1, 1], [], []>} : vector<8x8xf32>, vector<8x32xf32>, vector<8x32xf32> -> vector<8x32xf32>
    %531 = vector.extract_strided_slice %366 {offsets = [8, 0], sizes = [8, 8], strides = [1, 1]} : vector<16x8xf32> to vector<8x8xf32>
    %cst_403 = arith.constant 0.353553385 : f32
    %532 = vector.broadcast %cst_403 : f32 to vector<8x8xf32>
    %533 = arith.mulf %531, %532 : vector<8x8xf32>
    %534 = vector.extract_strided_slice %373 {offsets = [8, 0], sizes = [8, 8], strides = [1, 1]} : vector<16x8xf32> to vector<8x8xf32>
    %535 = vector.extract_strided_slice %380 {offsets = [8, 0], sizes = [8, 8], strides = [1, 1]} : vector<16x8xf32> to vector<8x8xf32>
    %cst_404 = arith.constant dense<0.000000e+00> : vector<8x8xf32>
    %536 = tpu.matmul %533, %534, %cst_404 {dimension_numbers = #tpu.dot_dimension_numbers<[1], [1], [0], [0], [0, 0, 1, 0], [], []>} : vector<8x8xf32>, vector<8x8xf32>, vector<8x8xf32> -> vector<8x8xf32>
    %cst_405 = arith.constant dense<0xFF800000> : vector<8xf32>
    %537 = vector.multi_reduction <maximumf>, %536, %cst_405 [1] : vector<8x8xf32> to vector<8xf32>
    %538 = vector.shape_cast %537 : vector<8xf32> to vector<8x1xf32>
    %539 = vector.broadcast %538 : vector<8x1xf32> to vector<8x8xf32>
    %540 = arith.subf %536, %539 : vector<8x8xf32>
    %541 = math.exp %540 : vector<8x8xf32>
    %cst_406 = arith.constant dense<0.000000e+00> : vector<8xf32>
    %542 = vector.multi_reduction <add>, %541, %cst_406 [1] : vector<8x8xf32> to vector<8xf32>
    %543 = vector.shape_cast %542 : vector<8xf32> to vector<8x1xf32>
    %544 = tpu.reciprocal %543 {approx = true} : vector<8x1xf32> -> vector<8x1xf32>
    %545 = vector.broadcast %544 : vector<8x1xf32> to vector<8x8xf32>
    %546 = arith.mulf %541, %545 : vector<8x8xf32>
    %cst_407 = arith.constant dense<0.000000e+00> : vector<8x8xf32>
    %547 = tpu.matmul %546, %535, %cst_407 {dimension_numbers = #tpu.dot_dimension_numbers<[1], [0], [0], [1], [0, 0, 1, 1], [], []>} : vector<8x8xf32>, vector<8x8xf32>, vector<8x8xf32> -> vector<8x8xf32>
    %c1_408 = arith.constant 1 : index
    %c1_409 = arith.constant 1 : index
    %c0_410 = arith.constant 0 : index
    %c0_411 = arith.constant 0 : index
    %548 = vector.load %arg11[%c1_408, %c1_409, %c0_410, %c0_411] : memref<2x4x8x32xf32, #tpu.memory_space<vmem>>, vector<1x1x8x32xf32>
    %549 = vector.shape_cast %548 : vector<1x1x8x32xf32> to vector<8x32xf32>
    %cst_412 = arith.constant dense<0.000000e+00> : vector<8x32xf32>
    %550 = tpu.matmul %547, %549, %cst_412 {dimension_numbers = #tpu.dot_dimension_numbers<[1], [0], [0], [1], [0, 0, 1, 1], [], []>} : vector<8x8xf32>, vector<8x32xf32>, vector<8x32xf32> -> vector<8x32xf32>
    %551 = arith.addf %530, %550 : vector<8x32xf32>
    %552 = vector.extract_strided_slice %387 {offsets = [8, 0], sizes = [8, 8], strides = [1, 1]} : vector<16x8xf32> to vector<8x8xf32>
    %cst_413 = arith.constant 0.353553385 : f32
    %553 = vector.broadcast %cst_413 : f32 to vector<8x8xf32>
    %554 = arith.mulf %552, %553 : vector<8x8xf32>
    %555 = vector.extract_strided_slice %394 {offsets = [8, 0], sizes = [8, 8], strides = [1, 1]} : vector<16x8xf32> to vector<8x8xf32>
    %556 = vector.extract_strided_slice %401 {offsets = [8, 0], sizes = [8, 8], strides = [1, 1]} : vector<16x8xf32> to vector<8x8xf32>
    %cst_414 = arith.constant dense<0.000000e+00> : vector<8x8xf32>
    %557 = tpu.matmul %554, %555, %cst_414 {dimension_numbers = #tpu.dot_dimension_numbers<[1], [1], [0], [0], [0, 0, 1, 0], [], []>} : vector<8x8xf32>, vector<8x8xf32>, vector<8x8xf32> -> vector<8x8xf32>
    %cst_415 = arith.constant dense<0xFF800000> : vector<8xf32>
    %558 = vector.multi_reduction <maximumf>, %557, %cst_415 [1] : vector<8x8xf32> to vector<8xf32>
    %559 = vector.shape_cast %558 : vector<8xf32> to vector<8x1xf32>
    %560 = vector.broadcast %559 : vector<8x1xf32> to vector<8x8xf32>
    %561 = arith.subf %557, %560 : vector<8x8xf32>
    %562 = math.exp %561 : vector<8x8xf32>
    %cst_416 = arith.constant dense<0.000000e+00> : vector<8xf32>
    %563 = vector.multi_reduction <add>, %562, %cst_416 [1] : vector<8x8xf32> to vector<8xf32>
    %564 = vector.shape_cast %563 : vector<8xf32> to vector<8x1xf32>
    %565 = tpu.reciprocal %564 {approx = true} : vector<8x1xf32> -> vector<8x1xf32>
    %566 = vector.broadcast %565 : vector<8x1xf32> to vector<8x8xf32>
    %567 = arith.mulf %562, %566 : vector<8x8xf32>
    %cst_417 = arith.constant dense<0.000000e+00> : vector<8x8xf32>
    %568 = tpu.matmul %567, %556, %cst_417 {dimension_numbers = #tpu.dot_dimension_numbers<[1], [0], [0], [1], [0, 0, 1, 1], [], []>} : vector<8x8xf32>, vector<8x8xf32>, vector<8x8xf32> -> vector<8x8xf32>
    %c1_418 = arith.constant 1 : index
    %c2_419 = arith.constant 2 : index
    %c0_420 = arith.constant 0 : index
    %c0_421 = arith.constant 0 : index
    %569 = vector.load %arg11[%c1_418, %c2_419, %c0_420, %c0_421] : memref<2x4x8x32xf32, #tpu.memory_space<vmem>>, vector<1x1x8x32xf32>
    %570 = vector.shape_cast %569 : vector<1x1x8x32xf32> to vector<8x32xf32>
    %cst_422 = arith.constant dense<0.000000e+00> : vector<8x32xf32>
    %571 = tpu.matmul %568, %570, %cst_422 {dimension_numbers = #tpu.dot_dimension_numbers<[1], [0], [0], [1], [0, 0, 1, 1], [], []>} : vector<8x8xf32>, vector<8x32xf32>, vector<8x32xf32> -> vector<8x32xf32>
    %572 = arith.addf %551, %571 : vector<8x32xf32>
    %573 = vector.extract_strided_slice %408 {offsets = [8, 0], sizes = [8, 8], strides = [1, 1]} : vector<16x8xf32> to vector<8x8xf32>
    %cst_423 = arith.constant 0.353553385 : f32
    %574 = vector.broadcast %cst_423 : f32 to vector<8x8xf32>
    %575 = arith.mulf %573, %574 : vector<8x8xf32>
    %576 = vector.extract_strided_slice %415 {offsets = [8, 0], sizes = [8, 8], strides = [1, 1]} : vector<16x8xf32> to vector<8x8xf32>
    %577 = vector.extract_strided_slice %422 {offsets = [8, 0], sizes = [8, 8], strides = [1, 1]} : vector<16x8xf32> to vector<8x8xf32>
    %cst_424 = arith.constant dense<0.000000e+00> : vector<8x8xf32>
    %578 = tpu.matmul %575, %576, %cst_424 {dimension_numbers = #tpu.dot_dimension_numbers<[1], [1], [0], [0], [0, 0, 1, 0], [], []>} : vector<8x8xf32>, vector<8x8xf32>, vector<8x8xf32> -> vector<8x8xf32>
    %cst_425 = arith.constant dense<0xFF800000> : vector<8xf32>
    %579 = vector.multi_reduction <maximumf>, %578, %cst_425 [1] : vector<8x8xf32> to vector<8xf32>
    %580 = vector.shape_cast %579 : vector<8xf32> to vector<8x1xf32>
    %581 = vector.broadcast %580 : vector<8x1xf32> to vector<8x8xf32>
    %582 = arith.subf %578, %581 : vector<8x8xf32>
    %583 = math.exp %582 : vector<8x8xf32>
    %cst_426 = arith.constant dense<0.000000e+00> : vector<8xf32>
    %584 = vector.multi_reduction <add>, %583, %cst_426 [1] : vector<8x8xf32> to vector<8xf32>
    %585 = vector.shape_cast %584 : vector<8xf32> to vector<8x1xf32>
    %586 = tpu.reciprocal %585 {approx = true} : vector<8x1xf32> -> vector<8x1xf32>
    %587 = vector.broadcast %586 : vector<8x1xf32> to vector<8x8xf32>
    %588 = arith.mulf %583, %587 : vector<8x8xf32>
    %cst_427 = arith.constant dense<0.000000e+00> : vector<8x8xf32>
    %589 = tpu.matmul %588, %577, %cst_427 {dimension_numbers = #tpu.dot_dimension_numbers<[1], [0], [0], [1], [0, 0, 1, 1], [], []>} : vector<8x8xf32>, vector<8x8xf32>, vector<8x8xf32> -> vector<8x8xf32>
    %c1_428 = arith.constant 1 : index
    %c3_429 = arith.constant 3 : index
    %c0_430 = arith.constant 0 : index
    %c0_431 = arith.constant 0 : index
    %590 = vector.load %arg11[%c1_428, %c3_429, %c0_430, %c0_431] : memref<2x4x8x32xf32, #tpu.memory_space<vmem>>, vector<1x1x8x32xf32>
    %591 = vector.shape_cast %590 : vector<1x1x8x32xf32> to vector<8x32xf32>
    %cst_432 = arith.constant dense<0.000000e+00> : vector<8x32xf32>
    %592 = tpu.matmul %589, %591, %cst_432 {dimension_numbers = #tpu.dot_dimension_numbers<[1], [0], [0], [1], [0, 0, 1, 1], [], []>} : vector<8x8xf32>, vector<8x32xf32>, vector<8x32xf32> -> vector<8x32xf32>
    %593 = arith.addf %572, %592 : vector<8x32xf32>
    %c1_433 = arith.constant 1 : index
    %c0_434 = arith.constant 0 : index
    %c0_435 = arith.constant 0 : index
    %594 = vector.load %arg12[%c1_433, %c0_434, %c0_435] : memref<2x1x32xf32, #tpu.memory_space<vmem>>, vector<1x1x32xf32>
    %595 = vector.shape_cast %594 : vector<1x1x32xf32> to vector<1x32xf32>
    %596 = vector.broadcast %595 : vector<1x32xf32> to vector<8x32xf32>
    %597 = arith.addf %593, %596 : vector<8x32xf32>
    %c8_436 = arith.constant 8 : index
    %c0_437 = arith.constant 0 : index
    %598 = vector.load %arg24[%c8_436, %c0_437] : memref<16x32xf32, #tpu.memory_space<vmem>>, vector<8x32xf32>
    tpu.vector_store %arg24[%c8_436, %c0_437], %597 {strides = array<i32>} : memref<16x32xf32, #tpu.memory_space<vmem>>, vector<8x32xf32>,
    %c0_438 = arith.constant 0 : index
    %c0_439 = arith.constant 0 : index
    %599 = vector.load %arg24[%c0_438, %c0_439] : memref<16x32xf32, #tpu.memory_space<vmem>>, vector<16x32xf32>
    %600 = arith.addf %338, %599 : vector<16x32xf32>
    %c1_440 = arith.constant 1 : index
    %c0_441 = arith.constant 0 : index
    %c0_442 = arith.constant 0 : index
    %601 = vector.load %arg17[%c1_440, %c0_441, %c0_442] : memref<2x1x32xf32, #tpu.memory_space<vmem>>, vector<1x1x32xf32>
    %602 = vector.shape_cast %601 : vector<1x1x32xf32> to vector<1x32xf32>
    %c1_443 = arith.constant 1 : index
    %c0_444 = arith.constant 0 : index
    %c0_445 = arith.constant 0 : index
    %603 = vector.load %arg18[%c1_443, %c0_444, %c0_445] : memref<2x1x32xf32, #tpu.memory_space<vmem>>, vector<1x1x32xf32>
    %604 = vector.shape_cast %603 : vector<1x1x32xf32> to vector<1x32xf32>
    %cst_446 = arith.constant dense<0.000000e+00> : vector<16xf32>
    %605 = vector.multi_reduction <add>, %600, %cst_446 [1] : vector<16x32xf32> to vector<16xf32>
    %606 = vector.shape_cast %605 : vector<16xf32> to vector<16x1xf32>
    %cst_447 = arith.constant 3.200000e+01 : f32
    %607 = vector.broadcast %cst_447 : f32 to vector<16x1xf32>
    %608 = arith.divf %606, %607 : vector<16x1xf32>
    %609 = vector.broadcast %608 : vector<16x1xf32> to vector<16x32xf32>
    %610 = arith.subf %600, %609 : vector<16x32xf32>
    %611 = arith.mulf %610, %610 : vector<16x32xf32>
    %cst_448 = arith.constant dense<0.000000e+00> : vector<16xf32>
    %612 = vector.multi_reduction <add>, %611, %cst_448 [1] : vector<16x32xf32> to vector<16xf32>
    %613 = vector.shape_cast %612 : vector<16xf32> to vector<16x1xf32>
    %cst_449 = arith.constant 3.200000e+01 : f32
    %614 = vector.broadcast %cst_449 : f32 to vector<16x1xf32>
    %615 = arith.divf %613, %614 : vector<16x1xf32>
    %616 = vector.broadcast %608 : vector<16x1xf32> to vector<16x32xf32>
    %617 = arith.subf %600, %616 : vector<16x32xf32>
    %cst_450 = arith.constant 9.99999974E-6 : f32
    %618 = vector.broadcast %cst_450 : f32 to vector<16x1xf32>
    %619 = arith.addf %615, %618 : vector<16x1xf32>
    %620 = math.rsqrt %619 : vector<16x1xf32>
    %621 = vector.broadcast %620 : vector<16x1xf32> to vector<16x32xf32>
    %622 = arith.mulf %617, %621 : vector<16x32xf32>
    %623 = vector.broadcast %602 : vector<1x32xf32> to vector<16x32xf32>
    %624 = arith.mulf %622, %623 : vector<16x32xf32>
    %625 = vector.broadcast %604 : vector<1x32xf32> to vector<16x32xf32>
    %626 = arith.addf %624, %625 : vector<16x32xf32>
    %c1_451 = arith.constant 1 : index
    %c0_452 = arith.constant 0 : index
    %c0_453 = arith.constant 0 : index
    %627 = vector.load %arg13[%c1_451, %c0_452, %c0_453] : memref<2x32x2048xf32, #tpu.memory_space<vmem>>, vector<1x32x2048xf32>
    %628 = vector.shape_cast %627 : vector<1x32x2048xf32> to vector<32x2048xf32>
    %cst_454 = arith.constant dense<0.000000e+00> : vector<16x2048xf32>
    %629 = tpu.matmul %626, %628, %cst_454 {dimension_numbers = #tpu.dot_dimension_numbers<[1], [0], [0], [1], [0, 0, 1, 1], [], []>} : vector<16x32xf32>, vector<32x2048xf32>, vector<16x2048xf32> -> vector<16x2048xf32>
    %c1_455 = arith.constant 1 : index
    %c0_456 = arith.constant 0 : index
    %c0_457 = arith.constant 0 : index
    %630 = vector.load %arg14[%c1_455, %c0_456, %c0_457] : memref<2x1x2048xf32, #tpu.memory_space<vmem>>, vector<1x1x2048xf32>
    %631 = vector.shape_cast %630 : vector<1x1x2048xf32> to vector<1x2048xf32>
    %632 = vector.broadcast %631 : vector<1x2048xf32> to vector<16x2048xf32>
    %633 = arith.addf %629, %632 : vector<16x2048xf32>
    %cst_458 = arith.constant 0.000000e+00 : f32
    %634 = vector.broadcast %cst_458 : f32 to vector<16x2048xf32>
    %635 = arith.maximumf %633, %634 : vector<16x2048xf32>
    %c1_459 = arith.constant 1 : index
    %c0_460 = arith.constant 0 : index
    %c0_461 = arith.constant 0 : index
    %636 = vector.load %arg15[%c1_459, %c0_460, %c0_461] : memref<2x2048x32xf32, #tpu.memory_space<vmem>>, vector<1x2048x32xf32>
    %637 = vector.shape_cast %636 : vector<1x2048x32xf32> to vector<2048x32xf32>
    %cst_462 = arith.constant dense<0.000000e+00> : vector<16x32xf32>
    %638 = tpu.matmul %635, %637, %cst_462 {dimension_numbers = #tpu.dot_dimension_numbers<[1], [0], [0], [1], [0, 0, 1, 1], [], []>} : vector<16x2048xf32>, vector<2048x32xf32>, vector<16x32xf32> -> vector<16x32xf32>
    %c1_463 = arith.constant 1 : index
    %c0_464 = arith.constant 0 : index
    %c0_465 = arith.constant 0 : index
    %639 = vector.load %arg16[%c1_463, %c0_464, %c0_465] : memref<2x1x32xf32, #tpu.memory_space<vmem>>, vector<1x1x32xf32>
    %640 = vector.shape_cast %639 : vector<1x1x32xf32> to vector<1x32xf32>
    %641 = vector.broadcast %640 : vector<1x32xf32> to vector<16x32xf32>
    %642 = arith.addf %638, %641 : vector<16x32xf32>
    %643 = arith.addf %626, %642 : vector<16x32xf32>
    %c1_466 = arith.constant 1 : index
    %c0_467 = arith.constant 0 : index
    %c0_468 = arith.constant 0 : index
    %644 = vector.load %arg19[%c1_466, %c0_467, %c0_468] : memref<2x1x32xf32, #tpu.memory_space<vmem>>, vector<1x1x32xf32>
    %645 = vector.shape_cast %644 : vector<1x1x32xf32> to vector<1x32xf32>
    %c1_469 = arith.constant 1 : index
    %c0_470 = arith.constant 0 : index
    %c0_471 = arith.constant 0 : index
    %646 = vector.load %arg20[%c1_469, %c0_470, %c0_471] : memref<2x1x32xf32, #tpu.memory_space<vmem>>, vector<1x1x32xf32>
    %647 = vector.shape_cast %646 : vector<1x1x32xf32> to vector<1x32xf32>
    %cst_472 = arith.constant dense<0.000000e+00> : vector<16xf32>
    %648 = vector.multi_reduction <add>, %643, %cst_472 [1] : vector<16x32xf32> to vector<16xf32>
    %649 = vector.shape_cast %648 : vector<16xf32> to vector<16x1xf32>
    %cst_473 = arith.constant 3.200000e+01 : f32
    %650 = vector.broadcast %cst_473 : f32 to vector<16x1xf32>
    %651 = arith.divf %649, %650 : vector<16x1xf32>
    %652 = vector.broadcast %651 : vector<16x1xf32> to vector<16x32xf32>
    %653 = arith.subf %643, %652 : vector<16x32xf32>
    %654 = arith.mulf %653, %653 : vector<16x32xf32>
    %cst_474 = arith.constant dense<0.000000e+00> : vector<16xf32>
    %655 = vector.multi_reduction <add>, %654, %cst_474 [1] : vector<16x32xf32> to vector<16xf32>
    %656 = vector.shape_cast %655 : vector<16xf32> to vector<16x1xf32>
    %cst_475 = arith.constant 3.200000e+01 : f32
    %657 = vector.broadcast %cst_475 : f32 to vector<16x1xf32>
    %658 = arith.divf %656, %657 : vector<16x1xf32>
    %659 = vector.broadcast %651 : vector<16x1xf32> to vector<16x32xf32>
    %660 = arith.subf %643, %659 : vector<16x32xf32>
    %cst_476 = arith.constant 9.99999974E-6 : f32
    %661 = vector.broadcast %cst_476 : f32 to vector<16x1xf32>
    %662 = arith.addf %658, %661 : vector<16x1xf32>
    %663 = math.rsqrt %662 : vector<16x1xf32>
    %664 = vector.broadcast %663 : vector<16x1xf32> to vector<16x32xf32>
    %665 = arith.mulf %660, %664 : vector<16x32xf32>
    %666 = vector.broadcast %645 : vector<1x32xf32> to vector<16x32xf32>
    %667 = arith.mulf %665, %666 : vector<16x32xf32>
    %668 = vector.broadcast %647 : vector<1x32xf32> to vector<16x32xf32>
    %669 = arith.addf %667, %668 : vector<16x32xf32>
    %c0_477 = arith.constant 0 : index
    %c0_478 = arith.constant 0 : index
    %670 = vector.load %arg21[%c0_477, %c0_478] : memref<32x128xf32, #tpu.memory_space<vmem>>, vector<32x128xf32>
    %cst_479 = arith.constant dense<0.000000e+00> : vector<16x128xf32>
    %671 = tpu.matmul %669, %670, %cst_479 {dimension_numbers = #tpu.dot_dimension_numbers<[1], [0], [0], [1], [0, 0, 1, 1], [], []>} : vector<16x32xf32>, vector<32x128xf32>, vector<16x128xf32> -> vector<16x128xf32>
    %c0_480 = arith.constant 0 : index
    %c0_481 = arith.constant 0 : index
    %672 = vector.load %arg22[%c0_480, %c0_481] : memref<1x128xf32, #tpu.memory_space<vmem>>, vector<1x128xf32>
    %673 = vector.broadcast %672 : vector<1x128xf32> to vector<16x128xf32>
    %674 = arith.addf %671, %673 : vector<16x128xf32>
    %c0_482 = arith.constant 0 : index
    %c0_483 = arith.constant 0 : index
    %675 = vector.load %arg23[%c0_482, %c0_483] : memref<16x128xf32, #tpu.memory_space<vmem>>, vector<16x128xf32>
    tpu.vector_store %arg23[%c0_482, %c0_483], %674 {strides = array<i32>} : memref<16x128xf32, #tpu.memory_space<vmem>>, vector<16x128xf32>,
    return
  }
  func.func @transform_0(%arg0: i32) -> (i32, i32) {
    %c0_i32 = arith.constant 0 : i32
    %c0_i32_0 = arith.constant 0 : i32
    %c0_i32_1 = arith.constant 0 : i32
    return %c0_i32, %c0_i32_0 : i32, i32
  }
  func.func @transform_1(%arg0: i32) -> (i32, i32) {
    %c0_i32 = arith.constant 0 : i32
    %c0_i32_0 = arith.constant 0 : i32
    %c0_i32_1 = arith.constant 0 : i32
    return %c0_i32, %c0_i32_0 : i32, i32
  }
  func.func @transform_2(%arg0: i32) -> (i32, i32) {
    %c0_i32 = arith.constant 0 : i32
    %c0_i32_0 = arith.constant 0 : i32
    %c0_i32_1 = arith.constant 0 : i32
    return %c0_i32, %c0_i32_0 : i32, i32
  }
  func.func @transform_3(%arg0: i32) -> (i32, i32) {
    %c0_i32 = arith.constant 0 : i32
    %c0_i32_0 = arith.constant 0 : i32
    %c0_i32_1 = arith.constant 0 : i32
    return %c0_i32, %c0_i32_0 : i32, i32
  }
  func.func @transform_4(%arg0: i32) -> (i32, i32, i32, i32) {
    %c0_i32 = arith.constant 0 : i32
    %c0_i32_0 = arith.constant 0 : i32
    %c0_i32_1 = arith.constant 0 : i32
    %c0_i32_2 = arith.constant 0 : i32
    %c0_i32_3 = arith.constant 0 : i32
    return %c0_i32, %c0_i32_0, %c0_i32_1, %c0_i32_2 : i32, i32, i32, i32
  }
  func.func @transform_5(%arg0: i32) -> (i32, i32, i32, i32) {
    %c0_i32 = arith.constant 0 : i32
    %c0_i32_0 = arith.constant 0 : i32
    %c0_i32_1 = arith.constant 0 : i32
    %c0_i32_2 = arith.constant 0 : i32
    %c0_i32_3 = arith.constant 0 : i32
    return %c0_i32, %c0_i32_0, %c0_i32_1, %c0_i32_2 : i32, i32, i32, i32
  }
  func.func @transform_6(%arg0: i32) -> (i32, i32, i32, i32) {
    %c0_i32 = arith.constant 0 : i32
    %c0_i32_0 = arith.constant 0 : i32
    %c0_i32_1 = arith.constant 0 : i32
    %c0_i32_2 = arith.constant 0 : i32
    %c0_i32_3 = arith.constant 0 : i32
    return %c0_i32, %c0_i32_0, %c0_i32_1, %c0_i32_2 : i32, i32, i32, i32
  }
  func.func @transform_7(%arg0: i32) -> (i32, i32, i32, i32) {
    %c0_i32 = arith.constant 0 : i32
    %c0_i32_0 = arith.constant 0 : i32
    %c0_i32_1 = arith.constant 0 : i32
    %c0_i32_2 = arith.constant 0 : i32
    %c0_i32_3 = arith.constant 0 : i32
    return %c0_i32, %c0_i32_0, %c0_i32_1, %c0_i32_2 : i32, i32, i32, i32
  }
  func.func @transform_8(%arg0: i32) -> (i32, i32, i32, i32) {
    %c0_i32 = arith.constant 0 : i32
    %c0_i32_0 = arith.constant 0 : i32
    %c0_i32_1 = arith.constant 0 : i32
    %c0_i32_2 = arith.constant 0 : i32
    %c0_i32_3 = arith.constant 0 : i32
    return %c0_i32, %c0_i32_0, %c0_i32_1, %c0_i32_2 : i32, i32, i32, i32
  }
  func.func @transform_9(%arg0: i32) -> (i32, i32, i32, i32) {
    %c0_i32 = arith.constant 0 : i32
    %c0_i32_0 = arith.constant 0 : i32
    %c0_i32_1 = arith.constant 0 : i32
    %c0_i32_2 = arith.constant 0 : i32
    %c0_i32_3 = arith.constant 0 : i32
    return %c0_i32, %c0_i32_0, %c0_i32_1, %c0_i32_2 : i32, i32, i32, i32
  }
  func.func @transform_10(%arg0: i32) -> (i32, i32, i32, i32) {
    %c0_i32 = arith.constant 0 : i32
    %c0_i32_0 = arith.constant 0 : i32
    %c0_i32_1 = arith.constant 0 : i32
    %c0_i32_2 = arith.constant 0 : i32
    %c0_i32_3 = arith.constant 0 : i32
    return %c0_i32, %c0_i32_0, %c0_i32_1, %c0_i32_2 : i32, i32, i32, i32
  }
  func.func @transform_11(%arg0: i32) -> (i32, i32, i32) {
    %c0_i32 = arith.constant 0 : i32
    %c0_i32_0 = arith.constant 0 : i32
    %c0_i32_1 = arith.constant 0 : i32
    %c0_i32_2 = arith.constant 0 : i32
    return %c0_i32, %c0_i32_0, %c0_i32_1 : i32, i32, i32
  }
  func.func @transform_12(%arg0: i32) -> (i32, i32, i32) {
    %c0_i32 = arith.constant 0 : i32
    %c0_i32_0 = arith.constant 0 : i32
    %c0_i32_1 = arith.constant 0 : i32
    %c0_i32_2 = arith.constant 0 : i32
    return %c0_i32, %c0_i32_0, %c0_i32_1 : i32, i32, i32
  }
  func.func @transform_13(%arg0: i32) -> (i32, i32, i32) {
    %c0_i32 = arith.constant 0 : i32
    %c0_i32_0 = arith.constant 0 : i32
    %c0_i32_1 = arith.constant 0 : i32
    %c0_i32_2 = arith.constant 0 : i32
    return %c0_i32, %c0_i32_0, %c0_i32_1 : i32, i32, i32
  }
  func.func @transform_14(%arg0: i32) -> (i32, i32, i32) {
    %c0_i32 = arith.constant 0 : i32
    %c0_i32_0 = arith.constant 0 : i32
    %c0_i32_1 = arith.constant 0 : i32
    %c0_i32_2 = arith.constant 0 : i32
    return %c0_i32, %c0_i32_0, %c0_i32_1 : i32, i32, i32
  }
  func.func @transform_15(%arg0: i32) -> (i32, i32, i32) {
    %c0_i32 = arith.constant 0 : i32
    %c0_i32_0 = arith.constant 0 : i32
    %c0_i32_1 = arith.constant 0 : i32
    %c0_i32_2 = arith.constant 0 : i32
    return %c0_i32, %c0_i32_0, %c0_i32_1 : i32, i32, i32
  }
  func.func @transform_16(%arg0: i32) -> (i32, i32, i32) {
    %c0_i32 = arith.constant 0 : i32
    %c0_i32_0 = arith.constant 0 : i32
    %c0_i32_1 = arith.constant 0 : i32
    %c0_i32_2 = arith.constant 0 : i32
    return %c0_i32, %c0_i32_0, %c0_i32_1 : i32, i32, i32
  }
  func.func @transform_17(%arg0: i32) -> (i32, i32, i32) {
    %c0_i32 = arith.constant 0 : i32
    %c0_i32_0 = arith.constant 0 : i32
    %c0_i32_1 = arith.constant 0 : i32
    %c0_i32_2 = arith.constant 0 : i32
    return %c0_i32, %c0_i32_0, %c0_i32_1 : i32, i32, i32
  }
  func.func @transform_18(%arg0: i32) -> (i32, i32, i32) {
    %c0_i32 = arith.constant 0 : i32
    %c0_i32_0 = arith.constant 0 : i32
    %c0_i32_1 = arith.constant 0 : i32
    %c0_i32_2 = arith.constant 0 : i32
    return %c0_i32, %c0_i32_0, %c0_i32_1 : i32, i32, i32
  }
  func.func @transform_19(%arg0: i32) -> (i32, i32, i32) {
    %c0_i32 = arith.constant 0 : i32
    %c0_i32_0 = arith.constant 0 : i32
    %c0_i32_1 = arith.constant 0 : i32
    %c0_i32_2 = arith.constant 0 : i32
    return %c0_i32, %c0_i32_0, %c0_i32_1 : i32, i32, i32
  }
  func.func @transform_20(%arg0: i32) -> (i32, i32) {
    %c0_i32 = arith.constant 0 : i32
    %c0_i32_0 = arith.constant 0 : i32
    %c0_i32_1 = arith.constant 0 : i32
    return %c0_i32, %c0_i32_0 : i32, i32
  }
  func.func @transform_21(%arg0: i32) -> (i32, i32) {
    %c0_i32 = arith.constant 0 : i32
    %c0_i32_0 = arith.constant 0 : i32
    %c0_i32_1 = arith.constant 0 : i32
    return %c0_i32, %c0_i32_0 : i32, i32
  }
  func.func @transform_22(%arg0: i32) -> (i32, i32) {
    %c0_i32 = arith.constant 0 : i32
    %c0_i32_0 = arith.constant 0 : i32
    %c0_i32_1 = arith.constant 0 : i32
    return %c0_i32, %c0_i32_0 : i32, i32
  }
}

</mosaic_0001>

<llo_original>
// kernel: tpu_custom_call.1
$region0: #{tpu_custom_call.1}
  #allocation0 [shape = 'u32[]', space=smem, size = 0x4, offset = 0x4, fixed_abs, tag = 'smem constant byte address 0x4 - core index']
  #allocation1 [shape = 'u32[144,128]{1,0:T(1,128)}', space=vmem, size = 0x12000, scoped, tag = 'internal scratch']
  #allocation2 [shape = 'f32[16,32]{1,0:T(8,128)}', space=vmem, size = 0x2000, scoped, tag = 'scratch operand']
  %s0 = inlined_call_operand.vmem [shape: f32[16,4], index: 0, kind: input, shape index: {}]
  %s1 = inlined_call_operand.vmem [shape: f32[16,32], index: 1, kind: input, shape index: {}]
  %s2 = inlined_call_operand.vmem [shape: f32[4,32], index: 2, kind: input, shape index: {}]
  %s3 = inlined_call_operand.vmem [shape: f32[1,32], index: 3, kind: input, shape index: {}]
  %s4 = inlined_call_operand.vmem [shape: f32[2,4,32,8], index: 4, kind: input, shape index: {}]
  %s5 = inlined_call_operand.vmem [shape: f32[2,4,32,8], index: 5, kind: input, shape index: {}]
  %s6 = inlined_call_operand.vmem [shape: f32[2,4,32,8], index: 6, kind: input, shape index: {}]
  %s7 = inlined_call_operand.vmem [shape: f32[2,4,1,8], index: 7, kind: input, shape index: {}]
  %s8 = inlined_call_operand.vmem [shape: f32[2,4,1,8], index: 8, kind: input, shape index: {}]
  %s9 = inlined_call_operand.vmem [shape: f32[2,4,1,8], index: 9, kind: input, shape index: {}]
  %s10 = inlined_call_operand.vmem [shape: f32[2,4,8,32], index: 10, kind: input, shape index: {}]
  %s11 = inlined_call_operand.vmem [shape: f32[2,1,32], index: 11, kind: input, shape index: {}]
  %s12 = inlined_call_operand.vmem [shape: f32[2,32,2048], index: 12, kind: input, shape index: {}]
  %s13 = inlined_call_operand.vmem [shape: f32[2,1,2048], index: 13, kind: input, shape index: {}]
  %s14 = inlined_call_operand.vmem [shape: f32[2,2048,32], index: 14, kind: input, shape index: {}]
  %s15 = inlined_call_operand.vmem [shape: f32[2,1,32], index: 15, kind: input, shape index: {}]
  %s16 = inlined_call_operand.vmem [shape: f32[2,1,32], index: 16, kind: input, shape index: {}]
  %s17 = inlined_call_operand.vmem [shape: f32[2,1,32], index: 17, kind: input, shape index: {}]
  %s18 = inlined_call_operand.vmem [shape: f32[2,1,32], index: 18, kind: input, shape index: {}]
  %s19 = inlined_call_operand.vmem [shape: f32[2,1,32], index: 19, kind: input, shape index: {}]
  %s20 = inlined_call_operand.vmem [shape: f32[32,128], index: 20, kind: input, shape index: {}]
  %s21 = inlined_call_operand.vmem [shape: f32[1,128], index: 21, kind: input, shape index: {}]
  %s22 = inlined_call_operand.hbm [shape: f32[16,128], index: 22, kind: output, shape index: {}]
  %s23 = sld [smem:[#allocation0]]
  $region98: #{tpu_custom_call.1} parent=0
    _
  %s25 = ssub.s32 1, %s23
  %s26 = scalar_select 0, %s25, %s23
  $region1: #{tpu_custom_call.1} parent=0
    #allocation3 [shape = 'u8[8192]{0}', space=vmem, size = 0x2000, scoped, tag = 'output window, operand 0, single buffered']
    #allocation4 [shape = 's32[1]{0}', space=sflag, size = 0x4, scoped, tag = 'scoped memory for tpu_custom_call.1']
    %27 = vsyncpa [#allocation4], 0
    // Predicated region
    $region2: #{tpu_custom_call.1} parent=1 // pred_check
      _
    $region3: #{tpu_custom_call.1} parent=1 // pred_check_branch
      %29 = sbr.rel (0) target = $region5
    $region4: #{tpu_custom_call.1} parent=1 // pred_region
      _
    $region5: #{tpu_custom_call.1} parent=1 // pred_fallthru
      _
    // Predicated region
    $region6: #{tpu_custom_call.1} parent=1 // pred_check
      _
    $region7: #{tpu_custom_call.1} parent=1 // pred_check_branch
      %31 = sbr.rel (0) target = $region9
    $region8: #{tpu_custom_call.1} parent=1 // pred_region
      _
    $region9: #{tpu_custom_call.1} parent=1 // pred_fallthru
      _
    // Predicated region
    $region10: #{tpu_custom_call.1} parent=1 // pred_check
      _
    $region11: #{tpu_custom_call.1} parent=1 // pred_check_branch
      %33 = sbr.rel (0) target = $region13
    $region12: #{tpu_custom_call.1} parent=1 // pred_region
      _
    $region13: #{tpu_custom_call.1} parent=1 // pred_fallthru
      _
    // Predicated region
    $region14: #{tpu_custom_call.1} parent=1 // pred_check
      _
    $region15: #{tpu_custom_call.1} parent=1 // pred_check_branch
      %35 = sbr.rel (0) target = $region17
    $region16: #{tpu_custom_call.1} parent=1 // pred_region
      _
    $region17: #{tpu_custom_call.1} parent=1 // pred_fallthru
      _
    // Predicated region
    $region18: #{tpu_custom_call.1} parent=1 // pred_check
      _
    $region19: #{tpu_custom_call.1} parent=1 // pred_check_branch
      %37 = sbr.rel (0) target = $region21
    $region20: #{tpu_custom_call.1} parent=1 // pred_region
      _
    $region21: #{tpu_custom_call.1} parent=1 // pred_fallthru
      _
    // Predicated region
    $region22: #{tpu_custom_call.1} parent=1 // pred_check
      _
    $region23: #{tpu_custom_call.1} parent=1 // pred_check_branch
      %39 = sbr.rel (0) target = $region25
    $region24: #{tpu_custom_call.1} parent=1 // pred_region
      _
    $region25: #{tpu_custom_call.1} parent=1 // pred_fallthru
      _
    // Predicated region
    $region26: #{tpu_custom_call.1} parent=1 // pred_check
      _
    $region27: #{tpu_custom_call.1} parent=1 // pred_check_branch
      %41 = sbr.rel (0) target = $region29
    $region28: #{tpu_custom_call.1} parent=1 // pred_region
      _
    $region29: #{tpu_custom_call.1} parent=1 // pred_fallthru
      _
    // Predicated region
    $region30: #{tpu_custom_call.1} parent=1 // pred_check
      _
    $region31: #{tpu_custom_call.1} parent=1 // pred_check_branch
      %43 = sbr.rel (0) target = $region33
    $region32: #{tpu_custom_call.1} parent=1 // pred_region
      _
    $region33: #{tpu_custom_call.1} parent=1 // pred_fallthru
      _
    // Predicated region
    $region34: #{tpu_custom_call.1} parent=1 // pred_check
      _
    $region35: #{tpu_custom_call.1} parent=1 // pred_check_branch
      %45 = sbr.rel (0) target = $region37
    $region36: #{tpu_custom_call.1} parent=1 // pred_region
      _
    $region37: #{tpu_custom_call.1} parent=1 // pred_fallthru
      _
    // Predicated region
    $region38: #{tpu_custom_call.1} parent=1 // pred_check
      _
    $region39: #{tpu_custom_call.1} parent=1 // pred_check_branch
      %47 = sbr.rel (0) target = $region41
    $region40: #{tpu_custom_call.1} parent=1 // pred_region
      _
    $region41: #{tpu_custom_call.1} parent=1 // pred_fallthru
      _
    // Predicated region
    $region42: #{tpu_custom_call.1} parent=1 // pred_check
      _
    $region43: #{tpu_custom_call.1} parent=1 // pred_check_branch
      %49 = sbr.rel (0) target = $region45
    $region44: #{tpu_custom_call.1} parent=1 // pred_region
      _
    $region45: #{tpu_custom_call.1} parent=1 // pred_fallthru
      _
    // Predicated region
    $region46: #{tpu_custom_call.1} parent=1 // pred_check
      _
    $region47: #{tpu_custom_call.1} parent=1 // pred_check_branch
      %51 = sbr.rel (0) target = $region49
    $region48: #{tpu_custom_call.1} parent=1 // pred_region
      _
    $region49: #{tpu_custom_call.1} parent=1 // pred_fallthru
      _
    // Predicated region
    $region50: #{tpu_custom_call.1} parent=1 // pred_check
      _
    $region51: #{tpu_custom_call.1} parent=1 // pred_check_branch
      %53 = sbr.rel (0) target = $region53
    $region52: #{tpu_custom_call.1} parent=1 // pred_region
      _
    $region53: #{tpu_custom_call.1} parent=1 // pred_fallthru
      _
    // Predicated region
    $region54: #{tpu_custom_call.1} parent=1 // pred_check
      _
    $region55: #{tpu_custom_call.1} parent=1 // pred_check_branch
      %55 = sbr.rel (0) target = $region57
    $region56: #{tpu_custom_call.1} parent=1 // pred_region
      _
    $region57: #{tpu_custom_call.1} parent=1 // pred_fallthru
      _
    // Predicated region
    $region58: #{tpu_custom_call.1} parent=1 // pred_check
      _
    $region59: #{tpu_custom_call.1} parent=1 // pred_check_branch
      %57 = sbr.rel (0) target = $region61
    $region60: #{tpu_custom_call.1} parent=1 // pred_region
      _
    $region61: #{tpu_custom_call.1} parent=1 // pred_fallthru
      _
    // Predicated region
    $region62: #{tpu_custom_call.1} parent=1 // pred_check
      _
    $region63: #{tpu_custom_call.1} parent=1 // pred_check_branch
      %59 = sbr.rel (0) target = $region65
    $region64: #{tpu_custom_call.1} parent=1 // pred_region
      _
    $region65: #{tpu_custom_call.1} parent=1 // pred_fallthru
      _
    // Predicated region
    $region66: #{tpu_custom_call.1} parent=1 // pred_check
      _
    $region67: #{tpu_custom_call.1} parent=1 // pred_check_branch
      %61 = sbr.rel (0) target = $region69
    $region68: #{tpu_custom_call.1} parent=1 // pred_region
      _
    $region69: #{tpu_custom_call.1} parent=1 // pred_fallthru
      _
    // Predicated region
    $region70: #{tpu_custom_call.1} parent=1 // pred_check
      _
    $region71: #{tpu_custom_call.1} parent=1 // pred_check_branch
      %63 = sbr.rel (0) target = $region73
    $region72: #{tpu_custom_call.1} parent=1 // pred_region
      _
    $region73: #{tpu_custom_call.1} parent=1 // pred_fallthru
      _
    // Predicated region
    $region74: #{tpu_custom_call.1} parent=1 // pred_check
      _
    $region75: #{tpu_custom_call.1} parent=1 // pred_check_branch
      %65 = sbr.rel (0) target = $region77
    $region76: #{tpu_custom_call.1} parent=1 // pred_region
      _
    $region77: #{tpu_custom_call.1} parent=1 // pred_fallthru
      _
    // Predicated region
    $region78: #{tpu_custom_call.1} parent=1 // pred_check
      _
    $region79: #{tpu_custom_call.1} parent=1 // pred_check_branch
      %67 = sbr.rel (0) target = $region81
    $region80: #{tpu_custom_call.1} parent=1 // pred_region
      _
    $region81: #{tpu_custom_call.1} parent=1 // pred_fallthru
      _
    // Predicated region
    $region82: #{tpu_custom_call.1} parent=1 // pred_check
      _
    $region83: #{tpu_custom_call.1} parent=1 // pred_check_branch
      %69 = sbr.rel (0) target = $region85
    $region84: #{tpu_custom_call.1} parent=1 // pred_region
      _
    $region85: #{tpu_custom_call.1} parent=1 // pred_fallthru
      _
    // Predicated region
    $region86: #{tpu_custom_call.1} parent=1 // pred_check
      _
    $region87: #{tpu_custom_call.1} parent=1 // pred_check_branch
      %71 = sbr.rel (0) target = $region89
    $region88: #{tpu_custom_call.1} parent=1 // pred_region
      _
    $region89: #{tpu_custom_call.1} parent=1 // pred_fallthru
      _
    %v72 = vld [vmem:[%s0] sm:$0xff]
    %v73 = vld [vmem:[%s0 + $0x8] sm:$0xff]
    %v74 = vld [vmem:[%s2] sm:$0xf]
    %v75 = vld [vmem:[%s3] sm:$0x1]
    %v77 = vlaneseq
    %v78 = vshrl.u32 %v77, 7
    %v79 = vsub.s32 0, %v78
    %v80 = vrot.slane %v75, %v79
    %vm82 = vcmask 31744
    %v84 = vsel %vm82, %v72, 0
    %v87 = vsel %vm82, %v73, 0
    %vm89 = vcmask 1043456
    %v91 = vsel %vm89, %v74, 0
    %93 = vmatprep.subr.mxu0 0.0
    %94 = vmatpush1.msra.mxu0 %v91
    %95 = vmatprep.subr.mxu0 0.0
    %96 = vmatpush1.msra.mxu0 0.0
    %97 = vmatprep.subr.mxu0 0.0
    %98 = vmatpush1.msra.mxu0 0.0
    %99 = vmatprep.subr.mxu0 0.0
    %100 = vmatpush1.msra.mxu0 0.0
    %101 = vmatprep.subr.mxu0 0.0
    %102 = vmatpush1.msra.mxu0 0.0
    %103 = vmatprep.subr.mxu0 0.0
    %104 = vmatpush1.msra.mxu0 0.0
    %105 = vmatprep.subr.mxu0 0.0
    %106 = vmatpush1.msra.mxu0 0.0
    %107 = vmatprep.subr.mxu0 0.0
    %108 = vmatpush1.msra.mxu0 0.0
    %109 = vmatprep.subr.mxu0 0.0
    %110 = vmatpush1.msra.mxu0 0.0
    %111 = vmatprep.subr.mxu0 0.0
    %112 = vmatpush1.msra.mxu0 0.0
    %113 = vmatprep.subr.mxu0 0.0
    %114 = vmatpush1.msra.mxu0 0.0
    %115 = vmatprep.subr.mxu0 0.0
    %116 = vmatpush1.msra.mxu0 0.0
    %117 = vmatprep.subr.mxu0 0.0
    %118 = vmatpush1.msra.mxu0 0.0
    %119 = vmatprep.subr.mxu0 0.0
    %120 = vmatpush1.msra.mxu0 0.0
    %121 = vmatprep.subr.mxu0 0.0
    %122 = vmatpush1.msra.mxu0 0.0
    %123 = vmatprep.subr.mxu0 0.0
    %124 = vmatpush1.msra.mxu0 0.0
    %125 = vmatprep.subr.mxu0 0.0
    %126 = vmatpush1.msra.mxu0 0.0
    %127 = vmatprep.subr.mxu0 0.0
    %128 = vmatpush1.msra.mxu0 0.0
    %129 = vmatprep.subr.mxu0 0.0
    %130 = vmatpush1.msra.mxu0 0.0
    %131 = vmatprep.subr.mxu0 0.0
    %132 = vmatpush1.msra.mxu0 0.0
    %133 = vmatprep.subr.mxu0 0.0
    %134 = vmatpush1.msra.mxu0 0.0
    %135 = vmatprep.subr.mxu0 0.0
    %136 = vmatpush1.msra.mxu0 0.0
    %137 = vmatprep.subr.mxu0 0.0
    %138 = vmatpush1.msra.mxu0 0.0
    %139 = vmatprep.subr.mxu0 0.0
    %140 = vmatpush1.msra.mxu0 0.0
    %141 = vmatprep.subr.mxu0 0.0
    %142 = vmatpush1.msra.mxu0 0.0
    %143 = vmatprep.subr.mxu0 0.0
    %144 = vmatpush1.msra.mxu0 0.0
    %145 = vmatprep.subr.mxu0 0.0
    %146 = vmatpush1.msra.mxu0 0.0
    %147 = vmatprep.subr.mxu0 0.0
    %148 = vmatpush1.msra.mxu0 0.0
    %149 = vmatprep.subr.mxu0 0.0
    %150 = vmatpush1.msra.mxu0 0.0
    %151 = vmatprep.subr.mxu0 0.0
    %152 = vmatpush1.msra.mxu0 0.0
    %153 = vmatprep.subr.mxu0 0.0
    %154 = vmatpush1.msra.mxu0 0.0
    %155 = vmatprep.subr.mxu0 0.0
    %156 = vmatpush1.msra.mxu0 0.0
    %157 = vmatprep.mubr.f32.mxu0 0.0
    %158 = vmatmul.mubr.f32.gmra.mrb[0].mxu0 %v84
    %v159 = vpop.f32.mrb[0].mxu0
    %v160 = vadd.f32 %v80, %v159
    %v161 = vpop.f32.mrb[0].mxu0
    %162 = vmatprep.mubr.f32.mxu0 0.0
    %163 = vmatmul.mubr.f32.gmra.mrb[0].mxu0 %v87
    %v164 = vpop.f32.mrb[0].mxu0
    %v165 = vadd.f32 %v80, %v164
    %v166 = vpop.f32.mrb[0].mxu0
    %167 = vdwg.mxu0
    %v168 = vld [vmem:[%s1] sm:$0xff]
    %v169 = vld [vmem:[%s1 + $0x8] sm:$0xff]
    %v170 = vadd.f32 %v160, %v168
    %v171 = vadd.f32 %v165, %v169
    %v172 = vld [vmem:[%s4] sm:$0xff]
    %v173 = vld [vmem:[%s4 + $0x8] sm:$0xff]
    %v174 = vld [vmem:[%s4 + $0x10] sm:$0xff]
    %v175 = vld [vmem:[%s4 + $0x18] sm:$0xff]
    %v176 = vld [vmem:[%s7] sm:$0x1]
    %v178 = vlaneseq
    %v179 = vshrl.u32 %v178, 7
    %v180 = vsub.s32 0, %v179
    %v181 = vrot.slane %v176, %v180
    %vm183 = vcmask 261120
    %v185 = vsel %vm183, %v170, 0
    %v188 = vsel %vm183, %v171, 0
    %190 = vmatprep.subr.mxu0 0.0
    %191 = vmatpush1.msra.mxu0 %v172
    %192 = vmatprep.subr.mxu0 0.0
    %193 = vmatpush1.msra.mxu0 %v173
    %194 = vmatprep.subr.mxu0 0.0
    %195 = vmatpush1.msra.mxu0 %v174
    %196 = vmatprep.subr.mxu0 0.0
    %197 = vmatpush1.msra.mxu0 %v175
    %198 = vmatprep.subr.mxu0 0.0
    %199 = vmatpush1.msra.mxu0 0.0
    %200 = vmatprep.subr.mxu0 0.0
    %201 = vmatpush1.msra.mxu0 0.0
    %202 = vmatprep.subr.mxu0 0.0
    %203 = vmatpush1.msra.mxu0 0.0
    %204 = vmatprep.subr.mxu0 0.0
    %205 = vmatpush1.msra.mxu0 0.0
    %206 = vmatprep.subr.mxu0 0.0
    %207 = vmatpush1.msra.mxu0 0.0
    %208 = vmatprep.subr.mxu0 0.0
    %209 = vmatpush1.msra.mxu0 0.0
    %210 = vmatprep.subr.mxu0 0.0
    %211 = vmatpush1.msra.mxu0 0.0
    %212 = vmatprep.subr.mxu0 0.0
    %213 = vmatpush1.msra.mxu0 0.0
    %214 = vmatprep.subr.mxu0 0.0
    %215 = vmatpush1.msra.mxu0 0.0
    %216 = vmatprep.subr.mxu0 0.0
    %217 = vmatpush1.msra.mxu0 0.0
    %218 = vmatprep.subr.mxu0 0.0
    %219 = vmatpush1.msra.mxu0 0.0
    %220 = vmatprep.subr.mxu0 0.0
    %221 = vmatpush1.msra.mxu0 0.0
    %222 = vmatprep.subr.mxu0 0.0
    %223 = vmatpush1.msra.mxu0 0.0
    %224 = vmatprep.subr.mxu0 0.0
    %225 = vmatpush1.msra.mxu0 0.0
    %226 = vmatprep.subr.mxu0 0.0
    %227 = vmatpush1.msra.mxu0 0.0
    %228 = vmatprep.subr.mxu0 0.0
    %229 = vmatpush1.msra.mxu0 0.0
    %230 = vmatprep.subr.mxu0 0.0
    %231 = vmatpush1.msra.mxu0 0.0
    %232 = vmatprep.subr.mxu0 0.0
    %233 = vmatpush1.msra.mxu0 0.0
    %234 = vmatprep.subr.mxu0 0.0
    %235 = vmatpush1.msra.mxu0 0.0
    %236 = vmatprep.subr.mxu0 0.0
    %237 = vmatpush1.msra.mxu0 0.0
    %238 = vmatprep.subr.mxu0 0.0
    %239 = vmatpush1.msra.mxu0 0.0
    %240 = vmatprep.subr.mxu0 0.0
    %241 = vmatpush1.msra.mxu0 0.0
    %242 = vmatprep.subr.mxu0 0.0
    %243 = vmatpush1.msra.mxu0 0.0
    %244 = vmatprep.subr.mxu0 0.0
    %245 = vmatpush1.msra.mxu0 0.0
    %246 = vmatprep.subr.mxu0 0.0
    %247 = vmatpush1.msra.mxu0 0.0
    %248 = vmatprep.subr.mxu0 0.0
    %249 = vmatpush1.msra.mxu0 0.0
    %250 = vmatprep.subr.mxu0 0.0
    %251 = vmatpush1.msra.mxu0 0.0
    %252 = vmatprep.subr.mxu0 0.0
    %253 = vmatpush1.msra.mxu0 0.0
    %254 = vmatprep.mubr.f32.mxu0 0.0
    %255 = vmatmul.mubr.f32.gmra.mrb[0].mxu0 %v185
    %v256 = vpop.f32.mrb[0].mxu0
    %v257 = vadd.f32 %v181, %v256
    %v258 = vpop.f32.mrb[0].mxu0
    %259 = vmatprep.mubr.f32.mxu0 0.0
    %260 = vmatmul.mubr.f32.gmra.mrb[0].mxu0 %v188
    %v261 = vpop.f32.mrb[0].mxu0
    %v262 = vadd.f32 %v181, %v261
    %v263 = vpop.f32.mrb[0].mxu0
    %264 = vdwg.mxu0
    %v265 = vld [vmem:[%s5] sm:$0xff]
    %v266 = vld [vmem:[%s5 + $0x8] sm:$0xff]
    %v267 = vld [vmem:[%s5 + $0x10] sm:$0xff]
    %v268 = vld [vmem:[%s5 + $0x18] sm:$0xff]
    %v269 = vld [vmem:[%s8] sm:$0x1]
    %v271 = vlaneseq
    %v272 = vshrl.u32 %v271, 7
    %v273 = vsub.s32 0, %v272
    %v274 = vrot.slane %v269, %v273
    %276 = vmatprep.subr.mxu0 0.0
    %277 = vmatpush1.msra.mxu0 %v265
    %278 = vmatprep.subr.mxu0 0.0
    %279 = vmatpush1.msra.mxu0 %v266
    %280 = vmatprep.subr.mxu0 0.0
    %281 = vmatpush1.msra.mxu0 %v267
    %282 = vmatprep.subr.mxu0 0.0
    %283 = vmatpush1.msra.mxu0 %v268
    %284 = vmatprep.subr.mxu0 0.0
    %285 = vmatpush1.msra.mxu0 0.0
    %286 = vmatprep.subr.mxu0 0.0
    %287 = vmatpush1.msra.mxu0 0.0
    %288 = vmatprep.subr.mxu0 0.0
    %289 = vmatpush1.msra.mxu0 0.0
    %290 = vmatprep.subr.mxu0 0.0
    %291 = vmatpush1.msra.mxu0 0.0
    %292 = vmatprep.subr.mxu0 0.0
    %293 = vmatpush1.msra.mxu0 0.0
    %294 = vmatprep.subr.mxu0 0.0
    %295 = vmatpush1.msra.mxu0 0.0
    %296 = vmatprep.subr.mxu0 0.0
    %297 = vmatpush1.msra.mxu0 0.0
    %298 = vmatprep.subr.mxu0 0.0
    %299 = vmatpush1.msra.mxu0 0.0
    %300 = vmatprep.subr.mxu0 0.0
    %301 = vmatpush1.msra.mxu0 0.0
    %302 = vmatprep.subr.mxu0 0.0
    %303 = vmatpush1.msra.mxu0 0.0
    %304 = vmatprep.subr.mxu0 0.0
    %305 = vmatpush1.msra.mxu0 0.0
    %306 = vmatprep.subr.mxu0 0.0
    %307 = vmatpush1.msra.mxu0 0.0
    %308 = vmatprep.subr.mxu0 0.0
    %309 = vmatpush1.msra.mxu0 0.0
    %310 = vmatprep.subr.mxu0 0.0
    %311 = vmatpush1.msra.mxu0 0.0
    %312 = vmatprep.subr.mxu0 0.0
    %313 = vmatpush1.msra.mxu0 0.0
    %314 = vmatprep.subr.mxu0 0.0
    %315 = vmatpush1.msra.mxu0 0.0
    %316 = vmatprep.subr.mxu0 0.0
    %317 = vmatpush1.msra.mxu0 0.0
    %318 = vmatprep.subr.mxu0 0.0
    %319 = vmatpush1.msra.mxu0 0.0
    %320 = vmatprep.subr.mxu0 0.0
    %321 = vmatpush1.msra.mxu0 0.0
    %322 = vmatprep.subr.mxu0 0.0
    %323 = vmatpush1.msra.mxu0 0.0
    %324 = vmatprep.subr.mxu0 0.0
    %325 = vmatpush1.msra.mxu0 0.0
    %326 = vmatprep.subr.mxu0 0.0
    %327 = vmatpush1.msra.mxu0 0.0
    %328 = vmatprep.subr.mxu0 0.0
    %329 = vmatpush1.msra.mxu0 0.0
    %330 = vmatprep.subr.mxu0 0.0
    %331 = vmatpush1.msra.mxu0 0.0
    %332 = vmatprep.subr.mxu0 0.0
    %333 = vmatpush1.msra.mxu0 0.0
    %334 = vmatprep.subr.mxu0 0.0
    %335 = vmatpush1.msra.mxu0 0.0
    %336 = vmatprep.subr.mxu0 0.0
    %337 = vmatpush1.msra.mxu0 0.0
    %338 = vmatprep.subr.mxu0 0.0
    %339 = vmatpush1.msra.mxu0 0.0
    %340 = vmatprep.mubr.f32.mxu0 0.0
    %341 = vmatmul.mubr.f32.gmra.mrb[0].mxu0 %v185
    %v342 = vpop.f32.mrb[0].mxu0
    %v343 = vadd.f32 %v274, %v342
    %v344 = vpop.f32.mrb[0].mxu0
    %345 = vmatprep.mubr.f32.mxu0 0.0
    %346 = vmatmul.mubr.f32.gmra.mrb[0].mxu0 %v188
    %v347 = vpop.f32.mrb[0].mxu0
    %v348 = vadd.f32 %v274, %v347
    %v349 = vpop.f32.mrb[0].mxu0
    %350 = vdwg.mxu0
    %v351 = vld [vmem:[%s6] sm:$0xff]
    %v352 = vld [vmem:[%s6 + $0x8] sm:$0xff]
    %v353 = vld [vmem:[%s6 + $0x10] sm:$0xff]
    %v354 = vld [vmem:[%s6 + $0x18] sm:$0xff]
    %v355 = vld [vmem:[%s9] sm:$0x1]
    %v357 = vlaneseq
    %v358 = vshrl.u32 %v357, 7
    %v359 = vsub.s32 0, %v358
    %v360 = vrot.slane %v355, %v359
    %362 = vmatprep.subr.mxu0 0.0
    %363 = vmatpush1.msra.mxu0 %v351
    %364 = vmatprep.subr.mxu0 0.0
    %365 = vmatpush1.msra.mxu0 %v352
    %366 = vmatprep.subr.mxu0 0.0
    %367 = vmatpush1.msra.mxu0 %v353
    %368 = vmatprep.subr.mxu0 0.0
    %369 = vmatpush1.msra.mxu0 %v354
    %370 = vmatprep.subr.mxu0 0.0
    %371 = vmatpush1.msra.mxu0 0.0
    %372 = vmatprep.subr.mxu0 0.0
    %373 = vmatpush1.msra.mxu0 0.0
    %374 = vmatprep.subr.mxu0 0.0
    %375 = vmatpush1.msra.mxu0 0.0
    %376 = vmatprep.subr.mxu0 0.0
    %377 = vmatpush1.msra.mxu0 0.0
    %378 = vmatprep.subr.mxu0 0.0
    %379 = vmatpush1.msra.mxu0 0.0
    %380 = vmatprep.subr.mxu0 0.0
    %381 = vmatpush1.msra.mxu0 0.0
    %382 = vmatprep.subr.mxu0 0.0
    %383 = vmatpush1.msra.mxu0 0.0
    %384 = vmatprep.subr.mxu0 0.0
    %385 = vmatpush1.msra.mxu0 0.0
    %386 = vmatprep.subr.mxu0 0.0
    %387 = vmatpush1.msra.mxu0 0.0
    %388 = vmatprep.subr.mxu0 0.0
    %389 = vmatpush1.msra.mxu0 0.0
    %390 = vmatprep.subr.mxu0 0.0
    %391 = vmatpush1.msra.mxu0 0.0
    %392 = vmatprep.subr.mxu0 0.0
    %393 = vmatpush1.msra.mxu0 0.0
    %394 = vmatprep.subr.mxu0 0.0
    %395 = vmatpush1.msra.mxu0 0.0
    %396 = vmatprep.subr.mxu0 0.0
    %397 = vmatpush1.msra.mxu0 0.0
    %398 = vmatprep.subr.mxu0 0.0
    %399 = vmatpush1.msra.mxu0 0.0
    %400 = vmatprep.subr.mxu0 0.0
    %401 = vmatpush1.msra.mxu0 0.0
    %402 = vmatprep.subr.mxu0 0.0
    %403 = vmatpush1.msra.mxu0 0.0
    %404 = vmatprep.subr.mxu0 0.0
    %405 = vmatpush1.msra.mxu0 0.0
    %406 = vmatprep.subr.mxu0 0.0
    %407 = vmatpush1.msra.mxu0 0.0
    %408 = vmatprep.subr.mxu0 0.0
    %409 = vmatpush1.msra.mxu0 0.0
    %410 = vmatprep.subr.mxu0 0.0
    %411 = vmatpush1.msra.mxu0 0.0
    %412 = vmatprep.subr.mxu0 0.0
    %413 = vmatpush1.msra.mxu0 0.0
    %414 = vmatprep.subr.mxu0 0.0
    %415 = vmatpush1.msra.mxu0 0.0
    %416 = vmatprep.subr.mxu0 0.0
    %417 = vmatpush1.msra.mxu0 0.0
    %418 = vmatprep.subr.mxu0 0.0
    %419 = vmatpush1.msra.mxu0 0.0
    %420 = vmatprep.subr.mxu0 0.0
    %421 = vmatpush1.msra.mxu0 0.0
    %422 = vmatprep.subr.mxu0 0.0
    %423 = vmatpush1.msra.mxu0 0.0
    %424 = vmatprep.subr.mxu0 0.0
    %425 = vmatpush1.msra.mxu0 0.0
    %426 = vmatprep.mubr.f32.mxu0 0.0
    %427 = vmatmul.mubr.f32.gmra.mrb[0].mxu0 %v185
    %v428 = vpop.f32.mrb[0].mxu0
    %v429 = vadd.f32 %v360, %v428
    %v430 = vpop.f32.mrb[0].mxu0
    %431 = vmatprep.mubr.f32.mxu0 0.0
    %432 = vmatmul.mubr.f32.gmra.mrb[0].mxu0 %v188
    %v433 = vpop.f32.mrb[0].mxu0
    %v434 = vadd.f32 %v360, %v433
    %v435 = vpop.f32.mrb[0].mxu0
    %436 = vdwg.mxu0
    %s437 = scalar_lea.vmem %s4, 32
    %v438 = vld [vmem:[%s437] sm:$0xff]
    %v439 = vld [vmem:[%s437 + $0x8] sm:$0xff]
    %v440 = vld [vmem:[%s437 + $0x10] sm:$0xff]
    %v441 = vld [vmem:[%s437 + $0x18] sm:$0xff]
    %s442 = scalar_lea.vmem %s7, 1
    %v443 = vld [vmem:[%s442] sm:$0x1]
    %v445 = vlaneseq
    %v446 = vshrl.u32 %v445, 7
    %v447 = vsub.s32 0, %v446
    %v448 = vrot.slane %v443, %v447
    %450 = vmatprep.subr.mxu0 0.0
    %451 = vmatpush1.msra.mxu0 %v438
    %452 = vmatprep.subr.mxu0 0.0
    %453 = vmatpush1.msra.mxu0 %v439
    %454 = vmatprep.subr.mxu0 0.0
    %455 = vmatpush1.msra.mxu0 %v440
    %456 = vmatprep.subr.mxu0 0.0
    %457 = vmatpush1.msra.mxu0 %v441
    %458 = vmatprep.subr.mxu0 0.0
    %459 = vmatpush1.msra.mxu0 0.0
    %460 = vmatprep.subr.mxu0 0.0
    %461 = vmatpush1.msra.mxu0 0.0
    %462 = vmatprep.subr.mxu0 0.0
    %463 = vmatpush1.msra.mxu0 0.0
    %464 = vmatprep.subr.mxu0 0.0
    %465 = vmatpush1.msra.mxu0 0.0
    %466 = vmatprep.subr.mxu0 0.0
    %467 = vmatpush1.msra.mxu0 0.0
    %468 = vmatprep.subr.mxu0 0.0
    %469 = vmatpush1.msra.mxu0 0.0
    %470 = vmatprep.subr.mxu0 0.0
    %471 = vmatpush1.msra.mxu0 0.0
    %472 = vmatprep.subr.mxu0 0.0
    %473 = vmatpush1.msra.mxu0 0.0
    %474 = vmatprep.subr.mxu0 0.0
    %475 = vmatpush1.msra.mxu0 0.0
    %476 = vmatprep.subr.mxu0 0.0
    %477 = vmatpush1.msra.mxu0 0.0
    %478 = vmatprep.subr.mxu0 0.0
    %479 = vmatpush1.msra.mxu0 0.0
    %480 = vmatprep.subr.mxu0 0.0
    %481 = vmatpush1.msra.mxu0 0.0
    %482 = vmatprep.subr.mxu0 0.0
    %483 = vmatpush1.msra.mxu0 0.0
    %484 = vmatprep.subr.mxu0 0.0
    %485 = vmatpush1.msra.mxu0 0.0
    %486 = vmatprep.subr.mxu0 0.0
    %487 = vmatpush1.msra.mxu0 0.0
    %488 = vmatprep.subr.mxu0 0.0
    %489 = vmatpush1.msra.mxu0 0.0
    %490 = vmatprep.subr.mxu0 0.0
    %491 = vmatpush1.msra.mxu0 0.0
    %492 = vmatprep.subr.mxu0 0.0
    %493 = vmatpush1.msra.mxu0 0.0
    %494 = vmatprep.subr.mxu0 0.0
    %495 = vmatpush1.msra.mxu0 0.0
    %496 = vmatprep.subr.mxu0 0.0
    %497 = vmatpush1.msra.mxu0 0.0
    %498 = vmatprep.subr.mxu0 0.0
    %499 = vmatpush1.msra.mxu0 0.0
    %500 = vmatprep.subr.mxu0 0.0
    %501 = vmatpush1.msra.mxu0 0.0
    %502 = vmatprep.subr.mxu0 0.0
    %503 = vmatpush1.msra.mxu0 0.0
    %504 = vmatprep.subr.mxu0 0.0
    %505 = vmatpush1.msra.mxu0 0.0
    %506 = vmatprep.subr.mxu0 0.0
    %507 = vmatpush1.msra.mxu0 0.0
    %508 = vmatprep.subr.mxu0 0.0
    %509 = vmatpush1.msra.mxu0 0.0
    %510 = vmatprep.subr.mxu0 0.0
    %511 = vmatpush1.msra.mxu0 0.0
    %512 = vmatprep.subr.mxu0 0.0
    %513 = vmatpush1.msra.mxu0 0.0
    %514 = vmatprep.mubr.f32.mxu0 0.0
    %515 = vmatmul.mubr.f32.gmra.mrb[0].mxu0 %v185
    %v516 = vpop.f32.mrb[0].mxu0
    %v517 = vadd.f32 %v448, %v516
    %v518 = vpop.f32.mrb[0].mxu0
    %519 = vmatprep.mubr.f32.mxu0 0.0
    %520 = vmatmul.mubr.f32.gmra.mrb[0].mxu0 %v188
    %v521 = vpop.f32.mrb[0].mxu0
    %v522 = vadd.f32 %v448, %v521
    %v523 = vpop.f32.mrb[0].mxu0
    %524 = vdwg.mxu0
    %s525 = scalar_lea.vmem %s5, 32
    %v526 = vld [vmem:[%s525] sm:$0xff]
    %v527 = vld [vmem:[%s525 + $0x8] sm:$0xff]
    %v528 = vld [vmem:[%s525 + $0x10] sm:$0xff]
    %v529 = vld [vmem:[%s525 + $0x18] sm:$0xff]
    %s530 = scalar_lea.vmem %s8, 1
    %v531 = vld [vmem:[%s530] sm:$0x1]
    %v533 = vlaneseq
    %v534 = vshrl.u32 %v533, 7
    %v535 = vsub.s32 0, %v534
    %v536 = vrot.slane %v531, %v535
    %538 = vmatprep.subr.mxu0 0.0
    %539 = vmatpush1.msra.mxu0 %v526
    %540 = vmatprep.subr.mxu0 0.0
    %541 = vmatpush1.msra.mxu0 %v527
    %542 = vmatprep.subr.mxu0 0.0
    %543 = vmatpush1.msra.mxu0 %v528
    %544 = vmatprep.subr.mxu0 0.0
    %545 = vmatpush1.msra.mxu0 %v529
    %546 = vmatprep.subr.mxu0 0.0
    %547 = vmatpush1.msra.mxu0 0.0
    %548 = vmatprep.subr.mxu0 0.0
    %549 = vmatpush1.msra.mxu0 0.0
    %550 = vmatprep.subr.mxu0 0.0
    %551 = vmatpush1.msra.mxu0 0.0
    %552 = vmatprep.subr.mxu0 0.0
    %553 = vmatpush1.msra.mxu0 0.0
    %554 = vmatprep.subr.mxu0 0.0
    %555 = vmatpush1.msra.mxu0 0.0
    %556 = vmatprep.subr.mxu0 0.0
    %557 = vmatpush1.msra.mxu0 0.0
    %558 = vmatprep.subr.mxu0 0.0
    %559 = vmatpush1.msra.mxu0 0.0
    %560 = vmatprep.subr.mxu0 0.0
    %561 = vmatpush1.msra.mxu0 0.0
    %562 = vmatprep.subr.mxu0 0.0
    %563 = vmatpush1.msra.mxu0 0.0
    %564 = vmatprep.subr.mxu0 0.0
    %565 = vmatpush1.msra.mxu0 0.0
    %566 = vmatprep.subr.mxu0 0.0
    %567 = vmatpush1.msra.mxu0 0.0
    %568 = vmatprep.subr.mxu0 0.0
    %569 = vmatpush1.msra.mxu0 0.0
    %570 = vmatprep.subr.mxu0 0.0
    %571 = vmatpush1.msra.mxu0 0.0
    %572 = vmatprep.subr.mxu0 0.0
    %573 = vmatpush1.msra.mxu0 0.0
    %574 = vmatprep.subr.mxu0 0.0
    %575 = vmatpush1.msra.mxu0 0.0
    %576 = vmatprep.subr.mxu0 0.0
    %577 = vmatpush1.msra.mxu0 0.0
    %578 = vmatprep.subr.mxu0 0.0
    %579 = vmatpush1.msra.mxu0 0.0
    %580 = vmatprep.subr.mxu0 0.0
    %581 = vmatpush1.msra.mxu0 0.0
    %582 = vmatprep.subr.mxu0 0.0
    %583 = vmatpush1.msra.mxu0 0.0
    %584 = vmatprep.subr.mxu0 0.0
    %585 = vmatpush1.msra.mxu0 0.0
    %586 = vmatprep.subr.mxu0 0.0
    %587 = vmatpush1.msra.mxu0 0.0
    %588 = vmatprep.subr.mxu0 0.0
    %589 = vmatpush1.msra.mxu0 0.0
    %590 = vmatprep.subr.mxu0 0.0
    %591 = vmatpush1.msra.mxu0 0.0
    %592 = vmatprep.subr.mxu0 0.0
    %593 = vmatpush1.msra.mxu0 0.0
    %594 = vmatprep.subr.mxu0 0.0
    %595 = vmatpush1.msra.mxu0 0.0
    %596 = vmatprep.subr.mxu0 0.0
    %597 = vmatpush1.msra.mxu0 0.0
    %598 = vmatprep.subr.mxu0 0.0
    %599 = vmatpush1.msra.mxu0 0.0
    %600 = vmatprep.subr.mxu0 0.0
    %601 = vmatpush1.msra.mxu0 0.0
    %602 = vmatprep.mubr.f32.mxu0 0.0
    %603 = vmatmul.mubr.f32.gmra.mrb[0].mxu0 %v185
    %v604 = vpop.f32.mrb[0].mxu0
    %v605 = vadd.f32 %v536, %v604
    %v606 = vpop.f32.mrb[0].mxu0
    %607 = vmatprep.mubr.f32.mxu0 0.0
    %608 = vmatmul.mubr.f32.gmra.mrb[0].mxu0 %v188
    %v609 = vpop.f32.mrb[0].mxu0
    %v610 = vadd.f32 %v536, %v609
    %v611 = vpop.f32.mrb[0].mxu0
    %612 = vdwg.mxu0
    %s613 = scalar_lea.vmem %s6, 32
    %v614 = vld [vmem:[%s613] sm:$0xff]
    %v615 = vld [vmem:[%s613 + $0x8] sm:$0xff]
    %v616 = vld [vmem:[%s613 + $0x10] sm:$0xff]
    %v617 = vld [vmem:[%s613 + $0x18] sm:$0xff]
    %s618 = scalar_lea.vmem %s9, 1
    %v619 = vld [vmem:[%s618] sm:$0x1]
    %v621 = vlaneseq
    %v622 = vshrl.u32 %v621, 7
    %v623 = vsub.s32 0, %v622
    %v624 = vrot.slane %v619, %v623
    %626 = vmatprep.subr.mxu0 0.0
    %627 = vmatpush1.msra.mxu0 %v614
    %628 = vmatprep.subr.mxu0 0.0
    %629 = vmatpush1.msra.mxu0 %v615
    %630 = vmatprep.subr.mxu0 0.0
    %631 = vmatpush1.msra.mxu0 %v616
    %632 = vmatprep.subr.mxu0 0.0
    %633 = vmatpush1.msra.mxu0 %v617
    %634 = vmatprep.subr.mxu0 0.0
    %635 = vmatpush1.msra.mxu0 0.0
    %636 = vmatprep.subr.mxu0 0.0
    %637 = vmatpush1.msra.mxu0 0.0
    %638 = vmatprep.subr.mxu0 0.0
    %639 = vmatpush1.msra.mxu0 0.0
    %640 = vmatprep.subr.mxu0 0.0
    %641 = vmatpush1.msra.mxu0 0.0
    %642 = vmatprep.subr.mxu0 0.0
    %643 = vmatpush1.msra.mxu0 0.0
    %644 = vmatprep.subr.mxu0 0.0
    %645 = vmatpush1.msra.mxu0 0.0
    %646 = vmatprep.subr.mxu0 0.0
    %647 = vmatpush1.msra.mxu0 0.0
    %648 = vmatprep.subr.mxu0 0.0
    %649 = vmatpush1.msra.mxu0 0.0
    %650 = vmatprep.subr.mxu0 0.0
    %651 = vmatpush1.msra.mxu0 0.0
    %652 = vmatprep.subr.mxu0 0.0
    %653 = vmatpush1.msra.mxu0 0.0
    %654 = vmatprep.subr.mxu0 0.0
    %655 = vmatpush1.msra.mxu0 0.0
    %656 = vmatprep.subr.mxu0 0.0
    %657 = vmatpush1.msra.mxu0 0.0
    %658 = vmatprep.subr.mxu0 0.0
    %659 = vmatpush1.msra.mxu0 0.0
    %660 = vmatprep.subr.mxu0 0.0
    %661 = vmatpush1.msra.mxu0 0.0
    %662 = vmatprep.subr.mxu0 0.0
    %663 = vmatpush1.msra.mxu0 0.0
    %664 = vmatprep.subr.mxu0 0.0
    %665 = vmatpush1.msra.mxu0 0.0
    %666 = vmatprep.subr.mxu0 0.0
    %667 = vmatpush1.msra.mxu0 0.0
    %668 = vmatprep.subr.mxu0 0.0
    %669 = vmatpush1.msra.mxu0 0.0
    %670 = vmatprep.subr.mxu0 0.0
    %671 = vmatpush1.msra.mxu0 0.0
    %672 = vmatprep.subr.mxu0 0.0
    %673 = vmatpush1.msra.mxu0 0.0
    %674 = vmatprep.subr.mxu0 0.0
    %675 = vmatpush1.msra.mxu0 0.0
    %676 = vmatprep.subr.mxu0 0.0
    %677 = vmatpush1.msra.mxu0 0.0
    %678 = vmatprep.subr.mxu0 0.0
    %679 = vmatpush1.msra.mxu0 0.0
    %680 = vmatprep.subr.mxu0 0.0
    %681 = vmatpush1.msra.mxu0 0.0
    %682 = vmatprep.subr.mxu0 0.0
    %683 = vmatpush1.msra.mxu0 0.0
    %684 = vmatprep.subr.mxu0 0.0
    %685 = vmatpush1.msra.mxu0 0.0
    %686 = vmatprep.subr.mxu0 0.0
    %687 = vmatpush1.msra.mxu0 0.0
    %688 = vmatprep.subr.mxu0 0.0
    %689 = vmatpush1.msra.mxu0 0.0
    %690 = vmatprep.mubr.f32.mxu0 0.0
    %691 = vmatmul.mubr.f32.gmra.mrb[0].mxu0 %v185
    %v692 = vpop.f32.mrb[0].mxu0
    %v693 = vadd.f32 %v624, %v692
    %v694 = vpop.f32.mrb[0].mxu0
    %695 = vmatprep.mubr.f32.mxu0 0.0
    %696 = vmatmul.mubr.f32.gmra.mrb[0].mxu0 %v188
    %v697 = vpop.f32.mrb[0].mxu0
    %v698 = vadd.f32 %v624, %v697
    %v699 = vpop.f32.mrb[0].mxu0
    %700 = vdwg.mxu0
    %s701 = scalar_lea.vmem %s4, 64
    %v702 = vld [vmem:[%s701] sm:$0xff]
    %v703 = vld [vmem:[%s701 + $0x8] sm:$0xff]
    %v704 = vld [vmem:[%s701 + $0x10] sm:$0xff]
    %v705 = vld [vmem:[%s701 + $0x18] sm:$0xff]
    %s706 = scalar_lea.vmem %s7, 2
    %v707 = vld [vmem:[%s706] sm:$0x1]
    %v709 = vlaneseq
    %v710 = vshrl.u32 %v709, 7
    %v711 = vsub.s32 0, %v710
    %v712 = vrot.slane %v707, %v711
    %714 = vmatprep.subr.mxu0 0.0
    %715 = vmatpush1.msra.mxu0 %v702
    %716 = vmatprep.subr.mxu0 0.0
    %717 = vmatpush1.msra.mxu0 %v703
    %718 = vmatprep.subr.mxu0 0.0
    %719 = vmatpush1.msra.mxu0 %v704
    %720 = vmatprep.subr.mxu0 0.0
    %721 = vmatpush1.msra.mxu0 %v705
    %722 = vmatprep.subr.mxu0 0.0
    %723 = vmatpush1.msra.mxu0 0.0
    %724 = vmatprep.subr.mxu0 0.0
    %725 = vmatpush1.msra.mxu0 0.0
    %726 = vmatprep.subr.mxu0 0.0
    %727 = vmatpush1.msra.mxu0 0.0
    %728 = vmatprep.subr.mxu0 0.0
    %729 = vmatpush1.msra.mxu0 0.0
    %730 = vmatprep.subr.mxu0 0.0
    %731 = vmatpush1.msra.mxu0 0.0
    %732 = vmatprep.subr.mxu0 0.0
    %733 = vmatpush1.msra.mxu0 0.0
    %734 = vmatprep.subr.mxu0 0.0
    %735 = vmatpush1.msra.mxu0 0.0
    %736 = vmatprep.subr.mxu0 0.0
    %737 = vmatpush1.msra.mxu0 0.0
    %738 = vmatprep.subr.mxu0 0.0
    %739 = vmatpush1.msra.mxu0 0.0
    %740 = vmatprep.subr.mxu0 0.0
    %741 = vmatpush1.msra.mxu0 0.0
    %742 = vmatprep.subr.mxu0 0.0
    %743 = vmatpush1.msra.mxu0 0.0
    %744 = vmatprep.subr.mxu0 0.0
    %745 = vmatpush1.msra.mxu0 0.0
    %746 = vmatprep.subr.mxu0 0.0
    %747 = vmatpush1.msra.mxu0 0.0
    %748 = vmatprep.subr.mxu0 0.0
    %749 = vmatpush1.msra.mxu0 0.0
    %750 = vmatprep.subr.mxu0 0.0
    %751 = vmatpush1.msra.mxu0 0.0
    %752 = vmatprep.subr.mxu0 0.0
    %753 = vmatpush1.msra.mxu0 0.0
    %754 = vmatprep.subr.mxu0 0.0
    %755 = vmatpush1.msra.mxu0 0.0
    %756 = vmatprep.subr.mxu0 0.0
    %757 = vmatpush1.msra.mxu0 0.0
    %758 = vmatprep.subr.mxu0 0.0
    %759 = vmatpush1.msra.mxu0 0.0
    %760 = vmatprep.subr.mxu0 0.0
    %761 = vmatpush1.msra.mxu0 0.0
    %762 = vmatprep.subr.mxu0 0.0
    %763 = vmatpush1.msra.mxu0 0.0
    %764 = vmatprep.subr.mxu0 0.0
    %765 = vmatpush1.msra.mxu0 0.0
    %766 = vmatprep.subr.mxu0 0.0
    %767 = vmatpush1.msra.mxu0 0.0
    %768 = vmatprep.subr.mxu0 0.0
    %769 = vmatpush1.msra.mxu0 0.0
    %770 = vmatprep.subr.mxu0 0.0
    %771 = vmatpush1.msra.mxu0 0.0
    %772 = vmatprep.subr.mxu0 0.0
    %773 = vmatpush1.msra.mxu0 0.0
    %774 = vmatprep.subr.mxu0 0.0
    %775 = vmatpush1.msra.mxu0 0.0
    %776 = vmatprep.subr.mxu0 0.0
    %777 = vmatpush1.msra.mxu0 0.0
    %778 = vmatprep.mubr.f32.mxu0 0.0
    %779 = vmatmul.mubr.f32.gmra.mrb[0].mxu0 %v185
    %v780 = vpop.f32.mrb[0].mxu0
    %v781 = vadd.f32 %v712, %v780
    %v782 = vpop.f32.mrb[0].mxu0
    %783 = vmatprep.mubr.f32.mxu0 0.0
    %784 = vmatmul.mubr.f32.gmra.mrb[0].mxu0 %v188
    %v785 = vpop.f32.mrb[0].mxu0
    %v786 = vadd.f32 %v712, %v785
    %v787 = vpop.f32.mrb[0].mxu0
    %788 = vdwg.mxu0
    %s789 = scalar_lea.vmem %s5, 64
    %v790 = vld [vmem:[%s789] sm:$0xff]
    %v791 = vld [vmem:[%s789 + $0x8] sm:$0xff]
    %v792 = vld [vmem:[%s789 + $0x10] sm:$0xff]
    %v793 = vld [vmem:[%s789 + $0x18] sm:$0xff]
    %s794 = scalar_lea.vmem %s8, 2
    %v795 = vld [vmem:[%s794] sm:$0x1]
    %v797 = vlaneseq
    %v798 = vshrl.u32 %v797, 7
    %v799 = vsub.s32 0, %v798
    %v800 = vrot.slane %v795, %v799
    %802 = vmatprep.subr.mxu0 0.0
    %803 = vmatpush1.msra.mxu0 %v790
    %804 = vmatprep.subr.mxu0 0.0
    %805 = vmatpush1.msra.mxu0 %v791
    %806 = vmatprep.subr.mxu0 0.0
    %807 = vmatpush1.msra.mxu0 %v792
    %808 = vmatprep.subr.mxu0 0.0
    %809 = vmatpush1.msra.mxu0 %v793
    %810 = vmatprep.subr.mxu0 0.0
    %811 = vmatpush1.msra.mxu0 0.0
    %812 = vmatprep.subr.mxu0 0.0
    %813 = vmatpush1.msra.mxu0 0.0
    %814 = vmatprep.subr.mxu0 0.0
    %815 = vmatpush1.msra.mxu0 0.0
    %816 = vmatprep.subr.mxu0 0.0
    %817 = vmatpush1.msra.mxu0 0.0
    %818 = vmatprep.subr.mxu0 0.0
    %819 = vmatpush1.msra.mxu0 0.0
    %820 = vmatprep.subr.mxu0 0.0
    %821 = vmatpush1.msra.mxu0 0.0
    %822 = vmatprep.subr.mxu0 0.0
    %823 = vmatpush1.msra.mxu0 0.0
    %824 = vmatprep.subr.mxu0 0.0
    %825 = vmatpush1.msra.mxu0 0.0
    %826 = vmatprep.subr.mxu0 0.0
    %827 = vmatpush1.msra.mxu0 0.0
    %828 = vmatprep.subr.mxu0 0.0
    %829 = vmatpush1.msra.mxu0 0.0
    %830 = vmatprep.subr.mxu0 0.0
    %831 = vmatpush1.msra.mxu0 0.0
    %832 = vmatprep.subr.mxu0 0.0
    %833 = vmatpush1.msra.mxu0 0.0
    %834 = vmatprep.subr.mxu0 0.0
    %835 = vmatpush1.msra.mxu0 0.0
    %836 = vmatprep.subr.mxu0 0.0
    %837 = vmatpush1.msra.mxu0 0.0
    %838 = vmatprep.subr.mxu0 0.0
    %839 = vmatpush1.msra.mxu0 0.0
    %840 = vmatprep.subr.mxu0 0.0
    %841 = vmatpush1.msra.mxu0 0.0
    %842 = vmatprep.subr.mxu0 0.0
    %843 = vmatpush1.msra.mxu0 0.0
    %844 = vmatprep.subr.mxu0 0.0
    %845 = vmatpush1.msra.mxu0 0.0
    %846 = vmatprep.subr.mxu0 0.0
    %847 = vmatpush1.msra.mxu0 0.0
    %848 = vmatprep.subr.mxu0 0.0
    %849 = vmatpush1.msra.mxu0 0.0
    %850 = vmatprep.subr.mxu0 0.0
    %851 = vmatpush1.msra.mxu0 0.0
    %852 = vmatprep.subr.mxu0 0.0
    %853 = vmatpush1.msra.mxu0 0.0
    %854 = vmatprep.subr.mxu0 0.0
    %855 = vmatpush1.msra.mxu0 0.0
    %856 = vmatprep.subr.mxu0 0.0
    %857 = vmatpush1.msra.mxu0 0.0
    %858 = vmatprep.subr.mxu0 0.0
    %859 = vmatpush1.msra.mxu0 0.0
    %860 = vmatprep.subr.mxu0 0.0
    %861 = vmatpush1.msra.mxu0 0.0
    %862 = vmatprep.subr.mxu0 0.0
    %863 = vmatpush1.msra.mxu0 0.0
    %864 = vmatprep.subr.mxu0 0.0
    %865 = vmatpush1.msra.mxu0 0.0
    %866 = vmatprep.mubr.f32.mxu0 0.0
    %867 = vmatmul.mubr.f32.gmra.mrb[0].mxu0 %v185
    %v868 = vpop.f32.mrb[0].mxu0
    %v869 = vadd.f32 %v800, %v868
    %v870 = vpop.f32.mrb[0].mxu0
    %871 = vmatprep.mubr.f32.mxu0 0.0
    %872 = vmatmul.mubr.f32.gmra.mrb[0].mxu0 %v188
    %v873 = vpop.f32.mrb[0].mxu0
    %v874 = vadd.f32 %v800, %v873
    %v875 = vpop.f32.mrb[0].mxu0
    %876 = vdwg.mxu0
    %s877 = scalar_lea.vmem %s6, 64
    %v878 = vld [vmem:[%s877] sm:$0xff]
    %v879 = vld [vmem:[%s877 + $0x8] sm:$0xff]
    %v880 = vld [vmem:[%s877 + $0x10] sm:$0xff]
    %v881 = vld [vmem:[%s877 + $0x18] sm:$0xff]
    %s882 = scalar_lea.vmem %s9, 2
    %v883 = vld [vmem:[%s882] sm:$0x1]
    %v885 = vlaneseq
    %v886 = vshrl.u32 %v885, 7
    %v887 = vsub.s32 0, %v886
    %v888 = vrot.slane %v883, %v887
    %890 = vmatprep.subr.mxu0 0.0
    %891 = vmatpush1.msra.mxu0 %v878
    %892 = vmatprep.subr.mxu0 0.0
    %893 = vmatpush1.msra.mxu0 %v879
    %894 = vmatprep.subr.mxu0 0.0
    %895 = vmatpush1.msra.mxu0 %v880
    %896 = vmatprep.subr.mxu0 0.0
    %897 = vmatpush1.msra.mxu0 %v881
    %898 = vmatprep.subr.mxu0 0.0
    %899 = vmatpush1.msra.mxu0 0.0
    %900 = vmatprep.subr.mxu0 0.0
    %901 = vmatpush1.msra.mxu0 0.0
    %902 = vmatprep.subr.mxu0 0.0
    %903 = vmatpush1.msra.mxu0 0.0
    %904 = vmatprep.subr.mxu0 0.0
    %905 = vmatpush1.msra.mxu0 0.0
    %906 = vmatprep.subr.mxu0 0.0
    %907 = vmatpush1.msra.mxu0 0.0
    %908 = vmatprep.subr.mxu0 0.0
    %909 = vmatpush1.msra.mxu0 0.0
    %910 = vmatprep.subr.mxu0 0.0
    %911 = vmatpush1.msra.mxu0 0.0
    %912 = vmatprep.subr.mxu0 0.0
    %913 = vmatpush1.msra.mxu0 0.0
    %914 = vmatprep.subr.mxu0 0.0
    %915 = vmatpush1.msra.mxu0 0.0
    %916 = vmatprep.subr.mxu0 0.0
    %917 = vmatpush1.msra.mxu0 0.0
    %918 = vmatprep.subr.mxu0 0.0
    %919 = vmatpush1.msra.mxu0 0.0
    %920 = vmatprep.subr.mxu0 0.0
    %921 = vmatpush1.msra.mxu0 0.0
    %922 = vmatprep.subr.mxu0 0.0
    %923 = vmatpush1.msra.mxu0 0.0
    %924 = vmatprep.subr.mxu0 0.0
    %925 = vmatpush1.msra.mxu0 0.0
    %926 = vmatprep.subr.mxu0 0.0
    %927 = vmatpush1.msra.mxu0 0.0
    %928 = vmatprep.subr.mxu0 0.0
    %929 = vmatpush1.msra.mxu0 0.0
    %930 = vmatprep.subr.mxu0 0.0
    %931 = vmatpush1.msra.mxu0 0.0
    %932 = vmatprep.subr.mxu0 0.0
    %933 = vmatpush1.msra.mxu0 0.0
    %934 = vmatprep.subr.mxu0 0.0
    %935 = vmatpush1.msra.mxu0 0.0
    %936 = vmatprep.subr.mxu0 0.0
    %937 = vmatpush1.msra.mxu0 0.0
    %938 = vmatprep.subr.mxu0 0.0
    %939 = vmatpush1.msra.mxu0 0.0
    %940 = vmatprep.subr.mxu0 0.0
    %941 = vmatpush1.msra.mxu0 0.0
    %942 = vmatprep.subr.mxu0 0.0
    %943 = vmatpush1.msra.mxu0 0.0
    %944 = vmatprep.subr.mxu0 0.0
    %945 = vmatpush1.msra.mxu0 0.0
    %946 = vmatprep.subr.mxu0 0.0
    %947 = vmatpush1.msra.mxu0 0.0
    %948 = vmatprep.subr.mxu0 0.0
    %949 = vmatpush1.msra.mxu0 0.0
    %950 = vmatprep.subr.mxu0 0.0
    %951 = vmatpush1.msra.mxu0 0.0
    %952 = vmatprep.subr.mxu0 0.0
    %953 = vmatpush1.msra.mxu0 0.0
    %954 = vmatprep.mubr.f32.mxu0 0.0
    %955 = vmatmul.mubr.f32.gmra.mrb[0].mxu0 %v185
    %v956 = vpop.f32.mrb[0].mxu0
    %v957 = vadd.f32 %v888, %v956
    %v958 = vpop.f32.mrb[0].mxu0
    %959 = vmatprep.mubr.f32.mxu0 0.0
    %960 = vmatmul.mubr.f32.gmra.mrb[0].mxu0 %v188
    %v961 = vpop.f32.mrb[0].mxu0
    %v962 = vadd.f32 %v888, %v961
    %v963 = vpop.f32.mrb[0].mxu0
    %964 = vdwg.mxu0
    %s965 = scalar_lea.vmem %s4, 96
    %v966 = vld [vmem:[%s965] sm:$0xff]
    %v967 = vld [vmem:[%s965 + $0x8] sm:$0xff]
    %v968 = vld [vmem:[%s965 + $0x10] sm:$0xff]
    %v969 = vld [vmem:[%s965 + $0x18] sm:$0xff]
    %s970 = scalar_lea.vmem %s7, 3
    %v971 = vld [vmem:[%s970] sm:$0x1]
    %v973 = vlaneseq
    %v974 = vshrl.u32 %v973, 7
    %v975 = vsub.s32 0, %v974
    %v976 = vrot.slane %v971, %v975
    %978 = vmatprep.subr.mxu0 0.0
    %979 = vmatpush1.msra.mxu0 %v966
    %980 = vmatprep.subr.mxu0 0.0
    %981 = vmatpush1.msra.mxu0 %v967
    %982 = vmatprep.subr.mxu0 0.0
    %983 = vmatpush1.msra.mxu0 %v968
    %984 = vmatprep.subr.mxu0 0.0
    %985 = vmatpush1.msra.mxu0 %v969
    %986 = vmatprep.subr.mxu0 0.0
    %987 = vmatpush1.msra.mxu0 0.0
    %988 = vmatprep.subr.mxu0 0.0
    %989 = vmatpush1.msra.mxu0 0.0
    %990 = vmatprep.subr.mxu0 0.0
    %991 = vmatpush1.msra.mxu0 0.0
    %992 = vmatprep.subr.mxu0 0.0
    %993 = vmatpush1.msra.mxu0 0.0
    %994 = vmatprep.subr.mxu0 0.0
    %995 = vmatpush1.msra.mxu0 0.0
    %996 = vmatprep.subr.mxu0 0.0
    %997 = vmatpush1.msra.mxu0 0.0
    %998 = vmatprep.subr.mxu0 0.0
    %999 = vmatpush1.msra.mxu0 0.0
    %1000 = vmatprep.subr.mxu0 0.0
    %1001 = vmatpush1.msra.mxu0 0.0
    %1002 = vmatprep.subr.mxu0 0.0
    %1003 = vmatpush1.msra.mxu0 0.0
    %1004 = vmatprep.subr.mxu0 0.0
    %1005 = vmatpush1.msra.mxu0 0.0
    %1006 = vmatprep.subr.mxu0 0.0
    %1007 = vmatpush1.msra.mxu0 0.0
    %1008 = vmatprep.subr.mxu0 0.0
    %1009 = vmatpush1.msra.mxu0 0.0
    %1010 = vmatprep.subr.mxu0 0.0
    %1011 = vmatpush1.msra.mxu0 0.0
    %1012 = vmatprep.subr.mxu0 0.0
    %1013 = vmatpush1.msra.mxu0 0.0
    %1014 = vmatprep.subr.mxu0 0.0
    %1015 = vmatpush1.msra.mxu0 0.0
    %1016 = vmatprep.subr.mxu0 0.0
    %1017 = vmatpush1.msra.mxu0 0.0
    %1018 = vmatprep.subr.mxu0 0.0
    %1019 = vmatpush1.msra.mxu0 0.0
    %1020 = vmatprep.subr.mxu0 0.0
    %1021 = vmatpush1.msra.mxu0 0.0
    %1022 = vmatprep.subr.mxu0 0.0
    %1023 = vmatpush1.msra.mxu0 0.0
    %1024 = vmatprep.subr.mxu0 0.0
    %1025 = vmatpush1.msra.mxu0 0.0
    %1026 = vmatprep.subr.mxu0 0.0
    %1027 = vmatpush1.msra.mxu0 0.0
    %1028 = vmatprep.subr.mxu0 0.0
    %1029 = vmatpush1.msra.mxu0 0.0
    %1030 = vmatprep.subr.mxu0 0.0
    %1031 = vmatpush1.msra.mxu0 0.0
    %1032 = vmatprep.subr.mxu0 0.0
    %1033 = vmatpush1.msra.mxu0 0.0
    %1034 = vmatprep.subr.mxu0 0.0
    %1035 = vmatpush1.msra.mxu0 0.0
    %1036 = vmatprep.subr.mxu0 0.0
    %1037 = vmatpush1.msra.mxu0 0.0
    %1038 = vmatprep.subr.mxu0 0.0
    %1039 = vmatpush1.msra.mxu0 0.0
    %1040 = vmatprep.subr.mxu0 0.0
    %1041 = vmatpush1.msra.mxu0 0.0
    %1042 = vmatprep.mubr.f32.mxu0 0.0
    %1043 = vmatmul.mubr.f32.gmra.mrb[0].mxu0 %v185
    %v1044 = vpop.f32.mrb[0].mxu0
    %v1045 = vadd.f32 %v976, %v1044
    %v1046 = vpop.f32.mrb[0].mxu0
    %1047 = vmatprep.mubr.f32.mxu0 0.0
    %1048 = vmatmul.mubr.f32.gmra.mrb[0].mxu0 %v188
    %v1049 = vpop.f32.mrb[0].mxu0
    %v1050 = vadd.f32 %v976, %v1049
    %v1051 = vpop.f32.mrb[0].mxu0
    %1052 = vdwg.mxu0
    %s1053 = scalar_lea.vmem %s5, 96
    %v1054 = vld [vmem:[%s1053] sm:$0xff]
    %v1055 = vld [vmem:[%s1053 + $0x8] sm:$0xff]
    %v1056 = vld [vmem:[%s1053 + $0x10] sm:$0xff]
    %v1057 = vld [vmem:[%s1053 + $0x18] sm:$0xff]
    %s1058 = scalar_lea.vmem %s8, 3
    %v1059 = vld [vmem:[%s1058] sm:$0x1]
    %v1061 = vlaneseq
    %v1062 = vshrl.u32 %v1061, 7
    %v1063 = vsub.s32 0, %v1062
    %v1064 = vrot.slane %v1059, %v1063
    %1066 = vmatprep.subr.mxu0 0.0
    %1067 = vmatpush1.msra.mxu0 %v1054
    %1068 = vmatprep.subr.mxu0 0.0
    %1069 = vmatpush1.msra.mxu0 %v1055
    %1070 = vmatprep.subr.mxu0 0.0
    %1071 = vmatpush1.msra.mxu0 %v1056
    %1072 = vmatprep.subr.mxu0 0.0
    %1073 = vmatpush1.msra.mxu0 %v1057
    %1074 = vmatprep.subr.mxu0 0.0
    %1075 = vmatpush1.msra.mxu0 0.0
    %1076 = vmatprep.subr.mxu0 0.0
    %1077 = vmatpush1.msra.mxu0 0.0
    %1078 = vmatprep.subr.mxu0 0.0
    %1079 = vmatpush1.msra.mxu0 0.0
    %1080 = vmatprep.subr.mxu0 0.0
    %1081 = vmatpush1.msra.mxu0 0.0
    %1082 = vmatprep.subr.mxu0 0.0
    %1083 = vmatpush1.msra.mxu0 0.0
    %1084 = vmatprep.subr.mxu0 0.0
    %1085 = vmatpush1.msra.mxu0 0.0
    %1086 = vmatprep.subr.mxu0 0.0
    %1087 = vmatpush1.msra.mxu0 0.0
    %1088 = vmatprep.subr.mxu0 0.0
    %1089 = vmatpush1.msra.mxu0 0.0
    %1090 = vmatprep.subr.mxu0 0.0
    %1091 = vmatpush1.msra.mxu0 0.0
    %1092 = vmatprep.subr.mxu0 0.0
    %1093 = vmatpush1.msra.mxu0 0.0
    %1094 = vmatprep.subr.mxu0 0.0
    %1095 = vmatpush1.msra.mxu0 0.0
    %1096 = vmatprep.subr.mxu0 0.0
    %1097 = vmatpush1.msra.mxu0 0.0
    %1098 = vmatprep.subr.mxu0 0.0
    %1099 = vmatpush1.msra.mxu0 0.0
    %1100 = vmatprep.subr.mxu0 0.0
    %1101 = vmatpush1.msra.mxu0 0.0
    %1102 = vmatprep.subr.mxu0 0.0
    %1103 = vmatpush1.msra.mxu0 0.0
    %1104 = vmatprep.subr.mxu0 0.0
    %1105 = vmatpush1.msra.mxu0 0.0
    %1106 = vmatprep.subr.mxu0 0.0
    %1107 = vmatpush1.msra.mxu0 0.0
    %1108 = vmatprep.subr.mxu0 0.0
    %1109 = vmatpush1.msra.mxu0 0.0
    %1110 = vmatprep.subr.mxu0 0.0
    %1111 = vmatpush1.msra.mxu0 0.0
    %1112 = vmatprep.subr.mxu0 0.0
    %1113 = vmatpush1.msra.mxu0 0.0
    %1114 = vmatprep.subr.mxu0 0.0
    %1115 = vmatpush1.msra.mxu0 0.0
    %1116 = vmatprep.subr.mxu0 0.0
    %1117 = vmatpush1.msra.mxu0 0.0
    %1118 = vmatprep.subr.mxu0 0.0
    %1119 = vmatpush1.msra.mxu0 0.0
    %1120 = vmatprep.subr.mxu0 0.0
    %1121 = vmatpush1.msra.mxu0 0.0
    %1122 = vmatprep.subr.mxu0 0.0
    %1123 = vmatpush1.msra.mxu0 0.0
    %1124 = vmatprep.subr.mxu0 0.0
    %1125 = vmatpush1.msra.mxu0 0.0
    %1126 = vmatprep.subr.mxu0 0.0
    %1127 = vmatpush1.msra.mxu0 0.0
    %1128 = vmatprep.subr.mxu0 0.0
    %1129 = vmatpush1.msra.mxu0 0.0
    %1130 = vmatprep.mubr.f32.mxu0 0.0
    %1131 = vmatmul.mubr.f32.gmra.mrb[0].mxu0 %v185
    %v1132 = vpop.f32.mrb[0].mxu0
    %v1133 = vadd.f32 %v1064, %v1132
    %v1134 = vpop.f32.mrb[0].mxu0
    %1135 = vmatprep.mubr.f32.mxu0 0.0
    %1136 = vmatmul.mubr.f32.gmra.mrb[0].mxu0 %v188
    %v1137 = vpop.f32.mrb[0].mxu0
    %v1138 = vadd.f32 %v1064, %v1137
    %v1139 = vpop.f32.mrb[0].mxu0
    %1140 = vdwg.mxu0
    %s1141 = scalar_lea.vmem %s6, 96
    %v1142 = vld [vmem:[%s1141] sm:$0xff]
    %v1143 = vld [vmem:[%s1141 + $0x8] sm:$0xff]
    %v1144 = vld [vmem:[%s1141 + $0x10] sm:$0xff]
    %v1145 = vld [vmem:[%s1141 + $0x18] sm:$0xff]
    %s1146 = scalar_lea.vmem %s9, 3
    %v1147 = vld [vmem:[%s1146] sm:$0x1]
    %v1149 = vlaneseq
    %v1150 = vshrl.u32 %v1149, 7
    %v1151 = vsub.s32 0, %v1150
    %v1152 = vrot.slane %v1147, %v1151
    %1154 = vmatprep.subr.mxu0 0.0
    %1155 = vmatpush1.msra.mxu0 %v1142
    %1156 = vmatprep.subr.mxu0 0.0
    %1157 = vmatpush1.msra.mxu0 %v1143
    %1158 = vmatprep.subr.mxu0 0.0
    %1159 = vmatpush1.msra.mxu0 %v1144
    %1160 = vmatprep.subr.mxu0 0.0
    %1161 = vmatpush1.msra.mxu0 %v1145
    %1162 = vmatprep.subr.mxu0 0.0
    %1163 = vmatpush1.msra.mxu0 0.0
    %1164 = vmatprep.subr.mxu0 0.0
    %1165 = vmatpush1.msra.mxu0 0.0
    %1166 = vmatprep.subr.mxu0 0.0
    %1167 = vmatpush1.msra.mxu0 0.0
    %1168 = vmatprep.subr.mxu0 0.0
    %1169 = vmatpush1.msra.mxu0 0.0
    %1170 = vmatprep.subr.mxu0 0.0
    %1171 = vmatpush1.msra.mxu0 0.0
    %1172 = vmatprep.subr.mxu0 0.0
    %1173 = vmatpush1.msra.mxu0 0.0
    %1174 = vmatprep.subr.mxu0 0.0
    %1175 = vmatpush1.msra.mxu0 0.0
    %1176 = vmatprep.subr.mxu0 0.0
    %1177 = vmatpush1.msra.mxu0 0.0
    %1178 = vmatprep.subr.mxu0 0.0
    %1179 = vmatpush1.msra.mxu0 0.0
    %1180 = vmatprep.subr.mxu0 0.0
    %1181 = vmatpush1.msra.mxu0 0.0
    %1182 = vmatprep.subr.mxu0 0.0
    %1183 = vmatpush1.msra.mxu0 0.0
    %1184 = vmatprep.subr.mxu0 0.0
    %1185 = vmatpush1.msra.mxu0 0.0
    %1186 = vmatprep.subr.mxu0 0.0
    %1187 = vmatpush1.msra.mxu0 0.0
    %1188 = vmatprep.subr.mxu0 0.0
    %1189 = vmatpush1.msra.mxu0 0.0
    %1190 = vmatprep.subr.mxu0 0.0
    %1191 = vmatpush1.msra.mxu0 0.0
    %1192 = vmatprep.subr.mxu0 0.0
    %1193 = vmatpush1.msra.mxu0 0.0
    %1194 = vmatprep.subr.mxu0 0.0
    %1195 = vmatpush1.msra.mxu0 0.0
    %1196 = vmatprep.subr.mxu0 0.0
    %1197 = vmatpush1.msra.mxu0 0.0
    %1198 = vmatprep.subr.mxu0 0.0
    %1199 = vmatpush1.msra.mxu0 0.0
    %1200 = vmatprep.subr.mxu0 0.0
    %1201 = vmatpush1.msra.mxu0 0.0
    %1202 = vmatprep.subr.mxu0 0.0
    %1203 = vmatpush1.msra.mxu0 0.0
    %1204 = vmatprep.subr.mxu0 0.0
    %1205 = vmatpush1.msra.mxu0 0.0
    %1206 = vmatprep.subr.mxu0 0.0
    %1207 = vmatpush1.msra.mxu0 0.0
    %1208 = vmatprep.subr.mxu0 0.0
    %1209 = vmatpush1.msra.mxu0 0.0
    %1210 = vmatprep.subr.mxu0 0.0
    %1211 = vmatpush1.msra.mxu0 0.0
    %1212 = vmatprep.subr.mxu0 0.0
    %1213 = vmatpush1.msra.mxu0 0.0
    %1214 = vmatprep.subr.mxu0 0.0
    %1215 = vmatpush1.msra.mxu0 0.0
    %1216 = vmatprep.subr.mxu0 0.0
    %1217 = vmatpush1.msra.mxu0 0.0
    %1218 = vmatprep.mubr.f32.mxu0 0.0
    %1219 = vmatmul.mubr.f32.gmra.mrb[0].mxu0 %v185
    %v1220 = vpop.f32.mrb[0].mxu0
    %v1221 = vadd.f32 %v1152, %v1220
    %v1222 = vpop.f32.mrb[0].mxu0
    %1223 = vmatprep.mubr.f32.mxu0 0.0
    %1224 = vmatmul.mubr.f32.gmra.mrb[0].mxu0 %v188
    %v1225 = vpop.f32.mrb[0].mxu0
    %v1226 = vadd.f32 %v1152, %v1225
    %v1227 = vpop.f32.mrb[0].mxu0
    %1228 = vdwg.mxu0
    %v1229 = vmul.f32 %v257, 0.35355338
    %vm1230 = vcmask 64512
    %v1232 = vsel %vm1230, %v1229, 0
    %v1235 = vsel %vm1230, %v343, 0
    %1237 = vmatprep.subr.mxu0 0.0
    %1238 = vmatpush1.xpose.msra.mxu0 %v1235
    %1239 = vmatprep.subr.mxu0 0.0
    %1240 = vmatpush1.xpose.msra.mxu0 0.0
    %1241 = vmatprep.subr.mxu0 0.0
    %1242 = vmatpush1.xpose.msra.mxu0 0.0
    %1243 = vmatprep.subr.mxu0 0.0
    %1244 = vmatpush1.xpose.msra.mxu0 0.0
    %1245 = vmatprep.subr.mxu0 0.0
    %1246 = vmatpush1.xpose.msra.mxu0 0.0
    %1247 = vmatprep.subr.mxu0 0.0
    %1248 = vmatpush1.xpose.msra.mxu0 0.0
    %1249 = vmatprep.subr.mxu0 0.0
    %1250 = vmatpush1.xpose.msra.mxu0 0.0
    %1251 = vmatprep.subr.mxu0 0.0
    %1252 = vmatpush1.xpose.msra.mxu0 0.0
    %1253 = vmatprep.subr.mxu0 0.0
    %1254 = vmatpush1.xpose.msra.mxu0 0.0
    %1255 = vmatprep.subr.mxu0 0.0
    %1256 = vmatpush1.xpose.msra.mxu0 0.0
    %1257 = vmatprep.subr.mxu0 0.0
    %1258 = vmatpush1.xpose.msra.mxu0 0.0
    %1259 = vmatprep.subr.mxu0 0.0
    %1260 = vmatpush1.xpose.msra.mxu0 0.0
    %1261 = vmatprep.subr.mxu0 0.0
    %1262 = vmatpush1.xpose.msra.mxu0 0.0
    %1263 = vmatprep.subr.mxu0 0.0
    %1264 = vmatpush1.xpose.msra.mxu0 0.0
    %1265 = vmatprep.subr.mxu0 0.0
    %1266 = vmatpush1.xpose.msra.mxu0 0.0
    %1267 = vmatprep.subr.mxu0 0.0
    %1268 = vmatpush1.xpose.msra.mxu0 0.0
    %1269 = vmatprep.subr.mxu0 0.0
    %1270 = vmatpush1.xpose.msra.mxu0 0.0
    %1271 = vmatprep.subr.mxu0 0.0
    %1272 = vmatpush1.xpose.msra.mxu0 0.0
    %1273 = vmatprep.subr.mxu0 0.0
    %1274 = vmatpush1.xpose.msra.mxu0 0.0
    %1275 = vmatprep.subr.mxu0 0.0
    %1276 = vmatpush1.xpose.msra.mxu0 0.0
    %1277 = vmatprep.subr.mxu0 0.0
    %1278 = vmatpush1.xpose.msra.mxu0 0.0
    %1279 = vmatprep.subr.mxu0 0.0
    %1280 = vmatpush1.xpose.msra.mxu0 0.0
    %1281 = vmatprep.subr.mxu0 0.0
    %1282 = vmatpush1.xpose.msra.mxu0 0.0
    %1283 = vmatprep.subr.mxu0 0.0
    %1284 = vmatpush1.xpose.msra.mxu0 0.0
    %1285 = vmatprep.subr.mxu0 0.0
    %1286 = vmatpush1.xpose.msra.mxu0 0.0
    %1287 = vmatprep.subr.mxu0 0.0
    %1288 = vmatpush1.xpose.msra.mxu0 0.0
    %1289 = vmatprep.subr.mxu0 0.0
    %1290 = vmatpush1.xpose.msra.mxu0 0.0
    %1291 = vmatprep.subr.mxu0 0.0
    %1292 = vmatpush1.xpose.msra.mxu0 0.0
    %1293 = vmatprep.subr.mxu0 0.0
    %1294 = vmatpush1.xpose.msra.mxu0 0.0
    %1295 = vmatprep.subr.mxu0 0.0
    %1296 = vmatpush1.xpose.msra.mxu0 0.0
    %1297 = vmatprep.subr.mxu0 0.0
    %1298 = vmatpush1.xpose.msra.mxu0 0.0
    %1299 = vmatprep.subr.mxu0 0.0
    %1300 = vmatpush1.xpose.msra.mxu0 0.0
    %1301 = vmatprep.mubr.f32.mxu0 0.0
    %1302 = vmatmul.mubr.f32.gmra.mrb[0].mxu0 %v1232
    %v1303 = vpop.f32.mrb[0].mxu0
    %v1304 = vadd.f32 0.0, %v1303
    %v1305 = vpop.f32.mrb[0].mxu0
    %1306 = vdwg.mxu0
    %v1307 = vsel %vm1230, %v1304, -inf
    %1308 = vmax.xlane.f32.xlu0 %v1307
    %v1309 = vpop.xlane.xlu0 %1308
    %v1310 = vsub.f32 %v1304, %v1309
    %v1311 = vmul.f32 %v1310, 1.442695
    %v1312 = vpow.pop %v1311
    %v1313 = vsel %vm1230, %v1312, 0.0
    %1314 = vadd.xlane.f32.xlu0 %v1313
    %v1315 = vpop.xlane.xlu0 %1314
    %v1316 = vrcp.pop %v1315
    %v1317 = vmul.f32 %v1312, %v1316
    %v1319 = vsel %vm1230, %v1317, 0
    %1321 = vmatprep.subr.mxu0 0.0
    %1322 = vmatpush1.msra.mxu0 %v429
    %1323 = vmatprep.subr.mxu0 0.0
    %1324 = vmatpush1.msra.mxu0 0.0
    %1325 = vmatprep.subr.mxu0 0.0
    %1326 = vmatpush1.msra.mxu0 0.0
    %1327 = vmatprep.subr.mxu0 0.0
    %1328 = vmatpush1.msra.mxu0 0.0
    %1329 = vmatprep.subr.mxu0 0.0
    %1330 = vmatpush1.msra.mxu0 0.0
    %1331 = vmatprep.subr.mxu0 0.0
    %1332 = vmatpush1.msra.mxu0 0.0
    %1333 = vmatprep.subr.mxu0 0.0
    %1334 = vmatpush1.msra.mxu0 0.0
    %1335 = vmatprep.subr.mxu0 0.0
    %1336 = vmatpush1.msra.mxu0 0.0
    %1337 = vmatprep.subr.mxu0 0.0
    %1338 = vmatpush1.msra.mxu0 0.0
    %1339 = vmatprep.subr.mxu0 0.0
    %1340 = vmatpush1.msra.mxu0 0.0
    %1341 = vmatprep.subr.mxu0 0.0
    %1342 = vmatpush1.msra.mxu0 0.0
    %1343 = vmatprep.subr.mxu0 0.0
    %1344 = vmatpush1.msra.mxu0 0.0
    %1345 = vmatprep.subr.mxu0 0.0
    %1346 = vmatpush1.msra.mxu0 0.0
    %1347 = vmatprep.subr.mxu0 0.0
    %1348 = vmatpush1.msra.mxu0 0.0
    %1349 = vmatprep.subr.mxu0 0.0
    %1350 = vmatpush1.msra.mxu0 0.0
    %1351 = vmatprep.subr.mxu0 0.0
    %1352 = vmatpush1.msra.mxu0 0.0
    %1353 = vmatprep.subr.mxu0 0.0
    %1354 = vmatpush1.msra.mxu0 0.0
    %1355 = vmatprep.subr.mxu0 0.0
    %1356 = vmatpush1.msra.mxu0 0.0
    %1357 = vmatprep.subr.mxu0 0.0
    %1358 = vmatpush1.msra.mxu0 0.0
    %1359 = vmatprep.subr.mxu0 0.0
    %1360 = vmatpush1.msra.mxu0 0.0
    %1361 = vmatprep.subr.mxu0 0.0
    %1362 = vmatpush1.msra.mxu0 0.0
    %1363 = vmatprep.subr.mxu0 0.0
    %1364 = vmatpush1.msra.mxu0 0.0
    %1365 = vmatprep.subr.mxu0 0.0
    %1366 = vmatpush1.msra.mxu0 0.0
    %1367 = vmatprep.subr.mxu0 0.0
    %1368 = vmatpush1.msra.mxu0 0.0
    %1369 = vmatprep.subr.mxu0 0.0
    %1370 = vmatpush1.msra.mxu0 0.0
    %1371 = vmatprep.subr.mxu0 0.0
    %1372 = vmatpush1.msra.mxu0 0.0
    %1373 = vmatprep.subr.mxu0 0.0
    %1374 = vmatpush1.msra.mxu0 0.0
    %1375 = vmatprep.subr.mxu0 0.0
    %1376 = vmatpush1.msra.mxu0 0.0
    %1377 = vmatprep.subr.mxu0 0.0
    %1378 = vmatpush1.msra.mxu0 0.0
    %1379 = vmatprep.subr.mxu0 0.0
    %1380 = vmatpush1.msra.mxu0 0.0
    %1381 = vmatprep.subr.mxu0 0.0
    %1382 = vmatpush1.msra.mxu0 0.0
    %1383 = vmatprep.subr.mxu0 0.0
    %1384 = vmatpush1.msra.mxu0 0.0
    %1385 = vmatprep.mubr.f32.mxu0 0.0
    %1386 = vmatmul.mubr.f32.gmra.mrb[0].mxu0 %v1319
    %v1387 = vpop.f32.mrb[0].mxu0
    %v1388 = vadd.f32 0.0, %v1387
    %v1389 = vpop.f32.mrb[0].mxu0
    %1390 = vdwg.mxu0
    %v1391 = vld [vmem:[%s10] sm:$0xff]
    %v1392 = vmul.f32 %v517, 0.35355338
    %v1394 = vsel %vm1230, %v1392, 0
    %v1397 = vsel %vm1230, %v605, 0
    %1399 = vmatprep.subr.mxu0 0.0
    %1400 = vmatpush1.xpose.msra.mxu0 %v1397
    %1401 = vmatprep.subr.mxu0 0.0
    %1402 = vmatpush1.xpose.msra.mxu0 0.0
    %1403 = vmatprep.subr.mxu0 0.0
    %1404 = vmatpush1.xpose.msra.mxu0 0.0
    %1405 = vmatprep.subr.mxu0 0.0
    %1406 = vmatpush1.xpose.msra.mxu0 0.0
    %1407 = vmatprep.subr.mxu0 0.0
    %1408 = vmatpush1.xpose.msra.mxu0 0.0
    %1409 = vmatprep.subr.mxu0 0.0
    %1410 = vmatpush1.xpose.msra.mxu0 0.0
    %1411 = vmatprep.subr.mxu0 0.0
    %1412 = vmatpush1.xpose.msra.mxu0 0.0
    %1413 = vmatprep.subr.mxu0 0.0
    %1414 = vmatpush1.xpose.msra.mxu0 0.0
    %1415 = vmatprep.subr.mxu0 0.0
    %1416 = vmatpush1.xpose.msra.mxu0 0.0
    %1417 = vmatprep.subr.mxu0 0.0
    %1418 = vmatpush1.xpose.msra.mxu0 0.0
    %1419 = vmatprep.subr.mxu0 0.0
    %1420 = vmatpush1.xpose.msra.mxu0 0.0
    %1421 = vmatprep.subr.mxu0 0.0
    %1422 = vmatpush1.xpose.msra.mxu0 0.0
    %1423 = vmatprep.subr.mxu0 0.0
    %1424 = vmatpush1.xpose.msra.mxu0 0.0
    %1425 = vmatprep.subr.mxu0 0.0
    %1426 = vmatpush1.xpose.msra.mxu0 0.0
    %1427 = vmatprep.subr.mxu0 0.0
    %1428 = vmatpush1.xpose.msra.mxu0 0.0
    %1429 = vmatprep.subr.mxu0 0.0
    %1430 = vmatpush1.xpose.msra.mxu0 0.0
    %1431 = vmatprep.subr.mxu0 0.0
    %1432 = vmatpush1.xpose.msra.mxu0 0.0
    %1433 = vmatprep.subr.mxu0 0.0
    %1434 = vmatpush1.xpose.msra.mxu0 0.0
    %1435 = vmatprep.subr.mxu0 0.0
    %1436 = vmatpush1.xpose.msra.mxu0 0.0
    %1437 = vmatprep.subr.mxu0 0.0
    %1438 = vmatpush1.xpose.msra.mxu0 0.0
    %1439 = vmatprep.subr.mxu0 0.0
    %1440 = vmatpush1.xpose.msra.mxu0 0.0
    %1441 = vmatprep.subr.mxu0 0.0
    %1442 = vmatpush1.xpose.msra.mxu0 0.0
    %1443 = vmatprep.subr.mxu0 0.0
    %1444 = vmatpush1.xpose.msra.mxu0 0.0
    %1445 = vmatprep.subr.mxu0 0.0
    %1446 = vmatpush1.xpose.msra.mxu0 0.0
    %1447 = vmatprep.subr.mxu0 0.0
    %1448 = vmatpush1.xpose.msra.mxu0 0.0
    %1449 = vmatprep.subr.mxu0 0.0
    %1450 = vmatpush1.xpose.msra.mxu0 0.0
    %1451 = vmatprep.subr.mxu0 0.0
    %1452 = vmatpush1.xpose.msra.mxu0 0.0
    %1453 = vmatprep.subr.mxu0 0.0
    %1454 = vmatpush1.xpose.msra.mxu0 0.0
    %1455 = vmatprep.subr.mxu0 0.0
    %1456 = vmatpush1.xpose.msra.mxu0 0.0
    %1457 = vmatprep.subr.mxu0 0.0
    %1458 = vmatpush1.xpose.msra.mxu0 0.0
    %1459 = vmatprep.subr.mxu0 0.0
    %1460 = vmatpush1.xpose.msra.mxu0 0.0
    %1461 = vmatprep.subr.mxu0 0.0
    %1462 = vmatpush1.xpose.msra.mxu0 0.0
    %1463 = vmatprep.mubr.f32.mxu0 0.0
    %1464 = vmatmul.mubr.f32.gmra.mrb[0].mxu0 %v1394
    %v1465 = vpop.f32.mrb[0].mxu0
    %v1466 = vadd.f32 0.0, %v1465
    %v1467 = vpop.f32.mrb[0].mxu0
    %1468 = vdwg.mxu0
    %v1469 = vsel %vm1230, %v1466, -inf
    %1470 = vmax.xlane.f32.xlu0 %v1469
    %v1471 = vpop.xlane.xlu0 %1470
    %v1472 = vsub.f32 %v1466, %v1471
    %v1473 = vmul.f32 %v1472, 1.442695
    %v1474 = vpow.pop %v1473
    %v1475 = vsel %vm1230, %v1474, 0.0
    %1476 = vadd.xlane.f32.xlu0 %v1475
    %v1477 = vpop.xlane.xlu0 %1476
    %v1478 = vrcp.pop %v1477
    %v1479 = vmul.f32 %v1474, %v1478
    %v1481 = vsel %vm1230, %v1479, 0
    %1483 = vmatprep.subr.mxu0 0.0
    %1484 = vmatpush1.msra.mxu0 %v693
    %1485 = vmatprep.subr.mxu0 0.0
    %1486 = vmatpush1.msra.mxu0 0.0
    %1487 = vmatprep.subr.mxu0 0.0
    %1488 = vmatpush1.msra.mxu0 0.0
    %1489 = vmatprep.subr.mxu0 0.0
    %1490 = vmatpush1.msra.mxu0 0.0
    %1491 = vmatprep.subr.mxu0 0.0
    %1492 = vmatpush1.msra.mxu0 0.0
    %1493 = vmatprep.subr.mxu0 0.0
    %1494 = vmatpush1.msra.mxu0 0.0
    %1495 = vmatprep.subr.mxu0 0.0
    %1496 = vmatpush1.msra.mxu0 0.0
    %1497 = vmatprep.subr.mxu0 0.0
    %1498 = vmatpush1.msra.mxu0 0.0
    %1499 = vmatprep.subr.mxu0 0.0
    %1500 = vmatpush1.msra.mxu0 0.0
    %1501 = vmatprep.subr.mxu0 0.0
    %1502 = vmatpush1.msra.mxu0 0.0
    %1503 = vmatprep.subr.mxu0 0.0
    %1504 = vmatpush1.msra.mxu0 0.0
    %1505 = vmatprep.subr.mxu0 0.0
    %1506 = vmatpush1.msra.mxu0 0.0
    %1507 = vmatprep.subr.mxu0 0.0
    %1508 = vmatpush1.msra.mxu0 0.0
    %1509 = vmatprep.subr.mxu0 0.0
    %1510 = vmatpush1.msra.mxu0 0.0
    %1511 = vmatprep.subr.mxu0 0.0
    %1512 = vmatpush1.msra.mxu0 0.0
    %1513 = vmatprep.subr.mxu0 0.0
    %1514 = vmatpush1.msra.mxu0 0.0
    %1515 = vmatprep.subr.mxu0 0.0
    %1516 = vmatpush1.msra.mxu0 0.0
    %1517 = vmatprep.subr.mxu0 0.0
    %1518 = vmatpush1.msra.mxu0 0.0
    %1519 = vmatprep.subr.mxu0 0.0
    %1520 = vmatpush1.msra.mxu0 0.0
    %1521 = vmatprep.subr.mxu0 0.0
    %1522 = vmatpush1.msra.mxu0 0.0
    %1523 = vmatprep.subr.mxu0 0.0
    %1524 = vmatpush1.msra.mxu0 0.0
    %1525 = vmatprep.subr.mxu0 0.0
    %1526 = vmatpush1.msra.mxu0 0.0
    %1527 = vmatprep.subr.mxu0 0.0
    %1528 = vmatpush1.msra.mxu0 0.0
    %1529 = vmatprep.subr.mxu0 0.0
    %1530 = vmatpush1.msra.mxu0 0.0
    %1531 = vmatprep.subr.mxu0 0.0
    %1532 = vmatpush1.msra.mxu0 0.0
    %1533 = vmatprep.subr.mxu0 0.0
    %1534 = vmatpush1.msra.mxu0 0.0
    %1535 = vmatprep.subr.mxu0 0.0
    %1536 = vmatpush1.msra.mxu0 0.0
    %1537 = vmatprep.subr.mxu0 0.0
    %1538 = vmatpush1.msra.mxu0 0.0
    %1539 = vmatprep.subr.mxu0 0.0
    %1540 = vmatpush1.msra.mxu0 0.0
    %1541 = vmatprep.subr.mxu0 0.0
    %1542 = vmatpush1.msra.mxu0 0.0
    %1543 = vmatprep.subr.mxu0 0.0
    %1544 = vmatpush1.msra.mxu0 0.0
    %1545 = vmatprep.subr.mxu0 0.0
    %1546 = vmatpush1.msra.mxu0 0.0
    %1547 = vmatprep.mubr.f32.mxu0 0.0
    %1548 = vmatmul.mubr.f32.gmra.mrb[0].mxu0 %v1481
    %v1549 = vpop.f32.mrb[0].mxu0
    %v1550 = vadd.f32 0.0, %v1549
    %v1551 = vpop.f32.mrb[0].mxu0
    %1552 = vdwg.mxu0
    %s1553 = scalar_lea.vmem %s10, 8
    %v1554 = vld [vmem:[%s1553] sm:$0xff]
    %v1556 = vsel %vm1230, %v1550, 0
    %1558 = vmatprep.subr.mxu0 0.0
    %1559 = vmatpush1.msra.mxu0 %v1554
    %1560 = vmatprep.subr.mxu0 0.0
    %1561 = vmatpush1.msra.mxu0 0.0
    %1562 = vmatprep.subr.mxu0 0.0
    %1563 = vmatpush1.msra.mxu0 0.0
    %1564 = vmatprep.subr.mxu0 0.0
    %1565 = vmatpush1.msra.mxu0 0.0
    %1566 = vmatprep.subr.mxu0 0.0
    %1567 = vmatpush1.msra.mxu0 0.0
    %1568 = vmatprep.subr.mxu0 0.0
    %1569 = vmatpush1.msra.mxu0 0.0
    %1570 = vmatprep.subr.mxu0 0.0
    %1571 = vmatpush1.msra.mxu0 0.0
    %1572 = vmatprep.subr.mxu0 0.0
    %1573 = vmatpush1.msra.mxu0 0.0
    %1574 = vmatprep.subr.mxu0 0.0
    %1575 = vmatpush1.msra.mxu0 0.0
    %1576 = vmatprep.subr.mxu0 0.0
    %1577 = vmatpush1.msra.mxu0 0.0
    %1578 = vmatprep.subr.mxu0 0.0
    %1579 = vmatpush1.msra.mxu0 0.0
    %1580 = vmatprep.subr.mxu0 0.0
    %1581 = vmatpush1.msra.mxu0 0.0
    %1582 = vmatprep.subr.mxu0 0.0
    %1583 = vmatpush1.msra.mxu0 0.0
    %1584 = vmatprep.subr.mxu0 0.0
    %1585 = vmatpush1.msra.mxu0 0.0
    %1586 = vmatprep.subr.mxu0 0.0
    %1587 = vmatpush1.msra.mxu0 0.0
    %1588 = vmatprep.subr.mxu0 0.0
    %1589 = vmatpush1.msra.mxu0 0.0
    %1590 = vmatprep.subr.mxu0 0.0
    %1591 = vmatpush1.msra.mxu0 0.0
    %1592 = vmatprep.subr.mxu0 0.0
    %1593 = vmatpush1.msra.mxu0 0.0
    %1594 = vmatprep.subr.mxu0 0.0
    %1595 = vmatpush1.msra.mxu0 0.0
    %1596 = vmatprep.subr.mxu0 0.0
    %1597 = vmatpush1.msra.mxu0 0.0
    %1598 = vmatprep.subr.mxu0 0.0
    %1599 = vmatpush1.msra.mxu0 0.0
    %1600 = vmatprep.subr.mxu0 0.0
    %1601 = vmatpush1.msra.mxu0 0.0
    %1602 = vmatprep.subr.mxu0 0.0
    %1603 = vmatpush1.msra.mxu0 0.0
    %1604 = vmatprep.subr.mxu0 0.0
    %1605 = vmatpush1.msra.mxu0 0.0
    %1606 = vmatprep.subr.mxu0 0.0
    %1607 = vmatpush1.msra.mxu0 0.0
    %1608 = vmatprep.subr.mxu0 0.0
    %1609 = vmatpush1.msra.mxu0 0.0
    %1610 = vmatprep.subr.mxu0 0.0
    %1611 = vmatpush1.msra.mxu0 0.0
    %1612 = vmatprep.subr.mxu0 0.0
    %1613 = vmatpush1.msra.mxu0 0.0
    %1614 = vmatprep.subr.mxu0 0.0
    %1615 = vmatpush1.msra.mxu0 0.0
    %1616 = vmatprep.subr.mxu0 0.0
    %1617 = vmatpush1.msra.mxu0 0.0
    %1618 = vmatprep.subr.mxu0 0.0
    %1619 = vmatpush1.msra.mxu0 0.0
    %1620 = vmatprep.subr.mxu0 0.0
    %1621 = vmatpush1.msra.mxu0 0.0
    %1622 = vmatprep.mubr.f32.mxu0 0.0
    %1623 = vmatmul.mubr.f32.gmra.mrb[0].mxu0 %v1556
    %v1624 = vpop.f32.mrb[0].mxu0
    %v1625 = vadd.f32 0.0, %v1624
    %v1626 = vpop.f32.mrb[0].mxu0
    %1627 = vdwg.mxu0
    %v1629 = vsel %vm1230, %v1388, 0
    %1631 = vmatprep.subr.mxu0 0.0
    %1632 = vmatpush1.msra.mxu0 %v1391
    %1633 = vmatprep.subr.mxu0 0.0
    %1634 = vmatpush1.msra.mxu0 0.0
    %1635 = vmatprep.subr.mxu0 0.0
    %1636 = vmatpush1.msra.mxu0 0.0
    %1637 = vmatprep.subr.mxu0 0.0
    %1638 = vmatpush1.msra.mxu0 0.0
    %1639 = vmatprep.subr.mxu0 0.0
    %1640 = vmatpush1.msra.mxu0 0.0
    %1641 = vmatprep.subr.mxu0 0.0
    %1642 = vmatpush1.msra.mxu0 0.0
    %1643 = vmatprep.subr.mxu0 0.0
    %1644 = vmatpush1.msra.mxu0 0.0
    %1645 = vmatprep.subr.mxu0 0.0
    %1646 = vmatpush1.msra.mxu0 0.0
    %1647 = vmatprep.subr.mxu0 0.0
    %1648 = vmatpush1.msra.mxu0 0.0
    %1649 = vmatprep.subr.mxu0 0.0
    %1650 = vmatpush1.msra.mxu0 0.0
    %1651 = vmatprep.subr.mxu0 0.0
    %1652 = vmatpush1.msra.mxu0 0.0
    %1653 = vmatprep.subr.mxu0 0.0
    %1654 = vmatpush1.msra.mxu0 0.0
    %1655 = vmatprep.subr.mxu0 0.0
    %1656 = vmatpush1.msra.mxu0 0.0
    %1657 = vmatprep.subr.mxu0 0.0
    %1658 = vmatpush1.msra.mxu0 0.0
    %1659 = vmatprep.subr.mxu0 0.0
    %1660 = vmatpush1.msra.mxu0 0.0
    %1661 = vmatprep.subr.mxu0 0.0
    %1662 = vmatpush1.msra.mxu0 0.0
    %1663 = vmatprep.subr.mxu0 0.0
    %1664 = vmatpush1.msra.mxu0 0.0
    %1665 = vmatprep.subr.mxu0 0.0
    %1666 = vmatpush1.msra.mxu0 0.0
    %1667 = vmatprep.subr.mxu0 0.0
    %1668 = vmatpush1.msra.mxu0 0.0
    %1669 = vmatprep.subr.mxu0 0.0
    %1670 = vmatpush1.msra.mxu0 0.0
    %1671 = vmatprep.subr.mxu0 0.0
    %1672 = vmatpush1.msra.mxu0 0.0
    %1673 = vmatprep.subr.mxu0 0.0
    %1674 = vmatpush1.msra.mxu0 0.0
    %1675 = vmatprep.subr.mxu0 0.0
    %1676 = vmatpush1.msra.mxu0 0.0
    %1677 = vmatprep.subr.mxu0 0.0
    %1678 = vmatpush1.msra.mxu0 0.0
    %1679 = vmatprep.subr.mxu0 0.0
    %1680 = vmatpush1.msra.mxu0 0.0
    %1681 = vmatprep.subr.mxu0 0.0
    %1682 = vmatpush1.msra.mxu0 0.0
    %1683 = vmatprep.subr.mxu0 0.0
    %1684 = vmatpush1.msra.mxu0 0.0
    %1685 = vmatprep.subr.mxu0 0.0
    %1686 = vmatpush1.msra.mxu0 0.0
    %1687 = vmatprep.subr.mxu0 0.0
    %1688 = vmatpush1.msra.mxu0 0.0
    %1689 = vmatprep.subr.mxu0 0.0
    %1690 = vmatpush1.msra.mxu0 0.0
    %1691 = vmatprep.subr.mxu0 0.0
    %1692 = vmatpush1.msra.mxu0 0.0
    %1693 = vmatprep.subr.mxu0 0.0
    %1694 = vmatpush1.msra.mxu0 0.0
    %1695 = vmatprep.mubr.f32.mxu0 0.0
    %1696 = vmatmul.mubr.f32.gmra.mrb[0].mxu0 %v1629
    %v1697 = vpop.f32.mrb[0].mxu0
    %v1698 = vadd.f32 %v1625, %v1697
    %v1699 = vpop.f32.mrb[0].mxu0
    %1700 = vdwg.mxu0
    %v1701 = vmul.f32 %v781, 0.35355338
    %v1703 = vsel %vm1230, %v1701, 0
    %v1706 = vsel %vm1230, %v869, 0
    %1708 = vmatprep.subr.mxu0 0.0
    %1709 = vmatpush1.xpose.msra.mxu0 %v1706
    %1710 = vmatprep.subr.mxu0 0.0
    %1711 = vmatpush1.xpose.msra.mxu0 0.0
    %1712 = vmatprep.subr.mxu0 0.0
    %1713 = vmatpush1.xpose.msra.mxu0 0.0
    %1714 = vmatprep.subr.mxu0 0.0
    %1715 = vmatpush1.xpose.msra.mxu0 0.0
    %1716 = vmatprep.subr.mxu0 0.0
    %1717 = vmatpush1.xpose.msra.mxu0 0.0
    %1718 = vmatprep.subr.mxu0 0.0
    %1719 = vmatpush1.xpose.msra.mxu0 0.0
    %1720 = vmatprep.subr.mxu0 0.0
    %1721 = vmatpush1.xpose.msra.mxu0 0.0
    %1722 = vmatprep.subr.mxu0 0.0
    %1723 = vmatpush1.xpose.msra.mxu0 0.0
    %1724 = vmatprep.subr.mxu0 0.0
    %1725 = vmatpush1.xpose.msra.mxu0 0.0
    %1726 = vmatprep.subr.mxu0 0.0
    %1727 = vmatpush1.xpose.msra.mxu0 0.0
    %1728 = vmatprep.subr.mxu0 0.0
    %1729 = vmatpush1.xpose.msra.mxu0 0.0
    %1730 = vmatprep.subr.mxu0 0.0
    %1731 = vmatpush1.xpose.msra.mxu0 0.0
    %1732 = vmatprep.subr.mxu0 0.0
    %1733 = vmatpush1.xpose.msra.mxu0 0.0
    %1734 = vmatprep.subr.mxu0 0.0
    %1735 = vmatpush1.xpose.msra.mxu0 0.0
    %1736 = vmatprep.subr.mxu0 0.0
    %1737 = vmatpush1.xpose.msra.mxu0 0.0
    %1738 = vmatprep.subr.mxu0 0.0
    %1739 = vmatpush1.xpose.msra.mxu0 0.0
    %1740 = vmatprep.subr.mxu0 0.0
    %1741 = vmatpush1.xpose.msra.mxu0 0.0
    %1742 = vmatprep.subr.mxu0 0.0
    %1743 = vmatpush1.xpose.msra.mxu0 0.0
    %1744 = vmatprep.subr.mxu0 0.0
    %1745 = vmatpush1.xpose.msra.mxu0 0.0
    %1746 = vmatprep.subr.mxu0 0.0
    %1747 = vmatpush1.xpose.msra.mxu0 0.0
    %1748 = vmatprep.subr.mxu0 0.0
    %1749 = vmatpush1.xpose.msra.mxu0 0.0
    %1750 = vmatprep.subr.mxu0 0.0
    %1751 = vmatpush1.xpose.msra.mxu0 0.0
    %1752 = vmatprep.subr.mxu0 0.0
    %1753 = vmatpush1.xpose.msra.mxu0 0.0
    %1754 = vmatprep.subr.mxu0 0.0
    %1755 = vmatpush1.xpose.msra.mxu0 0.0
    %1756 = vmatprep.subr.mxu0 0.0
    %1757 = vmatpush1.xpose.msra.mxu0 0.0
    %1758 = vmatprep.subr.mxu0 0.0
    %1759 = vmatpush1.xpose.msra.mxu0 0.0
    %1760 = vmatprep.subr.mxu0 0.0
    %1761 = vmatpush1.xpose.msra.mxu0 0.0
    %1762 = vmatprep.subr.mxu0 0.0
    %1763 = vmatpush1.xpose.msra.mxu0 0.0
    %1764 = vmatprep.subr.mxu0 0.0
    %1765 = vmatpush1.xpose.msra.mxu0 0.0
    %1766 = vmatprep.subr.mxu0 0.0
    %1767 = vmatpush1.xpose.msra.mxu0 0.0
    %1768 = vmatprep.subr.mxu0 0.0
    %1769 = vmatpush1.xpose.msra.mxu0 0.0
    %1770 = vmatprep.subr.mxu0 0.0
    %1771 = vmatpush1.xpose.msra.mxu0 0.0
    %1772 = vmatprep.mubr.f32.mxu0 0.0
    %1773 = vmatmul.mubr.f32.gmra.mrb[0].mxu0 %v1703
    %v1774 = vpop.f32.mrb[0].mxu0
    %v1775 = vadd.f32 0.0, %v1774
    %v1776 = vpop.f32.mrb[0].mxu0
    %1777 = vdwg.mxu0
    %v1778 = vsel %vm1230, %v1775, -inf
    %1779 = vmax.xlane.f32.xlu0 %v1778
    %v1780 = vpop.xlane.xlu0 %1779
    %v1781 = vsub.f32 %v1775, %v1780
    %v1782 = vmul.f32 %v1781, 1.442695
    %v1783 = vpow.pop %v1782
    %v1784 = vsel %vm1230, %v1783, 0.0
    %1785 = vadd.xlane.f32.xlu0 %v1784
    %v1786 = vpop.xlane.xlu0 %1785
    %v1787 = vrcp.pop %v1786
    %v1788 = vmul.f32 %v1783, %v1787
    %v1790 = vsel %vm1230, %v1788, 0
    %1792 = vmatprep.subr.mxu0 0.0
    %1793 = vmatpush1.msra.mxu0 %v957
    %1794 = vmatprep.subr.mxu0 0.0
    %1795 = vmatpush1.msra.mxu0 0.0
    %1796 = vmatprep.subr.mxu0 0.0
    %1797 = vmatpush1.msra.mxu0 0.0
    %1798 = vmatprep.subr.mxu0 0.0
    %1799 = vmatpush1.msra.mxu0 0.0
    %1800 = vmatprep.subr.mxu0 0.0
    %1801 = vmatpush1.msra.mxu0 0.0
    %1802 = vmatprep.subr.mxu0 0.0
    %1803 = vmatpush1.msra.mxu0 0.0
    %1804 = vmatprep.subr.mxu0 0.0
    %1805 = vmatpush1.msra.mxu0 0.0
    %1806 = vmatprep.subr.mxu0 0.0
    %1807 = vmatpush1.msra.mxu0 0.0
    %1808 = vmatprep.subr.mxu0 0.0
    %1809 = vmatpush1.msra.mxu0 0.0
    %1810 = vmatprep.subr.mxu0 0.0
    %1811 = vmatpush1.msra.mxu0 0.0
    %1812 = vmatprep.subr.mxu0 0.0
    %1813 = vmatpush1.msra.mxu0 0.0
    %1814 = vmatprep.subr.mxu0 0.0
    %1815 = vmatpush1.msra.mxu0 0.0
    %1816 = vmatprep.subr.mxu0 0.0
    %1817 = vmatpush1.msra.mxu0 0.0
    %1818 = vmatprep.subr.mxu0 0.0
    %1819 = vmatpush1.msra.mxu0 0.0
    %1820 = vmatprep.subr.mxu0 0.0
    %1821 = vmatpush1.msra.mxu0 0.0
    %1822 = vmatprep.subr.mxu0 0.0
    %1823 = vmatpush1.msra.mxu0 0.0
    %1824 = vmatprep.subr.mxu0 0.0
    %1825 = vmatpush1.msra.mxu0 0.0
    %1826 = vmatprep.subr.mxu0 0.0
    %1827 = vmatpush1.msra.mxu0 0.0
    %1828 = vmatprep.subr.mxu0 0.0
    %1829 = vmatpush1.msra.mxu0 0.0
    %1830 = vmatprep.subr.mxu0 0.0
    %1831 = vmatpush1.msra.mxu0 0.0
    %1832 = vmatprep.subr.mxu0 0.0
    %1833 = vmatpush1.msra.mxu0 0.0
    %1834 = vmatprep.subr.mxu0 0.0
    %1835 = vmatpush1.msra.mxu0 0.0
    %1836 = vmatprep.subr.mxu0 0.0
    %1837 = vmatpush1.msra.mxu0 0.0
    %1838 = vmatprep.subr.mxu0 0.0
    %1839 = vmatpush1.msra.mxu0 0.0
    %1840 = vmatprep.subr.mxu0 0.0
    %1841 = vmatpush1.msra.mxu0 0.0
    %1842 = vmatprep.subr.mxu0 0.0
    %1843 = vmatpush1.msra.mxu0 0.0
    %1844 = vmatprep.subr.mxu0 0.0
    %1845 = vmatpush1.msra.mxu0 0.0
    %1846 = vmatprep.subr.mxu0 0.0
    %1847 = vmatpush1.msra.mxu0 0.0
    %1848 = vmatprep.subr.mxu0 0.0
    %1849 = vmatpush1.msra.mxu0 0.0
    %1850 = vmatprep.subr.mxu0 0.0
    %1851 = vmatpush1.msra.mxu0 0.0
    %1852 = vmatprep.subr.mxu0 0.0
    %1853 = vmatpush1.msra.mxu0 0.0
    %1854 = vmatprep.subr.mxu0 0.0
    %1855 = vmatpush1.msra.mxu0 0.0
    %1856 = vmatprep.mubr.f32.mxu0 0.0
    %1857 = vmatmul.mubr.f32.gmra.mrb[0].mxu0 %v1790
    %v1858 = vpop.f32.mrb[0].mxu0
    %v1859 = vadd.f32 0.0, %v1858
    %v1860 = vpop.f32.mrb[0].mxu0
    %1861 = vdwg.mxu0
    %s1862 = scalar_lea.vmem %s10, 16
    %v1863 = vld [vmem:[%s1862] sm:$0xff]
    %v1865 = vsel %vm1230, %v1859, 0
    %1867 = vmatprep.subr.mxu0 0.0
    %1868 = vmatpush1.msra.mxu0 %v1863
    %1869 = vmatprep.subr.mxu0 0.0
    %1870 = vmatpush1.msra.mxu0 0.0
    %1871 = vmatprep.subr.mxu0 0.0
    %1872 = vmatpush1.msra.mxu0 0.0
    %1873 = vmatprep.subr.mxu0 0.0
    %1874 = vmatpush1.msra.mxu0 0.0
    %1875 = vmatprep.subr.mxu0 0.0
    %1876 = vmatpush1.msra.mxu0 0.0
    %1877 = vmatprep.subr.mxu0 0.0
    %1878 = vmatpush1.msra.mxu0 0.0
    %1879 = vmatprep.subr.mxu0 0.0
    %1880 = vmatpush1.msra.mxu0 0.0
    %1881 = vmatprep.subr.mxu0 0.0
    %1882 = vmatpush1.msra.mxu0 0.0
    %1883 = vmatprep.subr.mxu0 0.0
    %1884 = vmatpush1.msra.mxu0 0.0
    %1885 = vmatprep.subr.mxu0 0.0
    %1886 = vmatpush1.msra.mxu0 0.0
    %1887 = vmatprep.subr.mxu0 0.0
    %1888 = vmatpush1.msra.mxu0 0.0
    %1889 = vmatprep.subr.mxu0 0.0
    %1890 = vmatpush1.msra.mxu0 0.0
    %1891 = vmatprep.subr.mxu0 0.0
    %1892 = vmatpush1.msra.mxu0 0.0
    %1893 = vmatprep.subr.mxu0 0.0
    %1894 = vmatpush1.msra.mxu0 0.0
    %1895 = vmatprep.subr.mxu0 0.0
    %1896 = vmatpush1.msra.mxu0 0.0
    %1897 = vmatprep.subr.mxu0 0.0
    %1898 = vmatpush1.msra.mxu0 0.0
    %1899 = vmatprep.subr.mxu0 0.0
    %1900 = vmatpush1.msra.mxu0 0.0
    %1901 = vmatprep.subr.mxu0 0.0
    %1902 = vmatpush1.msra.mxu0 0.0
    %1903 = vmatprep.subr.mxu0 0.0
    %1904 = vmatpush1.msra.mxu0 0.0
    %1905 = vmatprep.subr.mxu0 0.0
    %1906 = vmatpush1.msra.mxu0 0.0
    %1907 = vmatprep.subr.mxu0 0.0
    %1908 = vmatpush1.msra.mxu0 0.0
    %1909 = vmatprep.subr.mxu0 0.0
    %1910 = vmatpush1.msra.mxu0 0.0
    %1911 = vmatprep.subr.mxu0 0.0
    %1912 = vmatpush1.msra.mxu0 0.0
    %1913 = vmatprep.subr.mxu0 0.0
    %1914 = vmatpush1.msra.mxu0 0.0
    %1915 = vmatprep.subr.mxu0 0.0
    %1916 = vmatpush1.msra.mxu0 0.0
    %1917 = vmatprep.subr.mxu0 0.0
    %1918 = vmatpush1.msra.mxu0 0.0
    %1919 = vmatprep.subr.mxu0 0.0
    %1920 = vmatpush1.msra.mxu0 0.0
    %1921 = vmatprep.subr.mxu0 0.0
    %1922 = vmatpush1.msra.mxu0 0.0
    %1923 = vmatprep.subr.mxu0 0.0
    %1924 = vmatpush1.msra.mxu0 0.0
    %1925 = vmatprep.subr.mxu0 0.0
    %1926 = vmatpush1.msra.mxu0 0.0
    %1927 = vmatprep.subr.mxu0 0.0
    %1928 = vmatpush1.msra.mxu0 0.0
    %1929 = vmatprep.subr.mxu0 0.0
    %1930 = vmatpush1.msra.mxu0 0.0
    %1931 = vmatprep.mubr.f32.mxu0 0.0
    %1932 = vmatmul.mubr.f32.gmra.mrb[0].mxu0 %v1865
    %v1933 = vpop.f32.mrb[0].mxu0
    %v1934 = vadd.f32 0.0, %v1933
    %v1935 = vpop.f32.mrb[0].mxu0
    %1936 = vdwg.mxu0
    %v1937 = vadd.f32 %v1698, %v1934
    %v1938 = vmul.f32 %v1045, 0.35355338
    %v1940 = vsel %vm1230, %v1938, 0
    %v1943 = vsel %vm1230, %v1133, 0
    %1945 = vmatprep.subr.mxu0 0.0
    %1946 = vmatpush1.xpose.msra.mxu0 %v1943
    %1947 = vmatprep.subr.mxu0 0.0
    %1948 = vmatpush1.xpose.msra.mxu0 0.0
    %1949 = vmatprep.subr.mxu0 0.0
    %1950 = vmatpush1.xpose.msra.mxu0 0.0
    %1951 = vmatprep.subr.mxu0 0.0
    %1952 = vmatpush1.xpose.msra.mxu0 0.0
    %1953 = vmatprep.subr.mxu0 0.0
    %1954 = vmatpush1.xpose.msra.mxu0 0.0
    %1955 = vmatprep.subr.mxu0 0.0
    %1956 = vmatpush1.xpose.msra.mxu0 0.0
    %1957 = vmatprep.subr.mxu0 0.0
    %1958 = vmatpush1.xpose.msra.mxu0 0.0
    %1959 = vmatprep.subr.mxu0 0.0
    %1960 = vmatpush1.xpose.msra.mxu0 0.0
    %1961 = vmatprep.subr.mxu0 0.0
    %1962 = vmatpush1.xpose.msra.mxu0 0.0
    %1963 = vmatprep.subr.mxu0 0.0
    %1964 = vmatpush1.xpose.msra.mxu0 0.0
    %1965 = vmatprep.subr.mxu0 0.0
    %1966 = vmatpush1.xpose.msra.mxu0 0.0
    %1967 = vmatprep.subr.mxu0 0.0
    %1968 = vmatpush1.xpose.msra.mxu0 0.0
    %1969 = vmatprep.subr.mxu0 0.0
    %1970 = vmatpush1.xpose.msra.mxu0 0.0
    %1971 = vmatprep.subr.mxu0 0.0
    %1972 = vmatpush1.xpose.msra.mxu0 0.0
    %1973 = vmatprep.subr.mxu0 0.0
    %1974 = vmatpush1.xpose.msra.mxu0 0.0
    %1975 = vmatprep.subr.mxu0 0.0
    %1976 = vmatpush1.xpose.msra.mxu0 0.0
    %1977 = vmatprep.subr.mxu0 0.0
    %1978 = vmatpush1.xpose.msra.mxu0 0.0
    %1979 = vmatprep.subr.mxu0 0.0
    %1980 = vmatpush1.xpose.msra.mxu0 0.0
    %1981 = vmatprep.subr.mxu0 0.0
    %1982 = vmatpush1.xpose.msra.mxu0 0.0
    %1983 = vmatprep.subr.mxu0 0.0
    %1984 = vmatpush1.xpose.msra.mxu0 0.0
    %1985 = vmatprep.subr.mxu0 0.0
    %1986 = vmatpush1.xpose.msra.mxu0 0.0
    %1987 = vmatprep.subr.mxu0 0.0
    %1988 = vmatpush1.xpose.msra.mxu0 0.0
    %1989 = vmatprep.subr.mxu0 0.0
    %1990 = vmatpush1.xpose.msra.mxu0 0.0
    %1991 = vmatprep.subr.mxu0 0.0
    %1992 = vmatpush1.xpose.msra.mxu0 0.0
    %1993 = vmatprep.subr.mxu0 0.0
    %1994 = vmatpush1.xpose.msra.mxu0 0.0
    %1995 = vmatprep.subr.mxu0 0.0
    %1996 = vmatpush1.xpose.msra.mxu0 0.0
    %1997 = vmatprep.subr.mxu0 0.0
    %1998 = vmatpush1.xpose.msra.mxu0 0.0
    %1999 = vmatprep.subr.mxu0 0.0
    %2000 = vmatpush1.xpose.msra.mxu0 0.0
    %2001 = vmatprep.subr.mxu0 0.0
    %2002 = vmatpush1.xpose.msra.mxu0 0.0
    %2003 = vmatprep.subr.mxu0 0.0
    %2004 = vmatpush1.xpose.msra.mxu0 0.0
    %2005 = vmatprep.subr.mxu0 0.0
    %2006 = vmatpush1.xpose.msra.mxu0 0.0
    %2007 = vmatprep.subr.mxu0 0.0
    %2008 = vmatpush1.xpose.msra.mxu0 0.0
    %2009 = vmatprep.mubr.f32.mxu0 0.0
    %2010 = vmatmul.mubr.f32.gmra.mrb[0].mxu0 %v1940
    %v2011 = vpop.f32.mrb[0].mxu0
    %v2012 = vadd.f32 0.0, %v2011
    %v2013 = vpop.f32.mrb[0].mxu0
    %2014 = vdwg.mxu0
    %v2015 = vsel %vm1230, %v2012, -inf
    %2016 = vmax.xlane.f32.xlu0 %v2015
    %v2017 = vpop.xlane.xlu0 %2016
    %v2018 = vsub.f32 %v2012, %v2017
    %v2019 = vmul.f32 %v2018, 1.442695
    %v2020 = vpow.pop %v2019
    %v2021 = vsel %vm1230, %v2020, 0.0
    %2022 = vadd.xlane.f32.xlu0 %v2021
    %v2023 = vpop.xlane.xlu0 %2022
    %v2024 = vrcp.pop %v2023
    %v2025 = vmul.f32 %v2020, %v2024
    %v2027 = vsel %vm1230, %v2025, 0
    %2029 = vmatprep.subr.mxu0 0.0
    %2030 = vmatpush1.msra.mxu0 %v1221
    %2031 = vmatprep.subr.mxu0 0.0
    %2032 = vmatpush1.msra.mxu0 0.0
    %2033 = vmatprep.subr.mxu0 0.0
    %2034 = vmatpush1.msra.mxu0 0.0
    %2035 = vmatprep.subr.mxu0 0.0
    %2036 = vmatpush1.msra.mxu0 0.0
    %2037 = vmatprep.subr.mxu0 0.0
    %2038 = vmatpush1.msra.mxu0 0.0
    %2039 = vmatprep.subr.mxu0 0.0
    %2040 = vmatpush1.msra.mxu0 0.0
    %2041 = vmatprep.subr.mxu0 0.0
    %2042 = vmatpush1.msra.mxu0 0.0
    %2043 = vmatprep.subr.mxu0 0.0
    %2044 = vmatpush1.msra.mxu0 0.0
    %2045 = vmatprep.subr.mxu0 0.0
    %2046 = vmatpush1.msra.mxu0 0.0
    %2047 = vmatprep.subr.mxu0 0.0
    %2048 = vmatpush1.msra.mxu0 0.0
    %2049 = vmatprep.subr.mxu0 0.0
    %2050 = vmatpush1.msra.mxu0 0.0
    %2051 = vmatprep.subr.mxu0 0.0
    %2052 = vmatpush1.msra.mxu0 0.0
    %2053 = vmatprep.subr.mxu0 0.0
    %2054 = vmatpush1.msra.mxu0 0.0
    %2055 = vmatprep.subr.mxu0 0.0
    %2056 = vmatpush1.msra.mxu0 0.0
    %2057 = vmatprep.subr.mxu0 0.0
    %2058 = vmatpush1.msra.mxu0 0.0
    %2059 = vmatprep.subr.mxu0 0.0
    %2060 = vmatpush1.msra.mxu0 0.0
    %2061 = vmatprep.subr.mxu0 0.0
    %2062 = vmatpush1.msra.mxu0 0.0
    %2063 = vmatprep.subr.mxu0 0.0
    %2064 = vmatpush1.msra.mxu0 0.0
    %2065 = vmatprep.subr.mxu0 0.0
    %2066 = vmatpush1.msra.mxu0 0.0
    %2067 = vmatprep.subr.mxu0 0.0
    %2068 = vmatpush1.msra.mxu0 0.0
    %2069 = vmatprep.subr.mxu0 0.0
    %2070 = vmatpush1.msra.mxu0 0.0
    %2071 = vmatprep.subr.mxu0 0.0
    %2072 = vmatpush1.msra.mxu0 0.0
    %2073 = vmatprep.subr.mxu0 0.0
    %2074 = vmatpush1.msra.mxu0 0.0
    %2075 = vmatprep.subr.mxu0 0.0
    %2076 = vmatpush1.msra.mxu0 0.0
    %2077 = vmatprep.subr.mxu0 0.0
    %2078 = vmatpush1.msra.mxu0 0.0
    %2079 = vmatprep.subr.mxu0 0.0
    %2080 = vmatpush1.msra.mxu0 0.0
    %2081 = vmatprep.subr.mxu0 0.0
    %2082 = vmatpush1.msra.mxu0 0.0
    %2083 = vmatprep.subr.mxu0 0.0
    %2084 = vmatpush1.msra.mxu0 0.0
    %2085 = vmatprep.subr.mxu0 0.0
    %2086 = vmatpush1.msra.mxu0 0.0
    %2087 = vmatprep.subr.mxu0 0.0
    %2088 = vmatpush1.msra.mxu0 0.0
    %2089 = vmatprep.subr.mxu0 0.0
    %2090 = vmatpush1.msra.mxu0 0.0
    %2091 = vmatprep.subr.mxu0 0.0
    %2092 = vmatpush1.msra.mxu0 0.0
    %2093 = vmatprep.mubr.f32.mxu0 0.0
    %2094 = vmatmul.mubr.f32.gmra.mrb[0].mxu0 %v2027
    %v2095 = vpop.f32.mrb[0].mxu0
    %v2096 = vadd.f32 0.0, %v2095
    %v2097 = vpop.f32.mrb[0].mxu0
    %2098 = vdwg.mxu0
    %s2099 = scalar_lea.vmem %s10, 24
    %v2100 = vld [vmem:[%s2099] sm:$0xff]
    %v2102 = vsel %vm1230, %v2096, 0
    %2104 = vmatprep.subr.mxu0 0.0
    %2105 = vmatpush1.msra.mxu0 %v2100
    %2106 = vmatprep.subr.mxu0 0.0
    %2107 = vmatpush1.msra.mxu0 0.0
    %2108 = vmatprep.subr.mxu0 0.0
    %2109 = vmatpush1.msra.mxu0 0.0
    %2110 = vmatprep.subr.mxu0 0.0
    %2111 = vmatpush1.msra.mxu0 0.0
    %2112 = vmatprep.subr.mxu0 0.0
    %2113 = vmatpush1.msra.mxu0 0.0
    %2114 = vmatprep.subr.mxu0 0.0
    %2115 = vmatpush1.msra.mxu0 0.0
    %2116 = vmatprep.subr.mxu0 0.0
    %2117 = vmatpush1.msra.mxu0 0.0
    %2118 = vmatprep.subr.mxu0 0.0
    %2119 = vmatpush1.msra.mxu0 0.0
    %2120 = vmatprep.subr.mxu0 0.0
    %2121 = vmatpush1.msra.mxu0 0.0
    %2122 = vmatprep.subr.mxu0 0.0
    %2123 = vmatpush1.msra.mxu0 0.0
    %2124 = vmatprep.subr.mxu0 0.0
    %2125 = vmatpush1.msra.mxu0 0.0
    %2126 = vmatprep.subr.mxu0 0.0
    %2127 = vmatpush1.msra.mxu0 0.0
    %2128 = vmatprep.subr.mxu0 0.0
    %2129 = vmatpush1.msra.mxu0 0.0
    %2130 = vmatprep.subr.mxu0 0.0
    %2131 = vmatpush1.msra.mxu0 0.0
    %2132 = vmatprep.subr.mxu0 0.0
    %2133 = vmatpush1.msra.mxu0 0.0
    %2134 = vmatprep.subr.mxu0 0.0
    %2135 = vmatpush1.msra.mxu0 0.0
    %2136 = vmatprep.subr.mxu0 0.0
    %2137 = vmatpush1.msra.mxu0 0.0
    %2138 = vmatprep.subr.mxu0 0.0
    %2139 = vmatpush1.msra.mxu0 0.0
    %2140 = vmatprep.subr.mxu0 0.0
    %2141 = vmatpush1.msra.mxu0 0.0
    %2142 = vmatprep.subr.mxu0 0.0
    %2143 = vmatpush1.msra.mxu0 0.0
    %2144 = vmatprep.subr.mxu0 0.0
    %2145 = vmatpush1.msra.mxu0 0.0
    %2146 = vmatprep.subr.mxu0 0.0
    %2147 = vmatpush1.msra.mxu0 0.0
    %2148 = vmatprep.subr.mxu0 0.0
    %2149 = vmatpush1.msra.mxu0 0.0
    %2150 = vmatprep.subr.mxu0 0.0
    %2151 = vmatpush1.msra.mxu0 0.0
    %2152 = vmatprep.subr.mxu0 0.0
    %2153 = vmatpush1.msra.mxu0 0.0
    %2154 = vmatprep.subr.mxu0 0.0
    %2155 = vmatpush1.msra.mxu0 0.0
    %2156 = vmatprep.subr.mxu0 0.0
    %2157 = vmatpush1.msra.mxu0 0.0
    %2158 = vmatprep.subr.mxu0 0.0
    %2159 = vmatpush1.msra.mxu0 0.0
    %2160 = vmatprep.subr.mxu0 0.0
    %2161 = vmatpush1.msra.mxu0 0.0
    %2162 = vmatprep.subr.mxu0 0.0
    %2163 = vmatpush1.msra.mxu0 0.0
    %2164 = vmatprep.subr.mxu0 0.0
    %2165 = vmatpush1.msra.mxu0 0.0
    %2166 = vmatprep.subr.mxu0 0.0
    %2167 = vmatpush1.msra.mxu0 0.0
    %2168 = vmatprep.mubr.f32.mxu0 0.0
    %2169 = vmatmul.mubr.f32.gmra.mrb[0].mxu0 %v2102
    %v2170 = vpop.f32.mrb[0].mxu0
    %v2171 = vadd.f32 0.0, %v2170
    %v2172 = vpop.f32.mrb[0].mxu0
    %2173 = vdwg.mxu0
    %v2174 = vadd.f32 %v1937, %v2171
    %v2175 = vld [vmem:[%s11] sm:$0x1]
    %v2177 = vlaneseq
    %v2178 = vshrl.u32 %v2177, 7
    %v2179 = vsub.s32 0, %v2178
    %v2180 = vrot.slane %v2175, %v2179
    %v2182 = vadd.f32 %v2174, %v2180
    %2183 = vst.msk [vmem:[#allocation2] sm:$0xff] %vm183, %v2182
    %v2184 = vmul.f32 %v262, 0.35355338
    %v2186 = vsel %vm1230, %v2184, 0
    %v2189 = vsel %vm1230, %v348, 0
    %2191 = vmatprep.subr.mxu0 0.0
    %2192 = vmatpush1.xpose.msra.mxu0 %v2189
    %2193 = vmatprep.subr.mxu0 0.0
    %2194 = vmatpush1.xpose.msra.mxu0 0.0
    %2195 = vmatprep.subr.mxu0 0.0
    %2196 = vmatpush1.xpose.msra.mxu0 0.0
    %2197 = vmatprep.subr.mxu0 0.0
    %2198 = vmatpush1.xpose.msra.mxu0 0.0
    %2199 = vmatprep.subr.mxu0 0.0
    %2200 = vmatpush1.xpose.msra.mxu0 0.0
    %2201 = vmatprep.subr.mxu0 0.0
    %2202 = vmatpush1.xpose.msra.mxu0 0.0
    %2203 = vmatprep.subr.mxu0 0.0
    %2204 = vmatpush1.xpose.msra.mxu0 0.0
    %2205 = vmatprep.subr.mxu0 0.0
    %2206 = vmatpush1.xpose.msra.mxu0 0.0
    %2207 = vmatprep.subr.mxu0 0.0
    %2208 = vmatpush1.xpose.msra.mxu0 0.0
    %2209 = vmatprep.subr.mxu0 0.0
    %2210 = vmatpush1.xpose.msra.mxu0 0.0
    %2211 = vmatprep.subr.mxu0 0.0
    %2212 = vmatpush1.xpose.msra.mxu0 0.0
    %2213 = vmatprep.subr.mxu0 0.0
    %2214 = vmatpush1.xpose.msra.mxu0 0.0
    %2215 = vmatprep.subr.mxu0 0.0
    %2216 = vmatpush1.xpose.msra.mxu0 0.0
    %2217 = vmatprep.subr.mxu0 0.0
    %2218 = vmatpush1.xpose.msra.mxu0 0.0
    %2219 = vmatprep.subr.mxu0 0.0
    %2220 = vmatpush1.xpose.msra.mxu0 0.0
    %2221 = vmatprep.subr.mxu0 0.0
    %2222 = vmatpush1.xpose.msra.mxu0 0.0
    %2223 = vmatprep.subr.mxu0 0.0
    %2224 = vmatpush1.xpose.msra.mxu0 0.0
    %2225 = vmatprep.subr.mxu0 0.0
    %2226 = vmatpush1.xpose.msra.mxu0 0.0
    %2227 = vmatprep.subr.mxu0 0.0
    %2228 = vmatpush1.xpose.msra.mxu0 0.0
    %2229 = vmatprep.subr.mxu0 0.0
    %2230 = vmatpush1.xpose.msra.mxu0 0.0
    %2231 = vmatprep.subr.mxu0 0.0
    %2232 = vmatpush1.xpose.msra.mxu0 0.0
    %2233 = vmatprep.subr.mxu0 0.0
    %2234 = vmatpush1.xpose.msra.mxu0 0.0
    %2235 = vmatprep.subr.mxu0 0.0
    %2236 = vmatpush1.xpose.msra.mxu0 0.0
    %2237 = vmatprep.subr.mxu0 0.0
    %2238 = vmatpush1.xpose.msra.mxu0 0.0
    %2239 = vmatprep.subr.mxu0 0.0
    %2240 = vmatpush1.xpose.msra.mxu0 0.0
    %2241 = vmatprep.subr.mxu0 0.0
    %2242 = vmatpush1.xpose.msra.mxu0 0.0
    %2243 = vmatprep.subr.mxu0 0.0
    %2244 = vmatpush1.xpose.msra.mxu0 0.0
    %2245 = vmatprep.subr.mxu0 0.0
    %2246 = vmatpush1.xpose.msra.mxu0 0.0
    %2247 = vmatprep.subr.mxu0 0.0
    %2248 = vmatpush1.xpose.msra.mxu0 0.0
    %2249 = vmatprep.subr.mxu0 0.0
    %2250 = vmatpush1.xpose.msra.mxu0 0.0
    %2251 = vmatprep.subr.mxu0 0.0
    %2252 = vmatpush1.xpose.msra.mxu0 0.0
    %2253 = vmatprep.subr.mxu0 0.0
    %2254 = vmatpush1.xpose.msra.mxu0 0.0
    %2255 = vmatprep.mubr.f32.mxu0 0.0
    %2256 = vmatmul.mubr.f32.gmra.mrb[0].mxu0 %v2186
    %v2257 = vpop.f32.mrb[0].mxu0
    %v2258 = vadd.f32 0.0, %v2257
    %v2259 = vpop.f32.mrb[0].mxu0
    %2260 = vdwg.mxu0
    %v2261 = vsel %vm1230, %v2258, -inf
    %2262 = vmax.xlane.f32.xlu0 %v2261
    %v2263 = vpop.xlane.xlu0 %2262
    %v2264 = vsub.f32 %v2258, %v2263
    %v2265 = vmul.f32 %v2264, 1.442695
    %v2266 = vpow.pop %v2265
    %v2267 = vsel %vm1230, %v2266, 0.0
    %2268 = vadd.xlane.f32.xlu0 %v2267
    %v2269 = vpop.xlane.xlu0 %2268
    %v2270 = vrcp.pop %v2269
    %v2271 = vmul.f32 %v2266, %v2270
    %v2273 = vsel %vm1230, %v2271, 0
    %2275 = vmatprep.subr.mxu0 0.0
    %2276 = vmatpush1.msra.mxu0 %v434
    %2277 = vmatprep.subr.mxu0 0.0
    %2278 = vmatpush1.msra.mxu0 0.0
    %2279 = vmatprep.subr.mxu0 0.0
    %2280 = vmatpush1.msra.mxu0 0.0
    %2281 = vmatprep.subr.mxu0 0.0
    %2282 = vmatpush1.msra.mxu0 0.0
    %2283 = vmatprep.subr.mxu0 0.0
    %2284 = vmatpush1.msra.mxu0 0.0
    %2285 = vmatprep.subr.mxu0 0.0
    %2286 = vmatpush1.msra.mxu0 0.0
    %2287 = vmatprep.subr.mxu0 0.0
    %2288 = vmatpush1.msra.mxu0 0.0
    %2289 = vmatprep.subr.mxu0 0.0
    %2290 = vmatpush1.msra.mxu0 0.0
    %2291 = vmatprep.subr.mxu0 0.0
    %2292 = vmatpush1.msra.mxu0 0.0
    %2293 = vmatprep.subr.mxu0 0.0
    %2294 = vmatpush1.msra.mxu0 0.0
    %2295 = vmatprep.subr.mxu0 0.0
    %2296 = vmatpush1.msra.mxu0 0.0
    %2297 = vmatprep.subr.mxu0 0.0
    %2298 = vmatpush1.msra.mxu0 0.0
    %2299 = vmatprep.subr.mxu0 0.0
    %2300 = vmatpush1.msra.mxu0 0.0
    %2301 = vmatprep.subr.mxu0 0.0
    %2302 = vmatpush1.msra.mxu0 0.0
    %2303 = vmatprep.subr.mxu0 0.0
    %2304 = vmatpush1.msra.mxu0 0.0
    %2305 = vmatprep.subr.mxu0 0.0
    %2306 = vmatpush1.msra.mxu0 0.0
    %2307 = vmatprep.subr.mxu0 0.0
    %2308 = vmatpush1.msra.mxu0 0.0
    %2309 = vmatprep.subr.mxu0 0.0
    %2310 = vmatpush1.msra.mxu0 0.0
    %2311 = vmatprep.subr.mxu0 0.0
    %2312 = vmatpush1.msra.mxu0 0.0
    %2313 = vmatprep.subr.mxu0 0.0
    %2314 = vmatpush1.msra.mxu0 0.0
    %2315 = vmatprep.subr.mxu0 0.0
    %2316 = vmatpush1.msra.mxu0 0.0
    %2317 = vmatprep.subr.mxu0 0.0
    %2318 = vmatpush1.msra.mxu0 0.0
    %2319 = vmatprep.subr.mxu0 0.0
    %2320 = vmatpush1.msra.mxu0 0.0
    %2321 = vmatprep.subr.mxu0 0.0
    %2322 = vmatpush1.msra.mxu0 0.0
    %2323 = vmatprep.subr.mxu0 0.0
    %2324 = vmatpush1.msra.mxu0 0.0
    %2325 = vmatprep.subr.mxu0 0.0
    %2326 = vmatpush1.msra.mxu0 0.0
    %2327 = vmatprep.subr.mxu0 0.0
    %2328 = vmatpush1.msra.mxu0 0.0
    %2329 = vmatprep.subr.mxu0 0.0
    %2330 = vmatpush1.msra.mxu0 0.0
    %2331 = vmatprep.subr.mxu0 0.0
    %2332 = vmatpush1.msra.mxu0 0.0
    %2333 = vmatprep.subr.mxu0 0.0
    %2334 = vmatpush1.msra.mxu0 0.0
    %2335 = vmatprep.subr.mxu0 0.0
    %2336 = vmatpush1.msra.mxu0 0.0
    %2337 = vmatprep.subr.mxu0 0.0
    %2338 = vmatpush1.msra.mxu0 0.0
    %2339 = vmatprep.mubr.f32.mxu0 0.0
    %2340 = vmatmul.mubr.f32.gmra.mrb[0].mxu0 %v2273
    %v2341 = vpop.f32.mrb[0].mxu0
    %v2342 = vadd.f32 0.0, %v2341
    %v2343 = vpop.f32.mrb[0].mxu0
    %2344 = vdwg.mxu0
    %v2345 = vld [vmem:[%s10] sm:$0xff]
    %v2346 = vmul.f32 %v522, 0.35355338
    %v2348 = vsel %vm1230, %v2346, 0
    %v2351 = vsel %vm1230, %v610, 0
    %2353 = vmatprep.subr.mxu0 0.0
    %2354 = vmatpush1.xpose.msra.mxu0 %v2351
    %2355 = vmatprep.subr.mxu0 0.0
    %2356 = vmatpush1.xpose.msra.mxu0 0.0
    %2357 = vmatprep.subr.mxu0 0.0
    %2358 = vmatpush1.xpose.msra.mxu0 0.0
    %2359 = vmatprep.subr.mxu0 0.0
    %2360 = vmatpush1.xpose.msra.mxu0 0.0
    %2361 = vmatprep.subr.mxu0 0.0
    %2362 = vmatpush1.xpose.msra.mxu0 0.0
    %2363 = vmatprep.subr.mxu0 0.0
    %2364 = vmatpush1.xpose.msra.mxu0 0.0
    %2365 = vmatprep.subr.mxu0 0.0
    %2366 = vmatpush1.xpose.msra.mxu0 0.0
    %2367 = vmatprep.subr.mxu0 0.0
    %2368 = vmatpush1.xpose.msra.mxu0 0.0
    %2369 = vmatprep.subr.mxu0 0.0
    %2370 = vmatpush1.xpose.msra.mxu0 0.0
    %2371 = vmatprep.subr.mxu0 0.0
    %2372 = vmatpush1.xpose.msra.mxu0 0.0
    %2373 = vmatprep.subr.mxu0 0.0
    %2374 = vmatpush1.xpose.msra.mxu0 0.0
    %2375 = vmatprep.subr.mxu0 0.0
    %2376 = vmatpush1.xpose.msra.mxu0 0.0
    %2377 = vmatprep.subr.mxu0 0.0
    %2378 = vmatpush1.xpose.msra.mxu0 0.0
    %2379 = vmatprep.subr.mxu0 0.0
    %2380 = vmatpush1.xpose.msra.mxu0 0.0
    %2381 = vmatprep.subr.mxu0 0.0
    %2382 = vmatpush1.xpose.msra.mxu0 0.0
    %2383 = vmatprep.subr.mxu0 0.0
    %2384 = vmatpush1.xpose.msra.mxu0 0.0
    %2385 = vmatprep.subr.mxu0 0.0
    %2386 = vmatpush1.xpose.msra.mxu0 0.0
    %2387 = vmatprep.subr.mxu0 0.0
    %2388 = vmatpush1.xpose.msra.mxu0 0.0
    %2389 = vmatprep.subr.mxu0 0.0
    %2390 = vmatpush1.xpose.msra.mxu0 0.0
    %2391 = vmatprep.subr.mxu0 0.0
    %2392 = vmatpush1.xpose.msra.mxu0 0.0
    %2393 = vmatprep.subr.mxu0 0.0
    %2394 = vmatpush1.xpose.msra.mxu0 0.0
    %2395 = vmatprep.subr.mxu0 0.0
    %2396 = vmatpush1.xpose.msra.mxu0 0.0
    %2397 = vmatprep.subr.mxu0 0.0
    %2398 = vmatpush1.xpose.msra.mxu0 0.0
    %2399 = vmatprep.subr.mxu0 0.0
    %2400 = vmatpush1.xpose.msra.mxu0 0.0
    %2401 = vmatprep.subr.mxu0 0.0
    %2402 = vmatpush1.xpose.msra.mxu0 0.0
    %2403 = vmatprep.subr.mxu0 0.0
    %2404 = vmatpush1.xpose.msra.mxu0 0.0
    %2405 = vmatprep.subr.mxu0 0.0
    %2406 = vmatpush1.xpose.msra.mxu0 0.0
    %2407 = vmatprep.subr.mxu0 0.0
    %2408 = vmatpush1.xpose.msra.mxu0 0.0
    %2409 = vmatprep.subr.mxu0 0.0
    %2410 = vmatpush1.xpose.msra.mxu0 0.0
    %2411 = vmatprep.subr.mxu0 0.0
    %2412 = vmatpush1.xpose.msra.mxu0 0.0
    %2413 = vmatprep.subr.mxu0 0.0
    %2414 = vmatpush1.xpose.msra.mxu0 0.0
    %2415 = vmatprep.subr.mxu0 0.0
    %2416 = vmatpush1.xpose.msra.mxu0 0.0
    %2417 = vmatprep.mubr.f32.mxu0 0.0
    %2418 = vmatmul.mubr.f32.gmra.mrb[0].mxu0 %v2348
    %v2419 = vpop.f32.mrb[0].mxu0
    %v2420 = vadd.f32 0.0, %v2419
    %v2421 = vpop.f32.mrb[0].mxu0
    %2422 = vdwg.mxu0
    %v2423 = vsel %vm1230, %v2420, -inf
    %2424 = vmax.xlane.f32.xlu0 %v2423
    %v2425 = vpop.xlane.xlu0 %2424
    %v2426 = vsub.f32 %v2420, %v2425
    %v2427 = vmul.f32 %v2426, 1.442695
    %v2428 = vpow.pop %v2427
    %v2429 = vsel %vm1230, %v2428, 0.0
    %2430 = vadd.xlane.f32.xlu0 %v2429
    %v2431 = vpop.xlane.xlu0 %2430
    %v2432 = vrcp.pop %v2431
    %v2433 = vmul.f32 %v2428, %v2432
    %v2435 = vsel %vm1230, %v2433, 0
    %2437 = vmatprep.subr.mxu0 0.0
    %2438 = vmatpush1.msra.mxu0 %v698
    %2439 = vmatprep.subr.mxu0 0.0
    %2440 = vmatpush1.msra.mxu0 0.0
    %2441 = vmatprep.subr.mxu0 0.0
    %2442 = vmatpush1.msra.mxu0 0.0
    %2443 = vmatprep.subr.mxu0 0.0
    %2444 = vmatpush1.msra.mxu0 0.0
    %2445 = vmatprep.subr.mxu0 0.0
    %2446 = vmatpush1.msra.mxu0 0.0
    %2447 = vmatprep.subr.mxu0 0.0
    %2448 = vmatpush1.msra.mxu0 0.0
    %2449 = vmatprep.subr.mxu0 0.0
    %2450 = vmatpush1.msra.mxu0 0.0
    %2451 = vmatprep.subr.mxu0 0.0
    %2452 = vmatpush1.msra.mxu0 0.0
    %2453 = vmatprep.subr.mxu0 0.0
    %2454 = vmatpush1.msra.mxu0 0.0
    %2455 = vmatprep.subr.mxu0 0.0
    %2456 = vmatpush1.msra.mxu0 0.0
    %2457 = vmatprep.subr.mxu0 0.0
    %2458 = vmatpush1.msra.mxu0 0.0
    %2459 = vmatprep.subr.mxu0 0.0
    %2460 = vmatpush1.msra.mxu0 0.0
    %2461 = vmatprep.subr.mxu0 0.0
    %2462 = vmatpush1.msra.mxu0 0.0
    %2463 = vmatprep.subr.mxu0 0.0
    %2464 = vmatpush1.msra.mxu0 0.0
    %2465 = vmatprep.subr.mxu0 0.0
    %2466 = vmatpush1.msra.mxu0 0.0
    %2467 = vmatprep.subr.mxu0 0.0
    %2468 = vmatpush1.msra.mxu0 0.0
    %2469 = vmatprep.subr.mxu0 0.0
    %2470 = vmatpush1.msra.mxu0 0.0
    %2471 = vmatprep.subr.mxu0 0.0
    %2472 = vmatpush1.msra.mxu0 0.0
    %2473 = vmatprep.subr.mxu0 0.0
    %2474 = vmatpush1.msra.mxu0 0.0
    %2475 = vmatprep.subr.mxu0 0.0
    %2476 = vmatpush1.msra.mxu0 0.0
    %2477 = vmatprep.subr.mxu0 0.0
    %2478 = vmatpush1.msra.mxu0 0.0
    %2479 = vmatprep.subr.mxu0 0.0
    %2480 = vmatpush1.msra.mxu0 0.0
    %2481 = vmatprep.subr.mxu0 0.0
    %2482 = vmatpush1.msra.mxu0 0.0
    %2483 = vmatprep.subr.mxu0 0.0
    %2484 = vmatpush1.msra.mxu0 0.0
    %2485 = vmatprep.subr.mxu0 0.0
    %2486 = vmatpush1.msra.mxu0 0.0
    %2487 = vmatprep.subr.mxu0 0.0
    %2488 = vmatpush1.msra.mxu0 0.0
    %2489 = vmatprep.subr.mxu0 0.0
    %2490 = vmatpush1.msra.mxu0 0.0
    %2491 = vmatprep.subr.mxu0 0.0
    %2492 = vmatpush1.msra.mxu0 0.0
    %2493 = vmatprep.subr.mxu0 0.0
    %2494 = vmatpush1.msra.mxu0 0.0
    %2495 = vmatprep.subr.mxu0 0.0
    %2496 = vmatpush1.msra.mxu0 0.0
    %2497 = vmatprep.subr.mxu0 0.0
    %2498 = vmatpush1.msra.mxu0 0.0
    %2499 = vmatprep.subr.mxu0 0.0
    %2500 = vmatpush1.msra.mxu0 0.0
    %2501 = vmatprep.mubr.f32.mxu0 0.0
    %2502 = vmatmul.mubr.f32.gmra.mrb[0].mxu0 %v2435
    %v2503 = vpop.f32.mrb[0].mxu0
    %v2504 = vadd.f32 0.0, %v2503
    %v2505 = vpop.f32.mrb[0].mxu0
    %2506 = vdwg.mxu0
    %v2507 = vld [vmem:[%s1553] sm:$0xff]
    %v2509 = vsel %vm1230, %v2504, 0
    %2511 = vmatprep.subr.mxu0 0.0
    %2512 = vmatpush1.msra.mxu0 %v2507
    %2513 = vmatprep.subr.mxu0 0.0
    %2514 = vmatpush1.msra.mxu0 0.0
    %2515 = vmatprep.subr.mxu0 0.0
    %2516 = vmatpush1.msra.mxu0 0.0
    %2517 = vmatprep.subr.mxu0 0.0
    %2518 = vmatpush1.msra.mxu0 0.0
    %2519 = vmatprep.subr.mxu0 0.0
    %2520 = vmatpush1.msra.mxu0 0.0
    %2521 = vmatprep.subr.mxu0 0.0
    %2522 = vmatpush1.msra.mxu0 0.0
    %2523 = vmatprep.subr.mxu0 0.0
    %2524 = vmatpush1.msra.mxu0 0.0
    %2525 = vmatprep.subr.mxu0 0.0
    %2526 = vmatpush1.msra.mxu0 0.0
    %2527 = vmatprep.subr.mxu0 0.0
    %2528 = vmatpush1.msra.mxu0 0.0
    %2529 = vmatprep.subr.mxu0 0.0
    %2530 = vmatpush1.msra.mxu0 0.0
    %2531 = vmatprep.subr.mxu0 0.0
    %2532 = vmatpush1.msra.mxu0 0.0
    %2533 = vmatprep.subr.mxu0 0.0
    %2534 = vmatpush1.msra.mxu0 0.0
    %2535 = vmatprep.subr.mxu0 0.0
    %2536 = vmatpush1.msra.mxu0 0.0
    %2537 = vmatprep.subr.mxu0 0.0
    %2538 = vmatpush1.msra.mxu0 0.0
    %2539 = vmatprep.subr.mxu0 0.0
    %2540 = vmatpush1.msra.mxu0 0.0
    %2541 = vmatprep.subr.mxu0 0.0
    %2542 = vmatpush1.msra.mxu0 0.0
    %2543 = vmatprep.subr.mxu0 0.0
    %2544 = vmatpush1.msra.mxu0 0.0
    %2545 = vmatprep.subr.mxu0 0.0
    %2546 = vmatpush1.msra.mxu0 0.0
    %2547 = vmatprep.subr.mxu0 0.0
    %2548 = vmatpush1.msra.mxu0 0.0
    %2549 = vmatprep.subr.mxu0 0.0
    %2550 = vmatpush1.msra.mxu0 0.0
    %2551 = vmatprep.subr.mxu0 0.0
    %2552 = vmatpush1.msra.mxu0 0.0
    %2553 = vmatprep.subr.mxu0 0.0
    %2554 = vmatpush1.msra.mxu0 0.0
    %2555 = vmatprep.subr.mxu0 0.0
    %2556 = vmatpush1.msra.mxu0 0.0
    %2557 = vmatprep.subr.mxu0 0.0
    %2558 = vmatpush1.msra.mxu0 0.0
    %2559 = vmatprep.subr.mxu0 0.0
    %2560 = vmatpush1.msra.mxu0 0.0
    %2561 = vmatprep.subr.mxu0 0.0
    %2562 = vmatpush1.msra.mxu0 0.0
    %2563 = vmatprep.subr.mxu0 0.0
    %2564 = vmatpush1.msra.mxu0 0.0
    %2565 = vmatprep.subr.mxu0 0.0
    %2566 = vmatpush1.msra.mxu0 0.0
    %2567 = vmatprep.subr.mxu0 0.0
    %2568 = vmatpush1.msra.mxu0 0.0
    %2569 = vmatprep.subr.mxu0 0.0
    %2570 = vmatpush1.msra.mxu0 0.0
    %2571 = vmatprep.subr.mxu0 0.0
    %2572 = vmatpush1.msra.mxu0 0.0
    %2573 = vmatprep.subr.mxu0 0.0
    %2574 = vmatpush1.msra.mxu0 0.0
    %2575 = vmatprep.mubr.f32.mxu0 0.0
    %2576 = vmatmul.mubr.f32.gmra.mrb[0].mxu0 %v2509
    %v2577 = vpop.f32.mrb[0].mxu0
    %v2578 = vadd.f32 0.0, %v2577
    %v2579 = vpop.f32.mrb[0].mxu0
    %2580 = vdwg.mxu0
    %v2582 = vsel %vm1230, %v2342, 0
    %2584 = vmatprep.subr.mxu0 0.0
    %2585 = vmatpush1.msra.mxu0 %v2345
    %2586 = vmatprep.subr.mxu0 0.0
    %2587 = vmatpush1.msra.mxu0 0.0
    %2588 = vmatprep.subr.mxu0 0.0
    %2589 = vmatpush1.msra.mxu0 0.0
    %2590 = vmatprep.subr.mxu0 0.0
    %2591 = vmatpush1.msra.mxu0 0.0
    %2592 = vmatprep.subr.mxu0 0.0
    %2593 = vmatpush1.msra.mxu0 0.0
    %2594 = vmatprep.subr.mxu0 0.0
    %2595 = vmatpush1.msra.mxu0 0.0
    %2596 = vmatprep.subr.mxu0 0.0
    %2597 = vmatpush1.msra.mxu0 0.0
    %2598 = vmatprep.subr.mxu0 0.0
    %2599 = vmatpush1.msra.mxu0 0.0
    %2600 = vmatprep.subr.mxu0 0.0
    %2601 = vmatpush1.msra.mxu0 0.0
    %2602 = vmatprep.subr.mxu0 0.0
    %2603 = vmatpush1.msra.mxu0 0.0
    %2604 = vmatprep.subr.mxu0 0.0
    %2605 = vmatpush1.msra.mxu0 0.0
    %2606 = vmatprep.subr.mxu0 0.0
    %2607 = vmatpush1.msra.mxu0 0.0
    %2608 = vmatprep.subr.mxu0 0.0
    %2609 = vmatpush1.msra.mxu0 0.0
    %2610 = vmatprep.subr.mxu0 0.0
    %2611 = vmatpush1.msra.mxu0 0.0
    %2612 = vmatprep.subr.mxu0 0.0
    %2613 = vmatpush1.msra.mxu0 0.0
    %2614 = vmatprep.subr.mxu0 0.0
    %2615 = vmatpush1.msra.mxu0 0.0
    %2616 = vmatprep.subr.mxu0 0.0
    %2617 = vmatpush1.msra.mxu0 0.0
    %2618 = vmatprep.subr.mxu0 0.0
    %2619 = vmatpush1.msra.mxu0 0.0
    %2620 = vmatprep.subr.mxu0 0.0
    %2621 = vmatpush1.msra.mxu0 0.0
    %2622 = vmatprep.subr.mxu0 0.0
    %2623 = vmatpush1.msra.mxu0 0.0
    %2624 = vmatprep.subr.mxu0 0.0
    %2625 = vmatpush1.msra.mxu0 0.0
    %2626 = vmatprep.subr.mxu0 0.0
    %2627 = vmatpush1.msra.mxu0 0.0
    %2628 = vmatprep.subr.mxu0 0.0
    %2629 = vmatpush1.msra.mxu0 0.0
    %2630 = vmatprep.subr.mxu0 0.0
    %2631 = vmatpush1.msra.mxu0 0.0
    %2632 = vmatprep.subr.mxu0 0.0
    %2633 = vmatpush1.msra.mxu0 0.0
    %2634 = vmatprep.subr.mxu0 0.0
    %2635 = vmatpush1.msra.mxu0 0.0
    %2636 = vmatprep.subr.mxu0 0.0
    %2637 = vmatpush1.msra.mxu0 0.0
    %2638 = vmatprep.subr.mxu0 0.0
    %2639 = vmatpush1.msra.mxu0 0.0
    %2640 = vmatprep.subr.mxu0 0.0
    %2641 = vmatpush1.msra.mxu0 0.0
    %2642 = vmatprep.subr.mxu0 0.0
    %2643 = vmatpush1.msra.mxu0 0.0
    %2644 = vmatprep.subr.mxu0 0.0
    %2645 = vmatpush1.msra.mxu0 0.0
    %2646 = vmatprep.subr.mxu0 0.0
    %2647 = vmatpush1.msra.mxu0 0.0
    %2648 = vmatprep.mubr.f32.mxu0 0.0
    %2649 = vmatmul.mubr.f32.gmra.mrb[0].mxu0 %v2582
    %v2650 = vpop.f32.mrb[0].mxu0
    %v2651 = vadd.f32 %v2578, %v2650
    %v2652 = vpop.f32.mrb[0].mxu0
    %2653 = vdwg.mxu0
    %v2654 = vmul.f32 %v786, 0.35355338
    %v2656 = vsel %vm1230, %v2654, 0
    %v2659 = vsel %vm1230, %v874, 0
    %2661 = vmatprep.subr.mxu0 0.0
    %2662 = vmatpush1.xpose.msra.mxu0 %v2659
    %2663 = vmatprep.subr.mxu0 0.0
    %2664 = vmatpush1.xpose.msra.mxu0 0.0
    %2665 = vmatprep.subr.mxu0 0.0
    %2666 = vmatpush1.xpose.msra.mxu0 0.0
    %2667 = vmatprep.subr.mxu0 0.0
    %2668 = vmatpush1.xpose.msra.mxu0 0.0
    %2669 = vmatprep.subr.mxu0 0.0
    %2670 = vmatpush1.xpose.msra.mxu0 0.0
    %2671 = vmatprep.subr.mxu0 0.0
    %2672 = vmatpush1.xpose.msra.mxu0 0.0
    %2673 = vmatprep.subr.mxu0 0.0
    %2674 = vmatpush1.xpose.msra.mxu0 0.0
    %2675 = vmatprep.subr.mxu0 0.0
    %2676 = vmatpush1.xpose.msra.mxu0 0.0
    %2677 = vmatprep.subr.mxu0 0.0
    %2678 = vmatpush1.xpose.msra.mxu0 0.0
    %2679 = vmatprep.subr.mxu0 0.0
    %2680 = vmatpush1.xpose.msra.mxu0 0.0
    %2681 = vmatprep.subr.mxu0 0.0
    %2682 = vmatpush1.xpose.msra.mxu0 0.0
    %2683 = vmatprep.subr.mxu0 0.0
    %2684 = vmatpush1.xpose.msra.mxu0 0.0
    %2685 = vmatprep.subr.mxu0 0.0
    %2686 = vmatpush1.xpose.msra.mxu0 0.0
    %2687 = vmatprep.subr.mxu0 0.0
    %2688 = vmatpush1.xpose.msra.mxu0 0.0
    %2689 = vmatprep.subr.mxu0 0.0
    %2690 = vmatpush1.xpose.msra.mxu0 0.0
    %2691 = vmatprep.subr.mxu0 0.0
    %2692 = vmatpush1.xpose.msra.mxu0 0.0
    %2693 = vmatprep.subr.mxu0 0.0
    %2694 = vmatpush1.xpose.msra.mxu0 0.0
    %2695 = vmatprep.subr.mxu0 0.0
    %2696 = vmatpush1.xpose.msra.mxu0 0.0
    %2697 = vmatprep.subr.mxu0 0.0
    %2698 = vmatpush1.xpose.msra.mxu0 0.0
    %2699 = vmatprep.subr.mxu0 0.0
    %2700 = vmatpush1.xpose.msra.mxu0 0.0
    %2701 = vmatprep.subr.mxu0 0.0
    %2702 = vmatpush1.xpose.msra.mxu0 0.0
    %2703 = vmatprep.subr.mxu0 0.0
    %2704 = vmatpush1.xpose.msra.mxu0 0.0
    %2705 = vmatprep.subr.mxu0 0.0
    %2706 = vmatpush1.xpose.msra.mxu0 0.0
    %2707 = vmatprep.subr.mxu0 0.0
    %2708 = vmatpush1.xpose.msra.mxu0 0.0
    %2709 = vmatprep.subr.mxu0 0.0
    %2710 = vmatpush1.xpose.msra.mxu0 0.0
    %2711 = vmatprep.subr.mxu0 0.0
    %2712 = vmatpush1.xpose.msra.mxu0 0.0
    %2713 = vmatprep.subr.mxu0 0.0
    %2714 = vmatpush1.xpose.msra.mxu0 0.0
    %2715 = vmatprep.subr.mxu0 0.0
    %2716 = vmatpush1.xpose.msra.mxu0 0.0
    %2717 = vmatprep.subr.mxu0 0.0
    %2718 = vmatpush1.xpose.msra.mxu0 0.0
    %2719 = vmatprep.subr.mxu0 0.0
    %2720 = vmatpush1.xpose.msra.mxu0 0.0
    %2721 = vmatprep.subr.mxu0 0.0
    %2722 = vmatpush1.xpose.msra.mxu0 0.0
    %2723 = vmatprep.subr.mxu0 0.0
    %2724 = vmatpush1.xpose.msra.mxu0 0.0
    %2725 = vmatprep.mubr.f32.mxu0 0.0
    %2726 = vmatmul.mubr.f32.gmra.mrb[0].mxu0 %v2656
    %v2727 = vpop.f32.mrb[0].mxu0
    %v2728 = vadd.f32 0.0, %v2727
    %v2729 = vpop.f32.mrb[0].mxu0
    %2730 = vdwg.mxu0
    %v2731 = vsel %vm1230, %v2728, -inf
    %2732 = vmax.xlane.f32.xlu0 %v2731
    %v2733 = vpop.xlane.xlu0 %2732
    %v2734 = vsub.f32 %v2728, %v2733
    %v2735 = vmul.f32 %v2734, 1.442695
    %v2736 = vpow.pop %v2735
    %v2737 = vsel %vm1230, %v2736, 0.0
    %2738 = vadd.xlane.f32.xlu0 %v2737
    %v2739 = vpop.xlane.xlu0 %2738
    %v2740 = vrcp.pop %v2739
    %v2741 = vmul.f32 %v2736, %v2740
    %v2743 = vsel %vm1230, %v2741, 0
    %2745 = vmatprep.subr.mxu0 0.0
    %2746 = vmatpush1.msra.mxu0 %v962
    %2747 = vmatprep.subr.mxu0 0.0
    %2748 = vmatpush1.msra.mxu0 0.0
    %2749 = vmatprep.subr.mxu0 0.0
    %2750 = vmatpush1.msra.mxu0 0.0
    %2751 = vmatprep.subr.mxu0 0.0
    %2752 = vmatpush1.msra.mxu0 0.0
    %2753 = vmatprep.subr.mxu0 0.0
    %2754 = vmatpush1.msra.mxu0 0.0
    %2755 = vmatprep.subr.mxu0 0.0
    %2756 = vmatpush1.msra.mxu0 0.0
    %2757 = vmatprep.subr.mxu0 0.0
    %2758 = vmatpush1.msra.mxu0 0.0
    %2759 = vmatprep.subr.mxu0 0.0
    %2760 = vmatpush1.msra.mxu0 0.0
    %2761 = vmatprep.subr.mxu0 0.0
    %2762 = vmatpush1.msra.mxu0 0.0
    %2763 = vmatprep.subr.mxu0 0.0
    %2764 = vmatpush1.msra.mxu0 0.0
    %2765 = vmatprep.subr.mxu0 0.0
    %2766 = vmatpush1.msra.mxu0 0.0
    %2767 = vmatprep.subr.mxu0 0.0
    %2768 = vmatpush1.msra.mxu0 0.0
    %2769 = vmatprep.subr.mxu0 0.0
    %2770 = vmatpush1.msra.mxu0 0.0
    %2771 = vmatprep.subr.mxu0 0.0
    %2772 = vmatpush1.msra.mxu0 0.0
    %2773 = vmatprep.subr.mxu0 0.0
    %2774 = vmatpush1.msra.mxu0 0.0
    %2775 = vmatprep.subr.mxu0 0.0
    %2776 = vmatpush1.msra.mxu0 0.0
    %2777 = vmatprep.subr.mxu0 0.0
    %2778 = vmatpush1.msra.mxu0 0.0
    %2779 = vmatprep.subr.mxu0 0.0
    %2780 = vmatpush1.msra.mxu0 0.0
    %2781 = vmatprep.subr.mxu0 0.0
    %2782 = vmatpush1.msra.mxu0 0.0
    %2783 = vmatprep.subr.mxu0 0.0
    %2784 = vmatpush1.msra.mxu0 0.0
    %2785 = vmatprep.subr.mxu0 0.0
    %2786 = vmatpush1.msra.mxu0 0.0
    %2787 = vmatprep.subr.mxu0 0.0
    %2788 = vmatpush1.msra.mxu0 0.0
    %2789 = vmatprep.subr.mxu0 0.0
    %2790 = vmatpush1.msra.mxu0 0.0
    %2791 = vmatprep.subr.mxu0 0.0
    %2792 = vmatpush1.msra.mxu0 0.0
    %2793 = vmatprep.subr.mxu0 0.0
    %2794 = vmatpush1.msra.mxu0 0.0
    %2795 = vmatprep.subr.mxu0 0.0
    %2796 = vmatpush1.msra.mxu0 0.0
    %2797 = vmatprep.subr.mxu0 0.0
    %2798 = vmatpush1.msra.mxu0 0.0
    %2799 = vmatprep.subr.mxu0 0.0
    %2800 = vmatpush1.msra.mxu0 0.0
    %2801 = vmatprep.subr.mxu0 0.0
    %2802 = vmatpush1.msra.mxu0 0.0
    %2803 = vmatprep.subr.mxu0 0.0
    %2804 = vmatpush1.msra.mxu0 0.0
    %2805 = vmatprep.subr.mxu0 0.0
    %2806 = vmatpush1.msra.mxu0 0.0
    %2807 = vmatprep.subr.mxu0 0.0
    %2808 = vmatpush1.msra.mxu0 0.0
    %2809 = vmatprep.mubr.f32.mxu0 0.0
    %2810 = vmatmul.mubr.f32.gmra.mrb[0].mxu0 %v2743
    %v2811 = vpop.f32.mrb[0].mxu0
    %v2812 = vadd.f32 0.0, %v2811
    %v2813 = vpop.f32.mrb[0].mxu0
    %2814 = vdwg.mxu0
    %v2815 = vld [vmem:[%s1862] sm:$0xff]
    %v2817 = vsel %vm1230, %v2812, 0
    %2819 = vmatprep.subr.mxu0 0.0
    %2820 = vmatpush1.msra.mxu0 %v2815
    %2821 = vmatprep.subr.mxu0 0.0
    %2822 = vmatpush1.msra.mxu0 0.0
    %2823 = vmatprep.subr.mxu0 0.0
    %2824 = vmatpush1.msra.mxu0 0.0
    %2825 = vmatprep.subr.mxu0 0.0
    %2826 = vmatpush1.msra.mxu0 0.0
    %2827 = vmatprep.subr.mxu0 0.0
    %2828 = vmatpush1.msra.mxu0 0.0
    %2829 = vmatprep.subr.mxu0 0.0
    %2830 = vmatpush1.msra.mxu0 0.0
    %2831 = vmatprep.subr.mxu0 0.0
    %2832 = vmatpush1.msra.mxu0 0.0
    %2833 = vmatprep.subr.mxu0 0.0
    %2834 = vmatpush1.msra.mxu0 0.0
    %2835 = vmatprep.subr.mxu0 0.0
    %2836 = vmatpush1.msra.mxu0 0.0
    %2837 = vmatprep.subr.mxu0 0.0
    %2838 = vmatpush1.msra.mxu0 0.0
    %2839 = vmatprep.subr.mxu0 0.0
    %2840 = vmatpush1.msra.mxu0 0.0
    %2841 = vmatprep.subr.mxu0 0.0
    %2842 = vmatpush1.msra.mxu0 0.0
    %2843 = vmatprep.subr.mxu0 0.0
    %2844 = vmatpush1.msra.mxu0 0.0
    %2845 = vmatprep.subr.mxu0 0.0
    %2846 = vmatpush1.msra.mxu0 0.0
    %2847 = vmatprep.subr.mxu0 0.0
    %2848 = vmatpush1.msra.mxu0 0.0
    %2849 = vmatprep.subr.mxu0 0.0
    %2850 = vmatpush1.msra.mxu0 0.0
    %2851 = vmatprep.subr.mxu0 0.0
    %2852 = vmatpush1.msra.mxu0 0.0
    %2853 = vmatprep.subr.mxu0 0.0
    %2854 = vmatpush1.msra.mxu0 0.0
    %2855 = vmatprep.subr.mxu0 0.0
    %2856 = vmatpush1.msra.mxu0 0.0
    %2857 = vmatprep.subr.mxu0 0.0
    %2858 = vmatpush1.msra.mxu0 0.0
    %2859 = vmatprep.subr.mxu0 0.0
    %2860 = vmatpush1.msra.mxu0 0.0
    %2861 = vmatprep.subr.mxu0 0.0
    %2862 = vmatpush1.msra.mxu0 0.0
    %2863 = vmatprep.subr.mxu0 0.0
    %2864 = vmatpush1.msra.mxu0 0.0
    %2865 = vmatprep.subr.mxu0 0.0
    %2866 = vmatpush1.msra.mxu0 0.0
    %2867 = vmatprep.subr.mxu0 0.0
    %2868 = vmatpush1.msra.mxu0 0.0
    %2869 = vmatprep.subr.mxu0 0.0
    %2870 = vmatpush1.msra.mxu0 0.0
    %2871 = vmatprep.subr.mxu0 0.0
    %2872 = vmatpush1.msra.mxu0 0.0
    %2873 = vmatprep.subr.mxu0 0.0
    %2874 = vmatpush1.msra.mxu0 0.0
    %2875 = vmatprep.subr.mxu0 0.0
    %2876 = vmatpush1.msra.mxu0 0.0
    %2877 = vmatprep.subr.mxu0 0.0
    %2878 = vmatpush1.msra.mxu0 0.0
    %2879 = vmatprep.subr.mxu0 0.0
    %2880 = vmatpush1.msra.mxu0 0.0
    %2881 = vmatprep.subr.mxu0 0.0
    %2882 = vmatpush1.msra.mxu0 0.0
    %2883 = vmatprep.mubr.f32.mxu0 0.0
    %2884 = vmatmul.mubr.f32.gmra.mrb[0].mxu0 %v2817
    %v2885 = vpop.f32.mrb[0].mxu0
    %v2886 = vadd.f32 0.0, %v2885
    %v2887 = vpop.f32.mrb[0].mxu0
    %2888 = vdwg.mxu0
    %v2889 = vadd.f32 %v2651, %v2886
    %v2890 = vmul.f32 %v1050, 0.35355338
    %v2892 = vsel %vm1230, %v2890, 0
    %v2895 = vsel %vm1230, %v1138, 0
    %2897 = vmatprep.subr.mxu0 0.0
    %2898 = vmatpush1.xpose.msra.mxu0 %v2895
    %2899 = vmatprep.subr.mxu0 0.0
    %2900 = vmatpush1.xpose.msra.mxu0 0.0
    %2901 = vmatprep.subr.mxu0 0.0
    %2902 = vmatpush1.xpose.msra.mxu0 0.0
    %2903 = vmatprep.subr.mxu0 0.0
    %2904 = vmatpush1.xpose.msra.mxu0 0.0
    %2905 = vmatprep.subr.mxu0 0.0
    %2906 = vmatpush1.xpose.msra.mxu0 0.0
    %2907 = vmatprep.subr.mxu0 0.0
    %2908 = vmatpush1.xpose.msra.mxu0 0.0
    %2909 = vmatprep.subr.mxu0 0.0
    %2910 = vmatpush1.xpose.msra.mxu0 0.0
    %2911 = vmatprep.subr.mxu0 0.0
    %2912 = vmatpush1.xpose.msra.mxu0 0.0
    %2913 = vmatprep.subr.mxu0 0.0
    %2914 = vmatpush1.xpose.msra.mxu0 0.0
    %2915 = vmatprep.subr.mxu0 0.0
    %2916 = vmatpush1.xpose.msra.mxu0 0.0
    %2917 = vmatprep.subr.mxu0 0.0
    %2918 = vmatpush1.xpose.msra.mxu0 0.0
    %2919 = vmatprep.subr.mxu0 0.0
    %2920 = vmatpush1.xpose.msra.mxu0 0.0
    %2921 = vmatprep.subr.mxu0 0.0
    %2922 = vmatpush1.xpose.msra.mxu0 0.0
    %2923 = vmatprep.subr.mxu0 0.0
    %2924 = vmatpush1.xpose.msra.mxu0 0.0
    %2925 = vmatprep.subr.mxu0 0.0
    %2926 = vmatpush1.xpose.msra.mxu0 0.0
    %2927 = vmatprep.subr.mxu0 0.0
    %2928 = vmatpush1.xpose.msra.mxu0 0.0
    %2929 = vmatprep.subr.mxu0 0.0
    %2930 = vmatpush1.xpose.msra.mxu0 0.0
    %2931 = vmatprep.subr.mxu0 0.0
    %2932 = vmatpush1.xpose.msra.mxu0 0.0
    %2933 = vmatprep.subr.mxu0 0.0
    %2934 = vmatpush1.xpose.msra.mxu0 0.0
    %2935 = vmatprep.subr.mxu0 0.0
    %2936 = vmatpush1.xpose.msra.mxu0 0.0
    %2937 = vmatprep.subr.mxu0 0.0
    %2938 = vmatpush1.xpose.msra.mxu0 0.0
    %2939 = vmatprep.subr.mxu0 0.0
    %2940 = vmatpush1.xpose.msra.mxu0 0.0
    %2941 = vmatprep.subr.mxu0 0.0
    %2942 = vmatpush1.xpose.msra.mxu0 0.0
    %2943 = vmatprep.subr.mxu0 0.0
    %2944 = vmatpush1.xpose.msra.mxu0 0.0
    %2945 = vmatprep.subr.mxu0 0.0
    %2946 = vmatpush1.xpose.msra.mxu0 0.0
    %2947 = vmatprep.subr.mxu0 0.0
    %2948 = vmatpush1.xpose.msra.mxu0 0.0
    %2949 = vmatprep.subr.mxu0 0.0
    %2950 = vmatpush1.xpose.msra.mxu0 0.0
    %2951 = vmatprep.subr.mxu0 0.0
    %2952 = vmatpush1.xpose.msra.mxu0 0.0
    %2953 = vmatprep.subr.mxu0 0.0
    %2954 = vmatpush1.xpose.msra.mxu0 0.0
    %2955 = vmatprep.subr.mxu0 0.0
    %2956 = vmatpush1.xpose.msra.mxu0 0.0
    %2957 = vmatprep.subr.mxu0 0.0
    %2958 = vmatpush1.xpose.msra.mxu0 0.0
    %2959 = vmatprep.subr.mxu0 0.0
    %2960 = vmatpush1.xpose.msra.mxu0 0.0
    %2961 = vmatprep.mubr.f32.mxu0 0.0
    %2962 = vmatmul.mubr.f32.gmra.mrb[0].mxu0 %v2892
    %v2963 = vpop.f32.mrb[0].mxu0
    %v2964 = vadd.f32 0.0, %v2963
    %v2965 = vpop.f32.mrb[0].mxu0
    %2966 = vdwg.mxu0
    %v2967 = vsel %vm1230, %v2964, -inf
    %2968 = vmax.xlane.f32.xlu0 %v2967
    %v2969 = vpop.xlane.xlu0 %2968
    %v2970 = vsub.f32 %v2964, %v2969
    %v2971 = vmul.f32 %v2970, 1.442695
    %v2972 = vpow.pop %v2971
    %v2973 = vsel %vm1230, %v2972, 0.0
    %2974 = vadd.xlane.f32.xlu0 %v2973
    %v2975 = vpop.xlane.xlu0 %2974
    %v2976 = vrcp.pop %v2975
    %v2977 = vmul.f32 %v2972, %v2976
    %v2979 = vsel %vm1230, %v2977, 0
    %2981 = vmatprep.subr.mxu0 0.0
    %2982 = vmatpush1.msra.mxu0 %v1226
    %2983 = vmatprep.subr.mxu0 0.0
    %2984 = vmatpush1.msra.mxu0 0.0
    %2985 = vmatprep.subr.mxu0 0.0
    %2986 = vmatpush1.msra.mxu0 0.0
    %2987 = vmatprep.subr.mxu0 0.0
    %2988 = vmatpush1.msra.mxu0 0.0
    %2989 = vmatprep.subr.mxu0 0.0
    %2990 = vmatpush1.msra.mxu0 0.0
    %2991 = vmatprep.subr.mxu0 0.0
    %2992 = vmatpush1.msra.mxu0 0.0
    %2993 = vmatprep.subr.mxu0 0.0
    %2994 = vmatpush1.msra.mxu0 0.0
    %2995 = vmatprep.subr.mxu0 0.0
    %2996 = vmatpush1.msra.mxu0 0.0
    %2997 = vmatprep.subr.mxu0 0.0
    %2998 = vmatpush1.msra.mxu0 0.0
    %2999 = vmatprep.subr.mxu0 0.0
    %3000 = vmatpush1.msra.mxu0 0.0
    %3001 = vmatprep.subr.mxu0 0.0
    %3002 = vmatpush1.msra.mxu0 0.0
    %3003 = vmatprep.subr.mxu0 0.0
    %3004 = vmatpush1.msra.mxu0 0.0
    %3005 = vmatprep.subr.mxu0 0.0
    %3006 = vmatpush1.msra.mxu0 0.0
    %3007 = vmatprep.subr.mxu0 0.0
    %3008 = vmatpush1.msra.mxu0 0.0
    %3009 = vmatprep.subr.mxu0 0.0
    %3010 = vmatpush1.msra.mxu0 0.0
    %3011 = vmatprep.subr.mxu0 0.0
    %3012 = vmatpush1.msra.mxu0 0.0
    %3013 = vmatprep.subr.mxu0 0.0
    %3014 = vmatpush1.msra.mxu0 0.0
    %3015 = vmatprep.subr.mxu0 0.0
    %3016 = vmatpush1.msra.mxu0 0.0
    %3017 = vmatprep.subr.mxu0 0.0
    %3018 = vmatpush1.msra.mxu0 0.0
    %3019 = vmatprep.subr.mxu0 0.0
    %3020 = vmatpush1.msra.mxu0 0.0
    %3021 = vmatprep.subr.mxu0 0.0
    %3022 = vmatpush1.msra.mxu0 0.0
    %3023 = vmatprep.subr.mxu0 0.0
    %3024 = vmatpush1.msra.mxu0 0.0
    %3025 = vmatprep.subr.mxu0 0.0
    %3026 = vmatpush1.msra.mxu0 0.0
    %3027 = vmatprep.subr.mxu0 0.0
    %3028 = vmatpush1.msra.mxu0 0.0
    %3029 = vmatprep.subr.mxu0 0.0
    %3030 = vmatpush1.msra.mxu0 0.0
    %3031 = vmatprep.subr.mxu0 0.0
    %3032 = vmatpush1.msra.mxu0 0.0
    %3033 = vmatprep.subr.mxu0 0.0
    %3034 = vmatpush1.msra.mxu0 0.0
    %3035 = vmatprep.subr.mxu0 0.0
    %3036 = vmatpush1.msra.mxu0 0.0
    %3037 = vmatprep.subr.mxu0 0.0
    %3038 = vmatpush1.msra.mxu0 0.0
    %3039 = vmatprep.subr.mxu0 0.0
    %3040 = vmatpush1.msra.mxu0 0.0
    %3041 = vmatprep.subr.mxu0 0.0
    %3042 = vmatpush1.msra.mxu0 0.0
    %3043 = vmatprep.subr.mxu0 0.0
    %3044 = vmatpush1.msra.mxu0 0.0
    %3045 = vmatprep.mubr.f32.mxu0 0.0
    %3046 = vmatmul.mubr.f32.gmra.mrb[0].mxu0 %v2979
    %v3047 = vpop.f32.mrb[0].mxu0
    %v3048 = vadd.f32 0.0, %v3047
    %v3049 = vpop.f32.mrb[0].mxu0
    %3050 = vdwg.mxu0
    %v3051 = vld [vmem:[%s2099] sm:$0xff]
    %v3053 = vsel %vm1230, %v3048, 0
    %3055 = vmatprep.subr.mxu0 0.0
    %3056 = vmatpush1.msra.mxu0 %v3051
    %3057 = vmatprep.subr.mxu0 0.0
    %3058 = vmatpush1.msra.mxu0 0.0
    %3059 = vmatprep.subr.mxu0 0.0
    %3060 = vmatpush1.msra.mxu0 0.0
    %3061 = vmatprep.subr.mxu0 0.0
    %3062 = vmatpush1.msra.mxu0 0.0
    %3063 = vmatprep.subr.mxu0 0.0
    %3064 = vmatpush1.msra.mxu0 0.0
    %3065 = vmatprep.subr.mxu0 0.0
    %3066 = vmatpush1.msra.mxu0 0.0
    %3067 = vmatprep.subr.mxu0 0.0
    %3068 = vmatpush1.msra.mxu0 0.0
    %3069 = vmatprep.subr.mxu0 0.0
    %3070 = vmatpush1.msra.mxu0 0.0
    %3071 = vmatprep.subr.mxu0 0.0
    %3072 = vmatpush1.msra.mxu0 0.0
    %3073 = vmatprep.subr.mxu0 0.0
    %3074 = vmatpush1.msra.mxu0 0.0
    %3075 = vmatprep.subr.mxu0 0.0
    %3076 = vmatpush1.msra.mxu0 0.0
    %3077 = vmatprep.subr.mxu0 0.0
    %3078 = vmatpush1.msra.mxu0 0.0
    %3079 = vmatprep.subr.mxu0 0.0
    %3080 = vmatpush1.msra.mxu0 0.0
    %3081 = vmatprep.subr.mxu0 0.0
    %3082 = vmatpush1.msra.mxu0 0.0
    %3083 = vmatprep.subr.mxu0 0.0
    %3084 = vmatpush1.msra.mxu0 0.0
    %3085 = vmatprep.subr.mxu0 0.0
    %3086 = vmatpush1.msra.mxu0 0.0
    %3087 = vmatprep.subr.mxu0 0.0
    %3088 = vmatpush1.msra.mxu0 0.0
    %3089 = vmatprep.subr.mxu0 0.0
    %3090 = vmatpush1.msra.mxu0 0.0
    %3091 = vmatprep.subr.mxu0 0.0
    %3092 = vmatpush1.msra.mxu0 0.0
    %3093 = vmatprep.subr.mxu0 0.0
    %3094 = vmatpush1.msra.mxu0 0.0
    %3095 = vmatprep.subr.mxu0 0.0
    %3096 = vmatpush1.msra.mxu0 0.0
    %3097 = vmatprep.subr.mxu0 0.0
    %3098 = vmatpush1.msra.mxu0 0.0
    %3099 = vmatprep.subr.mxu0 0.0
    %3100 = vmatpush1.msra.mxu0 0.0
    %3101 = vmatprep.subr.mxu0 0.0
    %3102 = vmatpush1.msra.mxu0 0.0
    %3103 = vmatprep.subr.mxu0 0.0
    %3104 = vmatpush1.msra.mxu0 0.0
    %3105 = vmatprep.subr.mxu0 0.0
    %3106 = vmatpush1.msra.mxu0 0.0
    %3107 = vmatprep.subr.mxu0 0.0
    %3108 = vmatpush1.msra.mxu0 0.0
    %3109 = vmatprep.subr.mxu0 0.0
    %3110 = vmatpush1.msra.mxu0 0.0
    %3111 = vmatprep.subr.mxu0 0.0
    %3112 = vmatpush1.msra.mxu0 0.0
    %3113 = vmatprep.subr.mxu0 0.0
    %3114 = vmatpush1.msra.mxu0 0.0
    %3115 = vmatprep.subr.mxu0 0.0
    %3116 = vmatpush1.msra.mxu0 0.0
    %3117 = vmatprep.subr.mxu0 0.0
    %3118 = vmatpush1.msra.mxu0 0.0
    %3119 = vmatprep.mubr.f32.mxu0 0.0
    %3120 = vmatmul.mubr.f32.gmra.mrb[0].mxu0 %v3053
    %v3121 = vpop.f32.mrb[0].mxu0
    %v3122 = vadd.f32 0.0, %v3121
    %v3123 = vpop.f32.mrb[0].mxu0
    %3124 = vdwg.mxu0
    %v3125 = vadd.f32 %v2889, %v3122
    %v3126 = vld [vmem:[%s11] sm:$0x1]
    %v3128 = vlaneseq
    %v3129 = vshrl.u32 %v3128, 7
    %v3130 = vsub.s32 0, %v3129
    %v3131 = vrot.slane %v3126, %v3130
    %v3133 = vadd.f32 %v3125, %v3131
    %3134 = vst.msk [vmem:[#allocation2 + $0x8] sm:$0xff] %vm183, %v3133
    %v3135 = vld [vmem:[#allocation2] sm:$0xff]
    %v3136 = vld [vmem:[#allocation2 + $0x8] sm:$0xff]
    %v3137 = vadd.f32 %v170, %v3135
    %v3138 = vadd.f32 %v171, %v3136
    %v3139 = vld [vmem:[%s16] sm:$0x1]
    %v3140 = vld [vmem:[%s17] sm:$0x1]
    %v3141 = vsel %vm183, %v3137, 0.0
    %3142 = vadd.xlane.f32.xlu0 %v3141
    %v3143 = vpop.xlane.xlu0 %3142
    %v3144 = vsel %vm183, %v3138, 0.0
    %3145 = vadd.xlane.f32.xlu0 %v3144
    %v3146 = vpop.xlane.xlu0 %3145
    %v3147 = vrcp.pop 32.0
    %v3148 = vmul.f32 %v3143, %v3147
    %v3149 = vmul.f32 %v3146, %v3147
    %v3150 = vsub.f32 %v3137, %v3148
    %v3151 = vsub.f32 %v3138, %v3149
    %v3152 = vmul.f32 %v3150, %v3150
    %v3153 = vmul.f32 %v3151, %v3151
    %v3154 = vsel %vm183, %v3152, 0.0
    %3155 = vadd.xlane.f32.xlu0 %v3154
    %v3156 = vpop.xlane.xlu0 %3155
    %v3157 = vsel %vm183, %v3153, 0.0
    %3158 = vadd.xlane.f32.xlu0 %v3157
    %v3159 = vpop.xlane.xlu0 %3158
    %v3160 = vmul.f32 %v3156, %v3147
    %v3161 = vmul.f32 %v3159, %v3147
    %v3162 = vadd.f32 %v3160, 1e-05
    %v3163 = vadd.f32 %v3161, 1e-05
    %v3164 = vrsqrt.pop %v3162
    %v3165 = vrsqrt.pop %v3163
    %v3166 = vmul.f32 %v3150, %v3164
    %v3167 = vmul.f32 %v3151, %v3165
    %v3169 = vlaneseq
    %v3170 = vshrl.u32 %v3169, 7
    %v3171 = vsub.s32 0, %v3170
    %v3172 = vrot.slane %v3139, %v3171
    %v3174 = vmul.f32 %v3166, %v3172
    %v3175 = vmul.f32 %v3167, %v3172
    %v3177 = vlaneseq
    %v3178 = vshrl.u32 %v3177, 7
    %v3179 = vsub.s32 0, %v3178
    %v3180 = vrot.slane %v3140, %v3179
    %v3182 = vadd.f32 %v3174, %v3180
    %v3183 = vadd.f32 %v3175, %v3180
    %v3184 = vld [vmem:[%s12] sm:$0xff]
    %v3185 = vld [vmem:[%s12 + $0x8] sm:$0xff]
    %v3186 = vld [vmem:[%s12 + $0x10] sm:$0xff]
    %v3187 = vld [vmem:[%s12 + $0x18] sm:$0xff]
    %v3188 = vld [vmem:[%s12 + $0x20] sm:$0xff]
    %v3189 = vld [vmem:[%s12 + $0x28] sm:$0xff]
    %v3190 = vld [vmem:[%s12 + $0x30] sm:$0xff]
    %v3191 = vld [vmem:[%s12 + $0x38] sm:$0xff]
    %v3192 = vld [vmem:[%s12 + $0x40] sm:$0xff]
    %v3193 = vld [vmem:[%s12 + $0x48] sm:$0xff]
    %v3194 = vld [vmem:[%s12 + $0x50] sm:$0xff]
    %v3195 = vld [vmem:[%s12 + $0x58] sm:$0xff]
    %v3196 = vld [vmem:[%s12 + $0x60] sm:$0xff]
    %v3197 = vld [vmem:[%s12 + $0x68] sm:$0xff]
    %v3198 = vld [vmem:[%s12 + $0x70] sm:$0xff]
    %v3199 = vld [vmem:[%s12 + $0x78] sm:$0xff]
    %v3200 = vld [vmem:[%s12 + $0x80] sm:$0xff]
    %v3201 = vld [vmem:[%s12 + $0x88] sm:$0xff]
    %v3202 = vld [vmem:[%s12 + $0x90] sm:$0xff]
    %v3203 = vld [vmem:[%s12 + $0x98] sm:$0xff]
    %v3204 = vld [vmem:[%s12 + $0xa0] sm:$0xff]
    %v3205 = vld [vmem:[%s12 + $0xa8] sm:$0xff]
    %v3206 = vld [vmem:[%s12 + $0xb0] sm:$0xff]
    %v3207 = vld [vmem:[%s12 + $0xb8] sm:$0xff]
    %v3208 = vld [vmem:[%s12 + $0xc0] sm:$0xff]
    %v3209 = vld [vmem:[%s12 + $0xc8] sm:$0xff]
    %v3210 = vld [vmem:[%s12 + $0xd0] sm:$0xff]
    %v3211 = vld [vmem:[%s12 + $0xd8] sm:$0xff]
    %v3212 = vld [vmem:[%s12 + $0xe0] sm:$0xff]
    %v3213 = vld [vmem:[%s12 + $0xe8] sm:$0xff]
    %v3214 = vld [vmem:[%s12 + $0xf0] sm:$0xff]
    %v3215 = vld [vmem:[%s12 + $0xf8] sm:$0xff]
    %v3216 = vld [vmem:[%s12 + $0x100] sm:$0xff]
    %v3217 = vld [vmem:[%s12 + $0x108] sm:$0xff]
    %v3218 = vld [vmem:[%s12 + $0x110] sm:$0xff]
    %v3219 = vld [vmem:[%s12 + $0x118] sm:$0xff]
    %v3220 = vld [vmem:[%s12 + $0x120] sm:$0xff]
    %v3221 = vld [vmem:[%s12 + $0x128] sm:$0xff]
    %v3222 = vld [vmem:[%s12 + $0x130] sm:$0xff]
    %v3223 = vld [vmem:[%s12 + $0x138] sm:$0xff]
    %v3224 = vld [vmem:[%s12 + $0x140] sm:$0xff]
    %v3225 = vld [vmem:[%s12 + $0x148] sm:$0xff]
    %v3226 = vld [vmem:[%s12 + $0x150] sm:$0xff]
    %v3227 = vld [vmem:[%s12 + $0x158] sm:$0xff]
    %v3228 = vld [vmem:[%s12 + $0x160] sm:$0xff]
    %v3229 = vld [vmem:[%s12 + $0x168] sm:$0xff]
    %v3230 = vld [vmem:[%s12 + $0x170] sm:$0xff]
    %v3231 = vld [vmem:[%s12 + $0x178] sm:$0xff]
    %v3232 = vld [vmem:[%s12 + $0x180] sm:$0xff]
    %v3233 = vld [vmem:[%s12 + $0x188] sm:$0xff]
    %v3234 = vld [vmem:[%s12 + $0x190] sm:$0xff]
    %v3235 = vld [vmem:[%s12 + $0x198] sm:$0xff]
    %v3236 = vld [vmem:[%s12 + $0x1a0] sm:$0xff]
    %v3237 = vld [vmem:[%s12 + $0x1a8] sm:$0xff]
    %v3238 = vld [vmem:[%s12 + $0x1b0] sm:$0xff]
    %v3239 = vld [vmem:[%s12 + $0x1b8] sm:$0xff]
    %v3240 = vld [vmem:[%s12 + $0x1c0] sm:$0xff]
    %v3241 = vld [vmem:[%s12 + $0x1c8] sm:$0xff]
    %v3242 = vld [vmem:[%s12 + $0x1d0] sm:$0xff]
    %v3243 = vld [vmem:[%s12 + $0x1d8] sm:$0xff]
    %v3244 = vld [vmem:[%s12 + $0x1e0] sm:$0xff]
    %v3245 = vld [vmem:[%s12 + $0x1e8] sm:$0xff]
    %v3246 = vld [vmem:[%s12 + $0x1f0] sm:$0xff]
    %v3247 = vld [vmem:[%s12 + $0x1f8] sm:$0xff]
    %v3248 = vld [vmem:[%s13] sm:$0xff]
    %v3249 = vld [vmem:[%s13 + $0x8] sm:$0xff]
    %v3252 = vlaneseq
    %v3253 = vshrl.u32 %v3252, 7
    %v3254 = vsub.s32 0, %v3253
    %v3255 = vrot.slane %v3248, %v3254
    %v3256 = vlaneseq
    %v3257 = vshrl.u32 %v3256, 7
    %v3258 = vsub.s32 1, %v3257
    %v3259 = vrot.slane %v3248, %v3258
    %v3260 = vlaneseq
    %v3261 = vshrl.u32 %v3260, 7
    %v3262 = vsub.s32 2, %v3261
    %v3263 = vrot.slane %v3248, %v3262
    %v3264 = vlaneseq
    %v3265 = vshrl.u32 %v3264, 7
    %v3266 = vsub.s32 3, %v3265
    %v3267 = vrot.slane %v3248, %v3266
    %v3268 = vlaneseq
    %v3269 = vshrl.u32 %v3268, 7
    %v3270 = vsub.s32 4, %v3269
    %v3271 = vrot.slane %v3248, %v3270
    %v3272 = vlaneseq
    %v3273 = vshrl.u32 %v3272, 7
    %v3274 = vsub.s32 5, %v3273
    %v3275 = vrot.slane %v3248, %v3274
    %v3276 = vlaneseq
    %v3277 = vshrl.u32 %v3276, 7
    %v3278 = vsub.s32 6, %v3277
    %v3279 = vrot.slane %v3248, %v3278
    %v3280 = vlaneseq
    %v3281 = vshrl.u32 %v3280, 7
    %v3282 = vsub.s32 7, %v3281
    %v3283 = vrot.slane %v3248, %v3282
    %v3284 = vlaneseq
    %v3285 = vshrl.u32 %v3284, 7
    %v3286 = vsub.s32 0, %v3285
    %v3287 = vrot.slane %v3249, %v3286
    %v3288 = vlaneseq
    %v3289 = vshrl.u32 %v3288, 7
    %v3290 = vsub.s32 1, %v3289
    %v3291 = vrot.slane %v3249, %v3290
    %v3292 = vlaneseq
    %v3293 = vshrl.u32 %v3292, 7
    %v3294 = vsub.s32 2, %v3293
    %v3295 = vrot.slane %v3249, %v3294
    %v3296 = vlaneseq
    %v3297 = vshrl.u32 %v3296, 7
    %v3298 = vsub.s32 3, %v3297
    %v3299 = vrot.slane %v3249, %v3298
    %v3300 = vlaneseq
    %v3301 = vshrl.u32 %v3300, 7
    %v3302 = vsub.s32 4, %v3301
    %v3303 = vrot.slane %v3249, %v3302
    %v3304 = vlaneseq
    %v3305 = vshrl.u32 %v3304, 7
    %v3306 = vsub.s32 5, %v3305
    %v3307 = vrot.slane %v3249, %v3306
    %v3308 = vlaneseq
    %v3309 = vshrl.u32 %v3308, 7
    %v3310 = vsub.s32 6, %v3309
    %v3311 = vrot.slane %v3249, %v3310
    %v3312 = vlaneseq
    %v3313 = vshrl.u32 %v3312, 7
    %v3314 = vsub.s32 7, %v3313
    %v3315 = vrot.slane %v3249, %v3314
    %v3333 = vsel %vm183, %v3182, 0
    %v3336 = vsel %vm183, %v3183, 0
    %3338 = vmatprep.subr.mxu0 %v3185
    %3339 = vmatpush1.msra.mxu0 %v3184
    %3340 = vmatprep.subr.mxu0 %v3201
    %3341 = vmatpush1.msra.mxu0 %v3200
    %3342 = vmatprep.subr.mxu0 %v3217
    %3343 = vmatpush1.msra.mxu0 %v3216
    %3344 = vmatprep.subr.mxu0 %v3233
    %3345 = vmatpush1.msra.mxu0 %v3232
    %3346 = vmatprep.subr.mxu0 0.0
    %3347 = vmatpush1.msra.mxu0 0.0
    %3348 = vmatprep.subr.mxu0 0.0
    %3349 = vmatpush1.msra.mxu0 0.0
    %3350 = vmatprep.subr.mxu0 0.0
    %3351 = vmatpush1.msra.mxu0 0.0
    %3352 = vmatprep.subr.mxu0 0.0
    %3353 = vmatpush1.msra.mxu0 0.0
    %3354 = vmatprep.subr.mxu0 0.0
    %3355 = vmatpush1.msra.mxu0 0.0
    %3356 = vmatprep.subr.mxu0 0.0
    %3357 = vmatpush1.msra.mxu0 0.0
    %3358 = vmatprep.subr.mxu0 0.0
    %3359 = vmatpush1.msra.mxu0 0.0
    %3360 = vmatprep.subr.mxu0 0.0
    %3361 = vmatpush1.msra.mxu0 0.0
    %3362 = vmatprep.subr.mxu0 0.0
    %3363 = vmatpush1.msra.mxu0 0.0
    %3364 = vmatprep.subr.mxu0 0.0
    %3365 = vmatpush1.msra.mxu0 0.0
    %3366 = vmatprep.subr.mxu0 0.0
    %3367 = vmatpush1.msra.mxu0 0.0
    %3368 = vmatprep.subr.mxu0 0.0
    %3369 = vmatpush1.msra.mxu0 0.0
    %3370 = vmatprep.subr.mxu0 0.0
    %3371 = vmatpush1.msra.mxu0 0.0
    %3372 = vmatprep.subr.mxu0 0.0
    %3373 = vmatpush1.msra.mxu0 0.0
    %3374 = vmatprep.subr.mxu0 0.0
    %3375 = vmatpush1.msra.mxu0 0.0
    %3376 = vmatprep.subr.mxu0 0.0
    %3377 = vmatpush1.msra.mxu0 0.0
    %3378 = vmatprep.subr.mxu0 0.0
    %3379 = vmatpush1.msra.mxu0 0.0
    %3380 = vmatprep.subr.mxu0 0.0
    %3381 = vmatpush1.msra.mxu0 0.0
    %3382 = vmatprep.subr.mxu0 0.0
    %3383 = vmatpush1.msra.mxu0 0.0
    %3384 = vmatprep.subr.mxu0 0.0
    %3385 = vmatpush1.msra.mxu0 0.0
    %3386 = vmatprep.subr.mxu0 0.0
    %3387 = vmatpush1.msra.mxu0 0.0
    %3388 = vmatprep.subr.mxu0 0.0
    %3389 = vmatpush1.msra.mxu0 0.0
    %3390 = vmatprep.subr.mxu0 0.0
    %3391 = vmatpush1.msra.mxu0 0.0
    %3392 = vmatprep.subr.mxu0 0.0
    %3393 = vmatpush1.msra.mxu0 0.0
    %3394 = vmatprep.subr.mxu0 0.0
    %3395 = vmatpush1.msra.mxu0 0.0
    %3396 = vmatprep.subr.mxu0 0.0
    %3397 = vmatpush1.msra.mxu0 0.0
    %3398 = vmatprep.subr.mxu0 0.0
    %3399 = vmatpush1.msra.mxu0 0.0
    %3400 = vmatprep.subr.mxu0 0.0
    %3401 = vmatpush1.msra.mxu0 0.0
    %3402 = vmatprep.mubr.f32.mxu0 0.0
    %3403 = vmatmul.mubr.f32.gmra.mrb[0].mxu0 %v3333
    %v3404 = vpop.f32.mrb[0].mxu0
    %v3405 = vadd.f32 %v3255, %v3404
    %v3406 = vpop.f32.mrb[0].mxu0
    %v3407 = vadd.f32 %v3259, %v3406
    %3408 = vmatprep.mubr.f32.mxu0 0.0
    %3409 = vmatmul.mubr.f32.gmra.mrb[0].mxu0 %v3336
    %v3410 = vpop.f32.mrb[0].mxu0
    %v3411 = vadd.f32 %v3255, %v3410
    %v3412 = vpop.f32.mrb[0].mxu0
    %v3413 = vadd.f32 %v3259, %v3412
    %3414 = vdwg.mxu0
    %3415 = vmatprep.subr.mxu0 %v3187
    %3416 = vmatpush1.msra.mxu0 %v3186
    %3417 = vmatprep.subr.mxu0 %v3203
    %3418 = vmatpush1.msra.mxu0 %v3202
    %3419 = vmatprep.subr.mxu0 %v3219
    %3420 = vmatpush1.msra.mxu0 %v3218
    %3421 = vmatprep.subr.mxu0 %v3235
    %3422 = vmatpush1.msra.mxu0 %v3234
    %3423 = vmatprep.subr.mxu0 0.0
    %3424 = vmatpush1.msra.mxu0 0.0
    %3425 = vmatprep.subr.mxu0 0.0
    %3426 = vmatpush1.msra.mxu0 0.0
    %3427 = vmatprep.subr.mxu0 0.0
    %3428 = vmatpush1.msra.mxu0 0.0
    %3429 = vmatprep.subr.mxu0 0.0
    %3430 = vmatpush1.msra.mxu0 0.0
    %3431 = vmatprep.subr.mxu0 0.0
    %3432 = vmatpush1.msra.mxu0 0.0
    %3433 = vmatprep.subr.mxu0 0.0
    %3434 = vmatpush1.msra.mxu0 0.0
    %3435 = vmatprep.subr.mxu0 0.0
    %3436 = vmatpush1.msra.mxu0 0.0
    %3437 = vmatprep.subr.mxu0 0.0
    %3438 = vmatpush1.msra.mxu0 0.0
    %3439 = vmatprep.subr.mxu0 0.0
    %3440 = vmatpush1.msra.mxu0 0.0
    %3441 = vmatprep.subr.mxu0 0.0
    %3442 = vmatpush1.msra.mxu0 0.0
    %3443 = vmatprep.subr.mxu0 0.0
    %3444 = vmatpush1.msra.mxu0 0.0
    %3445 = vmatprep.subr.mxu0 0.0
    %3446 = vmatpush1.msra.mxu0 0.0
    %3447 = vmatprep.subr.mxu0 0.0
    %3448 = vmatpush1.msra.mxu0 0.0
    %3449 = vmatprep.subr.mxu0 0.0
    %3450 = vmatpush1.msra.mxu0 0.0
    %3451 = vmatprep.subr.mxu0 0.0
    %3452 = vmatpush1.msra.mxu0 0.0
    %3453 = vmatprep.subr.mxu0 0.0
    %3454 = vmatpush1.msra.mxu0 0.0
    %3455 = vmatprep.subr.mxu0 0.0
    %3456 = vmatpush1.msra.mxu0 0.0
    %3457 = vmatprep.subr.mxu0 0.0
    %3458 = vmatpush1.msra.mxu0 0.0
    %3459 = vmatprep.subr.mxu0 0.0
    %3460 = vmatpush1.msra.mxu0 0.0
    %3461 = vmatprep.subr.mxu0 0.0
    %3462 = vmatpush1.msra.mxu0 0.0
    %3463 = vmatprep.subr.mxu0 0.0
    %3464 = vmatpush1.msra.mxu0 0.0
    %3465 = vmatprep.subr.mxu0 0.0
    %3466 = vmatpush1.msra.mxu0 0.0
    %3467 = vmatprep.subr.mxu0 0.0
    %3468 = vmatpush1.msra.mxu0 0.0
    %3469 = vmatprep.subr.mxu0 0.0
    %3470 = vmatpush1.msra.mxu0 0.0
    %3471 = vmatprep.subr.mxu0 0.0
    %3472 = vmatpush1.msra.mxu0 0.0
    %3473 = vmatprep.subr.mxu0 0.0
    %3474 = vmatpush1.msra.mxu0 0.0
    %3475 = vmatprep.subr.mxu0 0.0
    %3476 = vmatpush1.msra.mxu0 0.0
    %3477 = vmatprep.subr.mxu0 0.0
    %3478 = vmatpush1.msra.mxu0 0.0
    %3479 = vmatprep.mubr.f32.mxu0 0.0
    %3480 = vmatmul.mubr.f32.gmra.mrb[0].mxu0 %v3333
    %v3481 = vpop.f32.mrb[0].mxu0
    %v3482 = vadd.f32 %v3263, %v3481
    %v3483 = vpop.f32.mrb[0].mxu0
    %v3484 = vadd.f32 %v3267, %v3483
    %3485 = vmatprep.mubr.f32.mxu0 0.0
    %3486 = vmatmul.mubr.f32.gmra.mrb[0].mxu0 %v3336
    %v3487 = vpop.f32.mrb[0].mxu0
    %v3488 = vadd.f32 %v3263, %v3487
    %v3489 = vpop.f32.mrb[0].mxu0
    %v3490 = vadd.f32 %v3267, %v3489
    %3491 = vdwg.mxu0
    %3492 = vmatprep.subr.mxu0 %v3189
    %3493 = vmatpush1.msra.mxu0 %v3188
    %3494 = vmatprep.subr.mxu0 %v3205
    %3495 = vmatpush1.msra.mxu0 %v3204
    %3496 = vmatprep.subr.mxu0 %v3221
    %3497 = vmatpush1.msra.mxu0 %v3220
    %3498 = vmatprep.subr.mxu0 %v3237
    %3499 = vmatpush1.msra.mxu0 %v3236
    %3500 = vmatprep.subr.mxu0 0.0
    %3501 = vmatpush1.msra.mxu0 0.0
    %3502 = vmatprep.subr.mxu0 0.0
    %3503 = vmatpush1.msra.mxu0 0.0
    %3504 = vmatprep.subr.mxu0 0.0
    %3505 = vmatpush1.msra.mxu0 0.0
    %3506 = vmatprep.subr.mxu0 0.0
    %3507 = vmatpush1.msra.mxu0 0.0
    %3508 = vmatprep.subr.mxu0 0.0
    %3509 = vmatpush1.msra.mxu0 0.0
    %3510 = vmatprep.subr.mxu0 0.0
    %3511 = vmatpush1.msra.mxu0 0.0
    %3512 = vmatprep.subr.mxu0 0.0
    %3513 = vmatpush1.msra.mxu0 0.0
    %3514 = vmatprep.subr.mxu0 0.0
    %3515 = vmatpush1.msra.mxu0 0.0
    %3516 = vmatprep.subr.mxu0 0.0
    %3517 = vmatpush1.msra.mxu0 0.0
    %3518 = vmatprep.subr.mxu0 0.0
    %3519 = vmatpush1.msra.mxu0 0.0
    %3520 = vmatprep.subr.mxu0 0.0
    %3521 = vmatpush1.msra.mxu0 0.0
    %3522 = vmatprep.subr.mxu0 0.0
    %3523 = vmatpush1.msra.mxu0 0.0
    %3524 = vmatprep.subr.mxu0 0.0
    %3525 = vmatpush1.msra.mxu0 0.0
    %3526 = vmatprep.subr.mxu0 0.0
    %3527 = vmatpush1.msra.mxu0 0.0
    %3528 = vmatprep.subr.mxu0 0.0
    %3529 = vmatpush1.msra.mxu0 0.0
    %3530 = vmatprep.subr.mxu0 0.0
    %3531 = vmatpush1.msra.mxu0 0.0
    %3532 = vmatprep.subr.mxu0 0.0
    %3533 = vmatpush1.msra.mxu0 0.0
    %3534 = vmatprep.subr.mxu0 0.0
    %3535 = vmatpush1.msra.mxu0 0.0
    %3536 = vmatprep.subr.mxu0 0.0
    %3537 = vmatpush1.msra.mxu0 0.0
    %3538 = vmatprep.subr.mxu0 0.0
    %3539 = vmatpush1.msra.mxu0 0.0
    %3540 = vmatprep.subr.mxu0 0.0
    %3541 = vmatpush1.msra.mxu0 0.0
    %3542 = vmatprep.subr.mxu0 0.0
    %3543 = vmatpush1.msra.mxu0 0.0
    %3544 = vmatprep.subr.mxu0 0.0
    %3545 = vmatpush1.msra.mxu0 0.0
    %3546 = vmatprep.subr.mxu0 0.0
    %3547 = vmatpush1.msra.mxu0 0.0
    %3548 = vmatprep.subr.mxu0 0.0
    %3549 = vmatpush1.msra.mxu0 0.0
    %3550 = vmatprep.subr.mxu0 0.0
    %3551 = vmatpush1.msra.mxu0 0.0
    %3552 = vmatprep.subr.mxu0 0.0
    %3553 = vmatpush1.msra.mxu0 0.0
    %3554 = vmatprep.subr.mxu0 0.0
    %3555 = vmatpush1.msra.mxu0 0.0
    %3556 = vmatprep.mubr.f32.mxu0 0.0
    %3557 = vmatmul.mubr.f32.gmra.mrb[0].mxu0 %v3333
    %v3558 = vpop.f32.mrb[0].mxu0
    %v3559 = vadd.f32 %v3271, %v3558
    %v3560 = vpop.f32.mrb[0].mxu0
    %v3561 = vadd.f32 %v3275, %v3560
    %3562 = vmatprep.mubr.f32.mxu0 0.0
    %3563 = vmatmul.mubr.f32.gmra.mrb[0].mxu0 %v3336
    %v3564 = vpop.f32.mrb[0].mxu0
    %v3565 = vadd.f32 %v3271, %v3564
    %v3566 = vpop.f32.mrb[0].mxu0
    %v3567 = vadd.f32 %v3275, %v3566
    %3568 = vdwg.mxu0
    %3569 = vmatprep.subr.mxu0 %v3191
    %3570 = vmatpush1.msra.mxu0 %v3190
    %3571 = vmatprep.subr.mxu0 %v3207
    %3572 = vmatpush1.msra.mxu0 %v3206
    %3573 = vmatprep.subr.mxu0 %v3223
    %3574 = vmatpush1.msra.mxu0 %v3222
    %3575 = vmatprep.subr.mxu0 %v3239
    %3576 = vmatpush1.msra.mxu0 %v3238
    %3577 = vmatprep.subr.mxu0 0.0
    %3578 = vmatpush1.msra.mxu0 0.0
    %3579 = vmatprep.subr.mxu0 0.0
    %3580 = vmatpush1.msra.mxu0 0.0
    %3581 = vmatprep.subr.mxu0 0.0
    %3582 = vmatpush1.msra.mxu0 0.0
    %3583 = vmatprep.subr.mxu0 0.0
    %3584 = vmatpush1.msra.mxu0 0.0
    %3585 = vmatprep.subr.mxu0 0.0
    %3586 = vmatpush1.msra.mxu0 0.0
    %3587 = vmatprep.subr.mxu0 0.0
    %3588 = vmatpush1.msra.mxu0 0.0
    %3589 = vmatprep.subr.mxu0 0.0
    %3590 = vmatpush1.msra.mxu0 0.0
    %3591 = vmatprep.subr.mxu0 0.0
    %3592 = vmatpush1.msra.mxu0 0.0
    %3593 = vmatprep.subr.mxu0 0.0
    %3594 = vmatpush1.msra.mxu0 0.0
    %3595 = vmatprep.subr.mxu0 0.0
    %3596 = vmatpush1.msra.mxu0 0.0
    %3597 = vmatprep.subr.mxu0 0.0
    %3598 = vmatpush1.msra.mxu0 0.0
    %3599 = vmatprep.subr.mxu0 0.0
    %3600 = vmatpush1.msra.mxu0 0.0
    %3601 = vmatprep.subr.mxu0 0.0
    %3602 = vmatpush1.msra.mxu0 0.0
    %3603 = vmatprep.subr.mxu0 0.0
    %3604 = vmatpush1.msra.mxu0 0.0
    %3605 = vmatprep.subr.mxu0 0.0
    %3606 = vmatpush1.msra.mxu0 0.0
    %3607 = vmatprep.subr.mxu0 0.0
    %3608 = vmatpush1.msra.mxu0 0.0
    %3609 = vmatprep.subr.mxu0 0.0
    %3610 = vmatpush1.msra.mxu0 0.0
    %3611 = vmatprep.subr.mxu0 0.0
    %3612 = vmatpush1.msra.mxu0 0.0
    %3613 = vmatprep.subr.mxu0 0.0
    %3614 = vmatpush1.msra.mxu0 0.0
    %3615 = vmatprep.subr.mxu0 0.0
    %3616 = vmatpush1.msra.mxu0 0.0
    %3617 = vmatprep.subr.mxu0 0.0
    %3618 = vmatpush1.msra.mxu0 0.0
    %3619 = vmatprep.subr.mxu0 0.0
    %3620 = vmatpush1.msra.mxu0 0.0
    %3621 = vmatprep.subr.mxu0 0.0
    %3622 = vmatpush1.msra.mxu0 0.0
    %3623 = vmatprep.subr.mxu0 0.0
    %3624 = vmatpush1.msra.mxu0 0.0
    %3625 = vmatprep.subr.mxu0 0.0
    %3626 = vmatpush1.msra.mxu0 0.0
    %3627 = vmatprep.subr.mxu0 0.0
    %3628 = vmatpush1.msra.mxu0 0.0
    %3629 = vmatprep.subr.mxu0 0.0
    %3630 = vmatpush1.msra.mxu0 0.0
    %3631 = vmatprep.subr.mxu0 0.0
    %3632 = vmatpush1.msra.mxu0 0.0
    %3633 = vmatprep.mubr.f32.mxu0 0.0
    %3634 = vmatmul.mubr.f32.gmra.mrb[0].mxu0 %v3333
    %v3635 = vpop.f32.mrb[0].mxu0
    %v3636 = vadd.f32 %v3279, %v3635
    %v3637 = vpop.f32.mrb[0].mxu0
    %v3638 = vadd.f32 %v3283, %v3637
    %3639 = vmatprep.mubr.f32.mxu0 0.0
    %3640 = vmatmul.mubr.f32.gmra.mrb[0].mxu0 %v3336
    %v3641 = vpop.f32.mrb[0].mxu0
    %v3642 = vadd.f32 %v3279, %v3641
    %v3643 = vpop.f32.mrb[0].mxu0
    %v3644 = vadd.f32 %v3283, %v3643
    %3645 = vdwg.mxu0
    %3646 = vmatprep.subr.mxu0 %v3193
    %3647 = vmatpush1.msra.mxu0 %v3192
    %3648 = vmatprep.subr.mxu0 %v3209
    %3649 = vmatpush1.msra.mxu0 %v3208
    %3650 = vmatprep.subr.mxu0 %v3225
    %3651 = vmatpush1.msra.mxu0 %v3224
    %3652 = vmatprep.subr.mxu0 %v3241
    %3653 = vmatpush1.msra.mxu0 %v3240
    %3654 = vmatprep.subr.mxu0 0.0
    %3655 = vmatpush1.msra.mxu0 0.0
    %3656 = vmatprep.subr.mxu0 0.0
    %3657 = vmatpush1.msra.mxu0 0.0
    %3658 = vmatprep.subr.mxu0 0.0
    %3659 = vmatpush1.msra.mxu0 0.0
    %3660 = vmatprep.subr.mxu0 0.0
    %3661 = vmatpush1.msra.mxu0 0.0
    %3662 = vmatprep.subr.mxu0 0.0
    %3663 = vmatpush1.msra.mxu0 0.0
    %3664 = vmatprep.subr.mxu0 0.0
    %3665 = vmatpush1.msra.mxu0 0.0
    %3666 = vmatprep.subr.mxu0 0.0
    %3667 = vmatpush1.msra.mxu0 0.0
    %3668 = vmatprep.subr.mxu0 0.0
    %3669 = vmatpush1.msra.mxu0 0.0
    %3670 = vmatprep.subr.mxu0 0.0
    %3671 = vmatpush1.msra.mxu0 0.0
    %3672 = vmatprep.subr.mxu0 0.0
    %3673 = vmatpush1.msra.mxu0 0.0
    %3674 = vmatprep.subr.mxu0 0.0
    %3675 = vmatpush1.msra.mxu0 0.0
    %3676 = vmatprep.subr.mxu0 0.0
    %3677 = vmatpush1.msra.mxu0 0.0
    %3678 = vmatprep.subr.mxu0 0.0
    %3679 = vmatpush1.msra.mxu0 0.0
    %3680 = vmatprep.subr.mxu0 0.0
    %3681 = vmatpush1.msra.mxu0 0.0
    %3682 = vmatprep.subr.mxu0 0.0
    %3683 = vmatpush1.msra.mxu0 0.0
    %3684 = vmatprep.subr.mxu0 0.0
    %3685 = vmatpush1.msra.mxu0 0.0
    %3686 = vmatprep.subr.mxu0 0.0
    %3687 = vmatpush1.msra.mxu0 0.0
    %3688 = vmatprep.subr.mxu0 0.0
    %3689 = vmatpush1.msra.mxu0 0.0
    %3690 = vmatprep.subr.mxu0 0.0
    %3691 = vmatpush1.msra.mxu0 0.0
    %3692 = vmatprep.subr.mxu0 0.0
    %3693 = vmatpush1.msra.mxu0 0.0
    %3694 = vmatprep.subr.mxu0 0.0
    %3695 = vmatpush1.msra.mxu0 0.0
    %3696 = vmatprep.subr.mxu0 0.0
    %3697 = vmatpush1.msra.mxu0 0.0
    %3698 = vmatprep.subr.mxu0 0.0
    %3699 = vmatpush1.msra.mxu0 0.0
    %3700 = vmatprep.subr.mxu0 0.0
    %3701 = vmatpush1.msra.mxu0 0.0
    %3702 = vmatprep.subr.mxu0 0.0
    %3703 = vmatpush1.msra.mxu0 0.0
    %3704 = vmatprep.subr.mxu0 0.0
    %3705 = vmatpush1.msra.mxu0 0.0
    %3706 = vmatprep.subr.mxu0 0.0
    %3707 = vmatpush1.msra.mxu0 0.0
    %3708 = vmatprep.subr.mxu0 0.0
    %3709 = vmatpush1.msra.mxu0 0.0
    %3710 = vmatprep.mubr.f32.mxu0 0.0
    %3711 = vmatmul.mubr.f32.gmra.mrb[0].mxu0 %v3333
    %v3712 = vpop.f32.mrb[0].mxu0
    %v3713 = vadd.f32 %v3287, %v3712
    %v3714 = vpop.f32.mrb[0].mxu0
    %v3715 = vadd.f32 %v3291, %v3714
    %3716 = vmatprep.mubr.f32.mxu0 0.0
    %3717 = vmatmul.mubr.f32.gmra.mrb[0].mxu0 %v3336
    %v3718 = vpop.f32.mrb[0].mxu0
    %v3719 = vadd.f32 %v3287, %v3718
    %v3720 = vpop.f32.mrb[0].mxu0
    %v3721 = vadd.f32 %v3291, %v3720
    %3722 = vdwg.mxu0
    %3723 = vmatprep.subr.mxu0 %v3195
    %3724 = vmatpush1.msra.mxu0 %v3194
    %3725 = vmatprep.subr.mxu0 %v3211
    %3726 = vmatpush1.msra.mxu0 %v3210
    %3727 = vmatprep.subr.mxu0 %v3227
    %3728 = vmatpush1.msra.mxu0 %v3226
    %3729 = vmatprep.subr.mxu0 %v3243
    %3730 = vmatpush1.msra.mxu0 %v3242
    %3731 = vmatprep.subr.mxu0 0.0
    %3732 = vmatpush1.msra.mxu0 0.0
    %3733 = vmatprep.subr.mxu0 0.0
    %3734 = vmatpush1.msra.mxu0 0.0
    %3735 = vmatprep.subr.mxu0 0.0
    %3736 = vmatpush1.msra.mxu0 0.0
    %3737 = vmatprep.subr.mxu0 0.0
    %3738 = vmatpush1.msra.mxu0 0.0
    %3739 = vmatprep.subr.mxu0 0.0
    %3740 = vmatpush1.msra.mxu0 0.0
    %3741 = vmatprep.subr.mxu0 0.0
    %3742 = vmatpush1.msra.mxu0 0.0
    %3743 = vmatprep.subr.mxu0 0.0
    %3744 = vmatpush1.msra.mxu0 0.0
    %3745 = vmatprep.subr.mxu0 0.0
    %3746 = vmatpush1.msra.mxu0 0.0
    %3747 = vmatprep.subr.mxu0 0.0
    %3748 = vmatpush1.msra.mxu0 0.0
    %3749 = vmatprep.subr.mxu0 0.0
    %3750 = vmatpush1.msra.mxu0 0.0
    %3751 = vmatprep.subr.mxu0 0.0
    %3752 = vmatpush1.msra.mxu0 0.0
    %3753 = vmatprep.subr.mxu0 0.0
    %3754 = vmatpush1.msra.mxu0 0.0
    %3755 = vmatprep.subr.mxu0 0.0
    %3756 = vmatpush1.msra.mxu0 0.0
    %3757 = vmatprep.subr.mxu0 0.0
    %3758 = vmatpush1.msra.mxu0 0.0
    %3759 = vmatprep.subr.mxu0 0.0
    %3760 = vmatpush1.msra.mxu0 0.0
    %3761 = vmatprep.subr.mxu0 0.0
    %3762 = vmatpush1.msra.mxu0 0.0
    %3763 = vmatprep.subr.mxu0 0.0
    %3764 = vmatpush1.msra.mxu0 0.0
    %3765 = vmatprep.subr.mxu0 0.0
    %3766 = vmatpush1.msra.mxu0 0.0
    %3767 = vmatprep.subr.mxu0 0.0
    %3768 = vmatpush1.msra.mxu0 0.0
    %3769 = vmatprep.subr.mxu0 0.0
    %3770 = vmatpush1.msra.mxu0 0.0
    %3771 = vmatprep.subr.mxu0 0.0
    %3772 = vmatpush1.msra.mxu0 0.0
    %3773 = vmatprep.subr.mxu0 0.0
    %3774 = vmatpush1.msra.mxu0 0.0
    %3775 = vmatprep.subr.mxu0 0.0
    %3776 = vmatpush1.msra.mxu0 0.0
    %3777 = vmatprep.subr.mxu0 0.0
    %3778 = vmatpush1.msra.mxu0 0.0
    %3779 = vmatprep.subr.mxu0 0.0
    %3780 = vmatpush1.msra.mxu0 0.0
    %3781 = vmatprep.subr.mxu0 0.0
    %3782 = vmatpush1.msra.mxu0 0.0
    %3783 = vmatprep.subr.mxu0 0.0
    %3784 = vmatpush1.msra.mxu0 0.0
    %3785 = vmatprep.subr.mxu0 0.0
    %3786 = vmatpush1.msra.mxu0 0.0
    %3787 = vmatprep.mubr.f32.mxu0 0.0
    %3788 = vmatmul.mubr.f32.gmra.mrb[0].mxu0 %v3333
    %v3789 = vpop.f32.mrb[0].mxu0
    %v3790 = vadd.f32 %v3295, %v3789
    %v3791 = vpop.f32.mrb[0].mxu0
    %v3792 = vadd.f32 %v3299, %v3791
    %3793 = vmatprep.mubr.f32.mxu0 0.0
    %3794 = vmatmul.mubr.f32.gmra.mrb[0].mxu0 %v3336
    %v3795 = vpop.f32.mrb[0].mxu0
    %v3796 = vadd.f32 %v3295, %v3795
    %v3797 = vpop.f32.mrb[0].mxu0
    %v3798 = vadd.f32 %v3299, %v3797
    %3799 = vdwg.mxu0
    %3800 = vmatprep.subr.mxu0 %v3197
    %3801 = vmatpush1.msra.mxu0 %v3196
    %3802 = vmatprep.subr.mxu0 %v3213
    %3803 = vmatpush1.msra.mxu0 %v3212
    %3804 = vmatprep.subr.mxu0 %v3229
    %3805 = vmatpush1.msra.mxu0 %v3228
    %3806 = vmatprep.subr.mxu0 %v3245
    %3807 = vmatpush1.msra.mxu0 %v3244
    %3808 = vmatprep.subr.mxu0 0.0
    %3809 = vmatpush1.msra.mxu0 0.0
    %3810 = vmatprep.subr.mxu0 0.0
    %3811 = vmatpush1.msra.mxu0 0.0
    %3812 = vmatprep.subr.mxu0 0.0
    %3813 = vmatpush1.msra.mxu0 0.0
    %3814 = vmatprep.subr.mxu0 0.0
    %3815 = vmatpush1.msra.mxu0 0.0
    %3816 = vmatprep.subr.mxu0 0.0
    %3817 = vmatpush1.msra.mxu0 0.0
    %3818 = vmatprep.subr.mxu0 0.0
    %3819 = vmatpush1.msra.mxu0 0.0
    %3820 = vmatprep.subr.mxu0 0.0
    %3821 = vmatpush1.msra.mxu0 0.0
    %3822 = vmatprep.subr.mxu0 0.0
    %3823 = vmatpush1.msra.mxu0 0.0
    %3824 = vmatprep.subr.mxu0 0.0
    %3825 = vmatpush1.msra.mxu0 0.0
    %3826 = vmatprep.subr.mxu0 0.0
    %3827 = vmatpush1.msra.mxu0 0.0
    %3828 = vmatprep.subr.mxu0 0.0
    %3829 = vmatpush1.msra.mxu0 0.0
    %3830 = vmatprep.subr.mxu0 0.0
    %3831 = vmatpush1.msra.mxu0 0.0
    %3832 = vmatprep.subr.mxu0 0.0
    %3833 = vmatpush1.msra.mxu0 0.0
    %3834 = vmatprep.subr.mxu0 0.0
    %3835 = vmatpush1.msra.mxu0 0.0
    %3836 = vmatprep.subr.mxu0 0.0
    %3837 = vmatpush1.msra.mxu0 0.0
    %3838 = vmatprep.subr.mxu0 0.0
    %3839 = vmatpush1.msra.mxu0 0.0
    %3840 = vmatprep.subr.mxu0 0.0
    %3841 = vmatpush1.msra.mxu0 0.0
    %3842 = vmatprep.subr.mxu0 0.0
    %3843 = vmatpush1.msra.mxu0 0.0
    %3844 = vmatprep.subr.mxu0 0.0
    %3845 = vmatpush1.msra.mxu0 0.0
    %3846 = vmatprep.subr.mxu0 0.0
    %3847 = vmatpush1.msra.mxu0 0.0
    %3848 = vmatprep.subr.mxu0 0.0
    %3849 = vmatpush1.msra.mxu0 0.0
    %3850 = vmatprep.subr.mxu0 0.0
    %3851 = vmatpush1.msra.mxu0 0.0
    %3852 = vmatprep.subr.mxu0 0.0
    %3853 = vmatpush1.msra.mxu0 0.0
    %3854 = vmatprep.subr.mxu0 0.0
    %3855 = vmatpush1.msra.mxu0 0.0
    %3856 = vmatprep.subr.mxu0 0.0
    %3857 = vmatpush1.msra.mxu0 0.0
    %3858 = vmatprep.subr.mxu0 0.0
    %3859 = vmatpush1.msra.mxu0 0.0
    %3860 = vmatprep.subr.mxu0 0.0
    %3861 = vmatpush1.msra.mxu0 0.0
    %3862 = vmatprep.subr.mxu0 0.0
    %3863 = vmatpush1.msra.mxu0 0.0
    %3864 = vmatprep.mubr.f32.mxu0 0.0
    %3865 = vmatmul.mubr.f32.gmra.mrb[0].mxu0 %v3333
    %v3866 = vpop.f32.mrb[0].mxu0
    %v3867 = vadd.f32 %v3303, %v3866
    %v3868 = vpop.f32.mrb[0].mxu0
    %v3869 = vadd.f32 %v3307, %v3868
    %3870 = vmatprep.mubr.f32.mxu0 0.0
    %3871 = vmatmul.mubr.f32.gmra.mrb[0].mxu0 %v3336
    %v3872 = vpop.f32.mrb[0].mxu0
    %v3873 = vadd.f32 %v3303, %v3872
    %v3874 = vpop.f32.mrb[0].mxu0
    %v3875 = vadd.f32 %v3307, %v3874
    %3876 = vdwg.mxu0
    %3877 = vmatprep.subr.mxu0 %v3199
    %3878 = vmatpush1.msra.mxu0 %v3198
    %3879 = vmatprep.subr.mxu0 %v3215
    %3880 = vmatpush1.msra.mxu0 %v3214
    %3881 = vmatprep.subr.mxu0 %v3231
    %3882 = vmatpush1.msra.mxu0 %v3230
    %3883 = vmatprep.subr.mxu0 %v3247
    %3884 = vmatpush1.msra.mxu0 %v3246
    %3885 = vmatprep.subr.mxu0 0.0
    %3886 = vmatpush1.msra.mxu0 0.0
    %3887 = vmatprep.subr.mxu0 0.0
    %3888 = vmatpush1.msra.mxu0 0.0
    %3889 = vmatprep.subr.mxu0 0.0
    %3890 = vmatpush1.msra.mxu0 0.0
    %3891 = vmatprep.subr.mxu0 0.0
    %3892 = vmatpush1.msra.mxu0 0.0
    %3893 = vmatprep.subr.mxu0 0.0
    %3894 = vmatpush1.msra.mxu0 0.0
    %3895 = vmatprep.subr.mxu0 0.0
    %3896 = vmatpush1.msra.mxu0 0.0
    %3897 = vmatprep.subr.mxu0 0.0
    %3898 = vmatpush1.msra.mxu0 0.0
    %3899 = vmatprep.subr.mxu0 0.0
    %3900 = vmatpush1.msra.mxu0 0.0
    %3901 = vmatprep.subr.mxu0 0.0
    %3902 = vmatpush1.msra.mxu0 0.0
    %3903 = vmatprep.subr.mxu0 0.0
    %3904 = vmatpush1.msra.mxu0 0.0
    %3905 = vmatprep.subr.mxu0 0.0
    %3906 = vmatpush1.msra.mxu0 0.0
    %3907 = vmatprep.subr.mxu0 0.0
    %3908 = vmatpush1.msra.mxu0 0.0
    %3909 = vmatprep.subr.mxu0 0.0
    %3910 = vmatpush1.msra.mxu0 0.0
    %3911 = vmatprep.subr.mxu0 0.0
    %3912 = vmatpush1.msra.mxu0 0.0
    %3913 = vmatprep.subr.mxu0 0.0
    %3914 = vmatpush1.msra.mxu0 0.0
    %3915 = vmatprep.subr.mxu0 0.0
    %3916 = vmatpush1.msra.mxu0 0.0
    %3917 = vmatprep.subr.mxu0 0.0
    %3918 = vmatpush1.msra.mxu0 0.0
    %3919 = vmatprep.subr.mxu0 0.0
    %3920 = vmatpush1.msra.mxu0 0.0
    %3921 = vmatprep.subr.mxu0 0.0
    %3922 = vmatpush1.msra.mxu0 0.0
    %3923 = vmatprep.subr.mxu0 0.0
    %3924 = vmatpush1.msra.mxu0 0.0
    %3925 = vmatprep.subr.mxu0 0.0
    %3926 = vmatpush1.msra.mxu0 0.0
    %3927 = vmatprep.subr.mxu0 0.0
    %3928 = vmatpush1.msra.mxu0 0.0
    %3929 = vmatprep.subr.mxu0 0.0
    %3930 = vmatpush1.msra.mxu0 0.0
    %3931 = vmatprep.subr.mxu0 0.0
    %3932 = vmatpush1.msra.mxu0 0.0
    %3933 = vmatprep.subr.mxu0 0.0
    %3934 = vmatpush1.msra.mxu0 0.0
    %3935 = vmatprep.subr.mxu0 0.0
    %3936 = vmatpush1.msra.mxu0 0.0
    %3937 = vmatprep.subr.mxu0 0.0
    %3938 = vmatpush1.msra.mxu0 0.0
    %3939 = vmatprep.subr.mxu0 0.0
    %3940 = vmatpush1.msra.mxu0 0.0
    %3941 = vmatprep.mubr.f32.mxu0 0.0
    %3942 = vmatmul.mubr.f32.gmra.mrb[0].mxu0 %v3333
    %v3943 = vpop.f32.mrb[0].mxu0
    %v3944 = vadd.f32 %v3311, %v3943
    %v3945 = vpop.f32.mrb[0].mxu0
    %v3946 = vadd.f32 %v3315, %v3945
    %3947 = vmatprep.mubr.f32.mxu0 0.0
    %3948 = vmatmul.mubr.f32.gmra.mrb[0].mxu0 %v3336
    %v3949 = vpop.f32.mrb[0].mxu0
    %v3950 = vadd.f32 %v3311, %v3949
    %v3951 = vpop.f32.mrb[0].mxu0
    %v3952 = vadd.f32 %v3315, %v3951
    %3953 = vdwg.mxu0
    %v3954 = vmax.f32 %v3405, 0.0
    %v3955 = vmax.f32 %v3407, 0.0
    %v3956 = vmax.f32 %v3482, 0.0
    %v3957 = vmax.f32 %v3484, 0.0
    %v3958 = vmax.f32 %v3559, 0.0
    %v3959 = vmax.f32 %v3561, 0.0
    %v3960 = vmax.f32 %v3636, 0.0
    %v3961 = vmax.f32 %v3638, 0.0
    %v3962 = vmax.f32 %v3713, 0.0
    %v3963 = vmax.f32 %v3715, 0.0
    %v3964 = vmax.f32 %v3790, 0.0
    %v3965 = vmax.f32 %v3792, 0.0
    %v3966 = vmax.f32 %v3867, 0.0
    %v3967 = vmax.f32 %v3869, 0.0
    %v3968 = vmax.f32 %v3944, 0.0
    %v3969 = vmax.f32 %v3946, 0.0
    %v3970 = vmax.f32 %v3411, 0.0
    %v3971 = vmax.f32 %v3413, 0.0
    %v3972 = vmax.f32 %v3488, 0.0
    %v3973 = vmax.f32 %v3490, 0.0
    %v3974 = vmax.f32 %v3565, 0.0
    %v3975 = vmax.f32 %v3567, 0.0
    %v3976 = vmax.f32 %v3642, 0.0
    %v3977 = vmax.f32 %v3644, 0.0
    %v3978 = vmax.f32 %v3719, 0.0
    %v3979 = vmax.f32 %v3721, 0.0
    %v3980 = vmax.f32 %v3796, 0.0
    %v3981 = vmax.f32 %v3798, 0.0
    %v3982 = vmax.f32 %v3873, 0.0
    %v3983 = vmax.f32 %v3875, 0.0
    %v3984 = vmax.f32 %v3950, 0.0
    %v3985 = vmax.f32 %v3952, 0.0
    %v3986 = vld [vmem:[%s14] sm:$0xff]
    %v3987 = vld [vmem:[%s14 + $0x8] sm:$0xff]
    %v3988 = vld [vmem:[%s14 + $0x10] sm:$0xff]
    %v3989 = vld [vmem:[%s14 + $0x18] sm:$0xff]
    %v3990 = vld [vmem:[%s14 + $0x20] sm:$0xff]
    %v3991 = vld [vmem:[%s14 + $0x28] sm:$0xff]
    %v3992 = vld [vmem:[%s14 + $0x30] sm:$0xff]
    %v3993 = vld [vmem:[%s14 + $0x38] sm:$0xff]
    %v3994 = vld [vmem:[%s14 + $0x40] sm:$0xff]
    %v3995 = vld [vmem:[%s14 + $0x48] sm:$0xff]
    %v3996 = vld [vmem:[%s14 + $0x50] sm:$0xff]
    %v3997 = vld [vmem:[%s14 + $0x58] sm:$0xff]
    %v3998 = vld [vmem:[%s14 + $0x60] sm:$0xff]
    %v3999 = vld [vmem:[%s14 + $0x68] sm:$0xff]
    %v4000 = vld [vmem:[%s14 + $0x70] sm:$0xff]
    %v4001 = vld [vmem:[%s14 + $0x78] sm:$0xff]
    %v4002 = vld [vmem:[%s14 + $0x80] sm:$0xff]
    %v4003 = vld [vmem:[%s14 + $0x88] sm:$0xff]
    %v4004 = vld [vmem:[%s14 + $0x90] sm:$0xff]
    %v4005 = vld [vmem:[%s14 + $0x98] sm:$0xff]
    %v4006 = vld [vmem:[%s14 + $0xa0] sm:$0xff]
    %v4007 = vld [vmem:[%s14 + $0xa8] sm:$0xff]
    %v4008 = vld [vmem:[%s14 + $0xb0] sm:$0xff]
    %v4009 = vld [vmem:[%s14 + $0xb8] sm:$0xff]
    %v4010 = vld [vmem:[%s14 + $0xc0] sm:$0xff]
    %v4011 = vld [vmem:[%s14 + $0xc8] sm:$0xff]
    %v4012 = vld [vmem:[%s14 + $0xd0] sm:$0xff]
    %v4013 = vld [vmem:[%s14 + $0xd8] sm:$0xff]
    %v4014 = vld [vmem:[%s14 + $0xe0] sm:$0xff]
    %v4015 = vld [vmem:[%s14 + $0xe8] sm:$0xff]
    %v4016 = vld [vmem:[%s14 + $0xf0] sm:$0xff]
    %v4017 = vld [vmem:[%s14 + $0xf8] sm:$0xff]
    %v4018 = vld [vmem:[%s14 + $0x100] sm:$0xff]
    %v4019 = vld [vmem:[%s14 + $0x108] sm:$0xff]
    %v4020 = vld [vmem:[%s14 + $0x110] sm:$0xff]
    %v4021 = vld [vmem:[%s14 + $0x118] sm:$0xff]
    %v4022 = vld [vmem:[%s14 + $0x120] sm:$0xff]
    %v4023 = vld [vmem:[%s14 + $0x128] sm:$0xff]
    %v4024 = vld [vmem:[%s14 + $0x130] sm:$0xff]
    %v4025 = vld [vmem:[%s14 + $0x138] sm:$0xff]
    %v4026 = vld [vmem:[%s14 + $0x140] sm:$0xff]
    %v4027 = vld [vmem:[%s14 + $0x148] sm:$0xff]
    %v4028 = vld [vmem:[%s14 + $0x150] sm:$0xff]
    %v4029 = vld [vmem:[%s14 + $0x158] sm:$0xff]
    %v4030 = vld [vmem:[%s14 + $0x160] sm:$0xff]
    %v4031 = vld [vmem:[%s14 + $0x168] sm:$0xff]
    %v4032 = vld [vmem:[%s14 + $0x170] sm:$0xff]
    %v4033 = vld [vmem:[%s14 + $0x178] sm:$0xff]
    %v4034 = vld [vmem:[%s14 + $0x180] sm:$0xff]
    %v4035 = vld [vmem:[%s14 + $0x188] sm:$0xff]
    %v4036 = vld [vmem:[%s14 + $0x190] sm:$0xff]
    %v4037 = vld [vmem:[%s14 + $0x198] sm:$0xff]
    %v4038 = vld [vmem:[%s14 + $0x1a0] sm:$0xff]
    %v4039 = vld [vmem:[%s14 + $0x1a8] sm:$0xff]
    %v4040 = vld [vmem:[%s14 + $0x1b0] sm:$0xff]
    %v4041 = vld [vmem:[%s14 + $0x1b8] sm:$0xff]
    %v4042 = vld [vmem:[%s14 + $0x1c0] sm:$0xff]
    %v4043 = vld [vmem:[%s14 + $0x1c8] sm:$0xff]
    %v4044 = vld [vmem:[%s14 + $0x1d0] sm:$0xff]
    %v4045 = vld [vmem:[%s14 + $0x1d8] sm:$0xff]
    %v4046 = vld [vmem:[%s14 + $0x1e0] sm:$0xff]
    %v4047 = vld [vmem:[%s14 + $0x1e8] sm:$0xff]
    %v4048 = vld [vmem:[%s14 + $0x1f0] sm:$0xff]
    %v4049 = vld [vmem:[%s14 + $0x1f8] sm:$0xff]
    %v4050 = vld [vmem:[%s14 + $0x200] sm:$0xff]
    %v4051 = vld [vmem:[%s14 + $0x208] sm:$0xff]
    %v4052 = vld [vmem:[%s14 + $0x210] sm:$0xff]
    %v4053 = vld [vmem:[%s14 + $0x218] sm:$0xff]
    %v4054 = vld [vmem:[%s14 + $0x220] sm:$0xff]
    %v4055 = vld [vmem:[%s14 + $0x228] sm:$0xff]
    %v4056 = vld [vmem:[%s14 + $0x230] sm:$0xff]
    %v4057 = vld [vmem:[%s14 + $0x238] sm:$0xff]
    %v4058 = vld [vmem:[%s14 + $0x240] sm:$0xff]
    %v4059 = vld [vmem:[%s14 + $0x248] sm:$0xff]
    %v4060 = vld [vmem:[%s14 + $0x250] sm:$0xff]
    %v4061 = vld [vmem:[%s14 + $0x258] sm:$0xff]
    %v4062 = vld [vmem:[%s14 + $0x260] sm:$0xff]
    %v4063 = vld [vmem:[%s14 + $0x268] sm:$0xff]
    %v4064 = vld [vmem:[%s14 + $0x270] sm:$0xff]
    %v4065 = vld [vmem:[%s14 + $0x278] sm:$0xff]
    %v4066 = vld [vmem:[%s14 + $0x280] sm:$0xff]
    %v4067 = vld [vmem:[%s14 + $0x288] sm:$0xff]
    %v4068 = vld [vmem:[%s14 + $0x290] sm:$0xff]
    %v4069 = vld [vmem:[%s14 + $0x298] sm:$0xff]
    %v4070 = vld [vmem:[%s14 + $0x2a0] sm:$0xff]
    %v4071 = vld [vmem:[%s14 + $0x2a8] sm:$0xff]
    %v4072 = vld [vmem:[%s14 + $0x2b0] sm:$0xff]
    %v4073 = vld [vmem:[%s14 + $0x2b8] sm:$0xff]
    %v4074 = vld [vmem:[%s14 + $0x2c0] sm:$0xff]
    %v4075 = vld [vmem:[%s14 + $0x2c8] sm:$0xff]
    %v4076 = vld [vmem:[%s14 + $0x2d0] sm:$0xff]
    %v4077 = vld [vmem:[%s14 + $0x2d8] sm:$0xff]
    %v4078 = vld [vmem:[%s14 + $0x2e0] sm:$0xff]
    %v4079 = vld [vmem:[%s14 + $0x2e8] sm:$0xff]
    %v4080 = vld [vmem:[%s14 + $0x2f0] sm:$0xff]
    %v4081 = vld [vmem:[%s14 + $0x2f8] sm:$0xff]
    %v4082 = vld [vmem:[%s14 + $0x300] sm:$0xff]
    %v4083 = vld [vmem:[%s14 + $0x308] sm:$0xff]
    %v4084 = vld [vmem:[%s14 + $0x310] sm:$0xff]
    %v4085 = vld [vmem:[%s14 + $0x318] sm:$0xff]
    %v4086 = vld [vmem:[%s14 + $0x320] sm:$0xff]
    %v4087 = vld [vmem:[%s14 + $0x328] sm:$0xff]
    %v4088 = vld [vmem:[%s14 + $0x330] sm:$0xff]
    %v4089 = vld [vmem:[%s14 + $0x338] sm:$0xff]
    %v4090 = vld [vmem:[%s14 + $0x340] sm:$0xff]
    %v4091 = vld [vmem:[%s14 + $0x348] sm:$0xff]
    %v4092 = vld [vmem:[%s14 + $0x350] sm:$0xff]
    %v4093 = vld [vmem:[%s14 + $0x358] sm:$0xff]
    %v4094 = vld [vmem:[%s14 + $0x360] sm:$0xff]
    %v4095 = vld [vmem:[%s14 + $0x368] sm:$0xff]
    %v4096 = vld [vmem:[%s14 + $0x370] sm:$0xff]
    %v4097 = vld [vmem:[%s14 + $0x378] sm:$0xff]
    %v4098 = vld [vmem:[%s14 + $0x380] sm:$0xff]
    %v4099 = vld [vmem:[%s14 + $0x388] sm:$0xff]
    %v4100 = vld [vmem:[%s14 + $0x390] sm:$0xff]
    %v4101 = vld [vmem:[%s14 + $0x398] sm:$0xff]
    %v4102 = vld [vmem:[%s14 + $0x3a0] sm:$0xff]
    %v4103 = vld [vmem:[%s14 + $0x3a8] sm:$0xff]
    %v4104 = vld [vmem:[%s14 + $0x3b0] sm:$0xff]
    %v4105 = vld [vmem:[%s14 + $0x3b8] sm:$0xff]
    %v4106 = vld [vmem:[%s14 + $0x3c0] sm:$0xff]
    %v4107 = vld [vmem:[%s14 + $0x3c8] sm:$0xff]
    %v4108 = vld [vmem:[%s14 + $0x3d0] sm:$0xff]
    %v4109 = vld [vmem:[%s14 + $0x3d8] sm:$0xff]
    %v4110 = vld [vmem:[%s14 + $0x3e0] sm:$0xff]
    %v4111 = vld [vmem:[%s14 + $0x3e8] sm:$0xff]
    %v4112 = vld [vmem:[%s14 + $0x3f0] sm:$0xff]
    %v4113 = vld [vmem:[%s14 + $0x3f8] sm:$0xff]
    %v4114 = vld [vmem:[%s14 + $0x400] sm:$0xff]
    %v4115 = vld [vmem:[%s14 + $0x408] sm:$0xff]
    %v4116 = vld [vmem:[%s14 + $0x410] sm:$0xff]
    %v4117 = vld [vmem:[%s14 + $0x418] sm:$0xff]
    %v4118 = vld [vmem:[%s14 + $0x420] sm:$0xff]
    %v4119 = vld [vmem:[%s14 + $0x428] sm:$0xff]
    %v4120 = vld [vmem:[%s14 + $0x430] sm:$0xff]
    %v4121 = vld [vmem:[%s14 + $0x438] sm:$0xff]
    %v4122 = vld [vmem:[%s14 + $0x440] sm:$0xff]
    %v4123 = vld [vmem:[%s14 + $0x448] sm:$0xff]
    %v4124 = vld [vmem:[%s14 + $0x450] sm:$0xff]
    %v4125 = vld [vmem:[%s14 + $0x458] sm:$0xff]
    %v4126 = vld [vmem:[%s14 + $0x460] sm:$0xff]
    %v4127 = vld [vmem:[%s14 + $0x468] sm:$0xff]
    %v4128 = vld [vmem:[%s14 + $0x470] sm:$0xff]
    %v4129 = vld [vmem:[%s14 + $0x478] sm:$0xff]
    %v4130 = vld [vmem:[%s14 + $0x480] sm:$0xff]
    %v4131 = vld [vmem:[%s14 + $0x488] sm:$0xff]
    %v4132 = vld [vmem:[%s14 + $0x490] sm:$0xff]
    %v4133 = vld [vmem:[%s14 + $0x498] sm:$0xff]
    %v4134 = vld [vmem:[%s14 + $0x4a0] sm:$0xff]
    %v4135 = vld [vmem:[%s14 + $0x4a8] sm:$0xff]
    %v4136 = vld [vmem:[%s14 + $0x4b0] sm:$0xff]
    %v4137 = vld [vmem:[%s14 + $0x4b8] sm:$0xff]
    %v4138 = vld [vmem:[%s14 + $0x4c0] sm:$0xff]
    %v4139 = vld [vmem:[%s14 + $0x4c8] sm:$0xff]
    %v4140 = vld [vmem:[%s14 + $0x4d0] sm:$0xff]
    %v4141 = vld [vmem:[%s14 + $0x4d8] sm:$0xff]
    %v4142 = vld [vmem:[%s14 + $0x4e0] sm:$0xff]
    %v4143 = vld [vmem:[%s14 + $0x4e8] sm:$0xff]
    %v4144 = vld [vmem:[%s14 + $0x4f0] sm:$0xff]
    %v4145 = vld [vmem:[%s14 + $0x4f8] sm:$0xff]
    %v4146 = vld [vmem:[%s14 + $0x500] sm:$0xff]
    %v4147 = vld [vmem:[%s14 + $0x508] sm:$0xff]
    %v4148 = vld [vmem:[%s14 + $0x510] sm:$0xff]
    %v4149 = vld [vmem:[%s14 + $0x518] sm:$0xff]
    %v4150 = vld [vmem:[%s14 + $0x520] sm:$0xff]
    %v4151 = vld [vmem:[%s14 + $0x528] sm:$0xff]
    %v4152 = vld [vmem:[%s14 + $0x530] sm:$0xff]
    %v4153 = vld [vmem:[%s14 + $0x538] sm:$0xff]
    %v4154 = vld [vmem:[%s14 + $0x540] sm:$0xff]
    %v4155 = vld [vmem:[%s14 + $0x548] sm:$0xff]
    %v4156 = vld [vmem:[%s14 + $0x550] sm:$0xff]
    %v4157 = vld [vmem:[%s14 + $0x558] sm:$0xff]
    %v4158 = vld [vmem:[%s14 + $0x560] sm:$0xff]
    %v4159 = vld [vmem:[%s14 + $0x568] sm:$0xff]
    %v4160 = vld [vmem:[%s14 + $0x570] sm:$0xff]
    %v4161 = vld [vmem:[%s14 + $0x578] sm:$0xff]
    %v4162 = vld [vmem:[%s14 + $0x580] sm:$0xff]
    %v4163 = vld [vmem:[%s14 + $0x588] sm:$0xff]
    %v4164 = vld [vmem:[%s14 + $0x590] sm:$0xff]
    %v4165 = vld [vmem:[%s14 + $0x598] sm:$0xff]
    %v4166 = vld [vmem:[%s14 + $0x5a0] sm:$0xff]
    %v4167 = vld [vmem:[%s14 + $0x5a8] sm:$0xff]
    %v4168 = vld [vmem:[%s14 + $0x5b0] sm:$0xff]
    %v4169 = vld [vmem:[%s14 + $0x5b8] sm:$0xff]
    %v4170 = vld [vmem:[%s14 + $0x5c0] sm:$0xff]
    %v4171 = vld [vmem:[%s14 + $0x5c8] sm:$0xff]
    %v4172 = vld [vmem:[%s14 + $0x5d0] sm:$0xff]
    %v4173 = vld [vmem:[%s14 + $0x5d8] sm:$0xff]
    %v4174 = vld [vmem:[%s14 + $0x5e0] sm:$0xff]
    %v4175 = vld [vmem:[%s14 + $0x5e8] sm:$0xff]
    %v4176 = vld [vmem:[%s14 + $0x5f0] sm:$0xff]
    %v4177 = vld [vmem:[%s14 + $0x5f8] sm:$0xff]
    %v4178 = vld [vmem:[%s14 + $0x600] sm:$0xff]
    %v4179 = vld [vmem:[%s14 + $0x608] sm:$0xff]
    %v4180 = vld [vmem:[%s14 + $0x610] sm:$0xff]
    %v4181 = vld [vmem:[%s14 + $0x618] sm:$0xff]
    %v4182 = vld [vmem:[%s14 + $0x620] sm:$0xff]
    %v4183 = vld [vmem:[%s14 + $0x628] sm:$0xff]
    %v4184 = vld [vmem:[%s14 + $0x630] sm:$0xff]
    %v4185 = vld [vmem:[%s14 + $0x638] sm:$0xff]
    %v4186 = vld [vmem:[%s14 + $0x640] sm:$0xff]
    %v4187 = vld [vmem:[%s14 + $0x648] sm:$0xff]
    %v4188 = vld [vmem:[%s14 + $0x650] sm:$0xff]
    %v4189 = vld [vmem:[%s14 + $0x658] sm:$0xff]
    %v4190 = vld [vmem:[%s14 + $0x660] sm:$0xff]
    %v4191 = vld [vmem:[%s14 + $0x668] sm:$0xff]
    %v4192 = vld [vmem:[%s14 + $0x670] sm:$0xff]
    %v4193 = vld [vmem:[%s14 + $0x678] sm:$0xff]
    %v4194 = vld [vmem:[%s14 + $0x680] sm:$0xff]
    %v4195 = vld [vmem:[%s14 + $0x688] sm:$0xff]
    %v4196 = vld [vmem:[%s14 + $0x690] sm:$0xff]
    %v4197 = vld [vmem:[%s14 + $0x698] sm:$0xff]
    %v4198 = vld [vmem:[%s14 + $0x6a0] sm:$0xff]
    %v4199 = vld [vmem:[%s14 + $0x6a8] sm:$0xff]
    %v4200 = vld [vmem:[%s14 + $0x6b0] sm:$0xff]
    %v4201 = vld [vmem:[%s14 + $0x6b8] sm:$0xff]
    %v4202 = vld [vmem:[%s14 + $0x6c0] sm:$0xff]
    %v4203 = vld [vmem:[%s14 + $0x6c8] sm:$0xff]
    %v4204 = vld [vmem:[%s14 + $0x6d0] sm:$0xff]
    %v4205 = vld [vmem:[%s14 + $0x6d8] sm:$0xff]
    %v4206 = vld [vmem:[%s14 + $0x6e0] sm:$0xff]
    %v4207 = vld [vmem:[%s14 + $0x6e8] sm:$0xff]
    %v4208 = vld [vmem:[%s14 + $0x6f0] sm:$0xff]
    %v4209 = vld [vmem:[%s14 + $0x6f8] sm:$0xff]
    %v4210 = vld [vmem:[%s14 + $0x700] sm:$0xff]
    %v4211 = vld [vmem:[%s14 + $0x708] sm:$0xff]
    %v4212 = vld [vmem:[%s14 + $0x710] sm:$0xff]
    %v4213 = vld [vmem:[%s14 + $0x718] sm:$0xff]
    %v4214 = vld [vmem:[%s14 + $0x720] sm:$0xff]
    %v4215 = vld [vmem:[%s14 + $0x728] sm:$0xff]
    %v4216 = vld [vmem:[%s14 + $0x730] sm:$0xff]
    %v4217 = vld [vmem:[%s14 + $0x738] sm:$0xff]
    %v4218 = vld [vmem:[%s14 + $0x740] sm:$0xff]
    %v4219 = vld [vmem:[%s14 + $0x748] sm:$0xff]
    %v4220 = vld [vmem:[%s14 + $0x750] sm:$0xff]
    %v4221 = vld [vmem:[%s14 + $0x758] sm:$0xff]
    %v4222 = vld [vmem:[%s14 + $0x760] sm:$0xff]
    %v4223 = vld [vmem:[%s14 + $0x768] sm:$0xff]
    %v4224 = vld [vmem:[%s14 + $0x770] sm:$0xff]
    %v4225 = vld [vmem:[%s14 + $0x778] sm:$0xff]
    %v4226 = vld [vmem:[%s14 + $0x780] sm:$0xff]
    %v4227 = vld [vmem:[%s14 + $0x788] sm:$0xff]
    %v4228 = vld [vmem:[%s14 + $0x790] sm:$0xff]
    %v4229 = vld [vmem:[%s14 + $0x798] sm:$0xff]
    %v4230 = vld [vmem:[%s14 + $0x7a0] sm:$0xff]
    %v4231 = vld [vmem:[%s14 + $0x7a8] sm:$0xff]
    %v4232 = vld [vmem:[%s14 + $0x7b0] sm:$0xff]
    %v4233 = vld [vmem:[%s14 + $0x7b8] sm:$0xff]
    %v4234 = vld [vmem:[%s14 + $0x7c0] sm:$0xff]
    %v4235 = vld [vmem:[%s14 + $0x7c8] sm:$0xff]
    %v4236 = vld [vmem:[%s14 + $0x7d0] sm:$0xff]
    %v4237 = vld [vmem:[%s14 + $0x7d8] sm:$0xff]
    %v4238 = vld [vmem:[%s14 + $0x7e0] sm:$0xff]
    %v4239 = vld [vmem:[%s14 + $0x7e8] sm:$0xff]
    %v4240 = vld [vmem:[%s14 + $0x7f0] sm:$0xff]
    %v4241 = vld [vmem:[%s14 + $0x7f8] sm:$0xff]
    %v4242 = vld [vmem:[%s15] sm:$0x1]
    %v4244 = vlaneseq
    %v4245 = vshrl.u32 %v4244, 7
    %v4246 = vsub.s32 0, %v4245
    %v4247 = vrot.slane %v4242, %v4246
    %4249 = vmatprep.subr.mxu0 0.0
    %4250 = vmatpush1.msra.mxu0 %v3986
    %4251 = vmatprep.subr.mxu0 0.0
    %4252 = vmatpush1.msra.mxu0 %v3987
    %4253 = vmatprep.subr.mxu0 0.0
    %4254 = vmatpush1.msra.mxu0 %v3988
    %4255 = vmatprep.subr.mxu0 0.0
    %4256 = vmatpush1.msra.mxu0 %v3989
    %4257 = vmatprep.subr.mxu0 0.0
    %4258 = vmatpush1.msra.mxu0 %v3990
    %4259 = vmatprep.subr.mxu0 0.0
    %4260 = vmatpush1.msra.mxu0 %v3991
    %4261 = vmatprep.subr.mxu0 0.0
    %4262 = vmatpush1.msra.mxu0 %v3992
    %4263 = vmatprep.subr.mxu0 0.0
    %4264 = vmatpush1.msra.mxu0 %v3993
    %4265 = vmatprep.subr.mxu0 0.0
    %4266 = vmatpush1.msra.mxu0 %v3994
    %4267 = vmatprep.subr.mxu0 0.0
    %4268 = vmatpush1.msra.mxu0 %v3995
    %4269 = vmatprep.subr.mxu0 0.0
    %4270 = vmatpush1.msra.mxu0 %v3996
    %4271 = vmatprep.subr.mxu0 0.0
    %4272 = vmatpush1.msra.mxu0 %v3997
    %4273 = vmatprep.subr.mxu0 0.0
    %4274 = vmatpush1.msra.mxu0 %v3998
    %4275 = vmatprep.subr.mxu0 0.0
    %4276 = vmatpush1.msra.mxu0 %v3999
    %4277 = vmatprep.subr.mxu0 0.0
    %4278 = vmatpush1.msra.mxu0 %v4000
    %4279 = vmatprep.subr.mxu0 0.0
    %4280 = vmatpush1.msra.mxu0 %v4001
    %4281 = vmatprep.subr.mxu0 0.0
    %4282 = vmatpush1.msra.mxu0 %v4002
    %4283 = vmatprep.subr.mxu0 0.0
    %4284 = vmatpush1.msra.mxu0 %v4003
    %4285 = vmatprep.subr.mxu0 0.0
    %4286 = vmatpush1.msra.mxu0 %v4004
    %4287 = vmatprep.subr.mxu0 0.0
    %4288 = vmatpush1.msra.mxu0 %v4005
    %4289 = vmatprep.subr.mxu0 0.0
    %4290 = vmatpush1.msra.mxu0 %v4006
    %4291 = vmatprep.subr.mxu0 0.0
    %4292 = vmatpush1.msra.mxu0 %v4007
    %4293 = vmatprep.subr.mxu0 0.0
    %4294 = vmatpush1.msra.mxu0 %v4008
    %4295 = vmatprep.subr.mxu0 0.0
    %4296 = vmatpush1.msra.mxu0 %v4009
    %4297 = vmatprep.subr.mxu0 0.0
    %4298 = vmatpush1.msra.mxu0 %v4010
    %4299 = vmatprep.subr.mxu0 0.0
    %4300 = vmatpush1.msra.mxu0 %v4011
    %4301 = vmatprep.subr.mxu0 0.0
    %4302 = vmatpush1.msra.mxu0 %v4012
    %4303 = vmatprep.subr.mxu0 0.0
    %4304 = vmatpush1.msra.mxu0 %v4013
    %4305 = vmatprep.subr.mxu0 0.0
    %4306 = vmatpush1.msra.mxu0 %v4014
    %4307 = vmatprep.subr.mxu0 0.0
    %4308 = vmatpush1.msra.mxu0 %v4015
    %4309 = vmatprep.subr.mxu0 0.0
    %4310 = vmatpush1.msra.mxu0 %v4016
    %4311 = vmatprep.subr.mxu0 0.0
    %4312 = vmatpush1.msra.mxu0 %v4017
    %4313 = vmatprep.mubr.f32.mxu0 %v3955
    %4314 = vmatmul.mubr.f32.gmra.mrb[0].mxu0 %v3954
    %v4315 = vpop.f32.mrb[0].mxu0
    %v4316 = vadd.f32 %v4247, %v4315
    %v4317 = vpop.f32.mrb[0].mxu0
    %4318 = vmatprep.mubr.f32.mxu0 %v3971
    %4319 = vmatmul.mubr.f32.gmra.mrb[0].mxu0 %v3970
    %v4320 = vpop.f32.mrb[0].mxu0
    %v4321 = vadd.f32 %v4247, %v4320
    %v4322 = vpop.f32.mrb[0].mxu0
    %4323 = vdwg.mxu0
    %4324 = vmatprep.subr.mxu0 0.0
    %4325 = vmatpush1.msra.mxu0 %v4018
    %4326 = vmatprep.subr.mxu0 0.0
    %4327 = vmatpush1.msra.mxu0 %v4019
    %4328 = vmatprep.subr.mxu0 0.0
    %4329 = vmatpush1.msra.mxu0 %v4020
    %4330 = vmatprep.subr.mxu0 0.0
    %4331 = vmatpush1.msra.mxu0 %v4021
    %4332 = vmatprep.subr.mxu0 0.0
    %4333 = vmatpush1.msra.mxu0 %v4022
    %4334 = vmatprep.subr.mxu0 0.0
    %4335 = vmatpush1.msra.mxu0 %v4023
    %4336 = vmatprep.subr.mxu0 0.0
    %4337 = vmatpush1.msra.mxu0 %v4024
    %4338 = vmatprep.subr.mxu0 0.0
    %4339 = vmatpush1.msra.mxu0 %v4025
    %4340 = vmatprep.subr.mxu0 0.0
    %4341 = vmatpush1.msra.mxu0 %v4026
    %4342 = vmatprep.subr.mxu0 0.0
    %4343 = vmatpush1.msra.mxu0 %v4027
    %4344 = vmatprep.subr.mxu0 0.0
    %4345 = vmatpush1.msra.mxu0 %v4028
    %4346 = vmatprep.subr.mxu0 0.0
    %4347 = vmatpush1.msra.mxu0 %v4029
    %4348 = vmatprep.subr.mxu0 0.0
    %4349 = vmatpush1.msra.mxu0 %v4030
    %4350 = vmatprep.subr.mxu0 0.0
    %4351 = vmatpush1.msra.mxu0 %v4031
    %4352 = vmatprep.subr.mxu0 0.0
    %4353 = vmatpush1.msra.mxu0 %v4032
    %4354 = vmatprep.subr.mxu0 0.0
    %4355 = vmatpush1.msra.mxu0 %v4033
    %4356 = vmatprep.subr.mxu0 0.0
    %4357 = vmatpush1.msra.mxu0 %v4034
    %4358 = vmatprep.subr.mxu0 0.0
    %4359 = vmatpush1.msra.mxu0 %v4035
    %4360 = vmatprep.subr.mxu0 0.0
    %4361 = vmatpush1.msra.mxu0 %v4036
    %4362 = vmatprep.subr.mxu0 0.0
    %4363 = vmatpush1.msra.mxu0 %v4037
    %4364 = vmatprep.subr.mxu0 0.0
    %4365 = vmatpush1.msra.mxu0 %v4038
    %4366 = vmatprep.subr.mxu0 0.0
    %4367 = vmatpush1.msra.mxu0 %v4039
    %4368 = vmatprep.subr.mxu0 0.0
    %4369 = vmatpush1.msra.mxu0 %v4040
    %4370 = vmatprep.subr.mxu0 0.0
    %4371 = vmatpush1.msra.mxu0 %v4041
    %4372 = vmatprep.subr.mxu0 0.0
    %4373 = vmatpush1.msra.mxu0 %v4042
    %4374 = vmatprep.subr.mxu0 0.0
    %4375 = vmatpush1.msra.mxu0 %v4043
    %4376 = vmatprep.subr.mxu0 0.0
    %4377 = vmatpush1.msra.mxu0 %v4044
    %4378 = vmatprep.subr.mxu0 0.0
    %4379 = vmatpush1.msra.mxu0 %v4045
    %4380 = vmatprep.subr.mxu0 0.0
    %4381 = vmatpush1.msra.mxu0 %v4046
    %4382 = vmatprep.subr.mxu0 0.0
    %4383 = vmatpush1.msra.mxu0 %v4047
    %4384 = vmatprep.subr.mxu0 0.0
    %4385 = vmatpush1.msra.mxu0 %v4048
    %4386 = vmatprep.subr.mxu0 0.0
    %4387 = vmatpush1.msra.mxu0 %v4049
    %4388 = vmatprep.mubr.f32.mxu0 %v3957
    %4389 = vmatmul.mubr.f32.gmra.mrb[0].mxu0 %v3956
    %v4390 = vpop.f32.mrb[0].mxu0
    %v4391 = vadd.f32 %v4316, %v4390
    %v4392 = vpop.f32.mrb[0].mxu0
    %4393 = vmatprep.mubr.f32.mxu0 %v3973
    %4394 = vmatmul.mubr.f32.gmra.mrb[0].mxu0 %v3972
    %v4395 = vpop.f32.mrb[0].mxu0
    %v4396 = vadd.f32 %v4321, %v4395
    %v4397 = vpop.f32.mrb[0].mxu0
    %4398 = vdwg.mxu0
    %4399 = vmatprep.subr.mxu0 0.0
    %4400 = vmatpush1.msra.mxu0 %v4050
    %4401 = vmatprep.subr.mxu0 0.0
    %4402 = vmatpush1.msra.mxu0 %v4051
    %4403 = vmatprep.subr.mxu0 0.0
    %4404 = vmatpush1.msra.mxu0 %v4052
    %4405 = vmatprep.subr.mxu0 0.0
    %4406 = vmatpush1.msra.mxu0 %v4053
    %4407 = vmatprep.subr.mxu0 0.0
    %4408 = vmatpush1.msra.mxu0 %v4054
    %4409 = vmatprep.subr.mxu0 0.0
    %4410 = vmatpush1.msra.mxu0 %v4055
    %4411 = vmatprep.subr.mxu0 0.0
    %4412 = vmatpush1.msra.mxu0 %v4056
    %4413 = vmatprep.subr.mxu0 0.0
    %4414 = vmatpush1.msra.mxu0 %v4057
    %4415 = vmatprep.subr.mxu0 0.0
    %4416 = vmatpush1.msra.mxu0 %v4058
    %4417 = vmatprep.subr.mxu0 0.0
    %4418 = vmatpush1.msra.mxu0 %v4059
    %4419 = vmatprep.subr.mxu0 0.0
    %4420 = vmatpush1.msra.mxu0 %v4060
    %4421 = vmatprep.subr.mxu0 0.0
    %4422 = vmatpush1.msra.mxu0 %v4061
    %4423 = vmatprep.subr.mxu0 0.0
    %4424 = vmatpush1.msra.mxu0 %v4062
    %4425 = vmatprep.subr.mxu0 0.0
    %4426 = vmatpush1.msra.mxu0 %v4063
    %4427 = vmatprep.subr.mxu0 0.0
    %4428 = vmatpush1.msra.mxu0 %v4064
    %4429 = vmatprep.subr.mxu0 0.0
    %4430 = vmatpush1.msra.mxu0 %v4065
    %4431 = vmatprep.subr.mxu0 0.0
    %4432 = vmatpush1.msra.mxu0 %v4066
    %4433 = vmatprep.subr.mxu0 0.0
    %4434 = vmatpush1.msra.mxu0 %v4067
    %4435 = vmatprep.subr.mxu0 0.0
    %4436 = vmatpush1.msra.mxu0 %v4068
    %4437 = vmatprep.subr.mxu0 0.0
    %4438 = vmatpush1.msra.mxu0 %v4069
    %4439 = vmatprep.subr.mxu0 0.0
    %4440 = vmatpush1.msra.mxu0 %v4070
    %4441 = vmatprep.subr.mxu0 0.0
    %4442 = vmatpush1.msra.mxu0 %v4071
    %4443 = vmatprep.subr.mxu0 0.0
    %4444 = vmatpush1.msra.mxu0 %v4072
    %4445 = vmatprep.subr.mxu0 0.0
    %4446 = vmatpush1.msra.mxu0 %v4073
    %4447 = vmatprep.subr.mxu0 0.0
    %4448 = vmatpush1.msra.mxu0 %v4074
    %4449 = vmatprep.subr.mxu0 0.0
    %4450 = vmatpush1.msra.mxu0 %v4075
    %4451 = vmatprep.subr.mxu0 0.0
    %4452 = vmatpush1.msra.mxu0 %v4076
    %4453 = vmatprep.subr.mxu0 0.0
    %4454 = vmatpush1.msra.mxu0 %v4077
    %4455 = vmatprep.subr.mxu0 0.0
    %4456 = vmatpush1.msra.mxu0 %v4078
    %4457 = vmatprep.subr.mxu0 0.0
    %4458 = vmatpush1.msra.mxu0 %v4079
    %4459 = vmatprep.subr.mxu0 0.0
    %4460 = vmatpush1.msra.mxu0 %v4080
    %4461 = vmatprep.subr.mxu0 0.0
    %4462 = vmatpush1.msra.mxu0 %v4081
    %4463 = vmatprep.mubr.f32.mxu0 %v3959
    %4464 = vmatmul.mubr.f32.gmra.mrb[0].mxu0 %v3958
    %v4465 = vpop.f32.mrb[0].mxu0
    %v4466 = vadd.f32 %v4391, %v4465
    %v4467 = vpop.f32.mrb[0].mxu0
    %4468 = vmatprep.mubr.f32.mxu0 %v3975
    %4469 = vmatmul.mubr.f32.gmra.mrb[0].mxu0 %v3974
    %v4470 = vpop.f32.mrb[0].mxu0
    %v4471 = vadd.f32 %v4396, %v4470
    %v4472 = vpop.f32.mrb[0].mxu0
    %4473 = vdwg.mxu0
    %4474 = vmatprep.subr.mxu0 0.0
    %4475 = vmatpush1.msra.mxu0 %v4082
    %4476 = vmatprep.subr.mxu0 0.0
    %4477 = vmatpush1.msra.mxu0 %v4083
    %4478 = vmatprep.subr.mxu0 0.0
    %4479 = vmatpush1.msra.mxu0 %v4084
    %4480 = vmatprep.subr.mxu0 0.0
    %4481 = vmatpush1.msra.mxu0 %v4085
    %4482 = vmatprep.subr.mxu0 0.0
    %4483 = vmatpush1.msra.mxu0 %v4086
    %4484 = vmatprep.subr.mxu0 0.0
    %4485 = vmatpush1.msra.mxu0 %v4087
    %4486 = vmatprep.subr.mxu0 0.0
    %4487 = vmatpush1.msra.mxu0 %v4088
    %4488 = vmatprep.subr.mxu0 0.0
    %4489 = vmatpush1.msra.mxu0 %v4089
    %4490 = vmatprep.subr.mxu0 0.0
    %4491 = vmatpush1.msra.mxu0 %v4090
    %4492 = vmatprep.subr.mxu0 0.0
    %4493 = vmatpush1.msra.mxu0 %v4091
    %4494 = vmatprep.subr.mxu0 0.0
    %4495 = vmatpush1.msra.mxu0 %v4092
    %4496 = vmatprep.subr.mxu0 0.0
    %4497 = vmatpush1.msra.mxu0 %v4093
    %4498 = vmatprep.subr.mxu0 0.0
    %4499 = vmatpush1.msra.mxu0 %v4094
    %4500 = vmatprep.subr.mxu0 0.0
    %4501 = vmatpush1.msra.mxu0 %v4095
    %4502 = vmatprep.subr.mxu0 0.0
    %4503 = vmatpush1.msra.mxu0 %v4096
    %4504 = vmatprep.subr.mxu0 0.0
    %4505 = vmatpush1.msra.mxu0 %v4097
    %4506 = vmatprep.subr.mxu0 0.0
    %4507 = vmatpush1.msra.mxu0 %v4098
    %4508 = vmatprep.subr.mxu0 0.0
    %4509 = vmatpush1.msra.mxu0 %v4099
    %4510 = vmatprep.subr.mxu0 0.0
    %4511 = vmatpush1.msra.mxu0 %v4100
    %4512 = vmatprep.subr.mxu0 0.0
    %4513 = vmatpush1.msra.mxu0 %v4101
    %4514 = vmatprep.subr.mxu0 0.0
    %4515 = vmatpush1.msra.mxu0 %v4102
    %4516 = vmatprep.subr.mxu0 0.0
    %4517 = vmatpush1.msra.mxu0 %v4103
    %4518 = vmatprep.subr.mxu0 0.0
    %4519 = vmatpush1.msra.mxu0 %v4104
    %4520 = vmatprep.subr.mxu0 0.0
    %4521 = vmatpush1.msra.mxu0 %v4105
    %4522 = vmatprep.subr.mxu0 0.0
    %4523 = vmatpush1.msra.mxu0 %v4106
    %4524 = vmatprep.subr.mxu0 0.0
    %4525 = vmatpush1.msra.mxu0 %v4107
    %4526 = vmatprep.subr.mxu0 0.0
    %4527 = vmatpush1.msra.mxu0 %v4108
    %4528 = vmatprep.subr.mxu0 0.0
    %4529 = vmatpush1.msra.mxu0 %v4109
    %4530 = vmatprep.subr.mxu0 0.0
    %4531 = vmatpush1.msra.mxu0 %v4110
    %4532 = vmatprep.subr.mxu0 0.0
    %4533 = vmatpush1.msra.mxu0 %v4111
    %4534 = vmatprep.subr.mxu0 0.0
    %4535 = vmatpush1.msra.mxu0 %v4112
    %4536 = vmatprep.subr.mxu0 0.0
    %4537 = vmatpush1.msra.mxu0 %v4113
    %4538 = vmatprep.mubr.f32.mxu0 %v3961
    %4539 = vmatmul.mubr.f32.gmra.mrb[0].mxu0 %v3960
    %v4540 = vpop.f32.mrb[0].mxu0
    %v4541 = vadd.f32 %v4466, %v4540
    %v4542 = vpop.f32.mrb[0].mxu0
    %4543 = vmatprep.mubr.f32.mxu0 %v3977
    %4544 = vmatmul.mubr.f32.gmra.mrb[0].mxu0 %v3976
    %v4545 = vpop.f32.mrb[0].mxu0
    %v4546 = vadd.f32 %v4471, %v4545
    %v4547 = vpop.f32.mrb[0].mxu0
    %4548 = vdwg.mxu0
    %4549 = vmatprep.subr.mxu0 0.0
    %4550 = vmatpush1.msra.mxu0 %v4114
    %4551 = vmatprep.subr.mxu0 0.0
    %4552 = vmatpush1.msra.mxu0 %v4115
    %4553 = vmatprep.subr.mxu0 0.0
    %4554 = vmatpush1.msra.mxu0 %v4116
    %4555 = vmatprep.subr.mxu0 0.0
    %4556 = vmatpush1.msra.mxu0 %v4117
    %4557 = vmatprep.subr.mxu0 0.0
    %4558 = vmatpush1.msra.mxu0 %v4118
    %4559 = vmatprep.subr.mxu0 0.0
    %4560 = vmatpush1.msra.mxu0 %v4119
    %4561 = vmatprep.subr.mxu0 0.0
    %4562 = vmatpush1.msra.mxu0 %v4120
    %4563 = vmatprep.subr.mxu0 0.0
    %4564 = vmatpush1.msra.mxu0 %v4121
    %4565 = vmatprep.subr.mxu0 0.0
    %4566 = vmatpush1.msra.mxu0 %v4122
    %4567 = vmatprep.subr.mxu0 0.0
    %4568 = vmatpush1.msra.mxu0 %v4123
    %4569 = vmatprep.subr.mxu0 0.0
    %4570 = vmatpush1.msra.mxu0 %v4124
    %4571 = vmatprep.subr.mxu0 0.0
    %4572 = vmatpush1.msra.mxu0 %v4125
    %4573 = vmatprep.subr.mxu0 0.0
    %4574 = vmatpush1.msra.mxu0 %v4126
    %4575 = vmatprep.subr.mxu0 0.0
    %4576 = vmatpush1.msra.mxu0 %v4127
    %4577 = vmatprep.subr.mxu0 0.0
    %4578 = vmatpush1.msra.mxu0 %v4128
    %4579 = vmatprep.subr.mxu0 0.0
    %4580 = vmatpush1.msra.mxu0 %v4129
    %4581 = vmatprep.subr.mxu0 0.0
    %4582 = vmatpush1.msra.mxu0 %v4130
    %4583 = vmatprep.subr.mxu0 0.0
    %4584 = vmatpush1.msra.mxu0 %v4131
    %4585 = vmatprep.subr.mxu0 0.0
    %4586 = vmatpush1.msra.mxu0 %v4132
    %4587 = vmatprep.subr.mxu0 0.0
    %4588 = vmatpush1.msra.mxu0 %v4133
    %4589 = vmatprep.subr.mxu0 0.0
    %4590 = vmatpush1.msra.mxu0 %v4134
    %4591 = vmatprep.subr.mxu0 0.0
    %4592 = vmatpush1.msra.mxu0 %v4135
    %4593 = vmatprep.subr.mxu0 0.0
    %4594 = vmatpush1.msra.mxu0 %v4136
    %4595 = vmatprep.subr.mxu0 0.0
    %4596 = vmatpush1.msra.mxu0 %v4137
    %4597 = vmatprep.subr.mxu0 0.0
    %4598 = vmatpush1.msra.mxu0 %v4138
    %4599 = vmatprep.subr.mxu0 0.0
    %4600 = vmatpush1.msra.mxu0 %v4139
    %4601 = vmatprep.subr.mxu0 0.0
    %4602 = vmatpush1.msra.mxu0 %v4140
    %4603 = vmatprep.subr.mxu0 0.0
    %4604 = vmatpush1.msra.mxu0 %v4141
    %4605 = vmatprep.subr.mxu0 0.0
    %4606 = vmatpush1.msra.mxu0 %v4142
    %4607 = vmatprep.subr.mxu0 0.0
    %4608 = vmatpush1.msra.mxu0 %v4143
    %4609 = vmatprep.subr.mxu0 0.0
    %4610 = vmatpush1.msra.mxu0 %v4144
    %4611 = vmatprep.subr.mxu0 0.0
    %4612 = vmatpush1.msra.mxu0 %v4145
    %4613 = vmatprep.mubr.f32.mxu0 %v3963
    %4614 = vmatmul.mubr.f32.gmra.mrb[0].mxu0 %v3962
    %v4615 = vpop.f32.mrb[0].mxu0
    %v4616 = vadd.f32 %v4541, %v4615
    %v4617 = vpop.f32.mrb[0].mxu0
    %4618 = vmatprep.mubr.f32.mxu0 %v3979
    %4619 = vmatmul.mubr.f32.gmra.mrb[0].mxu0 %v3978
    %v4620 = vpop.f32.mrb[0].mxu0
    %v4621 = vadd.f32 %v4546, %v4620
    %v4622 = vpop.f32.mrb[0].mxu0
    %4623 = vdwg.mxu0
    %4624 = vmatprep.subr.mxu0 0.0
    %4625 = vmatpush1.msra.mxu0 %v4146
    %4626 = vmatprep.subr.mxu0 0.0
    %4627 = vmatpush1.msra.mxu0 %v4147
    %4628 = vmatprep.subr.mxu0 0.0
    %4629 = vmatpush1.msra.mxu0 %v4148
    %4630 = vmatprep.subr.mxu0 0.0
    %4631 = vmatpush1.msra.mxu0 %v4149
    %4632 = vmatprep.subr.mxu0 0.0
    %4633 = vmatpush1.msra.mxu0 %v4150
    %4634 = vmatprep.subr.mxu0 0.0
    %4635 = vmatpush1.msra.mxu0 %v4151
    %4636 = vmatprep.subr.mxu0 0.0
    %4637 = vmatpush1.msra.mxu0 %v4152
    %4638 = vmatprep.subr.mxu0 0.0
    %4639 = vmatpush1.msra.mxu0 %v4153
    %4640 = vmatprep.subr.mxu0 0.0
    %4641 = vmatpush1.msra.mxu0 %v4154
    %4642 = vmatprep.subr.mxu0 0.0
    %4643 = vmatpush1.msra.mxu0 %v4155
    %4644 = vmatprep.subr.mxu0 0.0
    %4645 = vmatpush1.msra.mxu0 %v4156
    %4646 = vmatprep.subr.mxu0 0.0
    %4647 = vmatpush1.msra.mxu0 %v4157
    %4648 = vmatprep.subr.mxu0 0.0
    %4649 = vmatpush1.msra.mxu0 %v4158
    %4650 = vmatprep.subr.mxu0 0.0
    %4651 = vmatpush1.msra.mxu0 %v4159
    %4652 = vmatprep.subr.mxu0 0.0
    %4653 = vmatpush1.msra.mxu0 %v4160
    %4654 = vmatprep.subr.mxu0 0.0
    %4655 = vmatpush1.msra.mxu0 %v4161
    %4656 = vmatprep.subr.mxu0 0.0
    %4657 = vmatpush1.msra.mxu0 %v4162
    %4658 = vmatprep.subr.mxu0 0.0
    %4659 = vmatpush1.msra.mxu0 %v4163
    %4660 = vmatprep.subr.mxu0 0.0
    %4661 = vmatpush1.msra.mxu0 %v4164
    %4662 = vmatprep.subr.mxu0 0.0
    %4663 = vmatpush1.msra.mxu0 %v4165
    %4664 = vmatprep.subr.mxu0 0.0
    %4665 = vmatpush1.msra.mxu0 %v4166
    %4666 = vmatprep.subr.mxu0 0.0
    %4667 = vmatpush1.msra.mxu0 %v4167
    %4668 = vmatprep.subr.mxu0 0.0
    %4669 = vmatpush1.msra.mxu0 %v4168
    %4670 = vmatprep.subr.mxu0 0.0
    %4671 = vmatpush1.msra.mxu0 %v4169
    %4672 = vmatprep.subr.mxu0 0.0
    %4673 = vmatpush1.msra.mxu0 %v4170
    %4674 = vmatprep.subr.mxu0 0.0
    %4675 = vmatpush1.msra.mxu0 %v4171
    %4676 = vmatprep.subr.mxu0 0.0
    %4677 = vmatpush1.msra.mxu0 %v4172
    %4678 = vmatprep.subr.mxu0 0.0
    %4679 = vmatpush1.msra.mxu0 %v4173
    %4680 = vmatprep.subr.mxu0 0.0
    %4681 = vmatpush1.msra.mxu0 %v4174
    %4682 = vmatprep.subr.mxu0 0.0
    %4683 = vmatpush1.msra.mxu0 %v4175
    %4684 = vmatprep.subr.mxu0 0.0
    %4685 = vmatpush1.msra.mxu0 %v4176
    %4686 = vmatprep.subr.mxu0 0.0
    %4687 = vmatpush1.msra.mxu0 %v4177
    %4688 = vmatprep.mubr.f32.mxu0 %v3965
    %4689 = vmatmul.mubr.f32.gmra.mrb[0].mxu0 %v3964
    %v4690 = vpop.f32.mrb[0].mxu0
    %v4691 = vadd.f32 %v4616, %v4690
    %v4692 = vpop.f32.mrb[0].mxu0
    %4693 = vmatprep.mubr.f32.mxu0 %v3981
    %4694 = vmatmul.mubr.f32.gmra.mrb[0].mxu0 %v3980
    %v4695 = vpop.f32.mrb[0].mxu0
    %v4696 = vadd.f32 %v4621, %v4695
    %v4697 = vpop.f32.mrb[0].mxu0
    %4698 = vdwg.mxu0
    %4699 = vmatprep.subr.mxu0 0.0
    %4700 = vmatpush1.msra.mxu0 %v4178
    %4701 = vmatprep.subr.mxu0 0.0
    %4702 = vmatpush1.msra.mxu0 %v4179
    %4703 = vmatprep.subr.mxu0 0.0
    %4704 = vmatpush1.msra.mxu0 %v4180
    %4705 = vmatprep.subr.mxu0 0.0
    %4706 = vmatpush1.msra.mxu0 %v4181
    %4707 = vmatprep.subr.mxu0 0.0
    %4708 = vmatpush1.msra.mxu0 %v4182
    %4709 = vmatprep.subr.mxu0 0.0
    %4710 = vmatpush1.msra.mxu0 %v4183
    %4711 = vmatprep.subr.mxu0 0.0
    %4712 = vmatpush1.msra.mxu0 %v4184
    %4713 = vmatprep.subr.mxu0 0.0
    %4714 = vmatpush1.msra.mxu0 %v4185
    %4715 = vmatprep.subr.mxu0 0.0
    %4716 = vmatpush1.msra.mxu0 %v4186
    %4717 = vmatprep.subr.mxu0 0.0
    %4718 = vmatpush1.msra.mxu0 %v4187
    %4719 = vmatprep.subr.mxu0 0.0
    %4720 = vmatpush1.msra.mxu0 %v4188
    %4721 = vmatprep.subr.mxu0 0.0
    %4722 = vmatpush1.msra.mxu0 %v4189
    %4723 = vmatprep.subr.mxu0 0.0
    %4724 = vmatpush1.msra.mxu0 %v4190
    %4725 = vmatprep.subr.mxu0 0.0
    %4726 = vmatpush1.msra.mxu0 %v4191
    %4727 = vmatprep.subr.mxu0 0.0
    %4728 = vmatpush1.msra.mxu0 %v4192
    %4729 = vmatprep.subr.mxu0 0.0
    %4730 = vmatpush1.msra.mxu0 %v4193
    %4731 = vmatprep.subr.mxu0 0.0
    %4732 = vmatpush1.msra.mxu0 %v4194
    %4733 = vmatprep.subr.mxu0 0.0
    %4734 = vmatpush1.msra.mxu0 %v4195
    %4735 = vmatprep.subr.mxu0 0.0
    %4736 = vmatpush1.msra.mxu0 %v4196
    %4737 = vmatprep.subr.mxu0 0.0
    %4738 = vmatpush1.msra.mxu0 %v4197
    %4739 = vmatprep.subr.mxu0 0.0
    %4740 = vmatpush1.msra.mxu0 %v4198
    %4741 = vmatprep.subr.mxu0 0.0
    %4742 = vmatpush1.msra.mxu0 %v4199
    %4743 = vmatprep.subr.mxu0 0.0
    %4744 = vmatpush1.msra.mxu0 %v4200
    %4745 = vmatprep.subr.mxu0 0.0
    %4746 = vmatpush1.msra.mxu0 %v4201
    %4747 = vmatprep.subr.mxu0 0.0
    %4748 = vmatpush1.msra.mxu0 %v4202
    %4749 = vmatprep.subr.mxu0 0.0
    %4750 = vmatpush1.msra.mxu0 %v4203
    %4751 = vmatprep.subr.mxu0 0.0
    %4752 = vmatpush1.msra.mxu0 %v4204
    %4753 = vmatprep.subr.mxu0 0.0
    %4754 = vmatpush1.msra.mxu0 %v4205
    %4755 = vmatprep.subr.mxu0 0.0
    %4756 = vmatpush1.msra.mxu0 %v4206
    %4757 = vmatprep.subr.mxu0 0.0
    %4758 = vmatpush1.msra.mxu0 %v4207
    %4759 = vmatprep.subr.mxu0 0.0
    %4760 = vmatpush1.msra.mxu0 %v4208
    %4761 = vmatprep.subr.mxu0 0.0
    %4762 = vmatpush1.msra.mxu0 %v4209
    %4763 = vmatprep.mubr.f32.mxu0 %v3967
    %4764 = vmatmul.mubr.f32.gmra.mrb[0].mxu0 %v3966
    %v4765 = vpop.f32.mrb[0].mxu0
    %v4766 = vadd.f32 %v4691, %v4765
    %v4767 = vpop.f32.mrb[0].mxu0
    %4768 = vmatprep.mubr.f32.mxu0 %v3983
    %4769 = vmatmul.mubr.f32.gmra.mrb[0].mxu0 %v3982
    %v4770 = vpop.f32.mrb[0].mxu0
    %v4771 = vadd.f32 %v4696, %v4770
    %v4772 = vpop.f32.mrb[0].mxu0
    %4773 = vdwg.mxu0
    %4774 = vmatprep.subr.mxu0 0.0
    %4775 = vmatpush1.msra.mxu0 %v4210
    %4776 = vmatprep.subr.mxu0 0.0
    %4777 = vmatpush1.msra.mxu0 %v4211
    %4778 = vmatprep.subr.mxu0 0.0
    %4779 = vmatpush1.msra.mxu0 %v4212
    %4780 = vmatprep.subr.mxu0 0.0
    %4781 = vmatpush1.msra.mxu0 %v4213
    %4782 = vmatprep.subr.mxu0 0.0
    %4783 = vmatpush1.msra.mxu0 %v4214
    %4784 = vmatprep.subr.mxu0 0.0
    %4785 = vmatpush1.msra.mxu0 %v4215
    %4786 = vmatprep.subr.mxu0 0.0
    %4787 = vmatpush1.msra.mxu0 %v4216
    %4788 = vmatprep.subr.mxu0 0.0
    %4789 = vmatpush1.msra.mxu0 %v4217
    %4790 = vmatprep.subr.mxu0 0.0
    %4791 = vmatpush1.msra.mxu0 %v4218
    %4792 = vmatprep.subr.mxu0 0.0
    %4793 = vmatpush1.msra.mxu0 %v4219
    %4794 = vmatprep.subr.mxu0 0.0
    %4795 = vmatpush1.msra.mxu0 %v4220
    %4796 = vmatprep.subr.mxu0 0.0
    %4797 = vmatpush1.msra.mxu0 %v4221
    %4798 = vmatprep.subr.mxu0 0.0
    %4799 = vmatpush1.msra.mxu0 %v4222
    %4800 = vmatprep.subr.mxu0 0.0
    %4801 = vmatpush1.msra.mxu0 %v4223
    %4802 = vmatprep.subr.mxu0 0.0
    %4803 = vmatpush1.msra.mxu0 %v4224
    %4804 = vmatprep.subr.mxu0 0.0
    %4805 = vmatpush1.msra.mxu0 %v4225
    %4806 = vmatprep.subr.mxu0 0.0
    %4807 = vmatpush1.msra.mxu0 %v4226
    %4808 = vmatprep.subr.mxu0 0.0
    %4809 = vmatpush1.msra.mxu0 %v4227
    %4810 = vmatprep.subr.mxu0 0.0
    %4811 = vmatpush1.msra.mxu0 %v4228
    %4812 = vmatprep.subr.mxu0 0.0
    %4813 = vmatpush1.msra.mxu0 %v4229
    %4814 = vmatprep.subr.mxu0 0.0
    %4815 = vmatpush1.msra.mxu0 %v4230
    %4816 = vmatprep.subr.mxu0 0.0
    %4817 = vmatpush1.msra.mxu0 %v4231
    %4818 = vmatprep.subr.mxu0 0.0
    %4819 = vmatpush1.msra.mxu0 %v4232
    %4820 = vmatprep.subr.mxu0 0.0
    %4821 = vmatpush1.msra.mxu0 %v4233
    %4822 = vmatprep.subr.mxu0 0.0
    %4823 = vmatpush1.msra.mxu0 %v4234
    %4824 = vmatprep.subr.mxu0 0.0
    %4825 = vmatpush1.msra.mxu0 %v4235
    %4826 = vmatprep.subr.mxu0 0.0
    %4827 = vmatpush1.msra.mxu0 %v4236
    %4828 = vmatprep.subr.mxu0 0.0
    %4829 = vmatpush1.msra.mxu0 %v4237
    %4830 = vmatprep.subr.mxu0 0.0
    %4831 = vmatpush1.msra.mxu0 %v4238
    %4832 = vmatprep.subr.mxu0 0.0
    %4833 = vmatpush1.msra.mxu0 %v4239
    %4834 = vmatprep.subr.mxu0 0.0
    %4835 = vmatpush1.msra.mxu0 %v4240
    %4836 = vmatprep.subr.mxu0 0.0
    %4837 = vmatpush1.msra.mxu0 %v4241
    %4838 = vmatprep.mubr.f32.mxu0 %v3969
    %4839 = vmatmul.mubr.f32.gmra.mrb[0].mxu0 %v3968
    %v4840 = vpop.f32.mrb[0].mxu0
    %v4841 = vadd.f32 %v4766, %v4840
    %v4842 = vpop.f32.mrb[0].mxu0
    %4843 = vmatprep.mubr.f32.mxu0 %v3985
    %4844 = vmatmul.mubr.f32.gmra.mrb[0].mxu0 %v3984
    %v4845 = vpop.f32.mrb[0].mxu0
    %v4846 = vadd.f32 %v4771, %v4845
    %v4847 = vpop.f32.mrb[0].mxu0
    %4848 = vdwg.mxu0
    %v4849 = vadd.f32 %v3182, %v4841
    %v4850 = vadd.f32 %v3183, %v4846
    %v4851 = vld [vmem:[%s18] sm:$0x1]
    %v4852 = vld [vmem:[%s19] sm:$0x1]
    %v4853 = vsel %vm183, %v4849, 0.0
    %4854 = vadd.xlane.f32.xlu0 %v4853
    %v4855 = vpop.xlane.xlu0 %4854
    %v4856 = vsel %vm183, %v4850, 0.0
    %4857 = vadd.xlane.f32.xlu0 %v4856
    %v4858 = vpop.xlane.xlu0 %4857
    %v4859 = vmul.f32 %v4855, %v3147
    %v4860 = vmul.f32 %v4858, %v3147
    %v4861 = vsub.f32 %v4849, %v4859
    %v4862 = vsub.f32 %v4850, %v4860
    %v4863 = vmul.f32 %v4861, %v4861
    %v4864 = vmul.f32 %v4862, %v4862
    %v4865 = vsel %vm183, %v4863, 0.0
    %4866 = vadd.xlane.f32.xlu0 %v4865
    %v4867 = vpop.xlane.xlu0 %4866
    %v4868 = vsel %vm183, %v4864, 0.0
    %4869 = vadd.xlane.f32.xlu0 %v4868
    %v4870 = vpop.xlane.xlu0 %4869
    %v4871 = vmul.f32 %v4867, %v3147
    %v4872 = vmul.f32 %v4870, %v3147
    %v4873 = vadd.f32 %v4871, 1e-05
    %v4874 = vadd.f32 %v4872, 1e-05
    %v4875 = vrsqrt.pop %v4873
    %v4876 = vrsqrt.pop %v4874
    %v4877 = vmul.f32 %v4861, %v4875
    %v4878 = vmul.f32 %v4862, %v4876
    %v4880 = vlaneseq
    %v4881 = vshrl.u32 %v4880, 7
    %v4882 = vsub.s32 0, %v4881
    %v4883 = vrot.slane %v4851, %v4882
    %v4885 = vmul.f32 %v4877, %v4883
    %v4886 = vmul.f32 %v4878, %v4883
    %v4888 = vlaneseq
    %v4889 = vshrl.u32 %v4888, 7
    %v4890 = vsub.s32 0, %v4889
    %v4891 = vrot.slane %v4852, %v4890
    %v4893 = vadd.f32 %v4885, %v4891
    %v4894 = vadd.f32 %v4886, %v4891
    %s4895 = scalar_lea.vmem %s4, 128
    %v4896 = vld [vmem:[%s4895] sm:$0xff]
    %v4897 = vld [vmem:[%s4895 + $0x8] sm:$0xff]
    %v4898 = vld [vmem:[%s4895 + $0x10] sm:$0xff]
    %v4899 = vld [vmem:[%s4895 + $0x18] sm:$0xff]
    %s4900 = scalar_lea.vmem %s7, 4
    %v4901 = vld [vmem:[%s4900] sm:$0x1]
    %v4903 = vlaneseq
    %v4904 = vshrl.u32 %v4903, 7
    %v4905 = vsub.s32 0, %v4904
    %v4906 = vrot.slane %v4901, %v4905
    %v4909 = vsel %vm183, %v4893, 0
    %v4912 = vsel %vm183, %v4894, 0
    %4914 = vmatprep.subr.mxu0 0.0
    %4915 = vmatpush1.msra.mxu0 %v4896
    %4916 = vmatprep.subr.mxu0 0.0
    %4917 = vmatpush1.msra.mxu0 %v4897
    %4918 = vmatprep.subr.mxu0 0.0
    %4919 = vmatpush1.msra.mxu0 %v4898
    %4920 = vmatprep.subr.mxu0 0.0
    %4921 = vmatpush1.msra.mxu0 %v4899
    %4922 = vmatprep.subr.mxu0 0.0
    %4923 = vmatpush1.msra.mxu0 0.0
    %4924 = vmatprep.subr.mxu0 0.0
    %4925 = vmatpush1.msra.mxu0 0.0
    %4926 = vmatprep.subr.mxu0 0.0
    %4927 = vmatpush1.msra.mxu0 0.0
    %4928 = vmatprep.subr.mxu0 0.0
    %4929 = vmatpush1.msra.mxu0 0.0
    %4930 = vmatprep.subr.mxu0 0.0
    %4931 = vmatpush1.msra.mxu0 0.0
    %4932 = vmatprep.subr.mxu0 0.0
    %4933 = vmatpush1.msra.mxu0 0.0
    %4934 = vmatprep.subr.mxu0 0.0
    %4935 = vmatpush1.msra.mxu0 0.0
    %4936 = vmatprep.subr.mxu0 0.0
    %4937 = vmatpush1.msra.mxu0 0.0
    %4938 = vmatprep.subr.mxu0 0.0
    %4939 = vmatpush1.msra.mxu0 0.0
    %4940 = vmatprep.subr.mxu0 0.0
    %4941 = vmatpush1.msra.mxu0 0.0
    %4942 = vmatprep.subr.mxu0 0.0
    %4943 = vmatpush1.msra.mxu0 0.0
    %4944 = vmatprep.subr.mxu0 0.0
    %4945 = vmatpush1.msra.mxu0 0.0
    %4946 = vmatprep.subr.mxu0 0.0
    %4947 = vmatpush1.msra.mxu0 0.0
    %4948 = vmatprep.subr.mxu0 0.0
    %4949 = vmatpush1.msra.mxu0 0.0
    %4950 = vmatprep.subr.mxu0 0.0
    %4951 = vmatpush1.msra.mxu0 0.0
    %4952 = vmatprep.subr.mxu0 0.0
    %4953 = vmatpush1.msra.mxu0 0.0
    %4954 = vmatprep.subr.mxu0 0.0
    %4955 = vmatpush1.msra.mxu0 0.0
    %4956 = vmatprep.subr.mxu0 0.0
    %4957 = vmatpush1.msra.mxu0 0.0
    %4958 = vmatprep.subr.mxu0 0.0
    %4959 = vmatpush1.msra.mxu0 0.0
    %4960 = vmatprep.subr.mxu0 0.0
    %4961 = vmatpush1.msra.mxu0 0.0
    %4962 = vmatprep.subr.mxu0 0.0
    %4963 = vmatpush1.msra.mxu0 0.0
    %4964 = vmatprep.subr.mxu0 0.0
    %4965 = vmatpush1.msra.mxu0 0.0
    %4966 = vmatprep.subr.mxu0 0.0
    %4967 = vmatpush1.msra.mxu0 0.0
    %4968 = vmatprep.subr.mxu0 0.0
    %4969 = vmatpush1.msra.mxu0 0.0
    %4970 = vmatprep.subr.mxu0 0.0
    %4971 = vmatpush1.msra.mxu0 0.0
    %4972 = vmatprep.subr.mxu0 0.0
    %4973 = vmatpush1.msra.mxu0 0.0
    %4974 = vmatprep.subr.mxu0 0.0
    %4975 = vmatpush1.msra.mxu0 0.0
    %4976 = vmatprep.subr.mxu0 0.0
    %4977 = vmatpush1.msra.mxu0 0.0
    %4978 = vmatprep.mubr.f32.mxu0 0.0
    %4979 = vmatmul.mubr.f32.gmra.mrb[0].mxu0 %v4909
    %v4980 = vpop.f32.mrb[0].mxu0
    %v4981 = vadd.f32 %v4906, %v4980
    %v4982 = vpop.f32.mrb[0].mxu0
    %4983 = vmatprep.mubr.f32.mxu0 0.0
    %4984 = vmatmul.mubr.f32.gmra.mrb[0].mxu0 %v4912
    %v4985 = vpop.f32.mrb[0].mxu0
    %v4986 = vadd.f32 %v4906, %v4985
    %v4987 = vpop.f32.mrb[0].mxu0
    %4988 = vdwg.mxu0
    %s4989 = scalar_lea.vmem %s5, 128
    %v4990 = vld [vmem:[%s4989] sm:$0xff]
    %v4991 = vld [vmem:[%s4989 + $0x8] sm:$0xff]
    %v4992 = vld [vmem:[%s4989 + $0x10] sm:$0xff]
    %v4993 = vld [vmem:[%s4989 + $0x18] sm:$0xff]
    %s4994 = scalar_lea.vmem %s8, 4
    %v4995 = vld [vmem:[%s4994] sm:$0x1]
    %v4997 = vlaneseq
    %v4998 = vshrl.u32 %v4997, 7
    %v4999 = vsub.s32 0, %v4998
    %v5000 = vrot.slane %v4995, %v4999
    %5002 = vmatprep.subr.mxu0 0.0
    %5003 = vmatpush1.msra.mxu0 %v4990
    %5004 = vmatprep.subr.mxu0 0.0
    %5005 = vmatpush1.msra.mxu0 %v4991
    %5006 = vmatprep.subr.mxu0 0.0
    %5007 = vmatpush1.msra.mxu0 %v4992
    %5008 = vmatprep.subr.mxu0 0.0
    %5009 = vmatpush1.msra.mxu0 %v4993
    %5010 = vmatprep.subr.mxu0 0.0
    %5011 = vmatpush1.msra.mxu0 0.0
    %5012 = vmatprep.subr.mxu0 0.0
    %5013 = vmatpush1.msra.mxu0 0.0
    %5014 = vmatprep.subr.mxu0 0.0
    %5015 = vmatpush1.msra.mxu0 0.0
    %5016 = vmatprep.subr.mxu0 0.0
    %5017 = vmatpush1.msra.mxu0 0.0
    %5018 = vmatprep.subr.mxu0 0.0
    %5019 = vmatpush1.msra.mxu0 0.0
    %5020 = vmatprep.subr.mxu0 0.0
    %5021 = vmatpush1.msra.mxu0 0.0
    %5022 = vmatprep.subr.mxu0 0.0
    %5023 = vmatpush1.msra.mxu0 0.0
    %5024 = vmatprep.subr.mxu0 0.0
    %5025 = vmatpush1.msra.mxu0 0.0
    %5026 = vmatprep.subr.mxu0 0.0
    %5027 = vmatpush1.msra.mxu0 0.0
    %5028 = vmatprep.subr.mxu0 0.0
    %5029 = vmatpush1.msra.mxu0 0.0
    %5030 = vmatprep.subr.mxu0 0.0
    %5031 = vmatpush1.msra.mxu0 0.0
    %5032 = vmatprep.subr.mxu0 0.0
    %5033 = vmatpush1.msra.mxu0 0.0
    %5034 = vmatprep.subr.mxu0 0.0
    %5035 = vmatpush1.msra.mxu0 0.0
    %5036 = vmatprep.subr.mxu0 0.0
    %5037 = vmatpush1.msra.mxu0 0.0
    %5038 = vmatprep.subr.mxu0 0.0
    %5039 = vmatpush1.msra.mxu0 0.0
    %5040 = vmatprep.subr.mxu0 0.0
    %5041 = vmatpush1.msra.mxu0 0.0
    %5042 = vmatprep.subr.mxu0 0.0
    %5043 = vmatpush1.msra.mxu0 0.0
    %5044 = vmatprep.subr.mxu0 0.0
    %5045 = vmatpush1.msra.mxu0 0.0
    %5046 = vmatprep.subr.mxu0 0.0
    %5047 = vmatpush1.msra.mxu0 0.0
    %5048 = vmatprep.subr.mxu0 0.0
    %5049 = vmatpush1.msra.mxu0 0.0
    %5050 = vmatprep.subr.mxu0 0.0
    %5051 = vmatpush1.msra.mxu0 0.0
    %5052 = vmatprep.subr.mxu0 0.0
    %5053 = vmatpush1.msra.mxu0 0.0
    %5054 = vmatprep.subr.mxu0 0.0
    %5055 = vmatpush1.msra.mxu0 0.0
    %5056 = vmatprep.subr.mxu0 0.0
    %5057 = vmatpush1.msra.mxu0 0.0
    %5058 = vmatprep.subr.mxu0 0.0
    %5059 = vmatpush1.msra.mxu0 0.0
    %5060 = vmatprep.subr.mxu0 0.0
    %5061 = vmatpush1.msra.mxu0 0.0
    %5062 = vmatprep.subr.mxu0 0.0
    %5063 = vmatpush1.msra.mxu0 0.0
    %5064 = vmatprep.subr.mxu0 0.0
    %5065 = vmatpush1.msra.mxu0 0.0
    %5066 = vmatprep.mubr.f32.mxu0 0.0
    %5067 = vmatmul.mubr.f32.gmra.mrb[0].mxu0 %v4909
    %v5068 = vpop.f32.mrb[0].mxu0
    %v5069 = vadd.f32 %v5000, %v5068
    %v5070 = vpop.f32.mrb[0].mxu0
    %5071 = vmatprep.mubr.f32.mxu0 0.0
    %5072 = vmatmul.mubr.f32.gmra.mrb[0].mxu0 %v4912
    %v5073 = vpop.f32.mrb[0].mxu0
    %v5074 = vadd.f32 %v5000, %v5073
    %v5075 = vpop.f32.mrb[0].mxu0
    %5076 = vdwg.mxu0
    %s5077 = scalar_lea.vmem %s6, 128
    %v5078 = vld [vmem:[%s5077] sm:$0xff]
    %v5079 = vld [vmem:[%s5077 + $0x8] sm:$0xff]
    %v5080 = vld [vmem:[%s5077 + $0x10] sm:$0xff]
    %v5081 = vld [vmem:[%s5077 + $0x18] sm:$0xff]
    %s5082 = scalar_lea.vmem %s9, 4
    %v5083 = vld [vmem:[%s5082] sm:$0x1]
    %v5085 = vlaneseq
    %v5086 = vshrl.u32 %v5085, 7
    %v5087 = vsub.s32 0, %v5086
    %v5088 = vrot.slane %v5083, %v5087
    %5090 = vmatprep.subr.mxu0 0.0
    %5091 = vmatpush1.msra.mxu0 %v5078
    %5092 = vmatprep.subr.mxu0 0.0
    %5093 = vmatpush1.msra.mxu0 %v5079
    %5094 = vmatprep.subr.mxu0 0.0
    %5095 = vmatpush1.msra.mxu0 %v5080
    %5096 = vmatprep.subr.mxu0 0.0
    %5097 = vmatpush1.msra.mxu0 %v5081
    %5098 = vmatprep.subr.mxu0 0.0
    %5099 = vmatpush1.msra.mxu0 0.0
    %5100 = vmatprep.subr.mxu0 0.0
    %5101 = vmatpush1.msra.mxu0 0.0
    %5102 = vmatprep.subr.mxu0 0.0
    %5103 = vmatpush1.msra.mxu0 0.0
    %5104 = vmatprep.subr.mxu0 0.0
    %5105 = vmatpush1.msra.mxu0 0.0
    %5106 = vmatprep.subr.mxu0 0.0
    %5107 = vmatpush1.msra.mxu0 0.0
    %5108 = vmatprep.subr.mxu0 0.0
    %5109 = vmatpush1.msra.mxu0 0.0
    %5110 = vmatprep.subr.mxu0 0.0
    %5111 = vmatpush1.msra.mxu0 0.0
    %5112 = vmatprep.subr.mxu0 0.0
    %5113 = vmatpush1.msra.mxu0 0.0
    %5114 = vmatprep.subr.mxu0 0.0
    %5115 = vmatpush1.msra.mxu0 0.0
    %5116 = vmatprep.subr.mxu0 0.0
    %5117 = vmatpush1.msra.mxu0 0.0
    %5118 = vmatprep.subr.mxu0 0.0
    %5119 = vmatpush1.msra.mxu0 0.0
    %5120 = vmatprep.subr.mxu0 0.0
    %5121 = vmatpush1.msra.mxu0 0.0
    %5122 = vmatprep.subr.mxu0 0.0
    %5123 = vmatpush1.msra.mxu0 0.0
    %5124 = vmatprep.subr.mxu0 0.0
    %5125 = vmatpush1.msra.mxu0 0.0
    %5126 = vmatprep.subr.mxu0 0.0
    %5127 = vmatpush1.msra.mxu0 0.0
    %5128 = vmatprep.subr.mxu0 0.0
    %5129 = vmatpush1.msra.mxu0 0.0
    %5130 = vmatprep.subr.mxu0 0.0
    %5131 = vmatpush1.msra.mxu0 0.0
    %5132 = vmatprep.subr.mxu0 0.0
    %5133 = vmatpush1.msra.mxu0 0.0
    %5134 = vmatprep.subr.mxu0 0.0
    %5135 = vmatpush1.msra.mxu0 0.0
    %5136 = vmatprep.subr.mxu0 0.0
    %5137 = vmatpush1.msra.mxu0 0.0
    %5138 = vmatprep.subr.mxu0 0.0
    %5139 = vmatpush1.msra.mxu0 0.0
    %5140 = vmatprep.subr.mxu0 0.0
    %5141 = vmatpush1.msra.mxu0 0.0
    %5142 = vmatprep.subr.mxu0 0.0
    %5143 = vmatpush1.msra.mxu0 0.0
    %5144 = vmatprep.subr.mxu0 0.0
    %5145 = vmatpush1.msra.mxu0 0.0
    %5146 = vmatprep.subr.mxu0 0.0
    %5147 = vmatpush1.msra.mxu0 0.0
    %5148 = vmatprep.subr.mxu0 0.0
    %5149 = vmatpush1.msra.mxu0 0.0
    %5150 = vmatprep.subr.mxu0 0.0
    %5151 = vmatpush1.msra.mxu0 0.0
    %5152 = vmatprep.subr.mxu0 0.0
    %5153 = vmatpush1.msra.mxu0 0.0
    %5154 = vmatprep.mubr.f32.mxu0 0.0
    %5155 = vmatmul.mubr.f32.gmra.mrb[0].mxu0 %v4909
    %v5156 = vpop.f32.mrb[0].mxu0
    %v5157 = vadd.f32 %v5088, %v5156
    %v5158 = vpop.f32.mrb[0].mxu0
    %5159 = vmatprep.mubr.f32.mxu0 0.0
    %5160 = vmatmul.mubr.f32.gmra.mrb[0].mxu0 %v4912
    %v5161 = vpop.f32.mrb[0].mxu0
    %v5162 = vadd.f32 %v5088, %v5161
    %v5163 = vpop.f32.mrb[0].mxu0
    %5164 = vdwg.mxu0
    %s5165 = scalar_lea.vmem %s4, 160
    %v5166 = vld [vmem:[%s5165] sm:$0xff]
    %v5167 = vld [vmem:[%s5165 + $0x8] sm:$0xff]
    %v5168 = vld [vmem:[%s5165 + $0x10] sm:$0xff]
    %v5169 = vld [vmem:[%s5165 + $0x18] sm:$0xff]
    %s5170 = scalar_lea.vmem %s7, 5
    %v5171 = vld [vmem:[%s5170] sm:$0x1]
    %v5173 = vlaneseq
    %v5174 = vshrl.u32 %v5173, 7
    %v5175 = vsub.s32 0, %v5174
    %v5176 = vrot.slane %v5171, %v5175
    %5178 = vmatprep.subr.mxu0 0.0
    %5179 = vmatpush1.msra.mxu0 %v5166
    %5180 = vmatprep.subr.mxu0 0.0
    %5181 = vmatpush1.msra.mxu0 %v5167
    %5182 = vmatprep.subr.mxu0 0.0
    %5183 = vmatpush1.msra.mxu0 %v5168
    %5184 = vmatprep.subr.mxu0 0.0
    %5185 = vmatpush1.msra.mxu0 %v5169
    %5186 = vmatprep.subr.mxu0 0.0
    %5187 = vmatpush1.msra.mxu0 0.0
    %5188 = vmatprep.subr.mxu0 0.0
    %5189 = vmatpush1.msra.mxu0 0.0
    %5190 = vmatprep.subr.mxu0 0.0
    %5191 = vmatpush1.msra.mxu0 0.0
    %5192 = vmatprep.subr.mxu0 0.0
    %5193 = vmatpush1.msra.mxu0 0.0
    %5194 = vmatprep.subr.mxu0 0.0
    %5195 = vmatpush1.msra.mxu0 0.0
    %5196 = vmatprep.subr.mxu0 0.0
    %5197 = vmatpush1.msra.mxu0 0.0
    %5198 = vmatprep.subr.mxu0 0.0
    %5199 = vmatpush1.msra.mxu0 0.0
    %5200 = vmatprep.subr.mxu0 0.0
    %5201 = vmatpush1.msra.mxu0 0.0
    %5202 = vmatprep.subr.mxu0 0.0
    %5203 = vmatpush1.msra.mxu0 0.0
    %5204 = vmatprep.subr.mxu0 0.0
    %5205 = vmatpush1.msra.mxu0 0.0
    %5206 = vmatprep.subr.mxu0 0.0
    %5207 = vmatpush1.msra.mxu0 0.0
    %5208 = vmatprep.subr.mxu0 0.0
    %5209 = vmatpush1.msra.mxu0 0.0
    %5210 = vmatprep.subr.mxu0 0.0
    %5211 = vmatpush1.msra.mxu0 0.0
    %5212 = vmatprep.subr.mxu0 0.0
    %5213 = vmatpush1.msra.mxu0 0.0
    %5214 = vmatprep.subr.mxu0 0.0
    %5215 = vmatpush1.msra.mxu0 0.0
    %5216 = vmatprep.subr.mxu0 0.0
    %5217 = vmatpush1.msra.mxu0 0.0
    %5218 = vmatprep.subr.mxu0 0.0
    %5219 = vmatpush1.msra.mxu0 0.0
    %5220 = vmatprep.subr.mxu0 0.0
    %5221 = vmatpush1.msra.mxu0 0.0
    %5222 = vmatprep.subr.mxu0 0.0
    %5223 = vmatpush1.msra.mxu0 0.0
    %5224 = vmatprep.subr.mxu0 0.0
    %5225 = vmatpush1.msra.mxu0 0.0
    %5226 = vmatprep.subr.mxu0 0.0
    %5227 = vmatpush1.msra.mxu0 0.0
    %5228 = vmatprep.subr.mxu0 0.0
    %5229 = vmatpush1.msra.mxu0 0.0
    %5230 = vmatprep.subr.mxu0 0.0
    %5231 = vmatpush1.msra.mxu0 0.0
    %5232 = vmatprep.subr.mxu0 0.0
    %5233 = vmatpush1.msra.mxu0 0.0
    %5234 = vmatprep.subr.mxu0 0.0
    %5235 = vmatpush1.msra.mxu0 0.0
    %5236 = vmatprep.subr.mxu0 0.0
    %5237 = vmatpush1.msra.mxu0 0.0
    %5238 = vmatprep.subr.mxu0 0.0
    %5239 = vmatpush1.msra.mxu0 0.0
    %5240 = vmatprep.subr.mxu0 0.0
    %5241 = vmatpush1.msra.mxu0 0.0
    %5242 = vmatprep.mubr.f32.mxu0 0.0
    %5243 = vmatmul.mubr.f32.gmra.mrb[0].mxu0 %v4909
    %v5244 = vpop.f32.mrb[0].mxu0
    %v5245 = vadd.f32 %v5176, %v5244
    %v5246 = vpop.f32.mrb[0].mxu0
    %5247 = vmatprep.mubr.f32.mxu0 0.0
    %5248 = vmatmul.mubr.f32.gmra.mrb[0].mxu0 %v4912
    %v5249 = vpop.f32.mrb[0].mxu0
    %v5250 = vadd.f32 %v5176, %v5249
    %v5251 = vpop.f32.mrb[0].mxu0
    %5252 = vdwg.mxu0
    %s5253 = scalar_lea.vmem %s5, 160
    %v5254 = vld [vmem:[%s5253] sm:$0xff]
    %v5255 = vld [vmem:[%s5253 + $0x8] sm:$0xff]
    %v5256 = vld [vmem:[%s5253 + $0x10] sm:$0xff]
    %v5257 = vld [vmem:[%s5253 + $0x18] sm:$0xff]
    %s5258 = scalar_lea.vmem %s8, 5
    %v5259 = vld [vmem:[%s5258] sm:$0x1]
    %v5261 = vlaneseq
    %v5262 = vshrl.u32 %v5261, 7
    %v5263 = vsub.s32 0, %v5262
    %v5264 = vrot.slane %v5259, %v5263
    %5266 = vmatprep.subr.mxu0 0.0
    %5267 = vmatpush1.msra.mxu0 %v5254
    %5268 = vmatprep.subr.mxu0 0.0
    %5269 = vmatpush1.msra.mxu0 %v5255
    %5270 = vmatprep.subr.mxu0 0.0
    %5271 = vmatpush1.msra.mxu0 %v5256
    %5272 = vmatprep.subr.mxu0 0.0
    %5273 = vmatpush1.msra.mxu0 %v5257
    %5274 = vmatprep.subr.mxu0 0.0
    %5275 = vmatpush1.msra.mxu0 0.0
    %5276 = vmatprep.subr.mxu0 0.0
    %5277 = vmatpush1.msra.mxu0 0.0
    %5278 = vmatprep.subr.mxu0 0.0
    %5279 = vmatpush1.msra.mxu0 0.0
    %5280 = vmatprep.subr.mxu0 0.0
    %5281 = vmatpush1.msra.mxu0 0.0
    %5282 = vmatprep.subr.mxu0 0.0
    %5283 = vmatpush1.msra.mxu0 0.0
    %5284 = vmatprep.subr.mxu0 0.0
    %5285 = vmatpush1.msra.mxu0 0.0
    %5286 = vmatprep.subr.mxu0 0.0
    %5287 = vmatpush1.msra.mxu0 0.0
    %5288 = vmatprep.subr.mxu0 0.0
    %5289 = vmatpush1.msra.mxu0 0.0
    %5290 = vmatprep.subr.mxu0 0.0
    %5291 = vmatpush1.msra.mxu0 0.0
    %5292 = vmatprep.subr.mxu0 0.0
    %5293 = vmatpush1.msra.mxu0 0.0
    %5294 = vmatprep.subr.mxu0 0.0
    %5295 = vmatpush1.msra.mxu0 0.0
    %5296 = vmatprep.subr.mxu0 0.0
    %5297 = vmatpush1.msra.mxu0 0.0
    %5298 = vmatprep.subr.mxu0 0.0
    %5299 = vmatpush1.msra.mxu0 0.0
    %5300 = vmatprep.subr.mxu0 0.0
    %5301 = vmatpush1.msra.mxu0 0.0
    %5302 = vmatprep.subr.mxu0 0.0
    %5303 = vmatpush1.msra.mxu0 0.0
    %5304 = vmatprep.subr.mxu0 0.0
    %5305 = vmatpush1.msra.mxu0 0.0
    %5306 = vmatprep.subr.mxu0 0.0
    %5307 = vmatpush1.msra.mxu0 0.0
    %5308 = vmatprep.subr.mxu0 0.0
    %5309 = vmatpush1.msra.mxu0 0.0
    %5310 = vmatprep.subr.mxu0 0.0
    %5311 = vmatpush1.msra.mxu0 0.0
    %5312 = vmatprep.subr.mxu0 0.0
    %5313 = vmatpush1.msra.mxu0 0.0
    %5314 = vmatprep.subr.mxu0 0.0
    %5315 = vmatpush1.msra.mxu0 0.0
    %5316 = vmatprep.subr.mxu0 0.0
    %5317 = vmatpush1.msra.mxu0 0.0
    %5318 = vmatprep.subr.mxu0 0.0
    %5319 = vmatpush1.msra.mxu0 0.0
    %5320 = vmatprep.subr.mxu0 0.0
    %5321 = vmatpush1.msra.mxu0 0.0
    %5322 = vmatprep.subr.mxu0 0.0
    %5323 = vmatpush1.msra.mxu0 0.0
    %5324 = vmatprep.subr.mxu0 0.0
    %5325 = vmatpush1.msra.mxu0 0.0
    %5326 = vmatprep.subr.mxu0 0.0
    %5327 = vmatpush1.msra.mxu0 0.0
    %5328 = vmatprep.subr.mxu0 0.0
    %5329 = vmatpush1.msra.mxu0 0.0
    %5330 = vmatprep.mubr.f32.mxu0 0.0
    %5331 = vmatmul.mubr.f32.gmra.mrb[0].mxu0 %v4909
    %v5332 = vpop.f32.mrb[0].mxu0
    %v5333 = vadd.f32 %v5264, %v5332
    %v5334 = vpop.f32.mrb[0].mxu0
    %5335 = vmatprep.mubr.f32.mxu0 0.0
    %5336 = vmatmul.mubr.f32.gmra.mrb[0].mxu0 %v4912
    %v5337 = vpop.f32.mrb[0].mxu0
    %v5338 = vadd.f32 %v5264, %v5337
    %v5339 = vpop.f32.mrb[0].mxu0
    %5340 = vdwg.mxu0
    %s5341 = scalar_lea.vmem %s6, 160
    %v5342 = vld [vmem:[%s5341] sm:$0xff]
    %v5343 = vld [vmem:[%s5341 + $0x8] sm:$0xff]
    %v5344 = vld [vmem:[%s5341 + $0x10] sm:$0xff]
    %v5345 = vld [vmem:[%s5341 + $0x18] sm:$0xff]
    %s5346 = scalar_lea.vmem %s9, 5
    %v5347 = vld [vmem:[%s5346] sm:$0x1]
    %v5349 = vlaneseq
    %v5350 = vshrl.u32 %v5349, 7
    %v5351 = vsub.s32 0, %v5350
    %v5352 = vrot.slane %v5347, %v5351
    %5354 = vmatprep.subr.mxu0 0.0
    %5355 = vmatpush1.msra.mxu0 %v5342
    %5356 = vmatprep.subr.mxu0 0.0
    %5357 = vmatpush1.msra.mxu0 %v5343
    %5358 = vmatprep.subr.mxu0 0.0
    %5359 = vmatpush1.msra.mxu0 %v5344
    %5360 = vmatprep.subr.mxu0 0.0
    %5361 = vmatpush1.msra.mxu0 %v5345
    %5362 = vmatprep.subr.mxu0 0.0
    %5363 = vmatpush1.msra.mxu0 0.0
    %5364 = vmatprep.subr.mxu0 0.0
    %5365 = vmatpush1.msra.mxu0 0.0
    %5366 = vmatprep.subr.mxu0 0.0
    %5367 = vmatpush1.msra.mxu0 0.0
    %5368 = vmatprep.subr.mxu0 0.0
    %5369 = vmatpush1.msra.mxu0 0.0
    %5370 = vmatprep.subr.mxu0 0.0
    %5371 = vmatpush1.msra.mxu0 0.0
    %5372 = vmatprep.subr.mxu0 0.0
    %5373 = vmatpush1.msra.mxu0 0.0
    %5374 = vmatprep.subr.mxu0 0.0
    %5375 = vmatpush1.msra.mxu0 0.0
    %5376 = vmatprep.subr.mxu0 0.0
    %5377 = vmatpush1.msra.mxu0 0.0
    %5378 = vmatprep.subr.mxu0 0.0
    %5379 = vmatpush1.msra.mxu0 0.0
    %5380 = vmatprep.subr.mxu0 0.0
    %5381 = vmatpush1.msra.mxu0 0.0
    %5382 = vmatprep.subr.mxu0 0.0
    %5383 = vmatpush1.msra.mxu0 0.0
    %5384 = vmatprep.subr.mxu0 0.0
    %5385 = vmatpush1.msra.mxu0 0.0
    %5386 = vmatprep.subr.mxu0 0.0
    %5387 = vmatpush1.msra.mxu0 0.0
    %5388 = vmatprep.subr.mxu0 0.0
    %5389 = vmatpush1.msra.mxu0 0.0
    %5390 = vmatprep.subr.mxu0 0.0
    %5391 = vmatpush1.msra.mxu0 0.0
    %5392 = vmatprep.subr.mxu0 0.0
    %5393 = vmatpush1.msra.mxu0 0.0
    %5394 = vmatprep.subr.mxu0 0.0
    %5395 = vmatpush1.msra.mxu0 0.0
    %5396 = vmatprep.subr.mxu0 0.0
    %5397 = vmatpush1.msra.mxu0 0.0
    %5398 = vmatprep.subr.mxu0 0.0
    %5399 = vmatpush1.msra.mxu0 0.0
    %5400 = vmatprep.subr.mxu0 0.0
    %5401 = vmatpush1.msra.mxu0 0.0
    %5402 = vmatprep.subr.mxu0 0.0
    %5403 = vmatpush1.msra.mxu0 0.0
    %5404 = vmatprep.subr.mxu0 0.0
    %5405 = vmatpush1.msra.mxu0 0.0
    %5406 = vmatprep.subr.mxu0 0.0
    %5407 = vmatpush1.msra.mxu0 0.0
    %5408 = vmatprep.subr.mxu0 0.0
    %5409 = vmatpush1.msra.mxu0 0.0
    %5410 = vmatprep.subr.mxu0 0.0
    %5411 = vmatpush1.msra.mxu0 0.0
    %5412 = vmatprep.subr.mxu0 0.0
    %5413 = vmatpush1.msra.mxu0 0.0
    %5414 = vmatprep.subr.mxu0 0.0
    %5415 = vmatpush1.msra.mxu0 0.0
    %5416 = vmatprep.subr.mxu0 0.0
    %5417 = vmatpush1.msra.mxu0 0.0
    %5418 = vmatprep.mubr.f32.mxu0 0.0
    %5419 = vmatmul.mubr.f32.gmra.mrb[0].mxu0 %v4909
    %v5420 = vpop.f32.mrb[0].mxu0
    %v5421 = vadd.f32 %v5352, %v5420
    %v5422 = vpop.f32.mrb[0].mxu0
    %5423 = vmatprep.mubr.f32.mxu0 0.0
    %5424 = vmatmul.mubr.f32.gmra.mrb[0].mxu0 %v4912
    %v5425 = vpop.f32.mrb[0].mxu0
    %v5426 = vadd.f32 %v5352, %v5425
    %v5427 = vpop.f32.mrb[0].mxu0
    %5428 = vdwg.mxu0
    %s5429 = scalar_lea.vmem %s4, 192
    %v5430 = vld [vmem:[%s5429] sm:$0xff]
    %v5431 = vld [vmem:[%s5429 + $0x8] sm:$0xff]
    %v5432 = vld [vmem:[%s5429 + $0x10] sm:$0xff]
    %v5433 = vld [vmem:[%s5429 + $0x18] sm:$0xff]
    %s5434 = scalar_lea.vmem %s7, 6
    %v5435 = vld [vmem:[%s5434] sm:$0x1]
    %v5437 = vlaneseq
    %v5438 = vshrl.u32 %v5437, 7
    %v5439 = vsub.s32 0, %v5438
    %v5440 = vrot.slane %v5435, %v5439
    %5442 = vmatprep.subr.mxu0 0.0
    %5443 = vmatpush1.msra.mxu0 %v5430
    %5444 = vmatprep.subr.mxu0 0.0
    %5445 = vmatpush1.msra.mxu0 %v5431
    %5446 = vmatprep.subr.mxu0 0.0
    %5447 = vmatpush1.msra.mxu0 %v5432
    %5448 = vmatprep.subr.mxu0 0.0
    %5449 = vmatpush1.msra.mxu0 %v5433
    %5450 = vmatprep.subr.mxu0 0.0
    %5451 = vmatpush1.msra.mxu0 0.0
    %5452 = vmatprep.subr.mxu0 0.0
    %5453 = vmatpush1.msra.mxu0 0.0
    %5454 = vmatprep.subr.mxu0 0.0
    %5455 = vmatpush1.msra.mxu0 0.0
    %5456 = vmatprep.subr.mxu0 0.0
    %5457 = vmatpush1.msra.mxu0 0.0
    %5458 = vmatprep.subr.mxu0 0.0
    %5459 = vmatpush1.msra.mxu0 0.0
    %5460 = vmatprep.subr.mxu0 0.0
    %5461 = vmatpush1.msra.mxu0 0.0
    %5462 = vmatprep.subr.mxu0 0.0
    %5463 = vmatpush1.msra.mxu0 0.0
    %5464 = vmatprep.subr.mxu0 0.0
    %5465 = vmatpush1.msra.mxu0 0.0
    %5466 = vmatprep.subr.mxu0 0.0
    %5467 = vmatpush1.msra.mxu0 0.0
    %5468 = vmatprep.subr.mxu0 0.0
    %5469 = vmatpush1.msra.mxu0 0.0
    %5470 = vmatprep.subr.mxu0 0.0
    %5471 = vmatpush1.msra.mxu0 0.0
    %5472 = vmatprep.subr.mxu0 0.0
    %5473 = vmatpush1.msra.mxu0 0.0
    %5474 = vmatprep.subr.mxu0 0.0
    %5475 = vmatpush1.msra.mxu0 0.0
    %5476 = vmatprep.subr.mxu0 0.0
    %5477 = vmatpush1.msra.mxu0 0.0
    %5478 = vmatprep.subr.mxu0 0.0
    %5479 = vmatpush1.msra.mxu0 0.0
    %5480 = vmatprep.subr.mxu0 0.0
    %5481 = vmatpush1.msra.mxu0 0.0
    %5482 = vmatprep.subr.mxu0 0.0
    %5483 = vmatpush1.msra.mxu0 0.0
    %5484 = vmatprep.subr.mxu0 0.0
    %5485 = vmatpush1.msra.mxu0 0.0
    %5486 = vmatprep.subr.mxu0 0.0
    %5487 = vmatpush1.msra.mxu0 0.0
    %5488 = vmatprep.subr.mxu0 0.0
    %5489 = vmatpush1.msra.mxu0 0.0
    %5490 = vmatprep.subr.mxu0 0.0
    %5491 = vmatpush1.msra.mxu0 0.0
    %5492 = vmatprep.subr.mxu0 0.0
    %5493 = vmatpush1.msra.mxu0 0.0
    %5494 = vmatprep.subr.mxu0 0.0
    %5495 = vmatpush1.msra.mxu0 0.0
    %5496 = vmatprep.subr.mxu0 0.0
    %5497 = vmatpush1.msra.mxu0 0.0
    %5498 = vmatprep.subr.mxu0 0.0
    %5499 = vmatpush1.msra.mxu0 0.0
    %5500 = vmatprep.subr.mxu0 0.0
    %5501 = vmatpush1.msra.mxu0 0.0
    %5502 = vmatprep.subr.mxu0 0.0
    %5503 = vmatpush1.msra.mxu0 0.0
    %5504 = vmatprep.subr.mxu0 0.0
    %5505 = vmatpush1.msra.mxu0 0.0
    %5506 = vmatprep.mubr.f32.mxu0 0.0
    %5507 = vmatmul.mubr.f32.gmra.mrb[0].mxu0 %v4909
    %v5508 = vpop.f32.mrb[0].mxu0
    %v5509 = vadd.f32 %v5440, %v5508
    %v5510 = vpop.f32.mrb[0].mxu0
    %5511 = vmatprep.mubr.f32.mxu0 0.0
    %5512 = vmatmul.mubr.f32.gmra.mrb[0].mxu0 %v4912
    %v5513 = vpop.f32.mrb[0].mxu0
    %v5514 = vadd.f32 %v5440, %v5513
    %v5515 = vpop.f32.mrb[0].mxu0
    %5516 = vdwg.mxu0
    %s5517 = scalar_lea.vmem %s5, 192
    %v5518 = vld [vmem:[%s5517] sm:$0xff]
    %v5519 = vld [vmem:[%s5517 + $0x8] sm:$0xff]
    %v5520 = vld [vmem:[%s5517 + $0x10] sm:$0xff]
    %v5521 = vld [vmem:[%s5517 + $0x18] sm:$0xff]
    %s5522 = scalar_lea.vmem %s8, 6
    %v5523 = vld [vmem:[%s5522] sm:$0x1]
    %v5525 = vlaneseq
    %v5526 = vshrl.u32 %v5525, 7
    %v5527 = vsub.s32 0, %v5526
    %v5528 = vrot.slane %v5523, %v5527
    %5530 = vmatprep.subr.mxu0 0.0
    %5531 = vmatpush1.msra.mxu0 %v5518
    %5532 = vmatprep.subr.mxu0 0.0
    %5533 = vmatpush1.msra.mxu0 %v5519
    %5534 = vmatprep.subr.mxu0 0.0
    %5535 = vmatpush1.msra.mxu0 %v5520
    %5536 = vmatprep.subr.mxu0 0.0
    %5537 = vmatpush1.msra.mxu0 %v5521
    %5538 = vmatprep.subr.mxu0 0.0
    %5539 = vmatpush1.msra.mxu0 0.0
    %5540 = vmatprep.subr.mxu0 0.0
    %5541 = vmatpush1.msra.mxu0 0.0
    %5542 = vmatprep.subr.mxu0 0.0
    %5543 = vmatpush1.msra.mxu0 0.0
    %5544 = vmatprep.subr.mxu0 0.0
    %5545 = vmatpush1.msra.mxu0 0.0
    %5546 = vmatprep.subr.mxu0 0.0
    %5547 = vmatpush1.msra.mxu0 0.0
    %5548 = vmatprep.subr.mxu0 0.0
    %5549 = vmatpush1.msra.mxu0 0.0
    %5550 = vmatprep.subr.mxu0 0.0
    %5551 = vmatpush1.msra.mxu0 0.0
    %5552 = vmatprep.subr.mxu0 0.0
    %5553 = vmatpush1.msra.mxu0 0.0
    %5554 = vmatprep.subr.mxu0 0.0
    %5555 = vmatpush1.msra.mxu0 0.0
    %5556 = vmatprep.subr.mxu0 0.0
    %5557 = vmatpush1.msra.mxu0 0.0
    %5558 = vmatprep.subr.mxu0 0.0
    %5559 = vmatpush1.msra.mxu0 0.0
    %5560 = vmatprep.subr.mxu0 0.0
    %5561 = vmatpush1.msra.mxu0 0.0
    %5562 = vmatprep.subr.mxu0 0.0
    %5563 = vmatpush1.msra.mxu0 0.0
    %5564 = vmatprep.subr.mxu0 0.0
    %5565 = vmatpush1.msra.mxu0 0.0
    %5566 = vmatprep.subr.mxu0 0.0
    %5567 = vmatpush1.msra.mxu0 0.0
    %5568 = vmatprep.subr.mxu0 0.0
    %5569 = vmatpush1.msra.mxu0 0.0
    %5570 = vmatprep.subr.mxu0 0.0
    %5571 = vmatpush1.msra.mxu0 0.0
    %5572 = vmatprep.subr.mxu0 0.0
    %5573 = vmatpush1.msra.mxu0 0.0
    %5574 = vmatprep.subr.mxu0 0.0
    %5575 = vmatpush1.msra.mxu0 0.0
    %5576 = vmatprep.subr.mxu0 0.0
    %5577 = vmatpush1.msra.mxu0 0.0
    %5578 = vmatprep.subr.mxu0 0.0
    %5579 = vmatpush1.msra.mxu0 0.0
    %5580 = vmatprep.subr.mxu0 0.0
    %5581 = vmatpush1.msra.mxu0 0.0
    %5582 = vmatprep.subr.mxu0 0.0
    %5583 = vmatpush1.msra.mxu0 0.0
    %5584 = vmatprep.subr.mxu0 0.0
    %5585 = vmatpush1.msra.mxu0 0.0
    %5586 = vmatprep.subr.mxu0 0.0
    %5587 = vmatpush1.msra.mxu0 0.0
    %5588 = vmatprep.subr.mxu0 0.0
    %5589 = vmatpush1.msra.mxu0 0.0
    %5590 = vmatprep.subr.mxu0 0.0
    %5591 = vmatpush1.msra.mxu0 0.0
    %5592 = vmatprep.subr.mxu0 0.0
    %5593 = vmatpush1.msra.mxu0 0.0
    %5594 = vmatprep.mubr.f32.mxu0 0.0
    %5595 = vmatmul.mubr.f32.gmra.mrb[0].mxu0 %v4909
    %v5596 = vpop.f32.mrb[0].mxu0
    %v5597 = vadd.f32 %v5528, %v5596
    %v5598 = vpop.f32.mrb[0].mxu0
    %5599 = vmatprep.mubr.f32.mxu0 0.0
    %5600 = vmatmul.mubr.f32.gmra.mrb[0].mxu0 %v4912
    %v5601 = vpop.f32.mrb[0].mxu0
    %v5602 = vadd.f32 %v5528, %v5601
    %v5603 = vpop.f32.mrb[0].mxu0
    %5604 = vdwg.mxu0
    %s5605 = scalar_lea.vmem %s6, 192
    %v5606 = vld [vmem:[%s5605] sm:$0xff]
    %v5607 = vld [vmem:[%s5605 + $0x8] sm:$0xff]
    %v5608 = vld [vmem:[%s5605 + $0x10] sm:$0xff]
    %v5609 = vld [vmem:[%s5605 + $0x18] sm:$0xff]
    %s5610 = scalar_lea.vmem %s9, 6
    %v5611 = vld [vmem:[%s5610] sm:$0x1]
    %v5613 = vlaneseq
    %v5614 = vshrl.u32 %v5613, 7
    %v5615 = vsub.s32 0, %v5614
    %v5616 = vrot.slane %v5611, %v5615
    %5618 = vmatprep.subr.mxu0 0.0
    %5619 = vmatpush1.msra.mxu0 %v5606
    %5620 = vmatprep.subr.mxu0 0.0
    %5621 = vmatpush1.msra.mxu0 %v5607
    %5622 = vmatprep.subr.mxu0 0.0
    %5623 = vmatpush1.msra.mxu0 %v5608
    %5624 = vmatprep.subr.mxu0 0.0
    %5625 = vmatpush1.msra.mxu0 %v5609
    %5626 = vmatprep.subr.mxu0 0.0
    %5627 = vmatpush1.msra.mxu0 0.0
    %5628 = vmatprep.subr.mxu0 0.0
    %5629 = vmatpush1.msra.mxu0 0.0
    %5630 = vmatprep.subr.mxu0 0.0
    %5631 = vmatpush1.msra.mxu0 0.0
    %5632 = vmatprep.subr.mxu0 0.0
    %5633 = vmatpush1.msra.mxu0 0.0
    %5634 = vmatprep.subr.mxu0 0.0
    %5635 = vmatpush1.msra.mxu0 0.0
    %5636 = vmatprep.subr.mxu0 0.0
    %5637 = vmatpush1.msra.mxu0 0.0
    %5638 = vmatprep.subr.mxu0 0.0
    %5639 = vmatpush1.msra.mxu0 0.0
    %5640 = vmatprep.subr.mxu0 0.0
    %5641 = vmatpush1.msra.mxu0 0.0
    %5642 = vmatprep.subr.mxu0 0.0
    %5643 = vmatpush1.msra.mxu0 0.0
    %5644 = vmatprep.subr.mxu0 0.0
    %5645 = vmatpush1.msra.mxu0 0.0
    %5646 = vmatprep.subr.mxu0 0.0
    %5647 = vmatpush1.msra.mxu0 0.0
    %5648 = vmatprep.subr.mxu0 0.0
    %5649 = vmatpush1.msra.mxu0 0.0
    %5650 = vmatprep.subr.mxu0 0.0
    %5651 = vmatpush1.msra.mxu0 0.0
    %5652 = vmatprep.subr.mxu0 0.0
    %5653 = vmatpush1.msra.mxu0 0.0
    %5654 = vmatprep.subr.mxu0 0.0
    %5655 = vmatpush1.msra.mxu0 0.0
    %5656 = vmatprep.subr.mxu0 0.0
    %5657 = vmatpush1.msra.mxu0 0.0
    %5658 = vmatprep.subr.mxu0 0.0
    %5659 = vmatpush1.msra.mxu0 0.0
    %5660 = vmatprep.subr.mxu0 0.0
    %5661 = vmatpush1.msra.mxu0 0.0
    %5662 = vmatprep.subr.mxu0 0.0
    %5663 = vmatpush1.msra.mxu0 0.0
    %5664 = vmatprep.subr.mxu0 0.0
    %5665 = vmatpush1.msra.mxu0 0.0
    %5666 = vmatprep.subr.mxu0 0.0
    %5667 = vmatpush1.msra.mxu0 0.0
    %5668 = vmatprep.subr.mxu0 0.0
    %5669 = vmatpush1.msra.mxu0 0.0
    %5670 = vmatprep.subr.mxu0 0.0
    %5671 = vmatpush1.msra.mxu0 0.0
    %5672 = vmatprep.subr.mxu0 0.0
    %5673 = vmatpush1.msra.mxu0 0.0
    %5674 = vmatprep.subr.mxu0 0.0
    %5675 = vmatpush1.msra.mxu0 0.0
    %5676 = vmatprep.subr.mxu0 0.0
    %5677 = vmatpush1.msra.mxu0 0.0
    %5678 = vmatprep.subr.mxu0 0.0
    %5679 = vmatpush1.msra.mxu0 0.0
    %5680 = vmatprep.subr.mxu0 0.0
    %5681 = vmatpush1.msra.mxu0 0.0
    %5682 = vmatprep.mubr.f32.mxu0 0.0
    %5683 = vmatmul.mubr.f32.gmra.mrb[0].mxu0 %v4909
    %v5684 = vpop.f32.mrb[0].mxu0
    %v5685 = vadd.f32 %v5616, %v5684
    %v5686 = vpop.f32.mrb[0].mxu0
    %5687 = vmatprep.mubr.f32.mxu0 0.0
    %5688 = vmatmul.mubr.f32.gmra.mrb[0].mxu0 %v4912
    %v5689 = vpop.f32.mrb[0].mxu0
    %v5690 = vadd.f32 %v5616, %v5689
    %v5691 = vpop.f32.mrb[0].mxu0
    %5692 = vdwg.mxu0
    %s5693 = scalar_lea.vmem %s4, 224
    %v5694 = vld [vmem:[%s5693] sm:$0xff]
    %v5695 = vld [vmem:[%s5693 + $0x8] sm:$0xff]
    %v5696 = vld [vmem:[%s5693 + $0x10] sm:$0xff]
    %v5697 = vld [vmem:[%s5693 + $0x18] sm:$0xff]
    %s5698 = scalar_lea.vmem %s7, 7
    %v5699 = vld [vmem:[%s5698] sm:$0x1]
    %v5701 = vlaneseq
    %v5702 = vshrl.u32 %v5701, 7
    %v5703 = vsub.s32 0, %v5702
    %v5704 = vrot.slane %v5699, %v5703
    %5706 = vmatprep.subr.mxu0 0.0
    %5707 = vmatpush1.msra.mxu0 %v5694
    %5708 = vmatprep.subr.mxu0 0.0
    %5709 = vmatpush1.msra.mxu0 %v5695
    %5710 = vmatprep.subr.mxu0 0.0
    %5711 = vmatpush1.msra.mxu0 %v5696
    %5712 = vmatprep.subr.mxu0 0.0
    %5713 = vmatpush1.msra.mxu0 %v5697
    %5714 = vmatprep.subr.mxu0 0.0
    %5715 = vmatpush1.msra.mxu0 0.0
    %5716 = vmatprep.subr.mxu0 0.0
    %5717 = vmatpush1.msra.mxu0 0.0
    %5718 = vmatprep.subr.mxu0 0.0
    %5719 = vmatpush1.msra.mxu0 0.0
    %5720 = vmatprep.subr.mxu0 0.0
    %5721 = vmatpush1.msra.mxu0 0.0
    %5722 = vmatprep.subr.mxu0 0.0
    %5723 = vmatpush1.msra.mxu0 0.0
    %5724 = vmatprep.subr.mxu0 0.0
    %5725 = vmatpush1.msra.mxu0 0.0
    %5726 = vmatprep.subr.mxu0 0.0
    %5727 = vmatpush1.msra.mxu0 0.0
    %5728 = vmatprep.subr.mxu0 0.0
    %5729 = vmatpush1.msra.mxu0 0.0
    %5730 = vmatprep.subr.mxu0 0.0
    %5731 = vmatpush1.msra.mxu0 0.0
    %5732 = vmatprep.subr.mxu0 0.0
    %5733 = vmatpush1.msra.mxu0 0.0
    %5734 = vmatprep.subr.mxu0 0.0
    %5735 = vmatpush1.msra.mxu0 0.0
    %5736 = vmatprep.subr.mxu0 0.0
    %5737 = vmatpush1.msra.mxu0 0.0
    %5738 = vmatprep.subr.mxu0 0.0
    %5739 = vmatpush1.msra.mxu0 0.0
    %5740 = vmatprep.subr.mxu0 0.0
    %5741 = vmatpush1.msra.mxu0 0.0
    %5742 = vmatprep.subr.mxu0 0.0
    %5743 = vmatpush1.msra.mxu0 0.0
    %5744 = vmatprep.subr.mxu0 0.0
    %5745 = vmatpush1.msra.mxu0 0.0
    %5746 = vmatprep.subr.mxu0 0.0
    %5747 = vmatpush1.msra.mxu0 0.0
    %5748 = vmatprep.subr.mxu0 0.0
    %5749 = vmatpush1.msra.mxu0 0.0
    %5750 = vmatprep.subr.mxu0 0.0
    %5751 = vmatpush1.msra.mxu0 0.0
    %5752 = vmatprep.subr.mxu0 0.0
    %5753 = vmatpush1.msra.mxu0 0.0
    %5754 = vmatprep.subr.mxu0 0.0
    %5755 = vmatpush1.msra.mxu0 0.0
    %5756 = vmatprep.subr.mxu0 0.0
    %5757 = vmatpush1.msra.mxu0 0.0
    %5758 = vmatprep.subr.mxu0 0.0
    %5759 = vmatpush1.msra.mxu0 0.0
    %5760 = vmatprep.subr.mxu0 0.0
    %5761 = vmatpush1.msra.mxu0 0.0
    %5762 = vmatprep.subr.mxu0 0.0
    %5763 = vmatpush1.msra.mxu0 0.0
    %5764 = vmatprep.subr.mxu0 0.0
    %5765 = vmatpush1.msra.mxu0 0.0
    %5766 = vmatprep.subr.mxu0 0.0
    %5767 = vmatpush1.msra.mxu0 0.0
    %5768 = vmatprep.subr.mxu0 0.0
    %5769 = vmatpush1.msra.mxu0 0.0
    %5770 = vmatprep.mubr.f32.mxu0 0.0
    %5771 = vmatmul.mubr.f32.gmra.mrb[0].mxu0 %v4909
    %v5772 = vpop.f32.mrb[0].mxu0
    %v5773 = vadd.f32 %v5704, %v5772
    %v5774 = vpop.f32.mrb[0].mxu0
    %5775 = vmatprep.mubr.f32.mxu0 0.0
    %5776 = vmatmul.mubr.f32.gmra.mrb[0].mxu0 %v4912
    %v5777 = vpop.f32.mrb[0].mxu0
    %v5778 = vadd.f32 %v5704, %v5777
    %v5779 = vpop.f32.mrb[0].mxu0
    %5780 = vdwg.mxu0
    %s5781 = scalar_lea.vmem %s5, 224
    %v5782 = vld [vmem:[%s5781] sm:$0xff]
    %v5783 = vld [vmem:[%s5781 + $0x8] sm:$0xff]
    %v5784 = vld [vmem:[%s5781 + $0x10] sm:$0xff]
    %v5785 = vld [vmem:[%s5781 + $0x18] sm:$0xff]
    %s5786 = scalar_lea.vmem %s8, 7
    %v5787 = vld [vmem:[%s5786] sm:$0x1]
    %v5789 = vlaneseq
    %v5790 = vshrl.u32 %v5789, 7
    %v5791 = vsub.s32 0, %v5790
    %v5792 = vrot.slane %v5787, %v5791
    %5794 = vmatprep.subr.mxu0 0.0
    %5795 = vmatpush1.msra.mxu0 %v5782
    %5796 = vmatprep.subr.mxu0 0.0
    %5797 = vmatpush1.msra.mxu0 %v5783
    %5798 = vmatprep.subr.mxu0 0.0
    %5799 = vmatpush1.msra.mxu0 %v5784
    %5800 = vmatprep.subr.mxu0 0.0
    %5801 = vmatpush1.msra.mxu0 %v5785
    %5802 = vmatprep.subr.mxu0 0.0
    %5803 = vmatpush1.msra.mxu0 0.0
    %5804 = vmatprep.subr.mxu0 0.0
    %5805 = vmatpush1.msra.mxu0 0.0
    %5806 = vmatprep.subr.mxu0 0.0
    %5807 = vmatpush1.msra.mxu0 0.0
    %5808 = vmatprep.subr.mxu0 0.0
    %5809 = vmatpush1.msra.mxu0 0.0
    %5810 = vmatprep.subr.mxu0 0.0
    %5811 = vmatpush1.msra.mxu0 0.0
    %5812 = vmatprep.subr.mxu0 0.0
    %5813 = vmatpush1.msra.mxu0 0.0
    %5814 = vmatprep.subr.mxu0 0.0
    %5815 = vmatpush1.msra.mxu0 0.0
    %5816 = vmatprep.subr.mxu0 0.0
    %5817 = vmatpush1.msra.mxu0 0.0
    %5818 = vmatprep.subr.mxu0 0.0
    %5819 = vmatpush1.msra.mxu0 0.0
    %5820 = vmatprep.subr.mxu0 0.0
    %5821 = vmatpush1.msra.mxu0 0.0
    %5822 = vmatprep.subr.mxu0 0.0
    %5823 = vmatpush1.msra.mxu0 0.0
    %5824 = vmatprep.subr.mxu0 0.0
    %5825 = vmatpush1.msra.mxu0 0.0
    %5826 = vmatprep.subr.mxu0 0.0
    %5827 = vmatpush1.msra.mxu0 0.0
    %5828 = vmatprep.subr.mxu0 0.0
    %5829 = vmatpush1.msra.mxu0 0.0
    %5830 = vmatprep.subr.mxu0 0.0
    %5831 = vmatpush1.msra.mxu0 0.0
    %5832 = vmatprep.subr.mxu0 0.0
    %5833 = vmatpush1.msra.mxu0 0.0
    %5834 = vmatprep.subr.mxu0 0.0
    %5835 = vmatpush1.msra.mxu0 0.0
    %5836 = vmatprep.subr.mxu0 0.0
    %5837 = vmatpush1.msra.mxu0 0.0
    %5838 = vmatprep.subr.mxu0 0.0
    %5839 = vmatpush1.msra.mxu0 0.0
    %5840 = vmatprep.subr.mxu0 0.0
    %5841 = vmatpush1.msra.mxu0 0.0
    %5842 = vmatprep.subr.mxu0 0.0
    %5843 = vmatpush1.msra.mxu0 0.0
    %5844 = vmatprep.subr.mxu0 0.0
    %5845 = vmatpush1.msra.mxu0 0.0
    %5846 = vmatprep.subr.mxu0 0.0
    %5847 = vmatpush1.msra.mxu0 0.0
    %5848 = vmatprep.subr.mxu0 0.0
    %5849 = vmatpush1.msra.mxu0 0.0
    %5850 = vmatprep.subr.mxu0 0.0
    %5851 = vmatpush1.msra.mxu0 0.0
    %5852 = vmatprep.subr.mxu0 0.0
    %5853 = vmatpush1.msra.mxu0 0.0
    %5854 = vmatprep.subr.mxu0 0.0
    %5855 = vmatpush1.msra.mxu0 0.0
    %5856 = vmatprep.subr.mxu0 0.0
    %5857 = vmatpush1.msra.mxu0 0.0
    %5858 = vmatprep.mubr.f32.mxu0 0.0
    %5859 = vmatmul.mubr.f32.gmra.mrb[0].mxu0 %v4909
    %v5860 = vpop.f32.mrb[0].mxu0
    %v5861 = vadd.f32 %v5792, %v5860
    %v5862 = vpop.f32.mrb[0].mxu0
    %5863 = vmatprep.mubr.f32.mxu0 0.0
    %5864 = vmatmul.mubr.f32.gmra.mrb[0].mxu0 %v4912
    %v5865 = vpop.f32.mrb[0].mxu0
    %v5866 = vadd.f32 %v5792, %v5865
    %v5867 = vpop.f32.mrb[0].mxu0
    %5868 = vdwg.mxu0
    %s5869 = scalar_lea.vmem %s6, 224
    %v5870 = vld [vmem:[%s5869] sm:$0xff]
    %v5871 = vld [vmem:[%s5869 + $0x8] sm:$0xff]
    %v5872 = vld [vmem:[%s5869 + $0x10] sm:$0xff]
    %v5873 = vld [vmem:[%s5869 + $0x18] sm:$0xff]
    %s5874 = scalar_lea.vmem %s9, 7
    %v5875 = vld [vmem:[%s5874] sm:$0x1]
    %v5877 = vlaneseq
    %v5878 = vshrl.u32 %v5877, 7
    %v5879 = vsub.s32 0, %v5878
    %v5880 = vrot.slane %v5875, %v5879
    %5882 = vmatprep.subr.mxu0 0.0
    %5883 = vmatpush1.msra.mxu0 %v5870
    %5884 = vmatprep.subr.mxu0 0.0
    %5885 = vmatpush1.msra.mxu0 %v5871
    %5886 = vmatprep.subr.mxu0 0.0
    %5887 = vmatpush1.msra.mxu0 %v5872
    %5888 = vmatprep.subr.mxu0 0.0
    %5889 = vmatpush1.msra.mxu0 %v5873
    %5890 = vmatprep.subr.mxu0 0.0
    %5891 = vmatpush1.msra.mxu0 0.0
    %5892 = vmatprep.subr.mxu0 0.0
    %5893 = vmatpush1.msra.mxu0 0.0
    %5894 = vmatprep.subr.mxu0 0.0
    %5895 = vmatpush1.msra.mxu0 0.0
    %5896 = vmatprep.subr.mxu0 0.0
    %5897 = vmatpush1.msra.mxu0 0.0
    %5898 = vmatprep.subr.mxu0 0.0
    %5899 = vmatpush1.msra.mxu0 0.0
    %5900 = vmatprep.subr.mxu0 0.0
    %5901 = vmatpush1.msra.mxu0 0.0
    %5902 = vmatprep.subr.mxu0 0.0
    %5903 = vmatpush1.msra.mxu0 0.0
    %5904 = vmatprep.subr.mxu0 0.0
    %5905 = vmatpush1.msra.mxu0 0.0
    %5906 = vmatprep.subr.mxu0 0.0
    %5907 = vmatpush1.msra.mxu0 0.0
    %5908 = vmatprep.subr.mxu0 0.0
    %5909 = vmatpush1.msra.mxu0 0.0
    %5910 = vmatprep.subr.mxu0 0.0
    %5911 = vmatpush1.msra.mxu0 0.0
    %5912 = vmatprep.subr.mxu0 0.0
    %5913 = vmatpush1.msra.mxu0 0.0
    %5914 = vmatprep.subr.mxu0 0.0
    %5915 = vmatpush1.msra.mxu0 0.0
    %5916 = vmatprep.subr.mxu0 0.0
    %5917 = vmatpush1.msra.mxu0 0.0
    %5918 = vmatprep.subr.mxu0 0.0
    %5919 = vmatpush1.msra.mxu0 0.0
    %5920 = vmatprep.subr.mxu0 0.0
    %5921 = vmatpush1.msra.mxu0 0.0
    %5922 = vmatprep.subr.mxu0 0.0
    %5923 = vmatpush1.msra.mxu0 0.0
    %5924 = vmatprep.subr.mxu0 0.0
    %5925 = vmatpush1.msra.mxu0 0.0
    %5926 = vmatprep.subr.mxu0 0.0
    %5927 = vmatpush1.msra.mxu0 0.0
    %5928 = vmatprep.subr.mxu0 0.0
    %5929 = vmatpush1.msra.mxu0 0.0
    %5930 = vmatprep.subr.mxu0 0.0
    %5931 = vmatpush1.msra.mxu0 0.0
    %5932 = vmatprep.subr.mxu0 0.0
    %5933 = vmatpush1.msra.mxu0 0.0
    %5934 = vmatprep.subr.mxu0 0.0
    %5935 = vmatpush1.msra.mxu0 0.0
    %5936 = vmatprep.subr.mxu0 0.0
    %5937 = vmatpush1.msra.mxu0 0.0
    %5938 = vmatprep.subr.mxu0 0.0
    %5939 = vmatpush1.msra.mxu0 0.0
    %5940 = vmatprep.subr.mxu0 0.0
    %5941 = vmatpush1.msra.mxu0 0.0
    %5942 = vmatprep.subr.mxu0 0.0
    %5943 = vmatpush1.msra.mxu0 0.0
    %5944 = vmatprep.subr.mxu0 0.0
    %5945 = vmatpush1.msra.mxu0 0.0
    %5946 = vmatprep.mubr.f32.mxu0 0.0
    %5947 = vmatmul.mubr.f32.gmra.mrb[0].mxu0 %v4909
    %v5948 = vpop.f32.mrb[0].mxu0
    %v5949 = vadd.f32 %v5880, %v5948
    %v5950 = vpop.f32.mrb[0].mxu0
    %5951 = vmatprep.mubr.f32.mxu0 0.0
    %5952 = vmatmul.mubr.f32.gmra.mrb[0].mxu0 %v4912
    %v5953 = vpop.f32.mrb[0].mxu0
    %v5954 = vadd.f32 %v5880, %v5953
    %v5955 = vpop.f32.mrb[0].mxu0
    %5956 = vdwg.mxu0
    %v5957 = vmul.f32 %v4981, 0.35355338
    %v5959 = vsel %vm1230, %v5957, 0
    %v5962 = vsel %vm1230, %v5069, 0
    %5964 = vmatprep.subr.mxu0 0.0
    %5965 = vmatpush1.xpose.msra.mxu0 %v5962
    %5966 = vmatprep.subr.mxu0 0.0
    %5967 = vmatpush1.xpose.msra.mxu0 0.0
    %5968 = vmatprep.subr.mxu0 0.0
    %5969 = vmatpush1.xpose.msra.mxu0 0.0
    %5970 = vmatprep.subr.mxu0 0.0
    %5971 = vmatpush1.xpose.msra.mxu0 0.0
    %5972 = vmatprep.subr.mxu0 0.0
    %5973 = vmatpush1.xpose.msra.mxu0 0.0
    %5974 = vmatprep.subr.mxu0 0.0
    %5975 = vmatpush1.xpose.msra.mxu0 0.0
    %5976 = vmatprep.subr.mxu0 0.0
    %5977 = vmatpush1.xpose.msra.mxu0 0.0
    %5978 = vmatprep.subr.mxu0 0.0
    %5979 = vmatpush1.xpose.msra.mxu0 0.0
    %5980 = vmatprep.subr.mxu0 0.0
    %5981 = vmatpush1.xpose.msra.mxu0 0.0
    %5982 = vmatprep.subr.mxu0 0.0
    %5983 = vmatpush1.xpose.msra.mxu0 0.0
    %5984 = vmatprep.subr.mxu0 0.0
    %5985 = vmatpush1.xpose.msra.mxu0 0.0
    %5986 = vmatprep.subr.mxu0 0.0
    %5987 = vmatpush1.xpose.msra.mxu0 0.0
    %5988 = vmatprep.subr.mxu0 0.0
    %5989 = vmatpush1.xpose.msra.mxu0 0.0
    %5990 = vmatprep.subr.mxu0 0.0
    %5991 = vmatpush1.xpose.msra.mxu0 0.0
    %5992 = vmatprep.subr.mxu0 0.0
    %5993 = vmatpush1.xpose.msra.mxu0 0.0
    %5994 = vmatprep.subr.mxu0 0.0
    %5995 = vmatpush1.xpose.msra.mxu0 0.0
    %5996 = vmatprep.subr.mxu0 0.0
    %5997 = vmatpush1.xpose.msra.mxu0 0.0
    %5998 = vmatprep.subr.mxu0 0.0
    %5999 = vmatpush1.xpose.msra.mxu0 0.0
    %6000 = vmatprep.subr.mxu0 0.0
    %6001 = vmatpush1.xpose.msra.mxu0 0.0
    %6002 = vmatprep.subr.mxu0 0.0
    %6003 = vmatpush1.xpose.msra.mxu0 0.0
    %6004 = vmatprep.subr.mxu0 0.0
    %6005 = vmatpush1.xpose.msra.mxu0 0.0
    %6006 = vmatprep.subr.mxu0 0.0
    %6007 = vmatpush1.xpose.msra.mxu0 0.0
    %6008 = vmatprep.subr.mxu0 0.0
    %6009 = vmatpush1.xpose.msra.mxu0 0.0
    %6010 = vmatprep.subr.mxu0 0.0
    %6011 = vmatpush1.xpose.msra.mxu0 0.0
    %6012 = vmatprep.subr.mxu0 0.0
    %6013 = vmatpush1.xpose.msra.mxu0 0.0
    %6014 = vmatprep.subr.mxu0 0.0
    %6015 = vmatpush1.xpose.msra.mxu0 0.0
    %6016 = vmatprep.subr.mxu0 0.0
    %6017 = vmatpush1.xpose.msra.mxu0 0.0
    %6018 = vmatprep.subr.mxu0 0.0
    %6019 = vmatpush1.xpose.msra.mxu0 0.0
    %6020 = vmatprep.subr.mxu0 0.0
    %6021 = vmatpush1.xpose.msra.mxu0 0.0
    %6022 = vmatprep.subr.mxu0 0.0
    %6023 = vmatpush1.xpose.msra.mxu0 0.0
    %6024 = vmatprep.subr.mxu0 0.0
    %6025 = vmatpush1.xpose.msra.mxu0 0.0
    %6026 = vmatprep.subr.mxu0 0.0
    %6027 = vmatpush1.xpose.msra.mxu0 0.0
    %6028 = vmatprep.mubr.f32.mxu0 0.0
    %6029 = vmatmul.mubr.f32.gmra.mrb[0].mxu0 %v5959
    %v6030 = vpop.f32.mrb[0].mxu0
    %v6031 = vadd.f32 0.0, %v6030
    %v6032 = vpop.f32.mrb[0].mxu0
    %6033 = vdwg.mxu0
    %v6034 = vsel %vm1230, %v6031, -inf
    %6035 = vmax.xlane.f32.xlu0 %v6034
    %v6036 = vpop.xlane.xlu0 %6035
    %v6037 = vsub.f32 %v6031, %v6036
    %v6038 = vmul.f32 %v6037, 1.442695
    %v6039 = vpow.pop %v6038
    %v6040 = vsel %vm1230, %v6039, 0.0
    %6041 = vadd.xlane.f32.xlu0 %v6040
    %v6042 = vpop.xlane.xlu0 %6041
    %v6043 = vrcp.pop %v6042
    %v6044 = vmul.f32 %v6039, %v6043
    %v6046 = vsel %vm1230, %v6044, 0
    %6048 = vmatprep.subr.mxu0 0.0
    %6049 = vmatpush1.msra.mxu0 %v5157
    %6050 = vmatprep.subr.mxu0 0.0
    %6051 = vmatpush1.msra.mxu0 0.0
    %6052 = vmatprep.subr.mxu0 0.0
    %6053 = vmatpush1.msra.mxu0 0.0
    %6054 = vmatprep.subr.mxu0 0.0
    %6055 = vmatpush1.msra.mxu0 0.0
    %6056 = vmatprep.subr.mxu0 0.0
    %6057 = vmatpush1.msra.mxu0 0.0
    %6058 = vmatprep.subr.mxu0 0.0
    %6059 = vmatpush1.msra.mxu0 0.0
    %6060 = vmatprep.subr.mxu0 0.0
    %6061 = vmatpush1.msra.mxu0 0.0
    %6062 = vmatprep.subr.mxu0 0.0
    %6063 = vmatpush1.msra.mxu0 0.0
    %6064 = vmatprep.subr.mxu0 0.0
    %6065 = vmatpush1.msra.mxu0 0.0
    %6066 = vmatprep.subr.mxu0 0.0
    %6067 = vmatpush1.msra.mxu0 0.0
    %6068 = vmatprep.subr.mxu0 0.0
    %6069 = vmatpush1.msra.mxu0 0.0
    %6070 = vmatprep.subr.mxu0 0.0
    %6071 = vmatpush1.msra.mxu0 0.0
    %6072 = vmatprep.subr.mxu0 0.0
    %6073 = vmatpush1.msra.mxu0 0.0
    %6074 = vmatprep.subr.mxu0 0.0
    %6075 = vmatpush1.msra.mxu0 0.0
    %6076 = vmatprep.subr.mxu0 0.0
    %6077 = vmatpush1.msra.mxu0 0.0
    %6078 = vmatprep.subr.mxu0 0.0
    %6079 = vmatpush1.msra.mxu0 0.0
    %6080 = vmatprep.subr.mxu0 0.0
    %6081 = vmatpush1.msra.mxu0 0.0
    %6082 = vmatprep.subr.mxu0 0.0
    %6083 = vmatpush1.msra.mxu0 0.0
    %6084 = vmatprep.subr.mxu0 0.0
    %6085 = vmatpush1.msra.mxu0 0.0
    %6086 = vmatprep.subr.mxu0 0.0
    %6087 = vmatpush1.msra.mxu0 0.0
    %6088 = vmatprep.subr.mxu0 0.0
    %6089 = vmatpush1.msra.mxu0 0.0
    %6090 = vmatprep.subr.mxu0 0.0
    %6091 = vmatpush1.msra.mxu0 0.0
    %6092 = vmatprep.subr.mxu0 0.0
    %6093 = vmatpush1.msra.mxu0 0.0
    %6094 = vmatprep.subr.mxu0 0.0
    %6095 = vmatpush1.msra.mxu0 0.0
    %6096 = vmatprep.subr.mxu0 0.0
    %6097 = vmatpush1.msra.mxu0 0.0
    %6098 = vmatprep.subr.mxu0 0.0
    %6099 = vmatpush1.msra.mxu0 0.0
    %6100 = vmatprep.subr.mxu0 0.0
    %6101 = vmatpush1.msra.mxu0 0.0
    %6102 = vmatprep.subr.mxu0 0.0
    %6103 = vmatpush1.msra.mxu0 0.0
    %6104 = vmatprep.subr.mxu0 0.0
    %6105 = vmatpush1.msra.mxu0 0.0
    %6106 = vmatprep.subr.mxu0 0.0
    %6107 = vmatpush1.msra.mxu0 0.0
    %6108 = vmatprep.subr.mxu0 0.0
    %6109 = vmatpush1.msra.mxu0 0.0
    %6110 = vmatprep.subr.mxu0 0.0
    %6111 = vmatpush1.msra.mxu0 0.0
    %6112 = vmatprep.mubr.f32.mxu0 0.0
    %6113 = vmatmul.mubr.f32.gmra.mrb[0].mxu0 %v6046
    %v6114 = vpop.f32.mrb[0].mxu0
    %v6115 = vadd.f32 0.0, %v6114
    %v6116 = vpop.f32.mrb[0].mxu0
    %6117 = vdwg.mxu0
    %s6118 = scalar_lea.vmem %s10, 32
    %v6119 = vld [vmem:[%s6118] sm:$0xff]
    %v6120 = vmul.f32 %v5245, 0.35355338
    %v6122 = vsel %vm1230, %v6120, 0
    %v6125 = vsel %vm1230, %v5333, 0
    %6127 = vmatprep.subr.mxu0 0.0
    %6128 = vmatpush1.xpose.msra.mxu0 %v6125
    %6129 = vmatprep.subr.mxu0 0.0
    %6130 = vmatpush1.xpose.msra.mxu0 0.0
    %6131 = vmatprep.subr.mxu0 0.0
    %6132 = vmatpush1.xpose.msra.mxu0 0.0
    %6133 = vmatprep.subr.mxu0 0.0
    %6134 = vmatpush1.xpose.msra.mxu0 0.0
    %6135 = vmatprep.subr.mxu0 0.0
    %6136 = vmatpush1.xpose.msra.mxu0 0.0
    %6137 = vmatprep.subr.mxu0 0.0
    %6138 = vmatpush1.xpose.msra.mxu0 0.0
    %6139 = vmatprep.subr.mxu0 0.0
    %6140 = vmatpush1.xpose.msra.mxu0 0.0
    %6141 = vmatprep.subr.mxu0 0.0
    %6142 = vmatpush1.xpose.msra.mxu0 0.0
    %6143 = vmatprep.subr.mxu0 0.0
    %6144 = vmatpush1.xpose.msra.mxu0 0.0
    %6145 = vmatprep.subr.mxu0 0.0
    %6146 = vmatpush1.xpose.msra.mxu0 0.0
    %6147 = vmatprep.subr.mxu0 0.0
    %6148 = vmatpush1.xpose.msra.mxu0 0.0
    %6149 = vmatprep.subr.mxu0 0.0
    %6150 = vmatpush1.xpose.msra.mxu0 0.0
    %6151 = vmatprep.subr.mxu0 0.0
    %6152 = vmatpush1.xpose.msra.mxu0 0.0
    %6153 = vmatprep.subr.mxu0 0.0
    %6154 = vmatpush1.xpose.msra.mxu0 0.0
    %6155 = vmatprep.subr.mxu0 0.0
    %6156 = vmatpush1.xpose.msra.mxu0 0.0
    %6157 = vmatprep.subr.mxu0 0.0
    %6158 = vmatpush1.xpose.msra.mxu0 0.0
    %6159 = vmatprep.subr.mxu0 0.0
    %6160 = vmatpush1.xpose.msra.mxu0 0.0
    %6161 = vmatprep.subr.mxu0 0.0
    %6162 = vmatpush1.xpose.msra.mxu0 0.0
    %6163 = vmatprep.subr.mxu0 0.0
    %6164 = vmatpush1.xpose.msra.mxu0 0.0
    %6165 = vmatprep.subr.mxu0 0.0
    %6166 = vmatpush1.xpose.msra.mxu0 0.0
    %6167 = vmatprep.subr.mxu0 0.0
    %6168 = vmatpush1.xpose.msra.mxu0 0.0
    %6169 = vmatprep.subr.mxu0 0.0
    %6170 = vmatpush1.xpose.msra.mxu0 0.0
    %6171 = vmatprep.subr.mxu0 0.0
    %6172 = vmatpush1.xpose.msra.mxu0 0.0
    %6173 = vmatprep.subr.mxu0 0.0
    %6174 = vmatpush1.xpose.msra.mxu0 0.0
    %6175 = vmatprep.subr.mxu0 0.0
    %6176 = vmatpush1.xpose.msra.mxu0 0.0
    %6177 = vmatprep.subr.mxu0 0.0
    %6178 = vmatpush1.xpose.msra.mxu0 0.0
    %6179 = vmatprep.subr.mxu0 0.0
    %6180 = vmatpush1.xpose.msra.mxu0 0.0
    %6181 = vmatprep.subr.mxu0 0.0
    %6182 = vmatpush1.xpose.msra.mxu0 0.0
    %6183 = vmatprep.subr.mxu0 0.0
    %6184 = vmatpush1.xpose.msra.mxu0 0.0
    %6185 = vmatprep.subr.mxu0 0.0
    %6186 = vmatpush1.xpose.msra.mxu0 0.0
    %6187 = vmatprep.subr.mxu0 0.0
    %6188 = vmatpush1.xpose.msra.mxu0 0.0
    %6189 = vmatprep.subr.mxu0 0.0
    %6190 = vmatpush1.xpose.msra.mxu0 0.0
    %6191 = vmatprep.mubr.f32.mxu0 0.0
    %6192 = vmatmul.mubr.f32.gmra.mrb[0].mxu0 %v6122
    %v6193 = vpop.f32.mrb[0].mxu0
    %v6194 = vadd.f32 0.0, %v6193
    %v6195 = vpop.f32.mrb[0].mxu0
    %6196 = vdwg.mxu0
    %v6197 = vsel %vm1230, %v6194, -inf
    %6198 = vmax.xlane.f32.xlu0 %v6197
    %v6199 = vpop.xlane.xlu0 %6198
    %v6200 = vsub.f32 %v6194, %v6199
    %v6201 = vmul.f32 %v6200, 1.442695
    %v6202 = vpow.pop %v6201
    %v6203 = vsel %vm1230, %v6202, 0.0
    %6204 = vadd.xlane.f32.xlu0 %v6203
    %v6205 = vpop.xlane.xlu0 %6204
    %v6206 = vrcp.pop %v6205
    %v6207 = vmul.f32 %v6202, %v6206
    %v6209 = vsel %vm1230, %v6207, 0
    %6211 = vmatprep.subr.mxu0 0.0
    %6212 = vmatpush1.msra.mxu0 %v5421
    %6213 = vmatprep.subr.mxu0 0.0
    %6214 = vmatpush1.msra.mxu0 0.0
    %6215 = vmatprep.subr.mxu0 0.0
    %6216 = vmatpush1.msra.mxu0 0.0
    %6217 = vmatprep.subr.mxu0 0.0
    %6218 = vmatpush1.msra.mxu0 0.0
    %6219 = vmatprep.subr.mxu0 0.0
    %6220 = vmatpush1.msra.mxu0 0.0
    %6221 = vmatprep.subr.mxu0 0.0
    %6222 = vmatpush1.msra.mxu0 0.0
    %6223 = vmatprep.subr.mxu0 0.0
    %6224 = vmatpush1.msra.mxu0 0.0
    %6225 = vmatprep.subr.mxu0 0.0
    %6226 = vmatpush1.msra.mxu0 0.0
    %6227 = vmatprep.subr.mxu0 0.0
    %6228 = vmatpush1.msra.mxu0 0.0
    %6229 = vmatprep.subr.mxu0 0.0
    %6230 = vmatpush1.msra.mxu0 0.0
    %6231 = vmatprep.subr.mxu0 0.0
    %6232 = vmatpush1.msra.mxu0 0.0
    %6233 = vmatprep.subr.mxu0 0.0
    %6234 = vmatpush1.msra.mxu0 0.0
    %6235 = vmatprep.subr.mxu0 0.0
    %6236 = vmatpush1.msra.mxu0 0.0
    %6237 = vmatprep.subr.mxu0 0.0
    %6238 = vmatpush1.msra.mxu0 0.0
    %6239 = vmatprep.subr.mxu0 0.0
    %6240 = vmatpush1.msra.mxu0 0.0
    %6241 = vmatprep.subr.mxu0 0.0
    %6242 = vmatpush1.msra.mxu0 0.0
    %6243 = vmatprep.subr.mxu0 0.0
    %6244 = vmatpush1.msra.mxu0 0.0
    %6245 = vmatprep.subr.mxu0 0.0
    %6246 = vmatpush1.msra.mxu0 0.0
    %6247 = vmatprep.subr.mxu0 0.0
    %6248 = vmatpush1.msra.mxu0 0.0
    %6249 = vmatprep.subr.mxu0 0.0
    %6250 = vmatpush1.msra.mxu0 0.0
    %6251 = vmatprep.subr.mxu0 0.0
    %6252 = vmatpush1.msra.mxu0 0.0
    %6253 = vmatprep.subr.mxu0 0.0
    %6254 = vmatpush1.msra.mxu0 0.0
    %6255 = vmatprep.subr.mxu0 0.0
    %6256 = vmatpush1.msra.mxu0 0.0
    %6257 = vmatprep.subr.mxu0 0.0
    %6258 = vmatpush1.msra.mxu0 0.0
    %6259 = vmatprep.subr.mxu0 0.0
    %6260 = vmatpush1.msra.mxu0 0.0
    %6261 = vmatprep.subr.mxu0 0.0
    %6262 = vmatpush1.msra.mxu0 0.0
    %6263 = vmatprep.subr.mxu0 0.0
    %6264 = vmatpush1.msra.mxu0 0.0
    %6265 = vmatprep.subr.mxu0 0.0
    %6266 = vmatpush1.msra.mxu0 0.0
    %6267 = vmatprep.subr.mxu0 0.0
    %6268 = vmatpush1.msra.mxu0 0.0
    %6269 = vmatprep.subr.mxu0 0.0
    %6270 = vmatpush1.msra.mxu0 0.0
    %6271 = vmatprep.subr.mxu0 0.0
    %6272 = vmatpush1.msra.mxu0 0.0
    %6273 = vmatprep.subr.mxu0 0.0
    %6274 = vmatpush1.msra.mxu0 0.0
    %6275 = vmatprep.mubr.f32.mxu0 0.0
    %6276 = vmatmul.mubr.f32.gmra.mrb[0].mxu0 %v6209
    %v6277 = vpop.f32.mrb[0].mxu0
    %v6278 = vadd.f32 0.0, %v6277
    %v6279 = vpop.f32.mrb[0].mxu0
    %6280 = vdwg.mxu0
    %s6281 = scalar_lea.vmem %s10, 40
    %v6282 = vld [vmem:[%s6281] sm:$0xff]
    %v6284 = vsel %vm1230, %v6278, 0
    %6286 = vmatprep.subr.mxu0 0.0
    %6287 = vmatpush1.msra.mxu0 %v6282
    %6288 = vmatprep.subr.mxu0 0.0
    %6289 = vmatpush1.msra.mxu0 0.0
    %6290 = vmatprep.subr.mxu0 0.0
    %6291 = vmatpush1.msra.mxu0 0.0
    %6292 = vmatprep.subr.mxu0 0.0
    %6293 = vmatpush1.msra.mxu0 0.0
    %6294 = vmatprep.subr.mxu0 0.0
    %6295 = vmatpush1.msra.mxu0 0.0
    %6296 = vmatprep.subr.mxu0 0.0
    %6297 = vmatpush1.msra.mxu0 0.0
    %6298 = vmatprep.subr.mxu0 0.0
    %6299 = vmatpush1.msra.mxu0 0.0
    %6300 = vmatprep.subr.mxu0 0.0
    %6301 = vmatpush1.msra.mxu0 0.0
    %6302 = vmatprep.subr.mxu0 0.0
    %6303 = vmatpush1.msra.mxu0 0.0
    %6304 = vmatprep.subr.mxu0 0.0
    %6305 = vmatpush1.msra.mxu0 0.0
    %6306 = vmatprep.subr.mxu0 0.0
    %6307 = vmatpush1.msra.mxu0 0.0
    %6308 = vmatprep.subr.mxu0 0.0
    %6309 = vmatpush1.msra.mxu0 0.0
    %6310 = vmatprep.subr.mxu0 0.0
    %6311 = vmatpush1.msra.mxu0 0.0
    %6312 = vmatprep.subr.mxu0 0.0
    %6313 = vmatpush1.msra.mxu0 0.0
    %6314 = vmatprep.subr.mxu0 0.0
    %6315 = vmatpush1.msra.mxu0 0.0
    %6316 = vmatprep.subr.mxu0 0.0
    %6317 = vmatpush1.msra.mxu0 0.0
    %6318 = vmatprep.subr.mxu0 0.0
    %6319 = vmatpush1.msra.mxu0 0.0
    %6320 = vmatprep.subr.mxu0 0.0
    %6321 = vmatpush1.msra.mxu0 0.0
    %6322 = vmatprep.subr.mxu0 0.0
    %6323 = vmatpush1.msra.mxu0 0.0
    %6324 = vmatprep.subr.mxu0 0.0
    %6325 = vmatpush1.msra.mxu0 0.0
    %6326 = vmatprep.subr.mxu0 0.0
    %6327 = vmatpush1.msra.mxu0 0.0
    %6328 = vmatprep.subr.mxu0 0.0
    %6329 = vmatpush1.msra.mxu0 0.0
    %6330 = vmatprep.subr.mxu0 0.0
    %6331 = vmatpush1.msra.mxu0 0.0
    %6332 = vmatprep.subr.mxu0 0.0
    %6333 = vmatpush1.msra.mxu0 0.0
    %6334 = vmatprep.subr.mxu0 0.0
    %6335 = vmatpush1.msra.mxu0 0.0
    %6336 = vmatprep.subr.mxu0 0.0
    %6337 = vmatpush1.msra.mxu0 0.0
    %6338 = vmatprep.subr.mxu0 0.0
    %6339 = vmatpush1.msra.mxu0 0.0
    %6340 = vmatprep.subr.mxu0 0.0
    %6341 = vmatpush1.msra.mxu0 0.0
    %6342 = vmatprep.subr.mxu0 0.0
    %6343 = vmatpush1.msra.mxu0 0.0
    %6344 = vmatprep.subr.mxu0 0.0
    %6345 = vmatpush1.msra.mxu0 0.0
    %6346 = vmatprep.subr.mxu0 0.0
    %6347 = vmatpush1.msra.mxu0 0.0
    %6348 = vmatprep.subr.mxu0 0.0
    %6349 = vmatpush1.msra.mxu0 0.0
    %6350 = vmatprep.mubr.f32.mxu0 0.0
    %6351 = vmatmul.mubr.f32.gmra.mrb[0].mxu0 %v6284
    %v6352 = vpop.f32.mrb[0].mxu0
    %v6353 = vadd.f32 0.0, %v6352
    %v6354 = vpop.f32.mrb[0].mxu0
    %6355 = vdwg.mxu0
    %v6357 = vsel %vm1230, %v6115, 0
    %6359 = vmatprep.subr.mxu0 0.0
    %6360 = vmatpush1.msra.mxu0 %v6119
    %6361 = vmatprep.subr.mxu0 0.0
    %6362 = vmatpush1.msra.mxu0 0.0
    %6363 = vmatprep.subr.mxu0 0.0
    %6364 = vmatpush1.msra.mxu0 0.0
    %6365 = vmatprep.subr.mxu0 0.0
    %6366 = vmatpush1.msra.mxu0 0.0
    %6367 = vmatprep.subr.mxu0 0.0
    %6368 = vmatpush1.msra.mxu0 0.0
    %6369 = vmatprep.subr.mxu0 0.0
    %6370 = vmatpush1.msra.mxu0 0.0
    %6371 = vmatprep.subr.mxu0 0.0
    %6372 = vmatpush1.msra.mxu0 0.0
    %6373 = vmatprep.subr.mxu0 0.0
    %6374 = vmatpush1.msra.mxu0 0.0
    %6375 = vmatprep.subr.mxu0 0.0
    %6376 = vmatpush1.msra.mxu0 0.0
    %6377 = vmatprep.subr.mxu0 0.0
    %6378 = vmatpush1.msra.mxu0 0.0
    %6379 = vmatprep.subr.mxu0 0.0
    %6380 = vmatpush1.msra.mxu0 0.0
    %6381 = vmatprep.subr.mxu0 0.0
    %6382 = vmatpush1.msra.mxu0 0.0
    %6383 = vmatprep.subr.mxu0 0.0
    %6384 = vmatpush1.msra.mxu0 0.0
    %6385 = vmatprep.subr.mxu0 0.0
    %6386 = vmatpush1.msra.mxu0 0.0
    %6387 = vmatprep.subr.mxu0 0.0
    %6388 = vmatpush1.msra.mxu0 0.0
    %6389 = vmatprep.subr.mxu0 0.0
    %6390 = vmatpush1.msra.mxu0 0.0
    %6391 = vmatprep.subr.mxu0 0.0
    %6392 = vmatpush1.msra.mxu0 0.0
    %6393 = vmatprep.subr.mxu0 0.0
    %6394 = vmatpush1.msra.mxu0 0.0
    %6395 = vmatprep.subr.mxu0 0.0
    %6396 = vmatpush1.msra.mxu0 0.0
    %6397 = vmatprep.subr.mxu0 0.0
    %6398 = vmatpush1.msra.mxu0 0.0
    %6399 = vmatprep.subr.mxu0 0.0
    %6400 = vmatpush1.msra.mxu0 0.0
    %6401 = vmatprep.subr.mxu0 0.0
    %6402 = vmatpush1.msra.mxu0 0.0
    %6403 = vmatprep.subr.mxu0 0.0
    %6404 = vmatpush1.msra.mxu0 0.0
    %6405 = vmatprep.subr.mxu0 0.0
    %6406 = vmatpush1.msra.mxu0 0.0
    %6407 = vmatprep.subr.mxu0 0.0
    %6408 = vmatpush1.msra.mxu0 0.0
    %6409 = vmatprep.subr.mxu0 0.0
    %6410 = vmatpush1.msra.mxu0 0.0
    %6411 = vmatprep.subr.mxu0 0.0
    %6412 = vmatpush1.msra.mxu0 0.0
    %6413 = vmatprep.subr.mxu0 0.0
    %6414 = vmatpush1.msra.mxu0 0.0
    %6415 = vmatprep.subr.mxu0 0.0
    %6416 = vmatpush1.msra.mxu0 0.0
    %6417 = vmatprep.subr.mxu0 0.0
    %6418 = vmatpush1.msra.mxu0 0.0
    %6419 = vmatprep.subr.mxu0 0.0
    %6420 = vmatpush1.msra.mxu0 0.0
    %6421 = vmatprep.subr.mxu0 0.0
    %6422 = vmatpush1.msra.mxu0 0.0
    %6423 = vmatprep.mubr.f32.mxu0 0.0
    %6424 = vmatmul.mubr.f32.gmra.mrb[0].mxu0 %v6357
    %v6425 = vpop.f32.mrb[0].mxu0
    %v6426 = vadd.f32 %v6353, %v6425
    %v6427 = vpop.f32.mrb[0].mxu0
    %6428 = vdwg.mxu0
    %v6429 = vmul.f32 %v5509, 0.35355338
    %v6431 = vsel %vm1230, %v6429, 0
    %v6434 = vsel %vm1230, %v5597, 0
    %6436 = vmatprep.subr.mxu0 0.0
    %6437 = vmatpush1.xpose.msra.mxu0 %v6434
    %6438 = vmatprep.subr.mxu0 0.0
    %6439 = vmatpush1.xpose.msra.mxu0 0.0
    %6440 = vmatprep.subr.mxu0 0.0
    %6441 = vmatpush1.xpose.msra.mxu0 0.0
    %6442 = vmatprep.subr.mxu0 0.0
    %6443 = vmatpush1.xpose.msra.mxu0 0.0
    %6444 = vmatprep.subr.mxu0 0.0
    %6445 = vmatpush1.xpose.msra.mxu0 0.0
    %6446 = vmatprep.subr.mxu0 0.0
    %6447 = vmatpush1.xpose.msra.mxu0 0.0
    %6448 = vmatprep.subr.mxu0 0.0
    %6449 = vmatpush1.xpose.msra.mxu0 0.0
    %6450 = vmatprep.subr.mxu0 0.0
    %6451 = vmatpush1.xpose.msra.mxu0 0.0
    %6452 = vmatprep.subr.mxu0 0.0
    %6453 = vmatpush1.xpose.msra.mxu0 0.0
    %6454 = vmatprep.subr.mxu0 0.0
    %6455 = vmatpush1.xpose.msra.mxu0 0.0
    %6456 = vmatprep.subr.mxu0 0.0
    %6457 = vmatpush1.xpose.msra.mxu0 0.0
    %6458 = vmatprep.subr.mxu0 0.0
    %6459 = vmatpush1.xpose.msra.mxu0 0.0
    %6460 = vmatprep.subr.mxu0 0.0
    %6461 = vmatpush1.xpose.msra.mxu0 0.0
    %6462 = vmatprep.subr.mxu0 0.0
    %6463 = vmatpush1.xpose.msra.mxu0 0.0
    %6464 = vmatprep.subr.mxu0 0.0
    %6465 = vmatpush1.xpose.msra.mxu0 0.0
    %6466 = vmatprep.subr.mxu0 0.0
    %6467 = vmatpush1.xpose.msra.mxu0 0.0
    %6468 = vmatprep.subr.mxu0 0.0
    %6469 = vmatpush1.xpose.msra.mxu0 0.0
    %6470 = vmatprep.subr.mxu0 0.0
    %6471 = vmatpush1.xpose.msra.mxu0 0.0
    %6472 = vmatprep.subr.mxu0 0.0
    %6473 = vmatpush1.xpose.msra.mxu0 0.0
    %6474 = vmatprep.subr.mxu0 0.0
    %6475 = vmatpush1.xpose.msra.mxu0 0.0
    %6476 = vmatprep.subr.mxu0 0.0
    %6477 = vmatpush1.xpose.msra.mxu0 0.0
    %6478 = vmatprep.subr.mxu0 0.0
    %6479 = vmatpush1.xpose.msra.mxu0 0.0
    %6480 = vmatprep.subr.mxu0 0.0
    %6481 = vmatpush1.xpose.msra.mxu0 0.0
    %6482 = vmatprep.subr.mxu0 0.0
    %6483 = vmatpush1.xpose.msra.mxu0 0.0
    %6484 = vmatprep.subr.mxu0 0.0
    %6485 = vmatpush1.xpose.msra.mxu0 0.0
    %6486 = vmatprep.subr.mxu0 0.0
    %6487 = vmatpush1.xpose.msra.mxu0 0.0
    %6488 = vmatprep.subr.mxu0 0.0
    %6489 = vmatpush1.xpose.msra.mxu0 0.0
    %6490 = vmatprep.subr.mxu0 0.0
    %6491 = vmatpush1.xpose.msra.mxu0 0.0
    %6492 = vmatprep.subr.mxu0 0.0
    %6493 = vmatpush1.xpose.msra.mxu0 0.0
    %6494 = vmatprep.subr.mxu0 0.0
    %6495 = vmatpush1.xpose.msra.mxu0 0.0
    %6496 = vmatprep.subr.mxu0 0.0
    %6497 = vmatpush1.xpose.msra.mxu0 0.0
    %6498 = vmatprep.subr.mxu0 0.0
    %6499 = vmatpush1.xpose.msra.mxu0 0.0
    %6500 = vmatprep.mubr.f32.mxu0 0.0
    %6501 = vmatmul.mubr.f32.gmra.mrb[0].mxu0 %v6431
    %v6502 = vpop.f32.mrb[0].mxu0
    %v6503 = vadd.f32 0.0, %v6502
    %v6504 = vpop.f32.mrb[0].mxu0
    %6505 = vdwg.mxu0
    %v6506 = vsel %vm1230, %v6503, -inf
    %6507 = vmax.xlane.f32.xlu0 %v6506
    %v6508 = vpop.xlane.xlu0 %6507
    %v6509 = vsub.f32 %v6503, %v6508
    %v6510 = vmul.f32 %v6509, 1.442695
    %v6511 = vpow.pop %v6510
    %v6512 = vsel %vm1230, %v6511, 0.0
    %6513 = vadd.xlane.f32.xlu0 %v6512
    %v6514 = vpop.xlane.xlu0 %6513
    %v6515 = vrcp.pop %v6514
    %v6516 = vmul.f32 %v6511, %v6515
    %v6518 = vsel %vm1230, %v6516, 0
    %6520 = vmatprep.subr.mxu0 0.0
    %6521 = vmatpush1.msra.mxu0 %v5685
    %6522 = vmatprep.subr.mxu0 0.0
    %6523 = vmatpush1.msra.mxu0 0.0
    %6524 = vmatprep.subr.mxu0 0.0
    %6525 = vmatpush1.msra.mxu0 0.0
    %6526 = vmatprep.subr.mxu0 0.0
    %6527 = vmatpush1.msra.mxu0 0.0
    %6528 = vmatprep.subr.mxu0 0.0
    %6529 = vmatpush1.msra.mxu0 0.0
    %6530 = vmatprep.subr.mxu0 0.0
    %6531 = vmatpush1.msra.mxu0 0.0
    %6532 = vmatprep.subr.mxu0 0.0
    %6533 = vmatpush1.msra.mxu0 0.0
    %6534 = vmatprep.subr.mxu0 0.0
    %6535 = vmatpush1.msra.mxu0 0.0
    %6536 = vmatprep.subr.mxu0 0.0
    %6537 = vmatpush1.msra.mxu0 0.0
    %6538 = vmatprep.subr.mxu0 0.0
    %6539 = vmatpush1.msra.mxu0 0.0
    %6540 = vmatprep.subr.mxu0 0.0
    %6541 = vmatpush1.msra.mxu0 0.0
    %6542 = vmatprep.subr.mxu0 0.0
    %6543 = vmatpush1.msra.mxu0 0.0
    %6544 = vmatprep.subr.mxu0 0.0
    %6545 = vmatpush1.msra.mxu0 0.0
    %6546 = vmatprep.subr.mxu0 0.0
    %6547 = vmatpush1.msra.mxu0 0.0
    %6548 = vmatprep.subr.mxu0 0.0
    %6549 = vmatpush1.msra.mxu0 0.0
    %6550 = vmatprep.subr.mxu0 0.0
    %6551 = vmatpush1.msra.mxu0 0.0
    %6552 = vmatprep.subr.mxu0 0.0
    %6553 = vmatpush1.msra.mxu0 0.0
    %6554 = vmatprep.subr.mxu0 0.0
    %6555 = vmatpush1.msra.mxu0 0.0
    %6556 = vmatprep.subr.mxu0 0.0
    %6557 = vmatpush1.msra.mxu0 0.0
    %6558 = vmatprep.subr.mxu0 0.0
    %6559 = vmatpush1.msra.mxu0 0.0
    %6560 = vmatprep.subr.mxu0 0.0
    %6561 = vmatpush1.msra.mxu0 0.0
    %6562 = vmatprep.subr.mxu0 0.0
    %6563 = vmatpush1.msra.mxu0 0.0
    %6564 = vmatprep.subr.mxu0 0.0
    %6565 = vmatpush1.msra.mxu0 0.0
    %6566 = vmatprep.subr.mxu0 0.0
    %6567 = vmatpush1.msra.mxu0 0.0
    %6568 = vmatprep.subr.mxu0 0.0
    %6569 = vmatpush1.msra.mxu0 0.0
    %6570 = vmatprep.subr.mxu0 0.0
    %6571 = vmatpush1.msra.mxu0 0.0
    %6572 = vmatprep.subr.mxu0 0.0
    %6573 = vmatpush1.msra.mxu0 0.0
    %6574 = vmatprep.subr.mxu0 0.0
    %6575 = vmatpush1.msra.mxu0 0.0
    %6576 = vmatprep.subr.mxu0 0.0
    %6577 = vmatpush1.msra.mxu0 0.0
    %6578 = vmatprep.subr.mxu0 0.0
    %6579 = vmatpush1.msra.mxu0 0.0
    %6580 = vmatprep.subr.mxu0 0.0
    %6581 = vmatpush1.msra.mxu0 0.0
    %6582 = vmatprep.subr.mxu0 0.0
    %6583 = vmatpush1.msra.mxu0 0.0
    %6584 = vmatprep.mubr.f32.mxu0 0.0
    %6585 = vmatmul.mubr.f32.gmra.mrb[0].mxu0 %v6518
    %v6586 = vpop.f32.mrb[0].mxu0
    %v6587 = vadd.f32 0.0, %v6586
    %v6588 = vpop.f32.mrb[0].mxu0
    %6589 = vdwg.mxu0
    %s6590 = scalar_lea.vmem %s10, 48
    %v6591 = vld [vmem:[%s6590] sm:$0xff]
    %v6593 = vsel %vm1230, %v6587, 0
    %6595 = vmatprep.subr.mxu0 0.0
    %6596 = vmatpush1.msra.mxu0 %v6591
    %6597 = vmatprep.subr.mxu0 0.0
    %6598 = vmatpush1.msra.mxu0 0.0
    %6599 = vmatprep.subr.mxu0 0.0
    %6600 = vmatpush1.msra.mxu0 0.0
    %6601 = vmatprep.subr.mxu0 0.0
    %6602 = vmatpush1.msra.mxu0 0.0
    %6603 = vmatprep.subr.mxu0 0.0
    %6604 = vmatpush1.msra.mxu0 0.0
    %6605 = vmatprep.subr.mxu0 0.0
    %6606 = vmatpush1.msra.mxu0 0.0
    %6607 = vmatprep.subr.mxu0 0.0
    %6608 = vmatpush1.msra.mxu0 0.0
    %6609 = vmatprep.subr.mxu0 0.0
    %6610 = vmatpush1.msra.mxu0 0.0
    %6611 = vmatprep.subr.mxu0 0.0
    %6612 = vmatpush1.msra.mxu0 0.0
    %6613 = vmatprep.subr.mxu0 0.0
    %6614 = vmatpush1.msra.mxu0 0.0
    %6615 = vmatprep.subr.mxu0 0.0
    %6616 = vmatpush1.msra.mxu0 0.0
    %6617 = vmatprep.subr.mxu0 0.0
    %6618 = vmatpush1.msra.mxu0 0.0
    %6619 = vmatprep.subr.mxu0 0.0
    %6620 = vmatpush1.msra.mxu0 0.0
    %6621 = vmatprep.subr.mxu0 0.0
    %6622 = vmatpush1.msra.mxu0 0.0
    %6623 = vmatprep.subr.mxu0 0.0
    %6624 = vmatpush1.msra.mxu0 0.0
    %6625 = vmatprep.subr.mxu0 0.0
    %6626 = vmatpush1.msra.mxu0 0.0
    %6627 = vmatprep.subr.mxu0 0.0
    %6628 = vmatpush1.msra.mxu0 0.0
    %6629 = vmatprep.subr.mxu0 0.0
    %6630 = vmatpush1.msra.mxu0 0.0
    %6631 = vmatprep.subr.mxu0 0.0
    %6632 = vmatpush1.msra.mxu0 0.0
    %6633 = vmatprep.subr.mxu0 0.0
    %6634 = vmatpush1.msra.mxu0 0.0
    %6635 = vmatprep.subr.mxu0 0.0
    %6636 = vmatpush1.msra.mxu0 0.0
    %6637 = vmatprep.subr.mxu0 0.0
    %6638 = vmatpush1.msra.mxu0 0.0
    %6639 = vmatprep.subr.mxu0 0.0
    %6640 = vmatpush1.msra.mxu0 0.0
    %6641 = vmatprep.subr.mxu0 0.0
    %6642 = vmatpush1.msra.mxu0 0.0
    %6643 = vmatprep.subr.mxu0 0.0
    %6644 = vmatpush1.msra.mxu0 0.0
    %6645 = vmatprep.subr.mxu0 0.0
    %6646 = vmatpush1.msra.mxu0 0.0
    %6647 = vmatprep.subr.mxu0 0.0
    %6648 = vmatpush1.msra.mxu0 0.0
    %6649 = vmatprep.subr.mxu0 0.0
    %6650 = vmatpush1.msra.mxu0 0.0
    %6651 = vmatprep.subr.mxu0 0.0
    %6652 = vmatpush1.msra.mxu0 0.0
    %6653 = vmatprep.subr.mxu0 0.0
    %6654 = vmatpush1.msra.mxu0 0.0
    %6655 = vmatprep.subr.mxu0 0.0
    %6656 = vmatpush1.msra.mxu0 0.0
    %6657 = vmatprep.subr.mxu0 0.0
    %6658 = vmatpush1.msra.mxu0 0.0
    %6659 = vmatprep.mubr.f32.mxu0 0.0
    %6660 = vmatmul.mubr.f32.gmra.mrb[0].mxu0 %v6593
    %v6661 = vpop.f32.mrb[0].mxu0
    %v6662 = vadd.f32 0.0, %v6661
    %v6663 = vpop.f32.mrb[0].mxu0
    %6664 = vdwg.mxu0
    %v6665 = vadd.f32 %v6426, %v6662
    %v6666 = vmul.f32 %v5773, 0.35355338
    %v6668 = vsel %vm1230, %v6666, 0
    %v6671 = vsel %vm1230, %v5861, 0
    %6673 = vmatprep.subr.mxu0 0.0
    %6674 = vmatpush1.xpose.msra.mxu0 %v6671
    %6675 = vmatprep.subr.mxu0 0.0
    %6676 = vmatpush1.xpose.msra.mxu0 0.0
    %6677 = vmatprep.subr.mxu0 0.0
    %6678 = vmatpush1.xpose.msra.mxu0 0.0
    %6679 = vmatprep.subr.mxu0 0.0
    %6680 = vmatpush1.xpose.msra.mxu0 0.0
    %6681 = vmatprep.subr.mxu0 0.0
    %6682 = vmatpush1.xpose.msra.mxu0 0.0
    %6683 = vmatprep.subr.mxu0 0.0
    %6684 = vmatpush1.xpose.msra.mxu0 0.0
    %6685 = vmatprep.subr.mxu0 0.0
    %6686 = vmatpush1.xpose.msra.mxu0 0.0
    %6687 = vmatprep.subr.mxu0 0.0
    %6688 = vmatpush1.xpose.msra.mxu0 0.0
    %6689 = vmatprep.subr.mxu0 0.0
    %6690 = vmatpush1.xpose.msra.mxu0 0.0
    %6691 = vmatprep.subr.mxu0 0.0
    %6692 = vmatpush1.xpose.msra.mxu0 0.0
    %6693 = vmatprep.subr.mxu0 0.0
    %6694 = vmatpush1.xpose.msra.mxu0 0.0
    %6695 = vmatprep.subr.mxu0 0.0
    %6696 = vmatpush1.xpose.msra.mxu0 0.0
    %6697 = vmatprep.subr.mxu0 0.0
    %6698 = vmatpush1.xpose.msra.mxu0 0.0
    %6699 = vmatprep.subr.mxu0 0.0
    %6700 = vmatpush1.xpose.msra.mxu0 0.0
    %6701 = vmatprep.subr.mxu0 0.0
    %6702 = vmatpush1.xpose.msra.mxu0 0.0
    %6703 = vmatprep.subr.mxu0 0.0
    %6704 = vmatpush1.xpose.msra.mxu0 0.0
    %6705 = vmatprep.subr.mxu0 0.0
    %6706 = vmatpush1.xpose.msra.mxu0 0.0
    %6707 = vmatprep.subr.mxu0 0.0
    %6708 = vmatpush1.xpose.msra.mxu0 0.0
    %6709 = vmatprep.subr.mxu0 0.0
    %6710 = vmatpush1.xpose.msra.mxu0 0.0
    %6711 = vmatprep.subr.mxu0 0.0
    %6712 = vmatpush1.xpose.msra.mxu0 0.0
    %6713 = vmatprep.subr.mxu0 0.0
    %6714 = vmatpush1.xpose.msra.mxu0 0.0
    %6715 = vmatprep.subr.mxu0 0.0
    %6716 = vmatpush1.xpose.msra.mxu0 0.0
    %6717 = vmatprep.subr.mxu0 0.0
    %6718 = vmatpush1.xpose.msra.mxu0 0.0
    %6719 = vmatprep.subr.mxu0 0.0
    %6720 = vmatpush1.xpose.msra.mxu0 0.0
    %6721 = vmatprep.subr.mxu0 0.0
    %6722 = vmatpush1.xpose.msra.mxu0 0.0
    %6723 = vmatprep.subr.mxu0 0.0
    %6724 = vmatpush1.xpose.msra.mxu0 0.0
    %6725 = vmatprep.subr.mxu0 0.0
    %6726 = vmatpush1.xpose.msra.mxu0 0.0
    %6727 = vmatprep.subr.mxu0 0.0
    %6728 = vmatpush1.xpose.msra.mxu0 0.0
    %6729 = vmatprep.subr.mxu0 0.0
    %6730 = vmatpush1.xpose.msra.mxu0 0.0
    %6731 = vmatprep.subr.mxu0 0.0
    %6732 = vmatpush1.xpose.msra.mxu0 0.0
    %6733 = vmatprep.subr.mxu0 0.0
    %6734 = vmatpush1.xpose.msra.mxu0 0.0
    %6735 = vmatprep.subr.mxu0 0.0
    %6736 = vmatpush1.xpose.msra.mxu0 0.0
    %6737 = vmatprep.mubr.f32.mxu0 0.0
    %6738 = vmatmul.mubr.f32.gmra.mrb[0].mxu0 %v6668
    %v6739 = vpop.f32.mrb[0].mxu0
    %v6740 = vadd.f32 0.0, %v6739
    %v6741 = vpop.f32.mrb[0].mxu0
    %6742 = vdwg.mxu0
    %v6743 = vsel %vm1230, %v6740, -inf
    %6744 = vmax.xlane.f32.xlu0 %v6743
    %v6745 = vpop.xlane.xlu0 %6744
    %v6746 = vsub.f32 %v6740, %v6745
    %v6747 = vmul.f32 %v6746, 1.442695
    %v6748 = vpow.pop %v6747
    %v6749 = vsel %vm1230, %v6748, 0.0
    %6750 = vadd.xlane.f32.xlu0 %v6749
    %v6751 = vpop.xlane.xlu0 %6750
    %v6752 = vrcp.pop %v6751
    %v6753 = vmul.f32 %v6748, %v6752
    %v6755 = vsel %vm1230, %v6753, 0
    %6757 = vmatprep.subr.mxu0 0.0
    %6758 = vmatpush1.msra.mxu0 %v5949
    %6759 = vmatprep.subr.mxu0 0.0
    %6760 = vmatpush1.msra.mxu0 0.0
    %6761 = vmatprep.subr.mxu0 0.0
    %6762 = vmatpush1.msra.mxu0 0.0
    %6763 = vmatprep.subr.mxu0 0.0
    %6764 = vmatpush1.msra.mxu0 0.0
    %6765 = vmatprep.subr.mxu0 0.0
    %6766 = vmatpush1.msra.mxu0 0.0
    %6767 = vmatprep.subr.mxu0 0.0
    %6768 = vmatpush1.msra.mxu0 0.0
    %6769 = vmatprep.subr.mxu0 0.0
    %6770 = vmatpush1.msra.mxu0 0.0
    %6771 = vmatprep.subr.mxu0 0.0
    %6772 = vmatpush1.msra.mxu0 0.0
    %6773 = vmatprep.subr.mxu0 0.0
    %6774 = vmatpush1.msra.mxu0 0.0
    %6775 = vmatprep.subr.mxu0 0.0
    %6776 = vmatpush1.msra.mxu0 0.0
    %6777 = vmatprep.subr.mxu0 0.0
    %6778 = vmatpush1.msra.mxu0 0.0
    %6779 = vmatprep.subr.mxu0 0.0
    %6780 = vmatpush1.msra.mxu0 0.0
    %6781 = vmatprep.subr.mxu0 0.0
    %6782 = vmatpush1.msra.mxu0 0.0
    %6783 = vmatprep.subr.mxu0 0.0
    %6784 = vmatpush1.msra.mxu0 0.0
    %6785 = vmatprep.subr.mxu0 0.0
    %6786 = vmatpush1.msra.mxu0 0.0
    %6787 = vmatprep.subr.mxu0 0.0
    %6788 = vmatpush1.msra.mxu0 0.0
    %6789 = vmatprep.subr.mxu0 0.0
    %6790 = vmatpush1.msra.mxu0 0.0
    %6791 = vmatprep.subr.mxu0 0.0
    %6792 = vmatpush1.msra.mxu0 0.0
    %6793 = vmatprep.subr.mxu0 0.0
    %6794 = vmatpush1.msra.mxu0 0.0
    %6795 = vmatprep.subr.mxu0 0.0
    %6796 = vmatpush1.msra.mxu0 0.0
    %6797 = vmatprep.subr.mxu0 0.0
    %6798 = vmatpush1.msra.mxu0 0.0
    %6799 = vmatprep.subr.mxu0 0.0
    %6800 = vmatpush1.msra.mxu0 0.0
    %6801 = vmatprep.subr.mxu0 0.0
    %6802 = vmatpush1.msra.mxu0 0.0
    %6803 = vmatprep.subr.mxu0 0.0
    %6804 = vmatpush1.msra.mxu0 0.0
    %6805 = vmatprep.subr.mxu0 0.0
    %6806 = vmatpush1.msra.mxu0 0.0
    %6807 = vmatprep.subr.mxu0 0.0
    %6808 = vmatpush1.msra.mxu0 0.0
    %6809 = vmatprep.subr.mxu0 0.0
    %6810 = vmatpush1.msra.mxu0 0.0
    %6811 = vmatprep.subr.mxu0 0.0
    %6812 = vmatpush1.msra.mxu0 0.0
    %6813 = vmatprep.subr.mxu0 0.0
    %6814 = vmatpush1.msra.mxu0 0.0
    %6815 = vmatprep.subr.mxu0 0.0
    %6816 = vmatpush1.msra.mxu0 0.0
    %6817 = vmatprep.subr.mxu0 0.0
    %6818 = vmatpush1.msra.mxu0 0.0
    %6819 = vmatprep.subr.mxu0 0.0
    %6820 = vmatpush1.msra.mxu0 0.0
    %6821 = vmatprep.mubr.f32.mxu0 0.0
    %6822 = vmatmul.mubr.f32.gmra.mrb[0].mxu0 %v6755
    %v6823 = vpop.f32.mrb[0].mxu0
    %v6824 = vadd.f32 0.0, %v6823
    %v6825 = vpop.f32.mrb[0].mxu0
    %6826 = vdwg.mxu0
    %s6827 = scalar_lea.vmem %s10, 56
    %v6828 = vld [vmem:[%s6827] sm:$0xff]
    %v6830 = vsel %vm1230, %v6824, 0
    %6832 = vmatprep.subr.mxu0 0.0
    %6833 = vmatpush1.msra.mxu0 %v6828
    %6834 = vmatprep.subr.mxu0 0.0
    %6835 = vmatpush1.msra.mxu0 0.0
    %6836 = vmatprep.subr.mxu0 0.0
    %6837 = vmatpush1.msra.mxu0 0.0
    %6838 = vmatprep.subr.mxu0 0.0
    %6839 = vmatpush1.msra.mxu0 0.0
    %6840 = vmatprep.subr.mxu0 0.0
    %6841 = vmatpush1.msra.mxu0 0.0
    %6842 = vmatprep.subr.mxu0 0.0
    %6843 = vmatpush1.msra.mxu0 0.0
    %6844 = vmatprep.subr.mxu0 0.0
    %6845 = vmatpush1.msra.mxu0 0.0
    %6846 = vmatprep.subr.mxu0 0.0
    %6847 = vmatpush1.msra.mxu0 0.0
    %6848 = vmatprep.subr.mxu0 0.0
    %6849 = vmatpush1.msra.mxu0 0.0
    %6850 = vmatprep.subr.mxu0 0.0
    %6851 = vmatpush1.msra.mxu0 0.0
    %6852 = vmatprep.subr.mxu0 0.0
    %6853 = vmatpush1.msra.mxu0 0.0
    %6854 = vmatprep.subr.mxu0 0.0
    %6855 = vmatpush1.msra.mxu0 0.0
    %6856 = vmatprep.subr.mxu0 0.0
    %6857 = vmatpush1.msra.mxu0 0.0
    %6858 = vmatprep.subr.mxu0 0.0
    %6859 = vmatpush1.msra.mxu0 0.0
    %6860 = vmatprep.subr.mxu0 0.0
    %6861 = vmatpush1.msra.mxu0 0.0
    %6862 = vmatprep.subr.mxu0 0.0
    %6863 = vmatpush1.msra.mxu0 0.0
    %6864 = vmatprep.subr.mxu0 0.0
    %6865 = vmatpush1.msra.mxu0 0.0
    %6866 = vmatprep.subr.mxu0 0.0
    %6867 = vmatpush1.msra.mxu0 0.0
    %6868 = vmatprep.subr.mxu0 0.0
    %6869 = vmatpush1.msra.mxu0 0.0
    %6870 = vmatprep.subr.mxu0 0.0
    %6871 = vmatpush1.msra.mxu0 0.0
    %6872 = vmatprep.subr.mxu0 0.0
    %6873 = vmatpush1.msra.mxu0 0.0
    %6874 = vmatprep.subr.mxu0 0.0
    %6875 = vmatpush1.msra.mxu0 0.0
    %6876 = vmatprep.subr.mxu0 0.0
    %6877 = vmatpush1.msra.mxu0 0.0
    %6878 = vmatprep.subr.mxu0 0.0
    %6879 = vmatpush1.msra.mxu0 0.0
    %6880 = vmatprep.subr.mxu0 0.0
    %6881 = vmatpush1.msra.mxu0 0.0
    %6882 = vmatprep.subr.mxu0 0.0
    %6883 = vmatpush1.msra.mxu0 0.0
    %6884 = vmatprep.subr.mxu0 0.0
    %6885 = vmatpush1.msra.mxu0 0.0
    %6886 = vmatprep.subr.mxu0 0.0
    %6887 = vmatpush1.msra.mxu0 0.0
    %6888 = vmatprep.subr.mxu0 0.0
    %6889 = vmatpush1.msra.mxu0 0.0
    %6890 = vmatprep.subr.mxu0 0.0
    %6891 = vmatpush1.msra.mxu0 0.0
    %6892 = vmatprep.subr.mxu0 0.0
    %6893 = vmatpush1.msra.mxu0 0.0
    %6894 = vmatprep.subr.mxu0 0.0
    %6895 = vmatpush1.msra.mxu0 0.0
    %6896 = vmatprep.mubr.f32.mxu0 0.0
    %6897 = vmatmul.mubr.f32.gmra.mrb[0].mxu0 %v6830
    %v6898 = vpop.f32.mrb[0].mxu0
    %v6899 = vadd.f32 0.0, %v6898
    %v6900 = vpop.f32.mrb[0].mxu0
    %6901 = vdwg.mxu0
    %v6902 = vadd.f32 %v6665, %v6899
    %s6903 = scalar_lea.vmem %s11, 1
    %v6904 = vld [vmem:[%s6903] sm:$0x1]
    %v6906 = vlaneseq
    %v6907 = vshrl.u32 %v6906, 7
    %v6908 = vsub.s32 0, %v6907
    %v6909 = vrot.slane %v6904, %v6908
    %v6911 = vadd.f32 %v6902, %v6909
    %6912 = vst.msk [vmem:[#allocation2] sm:$0xff] %vm183, %v6911
    %v6913 = vmul.f32 %v4986, 0.35355338
    %v6915 = vsel %vm1230, %v6913, 0
    %v6918 = vsel %vm1230, %v5074, 0
    %6920 = vmatprep.subr.mxu0 0.0
    %6921 = vmatpush1.xpose.msra.mxu0 %v6918
    %6922 = vmatprep.subr.mxu0 0.0
    %6923 = vmatpush1.xpose.msra.mxu0 0.0
    %6924 = vmatprep.subr.mxu0 0.0
    %6925 = vmatpush1.xpose.msra.mxu0 0.0
    %6926 = vmatprep.subr.mxu0 0.0
    %6927 = vmatpush1.xpose.msra.mxu0 0.0
    %6928 = vmatprep.subr.mxu0 0.0
    %6929 = vmatpush1.xpose.msra.mxu0 0.0
    %6930 = vmatprep.subr.mxu0 0.0
    %6931 = vmatpush1.xpose.msra.mxu0 0.0
    %6932 = vmatprep.subr.mxu0 0.0
    %6933 = vmatpush1.xpose.msra.mxu0 0.0
    %6934 = vmatprep.subr.mxu0 0.0
    %6935 = vmatpush1.xpose.msra.mxu0 0.0
    %6936 = vmatprep.subr.mxu0 0.0
    %6937 = vmatpush1.xpose.msra.mxu0 0.0
    %6938 = vmatprep.subr.mxu0 0.0
    %6939 = vmatpush1.xpose.msra.mxu0 0.0
    %6940 = vmatprep.subr.mxu0 0.0
    %6941 = vmatpush1.xpose.msra.mxu0 0.0
    %6942 = vmatprep.subr.mxu0 0.0
    %6943 = vmatpush1.xpose.msra.mxu0 0.0
    %6944 = vmatprep.subr.mxu0 0.0
    %6945 = vmatpush1.xpose.msra.mxu0 0.0
    %6946 = vmatprep.subr.mxu0 0.0
    %6947 = vmatpush1.xpose.msra.mxu0 0.0
    %6948 = vmatprep.subr.mxu0 0.0
    %6949 = vmatpush1.xpose.msra.mxu0 0.0
    %6950 = vmatprep.subr.mxu0 0.0
    %6951 = vmatpush1.xpose.msra.mxu0 0.0
    %6952 = vmatprep.subr.mxu0 0.0
    %6953 = vmatpush1.xpose.msra.mxu0 0.0
    %6954 = vmatprep.subr.mxu0 0.0
    %6955 = vmatpush1.xpose.msra.mxu0 0.0
    %6956 = vmatprep.subr.mxu0 0.0
    %6957 = vmatpush1.xpose.msra.mxu0 0.0
    %6958 = vmatprep.subr.mxu0 0.0
    %6959 = vmatpush1.xpose.msra.mxu0 0.0
    %6960 = vmatprep.subr.mxu0 0.0
    %6961 = vmatpush1.xpose.msra.mxu0 0.0
    %6962 = vmatprep.subr.mxu0 0.0
    %6963 = vmatpush1.xpose.msra.mxu0 0.0
    %6964 = vmatprep.subr.mxu0 0.0
    %6965 = vmatpush1.xpose.msra.mxu0 0.0
    %6966 = vmatprep.subr.mxu0 0.0
    %6967 = vmatpush1.xpose.msra.mxu0 0.0
    %6968 = vmatprep.subr.mxu0 0.0
    %6969 = vmatpush1.xpose.msra.mxu0 0.0
    %6970 = vmatprep.subr.mxu0 0.0
    %6971 = vmatpush1.xpose.msra.mxu0 0.0
    %6972 = vmatprep.subr.mxu0 0.0
    %6973 = vmatpush1.xpose.msra.mxu0 0.0
    %6974 = vmatprep.subr.mxu0 0.0
    %6975 = vmatpush1.xpose.msra.mxu0 0.0
    %6976 = vmatprep.subr.mxu0 0.0
    %6977 = vmatpush1.xpose.msra.mxu0 0.0
    %6978 = vmatprep.subr.mxu0 0.0
    %6979 = vmatpush1.xpose.msra.mxu0 0.0
    %6980 = vmatprep.subr.mxu0 0.0
    %6981 = vmatpush1.xpose.msra.mxu0 0.0
    %6982 = vmatprep.subr.mxu0 0.0
    %6983 = vmatpush1.xpose.msra.mxu0 0.0
    %6984 = vmatprep.mubr.f32.mxu0 0.0
    %6985 = vmatmul.mubr.f32.gmra.mrb[0].mxu0 %v6915
    %v6986 = vpop.f32.mrb[0].mxu0
    %v6987 = vadd.f32 0.0, %v6986
    %v6988 = vpop.f32.mrb[0].mxu0
    %6989 = vdwg.mxu0
    %v6990 = vsel %vm1230, %v6987, -inf
    %6991 = vmax.xlane.f32.xlu0 %v6990
    %v6992 = vpop.xlane.xlu0 %6991
    %v6993 = vsub.f32 %v6987, %v6992
    %v6994 = vmul.f32 %v6993, 1.442695
    %v6995 = vpow.pop %v6994
    %v6996 = vsel %vm1230, %v6995, 0.0
    %6997 = vadd.xlane.f32.xlu0 %v6996
    %v6998 = vpop.xlane.xlu0 %6997
    %v6999 = vrcp.pop %v6998
    %v7000 = vmul.f32 %v6995, %v6999
    %v7002 = vsel %vm1230, %v7000, 0
    %7004 = vmatprep.subr.mxu0 0.0
    %7005 = vmatpush1.msra.mxu0 %v5162
    %7006 = vmatprep.subr.mxu0 0.0
    %7007 = vmatpush1.msra.mxu0 0.0
    %7008 = vmatprep.subr.mxu0 0.0
    %7009 = vmatpush1.msra.mxu0 0.0
    %7010 = vmatprep.subr.mxu0 0.0
    %7011 = vmatpush1.msra.mxu0 0.0
    %7012 = vmatprep.subr.mxu0 0.0
    %7013 = vmatpush1.msra.mxu0 0.0
    %7014 = vmatprep.subr.mxu0 0.0
    %7015 = vmatpush1.msra.mxu0 0.0
    %7016 = vmatprep.subr.mxu0 0.0
    %7017 = vmatpush1.msra.mxu0 0.0
    %7018 = vmatprep.subr.mxu0 0.0
    %7019 = vmatpush1.msra.mxu0 0.0
    %7020 = vmatprep.subr.mxu0 0.0
    %7021 = vmatpush1.msra.mxu0 0.0
    %7022 = vmatprep.subr.mxu0 0.0
    %7023 = vmatpush1.msra.mxu0 0.0
    %7024 = vmatprep.subr.mxu0 0.0
    %7025 = vmatpush1.msra.mxu0 0.0
    %7026 = vmatprep.subr.mxu0 0.0
    %7027 = vmatpush1.msra.mxu0 0.0
    %7028 = vmatprep.subr.mxu0 0.0
    %7029 = vmatpush1.msra.mxu0 0.0
    %7030 = vmatprep.subr.mxu0 0.0
    %7031 = vmatpush1.msra.mxu0 0.0
    %7032 = vmatprep.subr.mxu0 0.0
    %7033 = vmatpush1.msra.mxu0 0.0
    %7034 = vmatprep.subr.mxu0 0.0
    %7035 = vmatpush1.msra.mxu0 0.0
    %7036 = vmatprep.subr.mxu0 0.0
    %7037 = vmatpush1.msra.mxu0 0.0
    %7038 = vmatprep.subr.mxu0 0.0
    %7039 = vmatpush1.msra.mxu0 0.0
    %7040 = vmatprep.subr.mxu0 0.0
    %7041 = vmatpush1.msra.mxu0 0.0
    %7042 = vmatprep.subr.mxu0 0.0
    %7043 = vmatpush1.msra.mxu0 0.0
    %7044 = vmatprep.subr.mxu0 0.0
    %7045 = vmatpush1.msra.mxu0 0.0
    %7046 = vmatprep.subr.mxu0 0.0
    %7047 = vmatpush1.msra.mxu0 0.0
    %7048 = vmatprep.subr.mxu0 0.0
    %7049 = vmatpush1.msra.mxu0 0.0
    %7050 = vmatprep.subr.mxu0 0.0
    %7051 = vmatpush1.msra.mxu0 0.0
    %7052 = vmatprep.subr.mxu0 0.0
    %7053 = vmatpush1.msra.mxu0 0.0
    %7054 = vmatprep.subr.mxu0 0.0
    %7055 = vmatpush1.msra.mxu0 0.0
    %7056 = vmatprep.subr.mxu0 0.0
    %7057 = vmatpush1.msra.mxu0 0.0
    %7058 = vmatprep.subr.mxu0 0.0
    %7059 = vmatpush1.msra.mxu0 0.0
    %7060 = vmatprep.subr.mxu0 0.0
    %7061 = vmatpush1.msra.mxu0 0.0
    %7062 = vmatprep.subr.mxu0 0.0
    %7063 = vmatpush1.msra.mxu0 0.0
    %7064 = vmatprep.subr.mxu0 0.0
    %7065 = vmatpush1.msra.mxu0 0.0
    %7066 = vmatprep.subr.mxu0 0.0
    %7067 = vmatpush1.msra.mxu0 0.0
    %7068 = vmatprep.mubr.f32.mxu0 0.0
    %7069 = vmatmul.mubr.f32.gmra.mrb[0].mxu0 %v7002
    %v7070 = vpop.f32.mrb[0].mxu0
    %v7071 = vadd.f32 0.0, %v7070
    %v7072 = vpop.f32.mrb[0].mxu0
    %7073 = vdwg.mxu0
    %v7074 = vld [vmem:[%s6118] sm:$0xff]
    %v7075 = vmul.f32 %v5250, 0.35355338
    %v7077 = vsel %vm1230, %v7075, 0
    %v7080 = vsel %vm1230, %v5338, 0
    %7082 = vmatprep.subr.mxu0 0.0
    %7083 = vmatpush1.xpose.msra.mxu0 %v7080
    %7084 = vmatprep.subr.mxu0 0.0
    %7085 = vmatpush1.xpose.msra.mxu0 0.0
    %7086 = vmatprep.subr.mxu0 0.0
    %7087 = vmatpush1.xpose.msra.mxu0 0.0
    %7088 = vmatprep.subr.mxu0 0.0
    %7089 = vmatpush1.xpose.msra.mxu0 0.0
    %7090 = vmatprep.subr.mxu0 0.0
    %7091 = vmatpush1.xpose.msra.mxu0 0.0
    %7092 = vmatprep.subr.mxu0 0.0
    %7093 = vmatpush1.xpose.msra.mxu0 0.0
    %7094 = vmatprep.subr.mxu0 0.0
    %7095 = vmatpush1.xpose.msra.mxu0 0.0
    %7096 = vmatprep.subr.mxu0 0.0
    %7097 = vmatpush1.xpose.msra.mxu0 0.0
    %7098 = vmatprep.subr.mxu0 0.0
    %7099 = vmatpush1.xpose.msra.mxu0 0.0
    %7100 = vmatprep.subr.mxu0 0.0
    %7101 = vmatpush1.xpose.msra.mxu0 0.0
    %7102 = vmatprep.subr.mxu0 0.0
    %7103 = vmatpush1.xpose.msra.mxu0 0.0
    %7104 = vmatprep.subr.mxu0 0.0
    %7105 = vmatpush1.xpose.msra.mxu0 0.0
    %7106 = vmatprep.subr.mxu0 0.0
    %7107 = vmatpush1.xpose.msra.mxu0 0.0
    %7108 = vmatprep.subr.mxu0 0.0
    %7109 = vmatpush1.xpose.msra.mxu0 0.0
    %7110 = vmatprep.subr.mxu0 0.0
    %7111 = vmatpush1.xpose.msra.mxu0 0.0
    %7112 = vmatprep.subr.mxu0 0.0
    %7113 = vmatpush1.xpose.msra.mxu0 0.0
    %7114 = vmatprep.subr.mxu0 0.0
    %7115 = vmatpush1.xpose.msra.mxu0 0.0
    %7116 = vmatprep.subr.mxu0 0.0
    %7117 = vmatpush1.xpose.msra.mxu0 0.0
    %7118 = vmatprep.subr.mxu0 0.0
    %7119 = vmatpush1.xpose.msra.mxu0 0.0
    %7120 = vmatprep.subr.mxu0 0.0
    %7121 = vmatpush1.xpose.msra.mxu0 0.0
    %7122 = vmatprep.subr.mxu0 0.0
    %7123 = vmatpush1.xpose.msra.mxu0 0.0
    %7124 = vmatprep.subr.mxu0 0.0
    %7125 = vmatpush1.xpose.msra.mxu0 0.0
    %7126 = vmatprep.subr.mxu0 0.0
    %7127 = vmatpush1.xpose.msra.mxu0 0.0
    %7128 = vmatprep.subr.mxu0 0.0
    %7129 = vmatpush1.xpose.msra.mxu0 0.0
    %7130 = vmatprep.subr.mxu0 0.0
    %7131 = vmatpush1.xpose.msra.mxu0 0.0
    %7132 = vmatprep.subr.mxu0 0.0
    %7133 = vmatpush1.xpose.msra.mxu0 0.0
    %7134 = vmatprep.subr.mxu0 0.0
    %7135 = vmatpush1.xpose.msra.mxu0 0.0
    %7136 = vmatprep.subr.mxu0 0.0
    %7137 = vmatpush1.xpose.msra.mxu0 0.0
    %7138 = vmatprep.subr.mxu0 0.0
    %7139 = vmatpush1.xpose.msra.mxu0 0.0
    %7140 = vmatprep.subr.mxu0 0.0
    %7141 = vmatpush1.xpose.msra.mxu0 0.0
    %7142 = vmatprep.subr.mxu0 0.0
    %7143 = vmatpush1.xpose.msra.mxu0 0.0
    %7144 = vmatprep.subr.mxu0 0.0
    %7145 = vmatpush1.xpose.msra.mxu0 0.0
    %7146 = vmatprep.mubr.f32.mxu0 0.0
    %7147 = vmatmul.mubr.f32.gmra.mrb[0].mxu0 %v7077
    %v7148 = vpop.f32.mrb[0].mxu0
    %v7149 = vadd.f32 0.0, %v7148
    %v7150 = vpop.f32.mrb[0].mxu0
    %7151 = vdwg.mxu0
    %v7152 = vsel %vm1230, %v7149, -inf
    %7153 = vmax.xlane.f32.xlu0 %v7152
    %v7154 = vpop.xlane.xlu0 %7153
    %v7155 = vsub.f32 %v7149, %v7154
    %v7156 = vmul.f32 %v7155, 1.442695
    %v7157 = vpow.pop %v7156
    %v7158 = vsel %vm1230, %v7157, 0.0
    %7159 = vadd.xlane.f32.xlu0 %v7158
    %v7160 = vpop.xlane.xlu0 %7159
    %v7161 = vrcp.pop %v7160
    %v7162 = vmul.f32 %v7157, %v7161
    %v7164 = vsel %vm1230, %v7162, 0
    %7166 = vmatprep.subr.mxu0 0.0
    %7167 = vmatpush1.msra.mxu0 %v5426
    %7168 = vmatprep.subr.mxu0 0.0
    %7169 = vmatpush1.msra.mxu0 0.0
    %7170 = vmatprep.subr.mxu0 0.0
    %7171 = vmatpush1.msra.mxu0 0.0
    %7172 = vmatprep.subr.mxu0 0.0
    %7173 = vmatpush1.msra.mxu0 0.0
    %7174 = vmatprep.subr.mxu0 0.0
    %7175 = vmatpush1.msra.mxu0 0.0
    %7176 = vmatprep.subr.mxu0 0.0
    %7177 = vmatpush1.msra.mxu0 0.0
    %7178 = vmatprep.subr.mxu0 0.0
    %7179 = vmatpush1.msra.mxu0 0.0
    %7180 = vmatprep.subr.mxu0 0.0
    %7181 = vmatpush1.msra.mxu0 0.0
    %7182 = vmatprep.subr.mxu0 0.0
    %7183 = vmatpush1.msra.mxu0 0.0
    %7184 = vmatprep.subr.mxu0 0.0
    %7185 = vmatpush1.msra.mxu0 0.0
    %7186 = vmatprep.subr.mxu0 0.0
    %7187 = vmatpush1.msra.mxu0 0.0
    %7188 = vmatprep.subr.mxu0 0.0
    %7189 = vmatpush1.msra.mxu0 0.0
    %7190 = vmatprep.subr.mxu0 0.0
    %7191 = vmatpush1.msra.mxu0 0.0
    %7192 = vmatprep.subr.mxu0 0.0
    %7193 = vmatpush1.msra.mxu0 0.0
    %7194 = vmatprep.subr.mxu0 0.0
    %7195 = vmatpush1.msra.mxu0 0.0
    %7196 = vmatprep.subr.mxu0 0.0
    %7197 = vmatpush1.msra.mxu0 0.0
    %7198 = vmatprep.subr.mxu0 0.0
    %7199 = vmatpush1.msra.mxu0 0.0
    %7200 = vmatprep.subr.mxu0 0.0
    %7201 = vmatpush1.msra.mxu0 0.0
    %7202 = vmatprep.subr.mxu0 0.0
    %7203 = vmatpush1.msra.mxu0 0.0
    %7204 = vmatprep.subr.mxu0 0.0
    %7205 = vmatpush1.msra.mxu0 0.0
    %7206 = vmatprep.subr.mxu0 0.0
    %7207 = vmatpush1.msra.mxu0 0.0
    %7208 = vmatprep.subr.mxu0 0.0
    %7209 = vmatpush1.msra.mxu0 0.0
    %7210 = vmatprep.subr.mxu0 0.0
    %7211 = vmatpush1.msra.mxu0 0.0
    %7212 = vmatprep.subr.mxu0 0.0
    %7213 = vmatpush1.msra.mxu0 0.0
    %7214 = vmatprep.subr.mxu0 0.0
    %7215 = vmatpush1.msra.mxu0 0.0
    %7216 = vmatprep.subr.mxu0 0.0
    %7217 = vmatpush1.msra.mxu0 0.0
    %7218 = vmatprep.subr.mxu0 0.0
    %7219 = vmatpush1.msra.mxu0 0.0
    %7220 = vmatprep.subr.mxu0 0.0
    %7221 = vmatpush1.msra.mxu0 0.0
    %7222 = vmatprep.subr.mxu0 0.0
    %7223 = vmatpush1.msra.mxu0 0.0
    %7224 = vmatprep.subr.mxu0 0.0
    %7225 = vmatpush1.msra.mxu0 0.0
    %7226 = vmatprep.subr.mxu0 0.0
    %7227 = vmatpush1.msra.mxu0 0.0
    %7228 = vmatprep.subr.mxu0 0.0
    %7229 = vmatpush1.msra.mxu0 0.0
    %7230 = vmatprep.mubr.f32.mxu0 0.0
    %7231 = vmatmul.mubr.f32.gmra.mrb[0].mxu0 %v7164
    %v7232 = vpop.f32.mrb[0].mxu0
    %v7233 = vadd.f32 0.0, %v7232
    %v7234 = vpop.f32.mrb[0].mxu0
    %7235 = vdwg.mxu0
    %v7236 = vld [vmem:[%s6281] sm:$0xff]
    %v7238 = vsel %vm1230, %v7233, 0
    %7240 = vmatprep.subr.mxu0 0.0
    %7241 = vmatpush1.msra.mxu0 %v7236
    %7242 = vmatprep.subr.mxu0 0.0
    %7243 = vmatpush1.msra.mxu0 0.0
    %7244 = vmatprep.subr.mxu0 0.0
    %7245 = vmatpush1.msra.mxu0 0.0
    %7246 = vmatprep.subr.mxu0 0.0
    %7247 = vmatpush1.msra.mxu0 0.0
    %7248 = vmatprep.subr.mxu0 0.0
    %7249 = vmatpush1.msra.mxu0 0.0
    %7250 = vmatprep.subr.mxu0 0.0
    %7251 = vmatpush1.msra.mxu0 0.0
    %7252 = vmatprep.subr.mxu0 0.0
    %7253 = vmatpush1.msra.mxu0 0.0
    %7254 = vmatprep.subr.mxu0 0.0
    %7255 = vmatpush1.msra.mxu0 0.0
    %7256 = vmatprep.subr.mxu0 0.0
    %7257 = vmatpush1.msra.mxu0 0.0
    %7258 = vmatprep.subr.mxu0 0.0
    %7259 = vmatpush1.msra.mxu0 0.0
    %7260 = vmatprep.subr.mxu0 0.0
    %7261 = vmatpush1.msra.mxu0 0.0
    %7262 = vmatprep.subr.mxu0 0.0
    %7263 = vmatpush1.msra.mxu0 0.0
    %7264 = vmatprep.subr.mxu0 0.0
    %7265 = vmatpush1.msra.mxu0 0.0
    %7266 = vmatprep.subr.mxu0 0.0
    %7267 = vmatpush1.msra.mxu0 0.0
    %7268 = vmatprep.subr.mxu0 0.0
    %7269 = vmatpush1.msra.mxu0 0.0
    %7270 = vmatprep.subr.mxu0 0.0
    %7271 = vmatpush1.msra.mxu0 0.0
    %7272 = vmatprep.subr.mxu0 0.0
    %7273 = vmatpush1.msra.mxu0 0.0
    %7274 = vmatprep.subr.mxu0 0.0
    %7275 = vmatpush1.msra.mxu0 0.0
    %7276 = vmatprep.subr.mxu0 0.0
    %7277 = vmatpush1.msra.mxu0 0.0
    %7278 = vmatprep.subr.mxu0 0.0
    %7279 = vmatpush1.msra.mxu0 0.0
    %7280 = vmatprep.subr.mxu0 0.0
    %7281 = vmatpush1.msra.mxu0 0.0
    %7282 = vmatprep.subr.mxu0 0.0
    %7283 = vmatpush1.msra.mxu0 0.0
    %7284 = vmatprep.subr.mxu0 0.0
    %7285 = vmatpush1.msra.mxu0 0.0
    %7286 = vmatprep.subr.mxu0 0.0
    %7287 = vmatpush1.msra.mxu0 0.0
    %7288 = vmatprep.subr.mxu0 0.0
    %7289 = vmatpush1.msra.mxu0 0.0
    %7290 = vmatprep.subr.mxu0 0.0
    %7291 = vmatpush1.msra.mxu0 0.0
    %7292 = vmatprep.subr.mxu0 0.0
    %7293 = vmatpush1.msra.mxu0 0.0
    %7294 = vmatprep.subr.mxu0 0.0
    %7295 = vmatpush1.msra.mxu0 0.0
    %7296 = vmatprep.subr.mxu0 0.0
    %7297 = vmatpush1.msra.mxu0 0.0
    %7298 = vmatprep.subr.mxu0 0.0
    %7299 = vmatpush1.msra.mxu0 0.0
    %7300 = vmatprep.subr.mxu0 0.0
    %7301 = vmatpush1.msra.mxu0 0.0
    %7302 = vmatprep.subr.mxu0 0.0
    %7303 = vmatpush1.msra.mxu0 0.0
    %7304 = vmatprep.mubr.f32.mxu0 0.0
    %7305 = vmatmul.mubr.f32.gmra.mrb[0].mxu0 %v7238
    %v7306 = vpop.f32.mrb[0].mxu0
    %v7307 = vadd.f32 0.0, %v7306
    %v7308 = vpop.f32.mrb[0].mxu0
    %7309 = vdwg.mxu0
    %v7311 = vsel %vm1230, %v7071, 0
    %7313 = vmatprep.subr.mxu0 0.0
    %7314 = vmatpush1.msra.mxu0 %v7074
    %7315 = vmatprep.subr.mxu0 0.0
    %7316 = vmatpush1.msra.mxu0 0.0
    %7317 = vmatprep.subr.mxu0 0.0
    %7318 = vmatpush1.msra.mxu0 0.0
    %7319 = vmatprep.subr.mxu0 0.0
    %7320 = vmatpush1.msra.mxu0 0.0
    %7321 = vmatprep.subr.mxu0 0.0
    %7322 = vmatpush1.msra.mxu0 0.0
    %7323 = vmatprep.subr.mxu0 0.0
    %7324 = vmatpush1.msra.mxu0 0.0
    %7325 = vmatprep.subr.mxu0 0.0
    %7326 = vmatpush1.msra.mxu0 0.0
    %7327 = vmatprep.subr.mxu0 0.0
    %7328 = vmatpush1.msra.mxu0 0.0
    %7329 = vmatprep.subr.mxu0 0.0
    %7330 = vmatpush1.msra.mxu0 0.0
    %7331 = vmatprep.subr.mxu0 0.0
    %7332 = vmatpush1.msra.mxu0 0.0
    %7333 = vmatprep.subr.mxu0 0.0
    %7334 = vmatpush1.msra.mxu0 0.0
    %7335 = vmatprep.subr.mxu0 0.0
    %7336 = vmatpush1.msra.mxu0 0.0
    %7337 = vmatprep.subr.mxu0 0.0
    %7338 = vmatpush1.msra.mxu0 0.0
    %7339 = vmatprep.subr.mxu0 0.0
    %7340 = vmatpush1.msra.mxu0 0.0
    %7341 = vmatprep.subr.mxu0 0.0
    %7342 = vmatpush1.msra.mxu0 0.0
    %7343 = vmatprep.subr.mxu0 0.0
    %7344 = vmatpush1.msra.mxu0 0.0
    %7345 = vmatprep.subr.mxu0 0.0
    %7346 = vmatpush1.msra.mxu0 0.0
    %7347 = vmatprep.subr.mxu0 0.0
    %7348 = vmatpush1.msra.mxu0 0.0
    %7349 = vmatprep.subr.mxu0 0.0
    %7350 = vmatpush1.msra.mxu0 0.0
    %7351 = vmatprep.subr.mxu0 0.0
    %7352 = vmatpush1.msra.mxu0 0.0
    %7353 = vmatprep.subr.mxu0 0.0
    %7354 = vmatpush1.msra.mxu0 0.0
    %7355 = vmatprep.subr.mxu0 0.0
    %7356 = vmatpush1.msra.mxu0 0.0
    %7357 = vmatprep.subr.mxu0 0.0
    %7358 = vmatpush1.msra.mxu0 0.0
    %7359 = vmatprep.subr.mxu0 0.0
    %7360 = vmatpush1.msra.mxu0 0.0
    %7361 = vmatprep.subr.mxu0 0.0
    %7362 = vmatpush1.msra.mxu0 0.0
    %7363 = vmatprep.subr.mxu0 0.0
    %7364 = vmatpush1.msra.mxu0 0.0
    %7365 = vmatprep.subr.mxu0 0.0
    %7366 = vmatpush1.msra.mxu0 0.0
    %7367 = vmatprep.subr.mxu0 0.0
    %7368 = vmatpush1.msra.mxu0 0.0
    %7369 = vmatprep.subr.mxu0 0.0
    %7370 = vmatpush1.msra.mxu0 0.0
    %7371 = vmatprep.subr.mxu0 0.0
    %7372 = vmatpush1.msra.mxu0 0.0
    %7373 = vmatprep.subr.mxu0 0.0
    %7374 = vmatpush1.msra.mxu0 0.0
    %7375 = vmatprep.subr.mxu0 0.0
    %7376 = vmatpush1.msra.mxu0 0.0
    %7377 = vmatprep.mubr.f32.mxu0 0.0
    %7378 = vmatmul.mubr.f32.gmra.mrb[0].mxu0 %v7311
    %v7379 = vpop.f32.mrb[0].mxu0
    %v7380 = vadd.f32 %v7307, %v7379
    %v7381 = vpop.f32.mrb[0].mxu0
    %7382 = vdwg.mxu0
    %v7383 = vmul.f32 %v5514, 0.35355338
    %v7385 = vsel %vm1230, %v7383, 0
    %v7388 = vsel %vm1230, %v5602, 0
    %7390 = vmatprep.subr.mxu0 0.0
    %7391 = vmatpush1.xpose.msra.mxu0 %v7388
    %7392 = vmatprep.subr.mxu0 0.0
    %7393 = vmatpush1.xpose.msra.mxu0 0.0
    %7394 = vmatprep.subr.mxu0 0.0
    %7395 = vmatpush1.xpose.msra.mxu0 0.0
    %7396 = vmatprep.subr.mxu0 0.0
    %7397 = vmatpush1.xpose.msra.mxu0 0.0
    %7398 = vmatprep.subr.mxu0 0.0
    %7399 = vmatpush1.xpose.msra.mxu0 0.0
    %7400 = vmatprep.subr.mxu0 0.0
    %7401 = vmatpush1.xpose.msra.mxu0 0.0
    %7402 = vmatprep.subr.mxu0 0.0
    %7403 = vmatpush1.xpose.msra.mxu0 0.0
    %7404 = vmatprep.subr.mxu0 0.0
    %7405 = vmatpush1.xpose.msra.mxu0 0.0
    %7406 = vmatprep.subr.mxu0 0.0
    %7407 = vmatpush1.xpose.msra.mxu0 0.0
    %7408 = vmatprep.subr.mxu0 0.0
    %7409 = vmatpush1.xpose.msra.mxu0 0.0
    %7410 = vmatprep.subr.mxu0 0.0
    %7411 = vmatpush1.xpose.msra.mxu0 0.0
    %7412 = vmatprep.subr.mxu0 0.0
    %7413 = vmatpush1.xpose.msra.mxu0 0.0
    %7414 = vmatprep.subr.mxu0 0.0
    %7415 = vmatpush1.xpose.msra.mxu0 0.0
    %7416 = vmatprep.subr.mxu0 0.0
    %7417 = vmatpush1.xpose.msra.mxu0 0.0
    %7418 = vmatprep.subr.mxu0 0.0
    %7419 = vmatpush1.xpose.msra.mxu0 0.0
    %7420 = vmatprep.subr.mxu0 0.0
    %7421 = vmatpush1.xpose.msra.mxu0 0.0
    %7422 = vmatprep.subr.mxu0 0.0
    %7423 = vmatpush1.xpose.msra.mxu0 0.0
    %7424 = vmatprep.subr.mxu0 0.0
    %7425 = vmatpush1.xpose.msra.mxu0 0.0
    %7426 = vmatprep.subr.mxu0 0.0
    %7427 = vmatpush1.xpose.msra.mxu0 0.0
    %7428 = vmatprep.subr.mxu0 0.0
    %7429 = vmatpush1.xpose.msra.mxu0 0.0
    %7430 = vmatprep.subr.mxu0 0.0
    %7431 = vmatpush1.xpose.msra.mxu0 0.0
    %7432 = vmatprep.subr.mxu0 0.0
    %7433 = vmatpush1.xpose.msra.mxu0 0.0
    %7434 = vmatprep.subr.mxu0 0.0
    %7435 = vmatpush1.xpose.msra.mxu0 0.0
    %7436 = vmatprep.subr.mxu0 0.0
    %7437 = vmatpush1.xpose.msra.mxu0 0.0
    %7438 = vmatprep.subr.mxu0 0.0
    %7439 = vmatpush1.xpose.msra.mxu0 0.0
    %7440 = vmatprep.subr.mxu0 0.0
    %7441 = vmatpush1.xpose.msra.mxu0 0.0
    %7442 = vmatprep.subr.mxu0 0.0
    %7443 = vmatpush1.xpose.msra.mxu0 0.0
    %7444 = vmatprep.subr.mxu0 0.0
    %7445 = vmatpush1.xpose.msra.mxu0 0.0
    %7446 = vmatprep.subr.mxu0 0.0
    %7447 = vmatpush1.xpose.msra.mxu0 0.0
    %7448 = vmatprep.subr.mxu0 0.0
    %7449 = vmatpush1.xpose.msra.mxu0 0.0
    %7450 = vmatprep.subr.mxu0 0.0
    %7451 = vmatpush1.xpose.msra.mxu0 0.0
    %7452 = vmatprep.subr.mxu0 0.0
    %7453 = vmatpush1.xpose.msra.mxu0 0.0
    %7454 = vmatprep.mubr.f32.mxu0 0.0
    %7455 = vmatmul.mubr.f32.gmra.mrb[0].mxu0 %v7385
    %v7456 = vpop.f32.mrb[0].mxu0
    %v7457 = vadd.f32 0.0, %v7456
    %v7458 = vpop.f32.mrb[0].mxu0
    %7459 = vdwg.mxu0
    %v7460 = vsel %vm1230, %v7457, -inf
    %7461 = vmax.xlane.f32.xlu0 %v7460
    %v7462 = vpop.xlane.xlu0 %7461
    %v7463 = vsub.f32 %v7457, %v7462
    %v7464 = vmul.f32 %v7463, 1.442695
    %v7465 = vpow.pop %v7464
    %v7466 = vsel %vm1230, %v7465, 0.0
    %7467 = vadd.xlane.f32.xlu0 %v7466
    %v7468 = vpop.xlane.xlu0 %7467
    %v7469 = vrcp.pop %v7468
    %v7470 = vmul.f32 %v7465, %v7469
    %v7472 = vsel %vm1230, %v7470, 0
    %7474 = vmatprep.subr.mxu0 0.0
    %7475 = vmatpush1.msra.mxu0 %v5690
    %7476 = vmatprep.subr.mxu0 0.0
    %7477 = vmatpush1.msra.mxu0 0.0
    %7478 = vmatprep.subr.mxu0 0.0
    %7479 = vmatpush1.msra.mxu0 0.0
    %7480 = vmatprep.subr.mxu0 0.0
    %7481 = vmatpush1.msra.mxu0 0.0
    %7482 = vmatprep.subr.mxu0 0.0
    %7483 = vmatpush1.msra.mxu0 0.0
    %7484 = vmatprep.subr.mxu0 0.0
    %7485 = vmatpush1.msra.mxu0 0.0
    %7486 = vmatprep.subr.mxu0 0.0
    %7487 = vmatpush1.msra.mxu0 0.0
    %7488 = vmatprep.subr.mxu0 0.0
    %7489 = vmatpush1.msra.mxu0 0.0
    %7490 = vmatprep.subr.mxu0 0.0
    %7491 = vmatpush1.msra.mxu0 0.0
    %7492 = vmatprep.subr.mxu0 0.0
    %7493 = vmatpush1.msra.mxu0 0.0
    %7494 = vmatprep.subr.mxu0 0.0
    %7495 = vmatpush1.msra.mxu0 0.0
    %7496 = vmatprep.subr.mxu0 0.0
    %7497 = vmatpush1.msra.mxu0 0.0
    %7498 = vmatprep.subr.mxu0 0.0
    %7499 = vmatpush1.msra.mxu0 0.0
    %7500 = vmatprep.subr.mxu0 0.0
    %7501 = vmatpush1.msra.mxu0 0.0
    %7502 = vmatprep.subr.mxu0 0.0
    %7503 = vmatpush1.msra.mxu0 0.0
    %7504 = vmatprep.subr.mxu0 0.0
    %7505 = vmatpush1.msra.mxu0 0.0
    %7506 = vmatprep.subr.mxu0 0.0
    %7507 = vmatpush1.msra.mxu0 0.0
    %7508 = vmatprep.subr.mxu0 0.0
    %7509 = vmatpush1.msra.mxu0 0.0
    %7510 = vmatprep.subr.mxu0 0.0
    %7511 = vmatpush1.msra.mxu0 0.0
    %7512 = vmatprep.subr.mxu0 0.0
    %7513 = vmatpush1.msra.mxu0 0.0
    %7514 = vmatprep.subr.mxu0 0.0
    %7515 = vmatpush1.msra.mxu0 0.0
    %7516 = vmatprep.subr.mxu0 0.0
    %7517 = vmatpush1.msra.mxu0 0.0
    %7518 = vmatprep.subr.mxu0 0.0
    %7519 = vmatpush1.msra.mxu0 0.0
    %7520 = vmatprep.subr.mxu0 0.0
    %7521 = vmatpush1.msra.mxu0 0.0
    %7522 = vmatprep.subr.mxu0 0.0
    %7523 = vmatpush1.msra.mxu0 0.0
    %7524 = vmatprep.subr.mxu0 0.0
    %7525 = vmatpush1.msra.mxu0 0.0
    %7526 = vmatprep.subr.mxu0 0.0
    %7527 = vmatpush1.msra.mxu0 0.0
    %7528 = vmatprep.subr.mxu0 0.0
    %7529 = vmatpush1.msra.mxu0 0.0
    %7530 = vmatprep.subr.mxu0 0.0
    %7531 = vmatpush1.msra.mxu0 0.0
    %7532 = vmatprep.subr.mxu0 0.0
    %7533 = vmatpush1.msra.mxu0 0.0
    %7534 = vmatprep.subr.mxu0 0.0
    %7535 = vmatpush1.msra.mxu0 0.0
    %7536 = vmatprep.subr.mxu0 0.0
    %7537 = vmatpush1.msra.mxu0 0.0
    %7538 = vmatprep.mubr.f32.mxu0 0.0
    %7539 = vmatmul.mubr.f32.gmra.mrb[0].mxu0 %v7472
    %v7540 = vpop.f32.mrb[0].mxu0
    %v7541 = vadd.f32 0.0, %v7540
    %v7542 = vpop.f32.mrb[0].mxu0
    %7543 = vdwg.mxu0
    %v7544 = vld [vmem:[%s6590] sm:$0xff]
    %v7546 = vsel %vm1230, %v7541, 0
    %7548 = vmatprep.subr.mxu0 0.0
    %7549 = vmatpush1.msra.mxu0 %v7544
    %7550 = vmatprep.subr.mxu0 0.0
    %7551 = vmatpush1.msra.mxu0 0.0
    %7552 = vmatprep.subr.mxu0 0.0
    %7553 = vmatpush1.msra.mxu0 0.0
    %7554 = vmatprep.subr.mxu0 0.0
    %7555 = vmatpush1.msra.mxu0 0.0
    %7556 = vmatprep.subr.mxu0 0.0
    %7557 = vmatpush1.msra.mxu0 0.0
    %7558 = vmatprep.subr.mxu0 0.0
    %7559 = vmatpush1.msra.mxu0 0.0
    %7560 = vmatprep.subr.mxu0 0.0
    %7561 = vmatpush1.msra.mxu0 0.0
    %7562 = vmatprep.subr.mxu0 0.0
    %7563 = vmatpush1.msra.mxu0 0.0
    %7564 = vmatprep.subr.mxu0 0.0
    %7565 = vmatpush1.msra.mxu0 0.0
    %7566 = vmatprep.subr.mxu0 0.0
    %7567 = vmatpush1.msra.mxu0 0.0
    %7568 = vmatprep.subr.mxu0 0.0
    %7569 = vmatpush1.msra.mxu0 0.0
    %7570 = vmatprep.subr.mxu0 0.0
    %7571 = vmatpush1.msra.mxu0 0.0
    %7572 = vmatprep.subr.mxu0 0.0
    %7573 = vmatpush1.msra.mxu0 0.0
    %7574 = vmatprep.subr.mxu0 0.0
    %7575 = vmatpush1.msra.mxu0 0.0
    %7576 = vmatprep.subr.mxu0 0.0
    %7577 = vmatpush1.msra.mxu0 0.0
    %7578 = vmatprep.subr.mxu0 0.0
    %7579 = vmatpush1.msra.mxu0 0.0
    %7580 = vmatprep.subr.mxu0 0.0
    %7581 = vmatpush1.msra.mxu0 0.0
    %7582 = vmatprep.subr.mxu0 0.0
    %7583 = vmatpush1.msra.mxu0 0.0
    %7584 = vmatprep.subr.mxu0 0.0
    %7585 = vmatpush1.msra.mxu0 0.0
    %7586 = vmatprep.subr.mxu0 0.0
    %7587 = vmatpush1.msra.mxu0 0.0
    %7588 = vmatprep.subr.mxu0 0.0
    %7589 = vmatpush1.msra.mxu0 0.0
    %7590 = vmatprep.subr.mxu0 0.0
    %7591 = vmatpush1.msra.mxu0 0.0
    %7592 = vmatprep.subr.mxu0 0.0
    %7593 = vmatpush1.msra.mxu0 0.0
    %7594 = vmatprep.subr.mxu0 0.0
    %7595 = vmatpush1.msra.mxu0 0.0
    %7596 = vmatprep.subr.mxu0 0.0
    %7597 = vmatpush1.msra.mxu0 0.0
    %7598 = vmatprep.subr.mxu0 0.0
    %7599 = vmatpush1.msra.mxu0 0.0
    %7600 = vmatprep.subr.mxu0 0.0
    %7601 = vmatpush1.msra.mxu0 0.0
    %7602 = vmatprep.subr.mxu0 0.0
    %7603 = vmatpush1.msra.mxu0 0.0
    %7604 = vmatprep.subr.mxu0 0.0
    %7605 = vmatpush1.msra.mxu0 0.0
    %7606 = vmatprep.subr.mxu0 0.0
    %7607 = vmatpush1.msra.mxu0 0.0
    %7608 = vmatprep.subr.mxu0 0.0
    %7609 = vmatpush1.msra.mxu0 0.0
    %7610 = vmatprep.subr.mxu0 0.0
    %7611 = vmatpush1.msra.mxu0 0.0
    %7612 = vmatprep.mubr.f32.mxu0 0.0
    %7613 = vmatmul.mubr.f32.gmra.mrb[0].mxu0 %v7546
    %v7614 = vpop.f32.mrb[0].mxu0
    %v7615 = vadd.f32 0.0, %v7614
    %v7616 = vpop.f32.mrb[0].mxu0
    %7617 = vdwg.mxu0
    %v7618 = vadd.f32 %v7380, %v7615
    %v7619 = vmul.f32 %v5778, 0.35355338
    %v7621 = vsel %vm1230, %v7619, 0
    %v7624 = vsel %vm1230, %v5866, 0
    %7626 = vmatprep.subr.mxu0 0.0
    %7627 = vmatpush1.xpose.msra.mxu0 %v7624
    %7628 = vmatprep.subr.mxu0 0.0
    %7629 = vmatpush1.xpose.msra.mxu0 0.0
    %7630 = vmatprep.subr.mxu0 0.0
    %7631 = vmatpush1.xpose.msra.mxu0 0.0
    %7632 = vmatprep.subr.mxu0 0.0
    %7633 = vmatpush1.xpose.msra.mxu0 0.0
    %7634 = vmatprep.subr.mxu0 0.0
    %7635 = vmatpush1.xpose.msra.mxu0 0.0
    %7636 = vmatprep.subr.mxu0 0.0
    %7637 = vmatpush1.xpose.msra.mxu0 0.0
    %7638 = vmatprep.subr.mxu0 0.0
    %7639 = vmatpush1.xpose.msra.mxu0 0.0
    %7640 = vmatprep.subr.mxu0 0.0
    %7641 = vmatpush1.xpose.msra.mxu0 0.0
    %7642 = vmatprep.subr.mxu0 0.0
    %7643 = vmatpush1.xpose.msra.mxu0 0.0
    %7644 = vmatprep.subr.mxu0 0.0
    %7645 = vmatpush1.xpose.msra.mxu0 0.0
    %7646 = vmatprep.subr.mxu0 0.0
    %7647 = vmatpush1.xpose.msra.mxu0 0.0
    %7648 = vmatprep.subr.mxu0 0.0
    %7649 = vmatpush1.xpose.msra.mxu0 0.0
    %7650 = vmatprep.subr.mxu0 0.0
    %7651 = vmatpush1.xpose.msra.mxu0 0.0
    %7652 = vmatprep.subr.mxu0 0.0
    %7653 = vmatpush1.xpose.msra.mxu0 0.0
    %7654 = vmatprep.subr.mxu0 0.0
    %7655 = vmatpush1.xpose.msra.mxu0 0.0
    %7656 = vmatprep.subr.mxu0 0.0
    %7657 = vmatpush1.xpose.msra.mxu0 0.0
    %7658 = vmatprep.subr.mxu0 0.0
    %7659 = vmatpush1.xpose.msra.mxu0 0.0
    %7660 = vmatprep.subr.mxu0 0.0
    %7661 = vmatpush1.xpose.msra.mxu0 0.0
    %7662 = vmatprep.subr.mxu0 0.0
    %7663 = vmatpush1.xpose.msra.mxu0 0.0
    %7664 = vmatprep.subr.mxu0 0.0
    %7665 = vmatpush1.xpose.msra.mxu0 0.0
    %7666 = vmatprep.subr.mxu0 0.0
    %7667 = vmatpush1.xpose.msra.mxu0 0.0
    %7668 = vmatprep.subr.mxu0 0.0
    %7669 = vmatpush1.xpose.msra.mxu0 0.0
    %7670 = vmatprep.subr.mxu0 0.0
    %7671 = vmatpush1.xpose.msra.mxu0 0.0
    %7672 = vmatprep.subr.mxu0 0.0
    %7673 = vmatpush1.xpose.msra.mxu0 0.0
    %7674 = vmatprep.subr.mxu0 0.0
    %7675 = vmatpush1.xpose.msra.mxu0 0.0
    %7676 = vmatprep.subr.mxu0 0.0
    %7677 = vmatpush1.xpose.msra.mxu0 0.0
    %7678 = vmatprep.subr.mxu0 0.0
    %7679 = vmatpush1.xpose.msra.mxu0 0.0
    %7680 = vmatprep.subr.mxu0 0.0
    %7681 = vmatpush1.xpose.msra.mxu0 0.0
    %7682 = vmatprep.subr.mxu0 0.0
    %7683 = vmatpush1.xpose.msra.mxu0 0.0
    %7684 = vmatprep.subr.mxu0 0.0
    %7685 = vmatpush1.xpose.msra.mxu0 0.0
    %7686 = vmatprep.subr.mxu0 0.0
    %7687 = vmatpush1.xpose.msra.mxu0 0.0
    %7688 = vmatprep.subr.mxu0 0.0
    %7689 = vmatpush1.xpose.msra.mxu0 0.0
    %7690 = vmatprep.mubr.f32.mxu0 0.0
    %7691 = vmatmul.mubr.f32.gmra.mrb[0].mxu0 %v7621
    %v7692 = vpop.f32.mrb[0].mxu0
    %v7693 = vadd.f32 0.0, %v7692
    %v7694 = vpop.f32.mrb[0].mxu0
    %7695 = vdwg.mxu0
    %v7696 = vsel %vm1230, %v7693, -inf
    %7697 = vmax.xlane.f32.xlu0 %v7696
    %v7698 = vpop.xlane.xlu0 %7697
    %v7699 = vsub.f32 %v7693, %v7698
    %v7700 = vmul.f32 %v7699, 1.442695
    %v7701 = vpow.pop %v7700
    %v7702 = vsel %vm1230, %v7701, 0.0
    %7703 = vadd.xlane.f32.xlu0 %v7702
    %v7704 = vpop.xlane.xlu0 %7703
    %v7705 = vrcp.pop %v7704
    %v7706 = vmul.f32 %v7701, %v7705
    %v7708 = vsel %vm1230, %v7706, 0
    %7710 = vmatprep.subr.mxu0 0.0
    %7711 = vmatpush1.msra.mxu0 %v5954
    %7712 = vmatprep.subr.mxu0 0.0
    %7713 = vmatpush1.msra.mxu0 0.0
    %7714 = vmatprep.subr.mxu0 0.0
    %7715 = vmatpush1.msra.mxu0 0.0
    %7716 = vmatprep.subr.mxu0 0.0
    %7717 = vmatpush1.msra.mxu0 0.0
    %7718 = vmatprep.subr.mxu0 0.0
    %7719 = vmatpush1.msra.mxu0 0.0
    %7720 = vmatprep.subr.mxu0 0.0
    %7721 = vmatpush1.msra.mxu0 0.0
    %7722 = vmatprep.subr.mxu0 0.0
    %7723 = vmatpush1.msra.mxu0 0.0
    %7724 = vmatprep.subr.mxu0 0.0
    %7725 = vmatpush1.msra.mxu0 0.0
    %7726 = vmatprep.subr.mxu0 0.0
    %7727 = vmatpush1.msra.mxu0 0.0
    %7728 = vmatprep.subr.mxu0 0.0
    %7729 = vmatpush1.msra.mxu0 0.0
    %7730 = vmatprep.subr.mxu0 0.0
    %7731 = vmatpush1.msra.mxu0 0.0
    %7732 = vmatprep.subr.mxu0 0.0
    %7733 = vmatpush1.msra.mxu0 0.0
    %7734 = vmatprep.subr.mxu0 0.0
    %7735 = vmatpush1.msra.mxu0 0.0
    %7736 = vmatprep.subr.mxu0 0.0
    %7737 = vmatpush1.msra.mxu0 0.0
    %7738 = vmatprep.subr.mxu0 0.0
    %7739 = vmatpush1.msra.mxu0 0.0
    %7740 = vmatprep.subr.mxu0 0.0
    %7741 = vmatpush1.msra.mxu0 0.0
    %7742 = vmatprep.subr.mxu0 0.0
    %7743 = vmatpush1.msra.mxu0 0.0
    %7744 = vmatprep.subr.mxu0 0.0
    %7745 = vmatpush1.msra.mxu0 0.0
    %7746 = vmatprep.subr.mxu0 0.0
    %7747 = vmatpush1.msra.mxu0 0.0
    %7748 = vmatprep.subr.mxu0 0.0
    %7749 = vmatpush1.msra.mxu0 0.0
    %7750 = vmatprep.subr.mxu0 0.0
    %7751 = vmatpush1.msra.mxu0 0.0
    %7752 = vmatprep.subr.mxu0 0.0
    %7753 = vmatpush1.msra.mxu0 0.0
    %7754 = vmatprep.subr.mxu0 0.0
    %7755 = vmatpush1.msra.mxu0 0.0
    %7756 = vmatprep.subr.mxu0 0.0
    %7757 = vmatpush1.msra.mxu0 0.0
    %7758 = vmatprep.subr.mxu0 0.0
    %7759 = vmatpush1.msra.mxu0 0.0
    %7760 = vmatprep.subr.mxu0 0.0
    %7761 = vmatpush1.msra.mxu0 0.0
    %7762 = vmatprep.subr.mxu0 0.0
    %7763 = vmatpush1.msra.mxu0 0.0
    %7764 = vmatprep.subr.mxu0 0.0
    %7765 = vmatpush1.msra.mxu0 0.0
    %7766 = vmatprep.subr.mxu0 0.0
    %7767 = vmatpush1.msra.mxu0 0.0
    %7768 = vmatprep.subr.mxu0 0.0
    %7769 = vmatpush1.msra.mxu0 0.0
    %7770 = vmatprep.subr.mxu0 0.0
    %7771 = vmatpush1.msra.mxu0 0.0
    %7772 = vmatprep.subr.mxu0 0.0
    %7773 = vmatpush1.msra.mxu0 0.0
    %7774 = vmatprep.mubr.f32.mxu0 0.0
    %7775 = vmatmul.mubr.f32.gmra.mrb[0].mxu0 %v7708
    %v7776 = vpop.f32.mrb[0].mxu0
    %v7777 = vadd.f32 0.0, %v7776
    %v7778 = vpop.f32.mrb[0].mxu0
    %7779 = vdwg.mxu0
    %v7780 = vld [vmem:[%s6827] sm:$0xff]
    %v7782 = vsel %vm1230, %v7777, 0
    %7784 = vmatprep.subr.mxu0 0.0
    %7785 = vmatpush1.msra.mxu0 %v7780
    %7786 = vmatprep.subr.mxu0 0.0
    %7787 = vmatpush1.msra.mxu0 0.0
    %7788 = vmatprep.subr.mxu0 0.0
    %7789 = vmatpush1.msra.mxu0 0.0
    %7790 = vmatprep.subr.mxu0 0.0
    %7791 = vmatpush1.msra.mxu0 0.0
    %7792 = vmatprep.subr.mxu0 0.0
    %7793 = vmatpush1.msra.mxu0 0.0
    %7794 = vmatprep.subr.mxu0 0.0
    %7795 = vmatpush1.msra.mxu0 0.0
    %7796 = vmatprep.subr.mxu0 0.0
    %7797 = vmatpush1.msra.mxu0 0.0
    %7798 = vmatprep.subr.mxu0 0.0
    %7799 = vmatpush1.msra.mxu0 0.0
    %7800 = vmatprep.subr.mxu0 0.0
    %7801 = vmatpush1.msra.mxu0 0.0
    %7802 = vmatprep.subr.mxu0 0.0
    %7803 = vmatpush1.msra.mxu0 0.0
    %7804 = vmatprep.subr.mxu0 0.0
    %7805 = vmatpush1.msra.mxu0 0.0
    %7806 = vmatprep.subr.mxu0 0.0
    %7807 = vmatpush1.msra.mxu0 0.0
    %7808 = vmatprep.subr.mxu0 0.0
    %7809 = vmatpush1.msra.mxu0 0.0
    %7810 = vmatprep.subr.mxu0 0.0
    %7811 = vmatpush1.msra.mxu0 0.0
    %7812 = vmatprep.subr.mxu0 0.0
    %7813 = vmatpush1.msra.mxu0 0.0
    %7814 = vmatprep.subr.mxu0 0.0
    %7815 = vmatpush1.msra.mxu0 0.0
    %7816 = vmatprep.subr.mxu0 0.0
    %7817 = vmatpush1.msra.mxu0 0.0
    %7818 = vmatprep.subr.mxu0 0.0
    %7819 = vmatpush1.msra.mxu0 0.0
    %7820 = vmatprep.subr.mxu0 0.0
    %7821 = vmatpush1.msra.mxu0 0.0
    %7822 = vmatprep.subr.mxu0 0.0
    %7823 = vmatpush1.msra.mxu0 0.0
    %7824 = vmatprep.subr.mxu0 0.0
    %7825 = vmatpush1.msra.mxu0 0.0
    %7826 = vmatprep.subr.mxu0 0.0
    %7827 = vmatpush1.msra.mxu0 0.0
    %7828 = vmatprep.subr.mxu0 0.0
    %7829 = vmatpush1.msra.mxu0 0.0
    %7830 = vmatprep.subr.mxu0 0.0
    %7831 = vmatpush1.msra.mxu0 0.0
    %7832 = vmatprep.subr.mxu0 0.0
    %7833 = vmatpush1.msra.mxu0 0.0
    %7834 = vmatprep.subr.mxu0 0.0
    %7835 = vmatpush1.msra.mxu0 0.0
    %7836 = vmatprep.subr.mxu0 0.0
    %7837 = vmatpush1.msra.mxu0 0.0
    %7838 = vmatprep.subr.mxu0 0.0
    %7839 = vmatpush1.msra.mxu0 0.0
    %7840 = vmatprep.subr.mxu0 0.0
    %7841 = vmatpush1.msra.mxu0 0.0
    %7842 = vmatprep.subr.mxu0 0.0
    %7843 = vmatpush1.msra.mxu0 0.0
    %7844 = vmatprep.subr.mxu0 0.0
    %7845 = vmatpush1.msra.mxu0 0.0
    %7846 = vmatprep.subr.mxu0 0.0
    %7847 = vmatpush1.msra.mxu0 0.0
    %7848 = vmatprep.mubr.f32.mxu0 0.0
    %7849 = vmatmul.mubr.f32.gmra.mrb[0].mxu0 %v7782
    %v7850 = vpop.f32.mrb[0].mxu0
    %v7851 = vadd.f32 0.0, %v7850
    %v7852 = vpop.f32.mrb[0].mxu0
    %7853 = vdwg.mxu0
    %v7854 = vadd.f32 %v7618, %v7851
    %v7855 = vld [vmem:[%s6903] sm:$0x1]
    %v7857 = vlaneseq
    %v7858 = vshrl.u32 %v7857, 7
    %v7859 = vsub.s32 0, %v7858
    %v7860 = vrot.slane %v7855, %v7859
    %v7862 = vadd.f32 %v7854, %v7860
    %7863 = vst.msk [vmem:[#allocation2 + $0x8] sm:$0xff] %vm183, %v7862
    %v7864 = vld [vmem:[#allocation2] sm:$0xff]
    %v7865 = vld [vmem:[#allocation2 + $0x8] sm:$0xff]
    %v7866 = vadd.f32 %v4893, %v7864
    %v7867 = vadd.f32 %v4894, %v7865
    %s7868 = scalar_lea.vmem %s16, 1
    %v7869 = vld [vmem:[%s7868] sm:$0x1]
    %s7870 = scalar_lea.vmem %s17, 1
    %v7871 = vld [vmem:[%s7870] sm:$0x1]
    %v7872 = vsel %vm183, %v7866, 0.0
    %7873 = vadd.xlane.f32.xlu0 %v7872
    %v7874 = vpop.xlane.xlu0 %7873
    %v7875 = vsel %vm183, %v7867, 0.0
    %7876 = vadd.xlane.f32.xlu0 %v7875
    %v7877 = vpop.xlane.xlu0 %7876
    %v7878 = vmul.f32 %v7874, %v3147
    %v7879 = vmul.f32 %v7877, %v3147
    %v7880 = vsub.f32 %v7866, %v7878
    %v7881 = vsub.f32 %v7867, %v7879
    %v7882 = vmul.f32 %v7880, %v7880
    %v7883 = vmul.f32 %v7881, %v7881
    %v7884 = vsel %vm183, %v7882, 0.0
    %7885 = vadd.xlane.f32.xlu0 %v7884
    %v7886 = vpop.xlane.xlu0 %7885
    %v7887 = vsel %vm183, %v7883, 0.0
    %7888 = vadd.xlane.f32.xlu0 %v7887
    %v7889 = vpop.xlane.xlu0 %7888
    %v7890 = vmul.f32 %v7886, %v3147
    %v7891 = vmul.f32 %v7889, %v3147
    %v7892 = vadd.f32 %v7890, 1e-05
    %v7893 = vadd.f32 %v7891, 1e-05
    %v7894 = vrsqrt.pop %v7892
    %v7895 = vrsqrt.pop %v7893
    %v7896 = vmul.f32 %v7880, %v7894
    %v7897 = vmul.f32 %v7881, %v7895
    %v7899 = vlaneseq
    %v7900 = vshrl.u32 %v7899, 7
    %v7901 = vsub.s32 0, %v7900
    %v7902 = vrot.slane %v7869, %v7901
    %v7904 = vmul.f32 %v7896, %v7902
    %v7905 = vmul.f32 %v7897, %v7902
    %v7907 = vlaneseq
    %v7908 = vshrl.u32 %v7907, 7
    %v7909 = vsub.s32 0, %v7908
    %v7910 = vrot.slane %v7871, %v7909
    %v7912 = vadd.f32 %v7904, %v7910
    %v7913 = vadd.f32 %v7905, %v7910
    %s7914 = scalar_lea.vmem %s12, 512
    %v7915 = vld [vmem:[%s7914] sm:$0xff]
    %v7916 = vld [vmem:[%s7914 + $0x8] sm:$0xff]
    %v7917 = vld [vmem:[%s7914 + $0x10] sm:$0xff]
    %v7918 = vld [vmem:[%s7914 + $0x18] sm:$0xff]
    %v7919 = vld [vmem:[%s7914 + $0x20] sm:$0xff]
    %v7920 = vld [vmem:[%s7914 + $0x28] sm:$0xff]
    %v7921 = vld [vmem:[%s7914 + $0x30] sm:$0xff]
    %v7922 = vld [vmem:[%s7914 + $0x38] sm:$0xff]
    %v7923 = vld [vmem:[%s7914 + $0x40] sm:$0xff]
    %v7924 = vld [vmem:[%s7914 + $0x48] sm:$0xff]
    %v7925 = vld [vmem:[%s7914 + $0x50] sm:$0xff]
    %v7926 = vld [vmem:[%s7914 + $0x58] sm:$0xff]
    %v7927 = vld [vmem:[%s7914 + $0x60] sm:$0xff]
    %v7928 = vld [vmem:[%s7914 + $0x68] sm:$0xff]
    %v7929 = vld [vmem:[%s7914 + $0x70] sm:$0xff]
    %v7930 = vld [vmem:[%s7914 + $0x78] sm:$0xff]
    %v7931 = vld [vmem:[%s7914 + $0x80] sm:$0xff]
    %v7932 = vld [vmem:[%s7914 + $0x88] sm:$0xff]
    %v7933 = vld [vmem:[%s7914 + $0x90] sm:$0xff]
    %v7934 = vld [vmem:[%s7914 + $0x98] sm:$0xff]
    %v7935 = vld [vmem:[%s7914 + $0xa0] sm:$0xff]
    %v7936 = vld [vmem:[%s7914 + $0xa8] sm:$0xff]
    %v7937 = vld [vmem:[%s7914 + $0xb0] sm:$0xff]
    %v7938 = vld [vmem:[%s7914 + $0xb8] sm:$0xff]
    %v7939 = vld [vmem:[%s7914 + $0xc0] sm:$0xff]
    %v7940 = vld [vmem:[%s7914 + $0xc8] sm:$0xff]
    %v7941 = vld [vmem:[%s7914 + $0xd0] sm:$0xff]
    %v7942 = vld [vmem:[%s7914 + $0xd8] sm:$0xff]
    %v7943 = vld [vmem:[%s7914 + $0xe0] sm:$0xff]
    %v7944 = vld [vmem:[%s7914 + $0xe8] sm:$0xff]
    %v7945 = vld [vmem:[%s7914 + $0xf0] sm:$0xff]
    %v7946 = vld [vmem:[%s7914 + $0xf8] sm:$0xff]
    %v7947 = vld [vmem:[%s7914 + $0x100] sm:$0xff]
    %v7948 = vld [vmem:[%s7914 + $0x108] sm:$0xff]
    %v7949 = vld [vmem:[%s7914 + $0x110] sm:$0xff]
    %v7950 = vld [vmem:[%s7914 + $0x118] sm:$0xff]
    %v7951 = vld [vmem:[%s7914 + $0x120] sm:$0xff]
    %v7952 = vld [vmem:[%s7914 + $0x128] sm:$0xff]
    %v7953 = vld [vmem:[%s7914 + $0x130] sm:$0xff]
    %v7954 = vld [vmem:[%s7914 + $0x138] sm:$0xff]
    %v7955 = vld [vmem:[%s7914 + $0x140] sm:$0xff]
    %v7956 = vld [vmem:[%s7914 + $0x148] sm:$0xff]
    %v7957 = vld [vmem:[%s7914 + $0x150] sm:$0xff]
    %v7958 = vld [vmem:[%s7914 + $0x158] sm:$0xff]
    %v7959 = vld [vmem:[%s7914 + $0x160] sm:$0xff]
    %v7960 = vld [vmem:[%s7914 + $0x168] sm:$0xff]
    %v7961 = vld [vmem:[%s7914 + $0x170] sm:$0xff]
    %v7962 = vld [vmem:[%s7914 + $0x178] sm:$0xff]
    %v7963 = vld [vmem:[%s7914 + $0x180] sm:$0xff]
    %v7964 = vld [vmem:[%s7914 + $0x188] sm:$0xff]
    %v7965 = vld [vmem:[%s7914 + $0x190] sm:$0xff]
    %v7966 = vld [vmem:[%s7914 + $0x198] sm:$0xff]
    %v7967 = vld [vmem:[%s7914 + $0x1a0] sm:$0xff]
    %v7968 = vld [vmem:[%s7914 + $0x1a8] sm:$0xff]
    %v7969 = vld [vmem:[%s7914 + $0x1b0] sm:$0xff]
    %v7970 = vld [vmem:[%s7914 + $0x1b8] sm:$0xff]
    %v7971 = vld [vmem:[%s7914 + $0x1c0] sm:$0xff]
    %v7972 = vld [vmem:[%s7914 + $0x1c8] sm:$0xff]
    %v7973 = vld [vmem:[%s7914 + $0x1d0] sm:$0xff]
    %v7974 = vld [vmem:[%s7914 + $0x1d8] sm:$0xff]
    %v7975 = vld [vmem:[%s7914 + $0x1e0] sm:$0xff]
    %v7976 = vld [vmem:[%s7914 + $0x1e8] sm:$0xff]
    %v7977 = vld [vmem:[%s7914 + $0x1f0] sm:$0xff]
    %v7978 = vld [vmem:[%s7914 + $0x1f8] sm:$0xff]
    %s7979 = scalar_lea.vmem %s13, 16
    %v7980 = vld [vmem:[%s7979] sm:$0xff]
    %v7981 = vld [vmem:[%s7979 + $0x8] sm:$0xff]
    %v7984 = vlaneseq
    %v7985 = vshrl.u32 %v7984, 7
    %v7986 = vsub.s32 0, %v7985
    %v7987 = vrot.slane %v7980, %v7986
    %v7988 = vlaneseq
    %v7989 = vshrl.u32 %v7988, 7
    %v7990 = vsub.s32 1, %v7989
    %v7991 = vrot.slane %v7980, %v7990
    %v7992 = vlaneseq
    %v7993 = vshrl.u32 %v7992, 7
    %v7994 = vsub.s32 2, %v7993
    %v7995 = vrot.slane %v7980, %v7994
    %v7996 = vlaneseq
    %v7997 = vshrl.u32 %v7996, 7
    %v7998 = vsub.s32 3, %v7997
    %v7999 = vrot.slane %v7980, %v7998
    %v8000 = vlaneseq
    %v8001 = vshrl.u32 %v8000, 7
    %v8002 = vsub.s32 4, %v8001
    %v8003 = vrot.slane %v7980, %v8002
    %v8004 = vlaneseq
    %v8005 = vshrl.u32 %v8004, 7
    %v8006 = vsub.s32 5, %v8005
    %v8007 = vrot.slane %v7980, %v8006
    %v8008 = vlaneseq
    %v8009 = vshrl.u32 %v8008, 7
    %v8010 = vsub.s32 6, %v8009
    %v8011 = vrot.slane %v7980, %v8010
    %v8012 = vlaneseq
    %v8013 = vshrl.u32 %v8012, 7
    %v8014 = vsub.s32 7, %v8013
    %v8015 = vrot.slane %v7980, %v8014
    %v8016 = vlaneseq
    %v8017 = vshrl.u32 %v8016, 7
    %v8018 = vsub.s32 0, %v8017
    %v8019 = vrot.slane %v7981, %v8018
    %v8020 = vlaneseq
    %v8021 = vshrl.u32 %v8020, 7
    %v8022 = vsub.s32 1, %v8021
    %v8023 = vrot.slane %v7981, %v8022
    %v8024 = vlaneseq
    %v8025 = vshrl.u32 %v8024, 7
    %v8026 = vsub.s32 2, %v8025
    %v8027 = vrot.slane %v7981, %v8026
    %v8028 = vlaneseq
    %v8029 = vshrl.u32 %v8028, 7
    %v8030 = vsub.s32 3, %v8029
    %v8031 = vrot.slane %v7981, %v8030
    %v8032 = vlaneseq
    %v8033 = vshrl.u32 %v8032, 7
    %v8034 = vsub.s32 4, %v8033
    %v8035 = vrot.slane %v7981, %v8034
    %v8036 = vlaneseq
    %v8037 = vshrl.u32 %v8036, 7
    %v8038 = vsub.s32 5, %v8037
    %v8039 = vrot.slane %v7981, %v8038
    %v8040 = vlaneseq
    %v8041 = vshrl.u32 %v8040, 7
    %v8042 = vsub.s32 6, %v8041
    %v8043 = vrot.slane %v7981, %v8042
    %v8044 = vlaneseq
    %v8045 = vshrl.u32 %v8044, 7
    %v8046 = vsub.s32 7, %v8045
    %v8047 = vrot.slane %v7981, %v8046
    %v8065 = vsel %vm183, %v7912, 0
    %v8068 = vsel %vm183, %v7913, 0
    %8070 = vmatprep.subr.mxu0 %v7916
    %8071 = vmatpush1.msra.mxu0 %v7915
    %8072 = vmatprep.subr.mxu0 %v7932
    %8073 = vmatpush1.msra.mxu0 %v7931
    %8074 = vmatprep.subr.mxu0 %v7948
    %8075 = vmatpush1.msra.mxu0 %v7947
    %8076 = vmatprep.subr.mxu0 %v7964
    %8077 = vmatpush1.msra.mxu0 %v7963
    %8078 = vmatprep.subr.mxu0 0.0
    %8079 = vmatpush1.msra.mxu0 0.0
    %8080 = vmatprep.subr.mxu0 0.0
    %8081 = vmatpush1.msra.mxu0 0.0
    %8082 = vmatprep.subr.mxu0 0.0
    %8083 = vmatpush1.msra.mxu0 0.0
    %8084 = vmatprep.subr.mxu0 0.0
    %8085 = vmatpush1.msra.mxu0 0.0
    %8086 = vmatprep.subr.mxu0 0.0
    %8087 = vmatpush1.msra.mxu0 0.0
    %8088 = vmatprep.subr.mxu0 0.0
    %8089 = vmatpush1.msra.mxu0 0.0
    %8090 = vmatprep.subr.mxu0 0.0
    %8091 = vmatpush1.msra.mxu0 0.0
    %8092 = vmatprep.subr.mxu0 0.0
    %8093 = vmatpush1.msra.mxu0 0.0
    %8094 = vmatprep.subr.mxu0 0.0
    %8095 = vmatpush1.msra.mxu0 0.0
    %8096 = vmatprep.subr.mxu0 0.0
    %8097 = vmatpush1.msra.mxu0 0.0
    %8098 = vmatprep.subr.mxu0 0.0
    %8099 = vmatpush1.msra.mxu0 0.0
    %8100 = vmatprep.subr.mxu0 0.0
    %8101 = vmatpush1.msra.mxu0 0.0
    %8102 = vmatprep.subr.mxu0 0.0
    %8103 = vmatpush1.msra.mxu0 0.0
    %8104 = vmatprep.subr.mxu0 0.0
    %8105 = vmatpush1.msra.mxu0 0.0
    %8106 = vmatprep.subr.mxu0 0.0
    %8107 = vmatpush1.msra.mxu0 0.0
    %8108 = vmatprep.subr.mxu0 0.0
    %8109 = vmatpush1.msra.mxu0 0.0
    %8110 = vmatprep.subr.mxu0 0.0
    %8111 = vmatpush1.msra.mxu0 0.0
    %8112 = vmatprep.subr.mxu0 0.0
    %8113 = vmatpush1.msra.mxu0 0.0
    %8114 = vmatprep.subr.mxu0 0.0
    %8115 = vmatpush1.msra.mxu0 0.0
    %8116 = vmatprep.subr.mxu0 0.0
    %8117 = vmatpush1.msra.mxu0 0.0
    %8118 = vmatprep.subr.mxu0 0.0
    %8119 = vmatpush1.msra.mxu0 0.0
    %8120 = vmatprep.subr.mxu0 0.0
    %8121 = vmatpush1.msra.mxu0 0.0
    %8122 = vmatprep.subr.mxu0 0.0
    %8123 = vmatpush1.msra.mxu0 0.0
    %8124 = vmatprep.subr.mxu0 0.0
    %8125 = vmatpush1.msra.mxu0 0.0
    %8126 = vmatprep.subr.mxu0 0.0
    %8127 = vmatpush1.msra.mxu0 0.0
    %8128 = vmatprep.subr.mxu0 0.0
    %8129 = vmatpush1.msra.mxu0 0.0
    %8130 = vmatprep.subr.mxu0 0.0
    %8131 = vmatpush1.msra.mxu0 0.0
    %8132 = vmatprep.subr.mxu0 0.0
    %8133 = vmatpush1.msra.mxu0 0.0
    %8134 = vmatprep.mubr.f32.mxu0 0.0
    %8135 = vmatmul.mubr.f32.gmra.mrb[0].mxu0 %v8065
    %v8136 = vpop.f32.mrb[0].mxu0
    %v8137 = vadd.f32 %v7987, %v8136
    %v8138 = vpop.f32.mrb[0].mxu0
    %v8139 = vadd.f32 %v7991, %v8138
    %8140 = vmatprep.mubr.f32.mxu0 0.0
    %8141 = vmatmul.mubr.f32.gmra.mrb[0].mxu0 %v8068
    %v8142 = vpop.f32.mrb[0].mxu0
    %v8143 = vadd.f32 %v7987, %v8142
    %v8144 = vpop.f32.mrb[0].mxu0
    %v8145 = vadd.f32 %v7991, %v8144
    %8146 = vdwg.mxu0
    %8147 = vmatprep.subr.mxu0 %v7918
    %8148 = vmatpush1.msra.mxu0 %v7917
    %8149 = vmatprep.subr.mxu0 %v7934
    %8150 = vmatpush1.msra.mxu0 %v7933
    %8151 = vmatprep.subr.mxu0 %v7950
    %8152 = vmatpush1.msra.mxu0 %v7949
    %8153 = vmatprep.subr.mxu0 %v7966
    %8154 = vmatpush1.msra.mxu0 %v7965
    %8155 = vmatprep.subr.mxu0 0.0
    %8156 = vmatpush1.msra.mxu0 0.0
    %8157 = vmatprep.subr.mxu0 0.0
    %8158 = vmatpush1.msra.mxu0 0.0
    %8159 = vmatprep.subr.mxu0 0.0
    %8160 = vmatpush1.msra.mxu0 0.0
    %8161 = vmatprep.subr.mxu0 0.0
    %8162 = vmatpush1.msra.mxu0 0.0
    %8163 = vmatprep.subr.mxu0 0.0
    %8164 = vmatpush1.msra.mxu0 0.0
    %8165 = vmatprep.subr.mxu0 0.0
    %8166 = vmatpush1.msra.mxu0 0.0
    %8167 = vmatprep.subr.mxu0 0.0
    %8168 = vmatpush1.msra.mxu0 0.0
    %8169 = vmatprep.subr.mxu0 0.0
    %8170 = vmatpush1.msra.mxu0 0.0
    %8171 = vmatprep.subr.mxu0 0.0
    %8172 = vmatpush1.msra.mxu0 0.0
    %8173 = vmatprep.subr.mxu0 0.0
    %8174 = vmatpush1.msra.mxu0 0.0
    %8175 = vmatprep.subr.mxu0 0.0
    %8176 = vmatpush1.msra.mxu0 0.0
    %8177 = vmatprep.subr.mxu0 0.0
    %8178 = vmatpush1.msra.mxu0 0.0
    %8179 = vmatprep.subr.mxu0 0.0
    %8180 = vmatpush1.msra.mxu0 0.0
    %8181 = vmatprep.subr.mxu0 0.0
    %8182 = vmatpush1.msra.mxu0 0.0
    %8183 = vmatprep.subr.mxu0 0.0
    %8184 = vmatpush1.msra.mxu0 0.0
    %8185 = vmatprep.subr.mxu0 0.0
    %8186 = vmatpush1.msra.mxu0 0.0
    %8187 = vmatprep.subr.mxu0 0.0
    %8188 = vmatpush1.msra.mxu0 0.0
    %8189 = vmatprep.subr.mxu0 0.0
    %8190 = vmatpush1.msra.mxu0 0.0
    %8191 = vmatprep.subr.mxu0 0.0
    %8192 = vmatpush1.msra.mxu0 0.0
    %8193 = vmatprep.subr.mxu0 0.0
    %8194 = vmatpush1.msra.mxu0 0.0
    %8195 = vmatprep.subr.mxu0 0.0
    %8196 = vmatpush1.msra.mxu0 0.0
    %8197 = vmatprep.subr.mxu0 0.0
    %8198 = vmatpush1.msra.mxu0 0.0
    %8199 = vmatprep.subr.mxu0 0.0
    %8200 = vmatpush1.msra.mxu0 0.0
    %8201 = vmatprep.subr.mxu0 0.0
    %8202 = vmatpush1.msra.mxu0 0.0
    %8203 = vmatprep.subr.mxu0 0.0
    %8204 = vmatpush1.msra.mxu0 0.0
    %8205 = vmatprep.subr.mxu0 0.0
    %8206 = vmatpush1.msra.mxu0 0.0
    %8207 = vmatprep.subr.mxu0 0.0
    %8208 = vmatpush1.msra.mxu0 0.0
    %8209 = vmatprep.subr.mxu0 0.0
    %8210 = vmatpush1.msra.mxu0 0.0
    %8211 = vmatprep.mubr.f32.mxu0 0.0
    %8212 = vmatmul.mubr.f32.gmra.mrb[0].mxu0 %v8065
    %v8213 = vpop.f32.mrb[0].mxu0
    %v8214 = vadd.f32 %v7995, %v8213
    %v8215 = vpop.f32.mrb[0].mxu0
    %v8216 = vadd.f32 %v7999, %v8215
    %8217 = vmatprep.mubr.f32.mxu0 0.0
    %8218 = vmatmul.mubr.f32.gmra.mrb[0].mxu0 %v8068
    %v8219 = vpop.f32.mrb[0].mxu0
    %v8220 = vadd.f32 %v7995, %v8219
    %v8221 = vpop.f32.mrb[0].mxu0
    %v8222 = vadd.f32 %v7999, %v8221
    %8223 = vdwg.mxu0
    %8224 = vmatprep.subr.mxu0 %v7920
    %8225 = vmatpush1.msra.mxu0 %v7919
    %8226 = vmatprep.subr.mxu0 %v7936
    %8227 = vmatpush1.msra.mxu0 %v7935
    %8228 = vmatprep.subr.mxu0 %v7952
    %8229 = vmatpush1.msra.mxu0 %v7951
    %8230 = vmatprep.subr.mxu0 %v7968
    %8231 = vmatpush1.msra.mxu0 %v7967
    %8232 = vmatprep.subr.mxu0 0.0
    %8233 = vmatpush1.msra.mxu0 0.0
    %8234 = vmatprep.subr.mxu0 0.0
    %8235 = vmatpush1.msra.mxu0 0.0
    %8236 = vmatprep.subr.mxu0 0.0
    %8237 = vmatpush1.msra.mxu0 0.0
    %8238 = vmatprep.subr.mxu0 0.0
    %8239 = vmatpush1.msra.mxu0 0.0
    %8240 = vmatprep.subr.mxu0 0.0
    %8241 = vmatpush1.msra.mxu0 0.0
    %8242 = vmatprep.subr.mxu0 0.0
    %8243 = vmatpush1.msra.mxu0 0.0
    %8244 = vmatprep.subr.mxu0 0.0
    %8245 = vmatpush1.msra.mxu0 0.0
    %8246 = vmatprep.subr.mxu0 0.0
    %8247 = vmatpush1.msra.mxu0 0.0
    %8248 = vmatprep.subr.mxu0 0.0
    %8249 = vmatpush1.msra.mxu0 0.0
    %8250 = vmatprep.subr.mxu0 0.0
    %8251 = vmatpush1.msra.mxu0 0.0
    %8252 = vmatprep.subr.mxu0 0.0
    %8253 = vmatpush1.msra.mxu0 0.0
    %8254 = vmatprep.subr.mxu0 0.0
    %8255 = vmatpush1.msra.mxu0 0.0
    %8256 = vmatprep.subr.mxu0 0.0
    %8257 = vmatpush1.msra.mxu0 0.0
    %8258 = vmatprep.subr.mxu0 0.0
    %8259 = vmatpush1.msra.mxu0 0.0
    %8260 = vmatprep.subr.mxu0 0.0
    %8261 = vmatpush1.msra.mxu0 0.0
    %8262 = vmatprep.subr.mxu0 0.0
    %8263 = vmatpush1.msra.mxu0 0.0
    %8264 = vmatprep.subr.mxu0 0.0
    %8265 = vmatpush1.msra.mxu0 0.0
    %8266 = vmatprep.subr.mxu0 0.0
    %8267 = vmatpush1.msra.mxu0 0.0
    %8268 = vmatprep.subr.mxu0 0.0
    %8269 = vmatpush1.msra.mxu0 0.0
    %8270 = vmatprep.subr.mxu0 0.0
    %8271 = vmatpush1.msra.mxu0 0.0
    %8272 = vmatprep.subr.mxu0 0.0
    %8273 = vmatpush1.msra.mxu0 0.0
    %8274 = vmatprep.subr.mxu0 0.0
    %8275 = vmatpush1.msra.mxu0 0.0
    %8276 = vmatprep.subr.mxu0 0.0
    %8277 = vmatpush1.msra.mxu0 0.0
    %8278 = vmatprep.subr.mxu0 0.0
    %8279 = vmatpush1.msra.mxu0 0.0
    %8280 = vmatprep.subr.mxu0 0.0
    %8281 = vmatpush1.msra.mxu0 0.0
    %8282 = vmatprep.subr.mxu0 0.0
    %8283 = vmatpush1.msra.mxu0 0.0
    %8284 = vmatprep.subr.mxu0 0.0
    %8285 = vmatpush1.msra.mxu0 0.0
    %8286 = vmatprep.subr.mxu0 0.0
    %8287 = vmatpush1.msra.mxu0 0.0
    %8288 = vmatprep.mubr.f32.mxu0 0.0
    %8289 = vmatmul.mubr.f32.gmra.mrb[0].mxu0 %v8065
    %v8290 = vpop.f32.mrb[0].mxu0
    %v8291 = vadd.f32 %v8003, %v8290
    %v8292 = vpop.f32.mrb[0].mxu0
    %v8293 = vadd.f32 %v8007, %v8292
    %8294 = vmatprep.mubr.f32.mxu0 0.0
    %8295 = vmatmul.mubr.f32.gmra.mrb[0].mxu0 %v8068
    %v8296 = vpop.f32.mrb[0].mxu0
    %v8297 = vadd.f32 %v8003, %v8296
    %v8298 = vpop.f32.mrb[0].mxu0
    %v8299 = vadd.f32 %v8007, %v8298
    %8300 = vdwg.mxu0
    %8301 = vmatprep.subr.mxu0 %v7922
    %8302 = vmatpush1.msra.mxu0 %v7921
    %8303 = vmatprep.subr.mxu0 %v7938
    %8304 = vmatpush1.msra.mxu0 %v7937
    %8305 = vmatprep.subr.mxu0 %v7954
    %8306 = vmatpush1.msra.mxu0 %v7953
    %8307 = vmatprep.subr.mxu0 %v7970
    %8308 = vmatpush1.msra.mxu0 %v7969
    %8309 = vmatprep.subr.mxu0 0.0
    %8310 = vmatpush1.msra.mxu0 0.0
    %8311 = vmatprep.subr.mxu0 0.0
    %8312 = vmatpush1.msra.mxu0 0.0
    %8313 = vmatprep.subr.mxu0 0.0
    %8314 = vmatpush1.msra.mxu0 0.0
    %8315 = vmatprep.subr.mxu0 0.0
    %8316 = vmatpush1.msra.mxu0 0.0
    %8317 = vmatprep.subr.mxu0 0.0
    %8318 = vmatpush1.msra.mxu0 0.0
    %8319 = vmatprep.subr.mxu0 0.0
    %8320 = vmatpush1.msra.mxu0 0.0
    %8321 = vmatprep.subr.mxu0 0.0
    %8322 = vmatpush1.msra.mxu0 0.0
    %8323 = vmatprep.subr.mxu0 0.0
    %8324 = vmatpush1.msra.mxu0 0.0
    %8325 = vmatprep.subr.mxu0 0.0
    %8326 = vmatpush1.msra.mxu0 0.0
    %8327 = vmatprep.subr.mxu0 0.0
    %8328 = vmatpush1.msra.mxu0 0.0
    %8329 = vmatprep.subr.mxu0 0.0
    %8330 = vmatpush1.msra.mxu0 0.0
    %8331 = vmatprep.subr.mxu0 0.0
    %8332 = vmatpush1.msra.mxu0 0.0
    %8333 = vmatprep.subr.mxu0 0.0
    %8334 = vmatpush1.msra.mxu0 0.0
    %8335 = vmatprep.subr.mxu0 0.0
    %8336 = vmatpush1.msra.mxu0 0.0
    %8337 = vmatprep.subr.mxu0 0.0
    %8338 = vmatpush1.msra.mxu0 0.0
    %8339 = vmatprep.subr.mxu0 0.0
    %8340 = vmatpush1.msra.mxu0 0.0
    %8341 = vmatprep.subr.mxu0 0.0
    %8342 = vmatpush1.msra.mxu0 0.0
    %8343 = vmatprep.subr.mxu0 0.0
    %8344 = vmatpush1.msra.mxu0 0.0
    %8345 = vmatprep.subr.mxu0 0.0
    %8346 = vmatpush1.msra.mxu0 0.0
    %8347 = vmatprep.subr.mxu0 0.0
    %8348 = vmatpush1.msra.mxu0 0.0
    %8349 = vmatprep.subr.mxu0 0.0
    %8350 = vmatpush1.msra.mxu0 0.0
    %8351 = vmatprep.subr.mxu0 0.0
    %8352 = vmatpush1.msra.mxu0 0.0
    %8353 = vmatprep.subr.mxu0 0.0
    %8354 = vmatpush1.msra.mxu0 0.0
    %8355 = vmatprep.subr.mxu0 0.0
    %8356 = vmatpush1.msra.mxu0 0.0
    %8357 = vmatprep.subr.mxu0 0.0
    %8358 = vmatpush1.msra.mxu0 0.0
    %8359 = vmatprep.subr.mxu0 0.0
    %8360 = vmatpush1.msra.mxu0 0.0
    %8361 = vmatprep.subr.mxu0 0.0
    %8362 = vmatpush1.msra.mxu0 0.0
    %8363 = vmatprep.subr.mxu0 0.0
    %8364 = vmatpush1.msra.mxu0 0.0
    %8365 = vmatprep.mubr.f32.mxu0 0.0
    %8366 = vmatmul.mubr.f32.gmra.mrb[0].mxu0 %v8065
    %v8367 = vpop.f32.mrb[0].mxu0
    %v8368 = vadd.f32 %v8011, %v8367
    %v8369 = vpop.f32.mrb[0].mxu0
    %v8370 = vadd.f32 %v8015, %v8369
    %8371 = vmatprep.mubr.f32.mxu0 0.0
    %8372 = vmatmul.mubr.f32.gmra.mrb[0].mxu0 %v8068
    %v8373 = vpop.f32.mrb[0].mxu0
    %v8374 = vadd.f32 %v8011, %v8373
    %v8375 = vpop.f32.mrb[0].mxu0
    %v8376 = vadd.f32 %v8015, %v8375
    %8377 = vdwg.mxu0
    %8378 = vmatprep.subr.mxu0 %v7924
    %8379 = vmatpush1.msra.mxu0 %v7923
    %8380 = vmatprep.subr.mxu0 %v7940
    %8381 = vmatpush1.msra.mxu0 %v7939
    %8382 = vmatprep.subr.mxu0 %v7956
    %8383 = vmatpush1.msra.mxu0 %v7955
    %8384 = vmatprep.subr.mxu0 %v7972
    %8385 = vmatpush1.msra.mxu0 %v7971
    %8386 = vmatprep.subr.mxu0 0.0
    %8387 = vmatpush1.msra.mxu0 0.0
    %8388 = vmatprep.subr.mxu0 0.0
    %8389 = vmatpush1.msra.mxu0 0.0
    %8390 = vmatprep.subr.mxu0 0.0
    %8391 = vmatpush1.msra.mxu0 0.0
    %8392 = vmatprep.subr.mxu0 0.0
    %8393 = vmatpush1.msra.mxu0 0.0
    %8394 = vmatprep.subr.mxu0 0.0
    %8395 = vmatpush1.msra.mxu0 0.0
    %8396 = vmatprep.subr.mxu0 0.0
    %8397 = vmatpush1.msra.mxu0 0.0
    %8398 = vmatprep.subr.mxu0 0.0
    %8399 = vmatpush1.msra.mxu0 0.0
    %8400 = vmatprep.subr.mxu0 0.0
    %8401 = vmatpush1.msra.mxu0 0.0
    %8402 = vmatprep.subr.mxu0 0.0
    %8403 = vmatpush1.msra.mxu0 0.0
    %8404 = vmatprep.subr.mxu0 0.0
    %8405 = vmatpush1.msra.mxu0 0.0
    %8406 = vmatprep.subr.mxu0 0.0
    %8407 = vmatpush1.msra.mxu0 0.0
    %8408 = vmatprep.subr.mxu0 0.0
    %8409 = vmatpush1.msra.mxu0 0.0
    %8410 = vmatprep.subr.mxu0 0.0
    %8411 = vmatpush1.msra.mxu0 0.0
    %8412 = vmatprep.subr.mxu0 0.0
    %8413 = vmatpush1.msra.mxu0 0.0
    %8414 = vmatprep.subr.mxu0 0.0
    %8415 = vmatpush1.msra.mxu0 0.0
    %8416 = vmatprep.subr.mxu0 0.0
    %8417 = vmatpush1.msra.mxu0 0.0
    %8418 = vmatprep.subr.mxu0 0.0
    %8419 = vmatpush1.msra.mxu0 0.0
    %8420 = vmatprep.subr.mxu0 0.0
    %8421 = vmatpush1.msra.mxu0 0.0
    %8422 = vmatprep.subr.mxu0 0.0
    %8423 = vmatpush1.msra.mxu0 0.0
    %8424 = vmatprep.subr.mxu0 0.0
    %8425 = vmatpush1.msra.mxu0 0.0
    %8426 = vmatprep.subr.mxu0 0.0
    %8427 = vmatpush1.msra.mxu0 0.0
    %8428 = vmatprep.subr.mxu0 0.0
    %8429 = vmatpush1.msra.mxu0 0.0
    %8430 = vmatprep.subr.mxu0 0.0
    %8431 = vmatpush1.msra.mxu0 0.0
    %8432 = vmatprep.subr.mxu0 0.0
    %8433 = vmatpush1.msra.mxu0 0.0
    %8434 = vmatprep.subr.mxu0 0.0
    %8435 = vmatpush1.msra.mxu0 0.0
    %8436 = vmatprep.subr.mxu0 0.0
    %8437 = vmatpush1.msra.mxu0 0.0
    %8438 = vmatprep.subr.mxu0 0.0
    %8439 = vmatpush1.msra.mxu0 0.0
    %8440 = vmatprep.subr.mxu0 0.0
    %8441 = vmatpush1.msra.mxu0 0.0
    %8442 = vmatprep.mubr.f32.mxu0 0.0
    %8443 = vmatmul.mubr.f32.gmra.mrb[0].mxu0 %v8065
    %v8444 = vpop.f32.mrb[0].mxu0
    %v8445 = vadd.f32 %v8019, %v8444
    %v8446 = vpop.f32.mrb[0].mxu0
    %v8447 = vadd.f32 %v8023, %v8446
    %8448 = vmatprep.mubr.f32.mxu0 0.0
    %8449 = vmatmul.mubr.f32.gmra.mrb[0].mxu0 %v8068
    %v8450 = vpop.f32.mrb[0].mxu0
    %v8451 = vadd.f32 %v8019, %v8450
    %v8452 = vpop.f32.mrb[0].mxu0
    %v8453 = vadd.f32 %v8023, %v8452
    %8454 = vdwg.mxu0
    %8455 = vmatprep.subr.mxu0 %v7926
    %8456 = vmatpush1.msra.mxu0 %v7925
    %8457 = vmatprep.subr.mxu0 %v7942
    %8458 = vmatpush1.msra.mxu0 %v7941
    %8459 = vmatprep.subr.mxu0 %v7958
    %8460 = vmatpush1.msra.mxu0 %v7957
    %8461 = vmatprep.subr.mxu0 %v7974
    %8462 = vmatpush1.msra.mxu0 %v7973
    %8463 = vmatprep.subr.mxu0 0.0
    %8464 = vmatpush1.msra.mxu0 0.0
    %8465 = vmatprep.subr.mxu0 0.0
    %8466 = vmatpush1.msra.mxu0 0.0
    %8467 = vmatprep.subr.mxu0 0.0
    %8468 = vmatpush1.msra.mxu0 0.0
    %8469 = vmatprep.subr.mxu0 0.0
    %8470 = vmatpush1.msra.mxu0 0.0
    %8471 = vmatprep.subr.mxu0 0.0
    %8472 = vmatpush1.msra.mxu0 0.0
    %8473 = vmatprep.subr.mxu0 0.0
    %8474 = vmatpush1.msra.mxu0 0.0
    %8475 = vmatprep.subr.mxu0 0.0
    %8476 = vmatpush1.msra.mxu0 0.0
    %8477 = vmatprep.subr.mxu0 0.0
    %8478 = vmatpush1.msra.mxu0 0.0
    %8479 = vmatprep.subr.mxu0 0.0
    %8480 = vmatpush1.msra.mxu0 0.0
    %8481 = vmatprep.subr.mxu0 0.0
    %8482 = vmatpush1.msra.mxu0 0.0
    %8483 = vmatprep.subr.mxu0 0.0
    %8484 = vmatpush1.msra.mxu0 0.0
    %8485 = vmatprep.subr.mxu0 0.0
    %8486 = vmatpush1.msra.mxu0 0.0
    %8487 = vmatprep.subr.mxu0 0.0
    %8488 = vmatpush1.msra.mxu0 0.0
    %8489 = vmatprep.subr.mxu0 0.0
    %8490 = vmatpush1.msra.mxu0 0.0
    %8491 = vmatprep.subr.mxu0 0.0
    %8492 = vmatpush1.msra.mxu0 0.0
    %8493 = vmatprep.subr.mxu0 0.0
    %8494 = vmatpush1.msra.mxu0 0.0
    %8495 = vmatprep.subr.mxu0 0.0
    %8496 = vmatpush1.msra.mxu0 0.0
    %8497 = vmatprep.subr.mxu0 0.0
    %8498 = vmatpush1.msra.mxu0 0.0
    %8499 = vmatprep.subr.mxu0 0.0
    %8500 = vmatpush1.msra.mxu0 0.0
    %8501 = vmatprep.subr.mxu0 0.0
    %8502 = vmatpush1.msra.mxu0 0.0
    %8503 = vmatprep.subr.mxu0 0.0
    %8504 = vmatpush1.msra.mxu0 0.0
    %8505 = vmatprep.subr.mxu0 0.0
    %8506 = vmatpush1.msra.mxu0 0.0
    %8507 = vmatprep.subr.mxu0 0.0
    %8508 = vmatpush1.msra.mxu0 0.0
    %8509 = vmatprep.subr.mxu0 0.0
    %8510 = vmatpush1.msra.mxu0 0.0
    %8511 = vmatprep.subr.mxu0 0.0
    %8512 = vmatpush1.msra.mxu0 0.0
    %8513 = vmatprep.subr.mxu0 0.0
    %8514 = vmatpush1.msra.mxu0 0.0
    %8515 = vmatprep.subr.mxu0 0.0
    %8516 = vmatpush1.msra.mxu0 0.0
    %8517 = vmatprep.subr.mxu0 0.0
    %8518 = vmatpush1.msra.mxu0 0.0
    %8519 = vmatprep.mubr.f32.mxu0 0.0
    %8520 = vmatmul.mubr.f32.gmra.mrb[0].mxu0 %v8065
    %v8521 = vpop.f32.mrb[0].mxu0
    %v8522 = vadd.f32 %v8027, %v8521
    %v8523 = vpop.f32.mrb[0].mxu0
    %v8524 = vadd.f32 %v8031, %v8523
    %8525 = vmatprep.mubr.f32.mxu0 0.0
    %8526 = vmatmul.mubr.f32.gmra.mrb[0].mxu0 %v8068
    %v8527 = vpop.f32.mrb[0].mxu0
    %v8528 = vadd.f32 %v8027, %v8527
    %v8529 = vpop.f32.mrb[0].mxu0
    %v8530 = vadd.f32 %v8031, %v8529
    %8531 = vdwg.mxu0
    %8532 = vmatprep.subr.mxu0 %v7928
    %8533 = vmatpush1.msra.mxu0 %v7927
    %8534 = vmatprep.subr.mxu0 %v7944
    %8535 = vmatpush1.msra.mxu0 %v7943
    %8536 = vmatprep.subr.mxu0 %v7960
    %8537 = vmatpush1.msra.mxu0 %v7959
    %8538 = vmatprep.subr.mxu0 %v7976
    %8539 = vmatpush1.msra.mxu0 %v7975
    %8540 = vmatprep.subr.mxu0 0.0
    %8541 = vmatpush1.msra.mxu0 0.0
    %8542 = vmatprep.subr.mxu0 0.0
    %8543 = vmatpush1.msra.mxu0 0.0
    %8544 = vmatprep.subr.mxu0 0.0
    %8545 = vmatpush1.msra.mxu0 0.0
    %8546 = vmatprep.subr.mxu0 0.0
    %8547 = vmatpush1.msra.mxu0 0.0
    %8548 = vmatprep.subr.mxu0 0.0
    %8549 = vmatpush1.msra.mxu0 0.0
    %8550 = vmatprep.subr.mxu0 0.0
    %8551 = vmatpush1.msra.mxu0 0.0
    %8552 = vmatprep.subr.mxu0 0.0
    %8553 = vmatpush1.msra.mxu0 0.0
    %8554 = vmatprep.subr.mxu0 0.0
    %8555 = vmatpush1.msra.mxu0 0.0
    %8556 = vmatprep.subr.mxu0 0.0
    %8557 = vmatpush1.msra.mxu0 0.0
    %8558 = vmatprep.subr.mxu0 0.0
    %8559 = vmatpush1.msra.mxu0 0.0
    %8560 = vmatprep.subr.mxu0 0.0
    %8561 = vmatpush1.msra.mxu0 0.0
    %8562 = vmatprep.subr.mxu0 0.0
    %8563 = vmatpush1.msra.mxu0 0.0
    %8564 = vmatprep.subr.mxu0 0.0
    %8565 = vmatpush1.msra.mxu0 0.0
    %8566 = vmatprep.subr.mxu0 0.0
    %8567 = vmatpush1.msra.mxu0 0.0
    %8568 = vmatprep.subr.mxu0 0.0
    %8569 = vmatpush1.msra.mxu0 0.0
    %8570 = vmatprep.subr.mxu0 0.0
    %8571 = vmatpush1.msra.mxu0 0.0
    %8572 = vmatprep.subr.mxu0 0.0
    %8573 = vmatpush1.msra.mxu0 0.0
    %8574 = vmatprep.subr.mxu0 0.0
    %8575 = vmatpush1.msra.mxu0 0.0
    %8576 = vmatprep.subr.mxu0 0.0
    %8577 = vmatpush1.msra.mxu0 0.0
    %8578 = vmatprep.subr.mxu0 0.0
    %8579 = vmatpush1.msra.mxu0 0.0
    %8580 = vmatprep.subr.mxu0 0.0
    %8581 = vmatpush1.msra.mxu0 0.0
    %8582 = vmatprep.subr.mxu0 0.0
    %8583 = vmatpush1.msra.mxu0 0.0
    %8584 = vmatprep.subr.mxu0 0.0
    %8585 = vmatpush1.msra.mxu0 0.0
    %8586 = vmatprep.subr.mxu0 0.0
    %8587 = vmatpush1.msra.mxu0 0.0
    %8588 = vmatprep.subr.mxu0 0.0
    %8589 = vmatpush1.msra.mxu0 0.0
    %8590 = vmatprep.subr.mxu0 0.0
    %8591 = vmatpush1.msra.mxu0 0.0
    %8592 = vmatprep.subr.mxu0 0.0
    %8593 = vmatpush1.msra.mxu0 0.0
    %8594 = vmatprep.subr.mxu0 0.0
    %8595 = vmatpush1.msra.mxu0 0.0
    %8596 = vmatprep.mubr.f32.mxu0 0.0
    %8597 = vmatmul.mubr.f32.gmra.mrb[0].mxu0 %v8065
    %v8598 = vpop.f32.mrb[0].mxu0
    %v8599 = vadd.f32 %v8035, %v8598
    %v8600 = vpop.f32.mrb[0].mxu0
    %v8601 = vadd.f32 %v8039, %v8600
    %8602 = vmatprep.mubr.f32.mxu0 0.0
    %8603 = vmatmul.mubr.f32.gmra.mrb[0].mxu0 %v8068
    %v8604 = vpop.f32.mrb[0].mxu0
    %v8605 = vadd.f32 %v8035, %v8604
    %v8606 = vpop.f32.mrb[0].mxu0
    %v8607 = vadd.f32 %v8039, %v8606
    %8608 = vdwg.mxu0
    %8609 = vmatprep.subr.mxu0 %v7930
    %8610 = vmatpush1.msra.mxu0 %v7929
    %8611 = vmatprep.subr.mxu0 %v7946
    %8612 = vmatpush1.msra.mxu0 %v7945
    %8613 = vmatprep.subr.mxu0 %v7962
    %8614 = vmatpush1.msra.mxu0 %v7961
    %8615 = vmatprep.subr.mxu0 %v7978
    %8616 = vmatpush1.msra.mxu0 %v7977
    %8617 = vmatprep.subr.mxu0 0.0
    %8618 = vmatpush1.msra.mxu0 0.0
    %8619 = vmatprep.subr.mxu0 0.0
    %8620 = vmatpush1.msra.mxu0 0.0
    %8621 = vmatprep.subr.mxu0 0.0
    %8622 = vmatpush1.msra.mxu0 0.0
    %8623 = vmatprep.subr.mxu0 0.0
    %8624 = vmatpush1.msra.mxu0 0.0
    %8625 = vmatprep.subr.mxu0 0.0
    %8626 = vmatpush1.msra.mxu0 0.0
    %8627 = vmatprep.subr.mxu0 0.0
    %8628 = vmatpush1.msra.mxu0 0.0
    %8629 = vmatprep.subr.mxu0 0.0
    %8630 = vmatpush1.msra.mxu0 0.0
    %8631 = vmatprep.subr.mxu0 0.0
    %8632 = vmatpush1.msra.mxu0 0.0
    %8633 = vmatprep.subr.mxu0 0.0
    %8634 = vmatpush1.msra.mxu0 0.0
    %8635 = vmatprep.subr.mxu0 0.0
    %8636 = vmatpush1.msra.mxu0 0.0
    %8637 = vmatprep.subr.mxu0 0.0
    %8638 = vmatpush1.msra.mxu0 0.0
    %8639 = vmatprep.subr.mxu0 0.0
    %8640 = vmatpush1.msra.mxu0 0.0
    %8641 = vmatprep.subr.mxu0 0.0
    %8642 = vmatpush1.msra.mxu0 0.0
    %8643 = vmatprep.subr.mxu0 0.0
    %8644 = vmatpush1.msra.mxu0 0.0
    %8645 = vmatprep.subr.mxu0 0.0
    %8646 = vmatpush1.msra.mxu0 0.0
    %8647 = vmatprep.subr.mxu0 0.0
    %8648 = vmatpush1.msra.mxu0 0.0
    %8649 = vmatprep.subr.mxu0 0.0
    %8650 = vmatpush1.msra.mxu0 0.0
    %8651 = vmatprep.subr.mxu0 0.0
    %8652 = vmatpush1.msra.mxu0 0.0
    %8653 = vmatprep.subr.mxu0 0.0
    %8654 = vmatpush1.msra.mxu0 0.0
    %8655 = vmatprep.subr.mxu0 0.0
    %8656 = vmatpush1.msra.mxu0 0.0
    %8657 = vmatprep.subr.mxu0 0.0
    %8658 = vmatpush1.msra.mxu0 0.0
    %8659 = vmatprep.subr.mxu0 0.0
    %8660 = vmatpush1.msra.mxu0 0.0
    %8661 = vmatprep.subr.mxu0 0.0
    %8662 = vmatpush1.msra.mxu0 0.0
    %8663 = vmatprep.subr.mxu0 0.0
    %8664 = vmatpush1.msra.mxu0 0.0
    %8665 = vmatprep.subr.mxu0 0.0
    %8666 = vmatpush1.msra.mxu0 0.0
    %8667 = vmatprep.subr.mxu0 0.0
    %8668 = vmatpush1.msra.mxu0 0.0
    %8669 = vmatprep.subr.mxu0 0.0
    %8670 = vmatpush1.msra.mxu0 0.0
    %8671 = vmatprep.subr.mxu0 0.0
    %8672 = vmatpush1.msra.mxu0 0.0
    %8673 = vmatprep.mubr.f32.mxu0 0.0
    %8674 = vmatmul.mubr.f32.gmra.mrb[0].mxu0 %v8065
    %v8675 = vpop.f32.mrb[0].mxu0
    %v8676 = vadd.f32 %v8043, %v8675
    %v8677 = vpop.f32.mrb[0].mxu0
    %v8678 = vadd.f32 %v8047, %v8677
    %8679 = vmatprep.mubr.f32.mxu0 0.0
    %8680 = vmatmul.mubr.f32.gmra.mrb[0].mxu0 %v8068
    %v8681 = vpop.f32.mrb[0].mxu0
    %v8682 = vadd.f32 %v8043, %v8681
    %v8683 = vpop.f32.mrb[0].mxu0
    %v8684 = vadd.f32 %v8047, %v8683
    %8685 = vdwg.mxu0
    %v8686 = vmax.f32 %v8137, 0.0
    %v8687 = vmax.f32 %v8139, 0.0
    %v8688 = vmax.f32 %v8214, 0.0
    %v8689 = vmax.f32 %v8216, 0.0
    %v8690 = vmax.f32 %v8291, 0.0
    %v8691 = vmax.f32 %v8293, 0.0
    %v8692 = vmax.f32 %v8368, 0.0
    %v8693 = vmax.f32 %v8370, 0.0
    %v8694 = vmax.f32 %v8445, 0.0
    %v8695 = vmax.f32 %v8447, 0.0
    %v8696 = vmax.f32 %v8522, 0.0
    %v8697 = vmax.f32 %v8524, 0.0
    %v8698 = vmax.f32 %v8599, 0.0
    %v8699 = vmax.f32 %v8601, 0.0
    %v8700 = vmax.f32 %v8676, 0.0
    %v8701 = vmax.f32 %v8678, 0.0
    %v8702 = vmax.f32 %v8143, 0.0
    %v8703 = vmax.f32 %v8145, 0.0
    %v8704 = vmax.f32 %v8220, 0.0
    %v8705 = vmax.f32 %v8222, 0.0
    %v8706 = vmax.f32 %v8297, 0.0
    %v8707 = vmax.f32 %v8299, 0.0
    %v8708 = vmax.f32 %v8374, 0.0
    %v8709 = vmax.f32 %v8376, 0.0
    %v8710 = vmax.f32 %v8451, 0.0
    %v8711 = vmax.f32 %v8453, 0.0
    %v8712 = vmax.f32 %v8528, 0.0
    %v8713 = vmax.f32 %v8530, 0.0
    %v8714 = vmax.f32 %v8605, 0.0
    %v8715 = vmax.f32 %v8607, 0.0
    %v8716 = vmax.f32 %v8682, 0.0
    %v8717 = vmax.f32 %v8684, 0.0
    %s8718 = scalar_lea.vmem %s14, 2048
    %v8719 = vld [vmem:[%s8718] sm:$0xff]
    %v8720 = vld [vmem:[%s8718 + $0x8] sm:$0xff]
    %v8721 = vld [vmem:[%s8718 + $0x10] sm:$0xff]
    %v8722 = vld [vmem:[%s8718 + $0x18] sm:$0xff]
    %v8723 = vld [vmem:[%s8718 + $0x20] sm:$0xff]
    %v8724 = vld [vmem:[%s8718 + $0x28] sm:$0xff]
    %v8725 = vld [vmem:[%s8718 + $0x30] sm:$0xff]
    %v8726 = vld [vmem:[%s8718 + $0x38] sm:$0xff]
    %v8727 = vld [vmem:[%s8718 + $0x40] sm:$0xff]
    %v8728 = vld [vmem:[%s8718 + $0x48] sm:$0xff]
    %v8729 = vld [vmem:[%s8718 + $0x50] sm:$0xff]
    %v8730 = vld [vmem:[%s8718 + $0x58] sm:$0xff]
    %v8731 = vld [vmem:[%s8718 + $0x60] sm:$0xff]
    %v8732 = vld [vmem:[%s8718 + $0x68] sm:$0xff]
    %v8733 = vld [vmem:[%s8718 + $0x70] sm:$0xff]
    %v8734 = vld [vmem:[%s8718 + $0x78] sm:$0xff]
    %v8735 = vld [vmem:[%s8718 + $0x80] sm:$0xff]
    %v8736 = vld [vmem:[%s8718 + $0x88] sm:$0xff]
    %v8737 = vld [vmem:[%s8718 + $0x90] sm:$0xff]
    %v8738 = vld [vmem:[%s8718 + $0x98] sm:$0xff]
    %v8739 = vld [vmem:[%s8718 + $0xa0] sm:$0xff]
    %v8740 = vld [vmem:[%s8718 + $0xa8] sm:$0xff]
    %v8741 = vld [vmem:[%s8718 + $0xb0] sm:$0xff]
    %v8742 = vld [vmem:[%s8718 + $0xb8] sm:$0xff]
    %v8743 = vld [vmem:[%s8718 + $0xc0] sm:$0xff]
    %v8744 = vld [vmem:[%s8718 + $0xc8] sm:$0xff]
    %v8745 = vld [vmem:[%s8718 + $0xd0] sm:$0xff]
    %v8746 = vld [vmem:[%s8718 + $0xd8] sm:$0xff]
    %v8747 = vld [vmem:[%s8718 + $0xe0] sm:$0xff]
    %v8748 = vld [vmem:[%s8718 + $0xe8] sm:$0xff]
    %v8749 = vld [vmem:[%s8718 + $0xf0] sm:$0xff]
    %v8750 = vld [vmem:[%s8718 + $0xf8] sm:$0xff]
    %v8751 = vld [vmem:[%s8718 + $0x100] sm:$0xff]
    %v8752 = vld [vmem:[%s8718 + $0x108] sm:$0xff]
    %v8753 = vld [vmem:[%s8718 + $0x110] sm:$0xff]
    %v8754 = vld [vmem:[%s8718 + $0x118] sm:$0xff]
    %v8755 = vld [vmem:[%s8718 + $0x120] sm:$0xff]
    %v8756 = vld [vmem:[%s8718 + $0x128] sm:$0xff]
    %v8757 = vld [vmem:[%s8718 + $0x130] sm:$0xff]
    %v8758 = vld [vmem:[%s8718 + $0x138] sm:$0xff]
    %v8759 = vld [vmem:[%s8718 + $0x140] sm:$0xff]
    %v8760 = vld [vmem:[%s8718 + $0x148] sm:$0xff]
    %v8761 = vld [vmem:[%s8718 + $0x150] sm:$0xff]
    %v8762 = vld [vmem:[%s8718 + $0x158] sm:$0xff]
    %v8763 = vld [vmem:[%s8718 + $0x160] sm:$0xff]
    %v8764 = vld [vmem:[%s8718 + $0x168] sm:$0xff]
    %v8765 = vld [vmem:[%s8718 + $0x170] sm:$0xff]
    %v8766 = vld [vmem:[%s8718 + $0x178] sm:$0xff]
    %v8767 = vld [vmem:[%s8718 + $0x180] sm:$0xff]
    %v8768 = vld [vmem:[%s8718 + $0x188] sm:$0xff]
    %v8769 = vld [vmem:[%s8718 + $0x190] sm:$0xff]
    %v8770 = vld [vmem:[%s8718 + $0x198] sm:$0xff]
    %v8771 = vld [vmem:[%s8718 + $0x1a0] sm:$0xff]
    %v8772 = vld [vmem:[%s8718 + $0x1a8] sm:$0xff]
    %v8773 = vld [vmem:[%s8718 + $0x1b0] sm:$0xff]
    %v8774 = vld [vmem:[%s8718 + $0x1b8] sm:$0xff]
    %v8775 = vld [vmem:[%s8718 + $0x1c0] sm:$0xff]
    %v8776 = vld [vmem:[%s8718 + $0x1c8] sm:$0xff]
    %v8777 = vld [vmem:[%s8718 + $0x1d0] sm:$0xff]
    %v8778 = vld [vmem:[%s8718 + $0x1d8] sm:$0xff]
    %v8779 = vld [vmem:[%s8718 + $0x1e0] sm:$0xff]
    %v8780 = vld [vmem:[%s8718 + $0x1e8] sm:$0xff]
    %v8781 = vld [vmem:[%s8718 + $0x1f0] sm:$0xff]
    %v8782 = vld [vmem:[%s8718 + $0x1f8] sm:$0xff]
    %v8783 = vld [vmem:[%s8718 + $0x200] sm:$0xff]
    %v8784 = vld [vmem:[%s8718 + $0x208] sm:$0xff]
    %v8785 = vld [vmem:[%s8718 + $0x210] sm:$0xff]
    %v8786 = vld [vmem:[%s8718 + $0x218] sm:$0xff]
    %v8787 = vld [vmem:[%s8718 + $0x220] sm:$0xff]
    %v8788 = vld [vmem:[%s8718 + $0x228] sm:$0xff]
    %v8789 = vld [vmem:[%s8718 + $0x230] sm:$0xff]
    %v8790 = vld [vmem:[%s8718 + $0x238] sm:$0xff]
    %v8791 = vld [vmem:[%s8718 + $0x240] sm:$0xff]
    %v8792 = vld [vmem:[%s8718 + $0x248] sm:$0xff]
    %v8793 = vld [vmem:[%s8718 + $0x250] sm:$0xff]
    %v8794 = vld [vmem:[%s8718 + $0x258] sm:$0xff]
    %v8795 = vld [vmem:[%s8718 + $0x260] sm:$0xff]
    %v8796 = vld [vmem:[%s8718 + $0x268] sm:$0xff]
    %v8797 = vld [vmem:[%s8718 + $0x270] sm:$0xff]
    %v8798 = vld [vmem:[%s8718 + $0x278] sm:$0xff]
    %v8799 = vld [vmem:[%s8718 + $0x280] sm:$0xff]
    %v8800 = vld [vmem:[%s8718 + $0x288] sm:$0xff]
    %v8801 = vld [vmem:[%s8718 + $0x290] sm:$0xff]
    %v8802 = vld [vmem:[%s8718 + $0x298] sm:$0xff]
    %v8803 = vld [vmem:[%s8718 + $0x2a0] sm:$0xff]
    %v8804 = vld [vmem:[%s8718 + $0x2a8] sm:$0xff]
    %v8805 = vld [vmem:[%s8718 + $0x2b0] sm:$0xff]
    %v8806 = vld [vmem:[%s8718 + $0x2b8] sm:$0xff]
    %v8807 = vld [vmem:[%s8718 + $0x2c0] sm:$0xff]
    %v8808 = vld [vmem:[%s8718 + $0x2c8] sm:$0xff]
    %v8809 = vld [vmem:[%s8718 + $0x2d0] sm:$0xff]
    %v8810 = vld [vmem:[%s8718 + $0x2d8] sm:$0xff]
    %v8811 = vld [vmem:[%s8718 + $0x2e0] sm:$0xff]
    %v8812 = vld [vmem:[%s8718 + $0x2e8] sm:$0xff]
    %v8813 = vld [vmem:[%s8718 + $0x2f0] sm:$0xff]
    %v8814 = vld [vmem:[%s8718 + $0x2f8] sm:$0xff]
    %v8815 = vld [vmem:[%s8718 + $0x300] sm:$0xff]
    %v8816 = vld [vmem:[%s8718 + $0x308] sm:$0xff]
    %v8817 = vld [vmem:[%s8718 + $0x310] sm:$0xff]
    %v8818 = vld [vmem:[%s8718 + $0x318] sm:$0xff]
    %v8819 = vld [vmem:[%s8718 + $0x320] sm:$0xff]
    %v8820 = vld [vmem:[%s8718 + $0x328] sm:$0xff]
    %v8821 = vld [vmem:[%s8718 + $0x330] sm:$0xff]
    %v8822 = vld [vmem:[%s8718 + $0x338] sm:$0xff]
    %v8823 = vld [vmem:[%s8718 + $0x340] sm:$0xff]
    %v8824 = vld [vmem:[%s8718 + $0x348] sm:$0xff]
    %v8825 = vld [vmem:[%s8718 + $0x350] sm:$0xff]
    %v8826 = vld [vmem:[%s8718 + $0x358] sm:$0xff]
    %v8827 = vld [vmem:[%s8718 + $0x360] sm:$0xff]
    %v8828 = vld [vmem:[%s8718 + $0x368] sm:$0xff]
    %v8829 = vld [vmem:[%s8718 + $0x370] sm:$0xff]
    %v8830 = vld [vmem:[%s8718 + $0x378] sm:$0xff]
    %v8831 = vld [vmem:[%s8718 + $0x380] sm:$0xff]
    %v8832 = vld [vmem:[%s8718 + $0x388] sm:$0xff]
    %v8833 = vld [vmem:[%s8718 + $0x390] sm:$0xff]
    %v8834 = vld [vmem:[%s8718 + $0x398] sm:$0xff]
    %v8835 = vld [vmem:[%s8718 + $0x3a0] sm:$0xff]
    %v8836 = vld [vmem:[%s8718 + $0x3a8] sm:$0xff]
    %v8837 = vld [vmem:[%s8718 + $0x3b0] sm:$0xff]
    %v8838 = vld [vmem:[%s8718 + $0x3b8] sm:$0xff]
    %v8839 = vld [vmem:[%s8718 + $0x3c0] sm:$0xff]
    %v8840 = vld [vmem:[%s8718 + $0x3c8] sm:$0xff]
    %v8841 = vld [vmem:[%s8718 + $0x3d0] sm:$0xff]
    %v8842 = vld [vmem:[%s8718 + $0x3d8] sm:$0xff]
    %v8843 = vld [vmem:[%s8718 + $0x3e0] sm:$0xff]
    %v8844 = vld [vmem:[%s8718 + $0x3e8] sm:$0xff]
    %v8845 = vld [vmem:[%s8718 + $0x3f0] sm:$0xff]
    %v8846 = vld [vmem:[%s8718 + $0x3f8] sm:$0xff]
    %v8847 = vld [vmem:[%s8718 + $0x400] sm:$0xff]
    %v8848 = vld [vmem:[%s8718 + $0x408] sm:$0xff]
    %v8849 = vld [vmem:[%s8718 + $0x410] sm:$0xff]
    %v8850 = vld [vmem:[%s8718 + $0x418] sm:$0xff]
    %v8851 = vld [vmem:[%s8718 + $0x420] sm:$0xff]
    %v8852 = vld [vmem:[%s8718 + $0x428] sm:$0xff]
    %v8853 = vld [vmem:[%s8718 + $0x430] sm:$0xff]
    %v8854 = vld [vmem:[%s8718 + $0x438] sm:$0xff]
    %v8855 = vld [vmem:[%s8718 + $0x440] sm:$0xff]
    %v8856 = vld [vmem:[%s8718 + $0x448] sm:$0xff]
    %v8857 = vld [vmem:[%s8718 + $0x450] sm:$0xff]
    %v8858 = vld [vmem:[%s8718 + $0x458] sm:$0xff]
    %v8859 = vld [vmem:[%s8718 + $0x460] sm:$0xff]
    %v8860 = vld [vmem:[%s8718 + $0x468] sm:$0xff]
    %v8861 = vld [vmem:[%s8718 + $0x470] sm:$0xff]
    %v8862 = vld [vmem:[%s8718 + $0x478] sm:$0xff]
    %v8863 = vld [vmem:[%s8718 + $0x480] sm:$0xff]
    %v8864 = vld [vmem:[%s8718 + $0x488] sm:$0xff]
    %v8865 = vld [vmem:[%s8718 + $0x490] sm:$0xff]
    %v8866 = vld [vmem:[%s8718 + $0x498] sm:$0xff]
    %v8867 = vld [vmem:[%s8718 + $0x4a0] sm:$0xff]
    %v8868 = vld [vmem:[%s8718 + $0x4a8] sm:$0xff]
    %v8869 = vld [vmem:[%s8718 + $0x4b0] sm:$0xff]
    %v8870 = vld [vmem:[%s8718 + $0x4b8] sm:$0xff]
    %v8871 = vld [vmem:[%s8718 + $0x4c0] sm:$0xff]
    %v8872 = vld [vmem:[%s8718 + $0x4c8] sm:$0xff]
    %v8873 = vld [vmem:[%s8718 + $0x4d0] sm:$0xff]
    %v8874 = vld [vmem:[%s8718 + $0x4d8] sm:$0xff]
    %v8875 = vld [vmem:[%s8718 + $0x4e0] sm:$0xff]
    %v8876 = vld [vmem:[%s8718 + $0x4e8] sm:$0xff]
    %v8877 = vld [vmem:[%s8718 + $0x4f0] sm:$0xff]
    %v8878 = vld [vmem:[%s8718 + $0x4f8] sm:$0xff]
    %v8879 = vld [vmem:[%s8718 + $0x500] sm:$0xff]
    %v8880 = vld [vmem:[%s8718 + $0x508] sm:$0xff]
    %v8881 = vld [vmem:[%s8718 + $0x510] sm:$0xff]
    %v8882 = vld [vmem:[%s8718 + $0x518] sm:$0xff]
    %v8883 = vld [vmem:[%s8718 + $0x520] sm:$0xff]
    %v8884 = vld [vmem:[%s8718 + $0x528] sm:$0xff]
    %v8885 = vld [vmem:[%s8718 + $0x530] sm:$0xff]
    %v8886 = vld [vmem:[%s8718 + $0x538] sm:$0xff]
    %v8887 = vld [vmem:[%s8718 + $0x540] sm:$0xff]
    %v8888 = vld [vmem:[%s8718 + $0x548] sm:$0xff]
    %v8889 = vld [vmem:[%s8718 + $0x550] sm:$0xff]
    %v8890 = vld [vmem:[%s8718 + $0x558] sm:$0xff]
    %v8891 = vld [vmem:[%s8718 + $0x560] sm:$0xff]
    %v8892 = vld [vmem:[%s8718 + $0x568] sm:$0xff]
    %v8893 = vld [vmem:[%s8718 + $0x570] sm:$0xff]
    %v8894 = vld [vmem:[%s8718 + $0x578] sm:$0xff]
    %v8895 = vld [vmem:[%s8718 + $0x580] sm:$0xff]
    %v8896 = vld [vmem:[%s8718 + $0x588] sm:$0xff]
    %v8897 = vld [vmem:[%s8718 + $0x590] sm:$0xff]
    %v8898 = vld [vmem:[%s8718 + $0x598] sm:$0xff]
    %v8899 = vld [vmem:[%s8718 + $0x5a0] sm:$0xff]
    %v8900 = vld [vmem:[%s8718 + $0x5a8] sm:$0xff]
    %v8901 = vld [vmem:[%s8718 + $0x5b0] sm:$0xff]
    %v8902 = vld [vmem:[%s8718 + $0x5b8] sm:$0xff]
    %v8903 = vld [vmem:[%s8718 + $0x5c0] sm:$0xff]
    %v8904 = vld [vmem:[%s8718 + $0x5c8] sm:$0xff]
    %v8905 = vld [vmem:[%s8718 + $0x5d0] sm:$0xff]
    %v8906 = vld [vmem:[%s8718 + $0x5d8] sm:$0xff]
    %v8907 = vld [vmem:[%s8718 + $0x5e0] sm:$0xff]
    %v8908 = vld [vmem:[%s8718 + $0x5e8] sm:$0xff]
    %v8909 = vld [vmem:[%s8718 + $0x5f0] sm:$0xff]
    %v8910 = vld [vmem:[%s8718 + $0x5f8] sm:$0xff]
    %v8911 = vld [vmem:[%s8718 + $0x600] sm:$0xff]
    %v8912 = vld [vmem:[%s8718 + $0x608] sm:$0xff]
    %v8913 = vld [vmem:[%s8718 + $0x610] sm:$0xff]
    %v8914 = vld [vmem:[%s8718 + $0x618] sm:$0xff]
    %v8915 = vld [vmem:[%s8718 + $0x620] sm:$0xff]
    %v8916 = vld [vmem:[%s8718 + $0x628] sm:$0xff]
    %v8917 = vld [vmem:[%s8718 + $0x630] sm:$0xff]
    %v8918 = vld [vmem:[%s8718 + $0x638] sm:$0xff]
    %v8919 = vld [vmem:[%s8718 + $0x640] sm:$0xff]
    %v8920 = vld [vmem:[%s8718 + $0x648] sm:$0xff]
    %v8921 = vld [vmem:[%s8718 + $0x650] sm:$0xff]
    %v8922 = vld [vmem:[%s8718 + $0x658] sm:$0xff]
    %v8923 = vld [vmem:[%s8718 + $0x660] sm:$0xff]
    %v8924 = vld [vmem:[%s8718 + $0x668] sm:$0xff]
    %v8925 = vld [vmem:[%s8718 + $0x670] sm:$0xff]
    %v8926 = vld [vmem:[%s8718 + $0x678] sm:$0xff]
    %v8927 = vld [vmem:[%s8718 + $0x680] sm:$0xff]
    %v8928 = vld [vmem:[%s8718 + $0x688] sm:$0xff]
    %v8929 = vld [vmem:[%s8718 + $0x690] sm:$0xff]
    %v8930 = vld [vmem:[%s8718 + $0x698] sm:$0xff]
    %v8931 = vld [vmem:[%s8718 + $0x6a0] sm:$0xff]
    %v8932 = vld [vmem:[%s8718 + $0x6a8] sm:$0xff]
    %v8933 = vld [vmem:[%s8718 + $0x6b0] sm:$0xff]
    %v8934 = vld [vmem:[%s8718 + $0x6b8] sm:$0xff]
    %v8935 = vld [vmem:[%s8718 + $0x6c0] sm:$0xff]
    %v8936 = vld [vmem:[%s8718 + $0x6c8] sm:$0xff]
    %v8937 = vld [vmem:[%s8718 + $0x6d0] sm:$0xff]
    %v8938 = vld [vmem:[%s8718 + $0x6d8] sm:$0xff]
    %v8939 = vld [vmem:[%s8718 + $0x6e0] sm:$0xff]
    %v8940 = vld [vmem:[%s8718 + $0x6e8] sm:$0xff]
    %v8941 = vld [vmem:[%s8718 + $0x6f0] sm:$0xff]
    %v8942 = vld [vmem:[%s8718 + $0x6f8] sm:$0xff]
    %v8943 = vld [vmem:[%s8718 + $0x700] sm:$0xff]
    %v8944 = vld [vmem:[%s8718 + $0x708] sm:$0xff]
    %v8945 = vld [vmem:[%s8718 + $0x710] sm:$0xff]
    %v8946 = vld [vmem:[%s8718 + $0x718] sm:$0xff]
    %v8947 = vld [vmem:[%s8718 + $0x720] sm:$0xff]
    %v8948 = vld [vmem:[%s8718 + $0x728] sm:$0xff]
    %v8949 = vld [vmem:[%s8718 + $0x730] sm:$0xff]
    %v8950 = vld [vmem:[%s8718 + $0x738] sm:$0xff]
    %v8951 = vld [vmem:[%s8718 + $0x740] sm:$0xff]
    %v8952 = vld [vmem:[%s8718 + $0x748] sm:$0xff]
    %v8953 = vld [vmem:[%s8718 + $0x750] sm:$0xff]
    %v8954 = vld [vmem:[%s8718 + $0x758] sm:$0xff]
    %v8955 = vld [vmem:[%s8718 + $0x760] sm:$0xff]
    %v8956 = vld [vmem:[%s8718 + $0x768] sm:$0xff]
    %v8957 = vld [vmem:[%s8718 + $0x770] sm:$0xff]
    %v8958 = vld [vmem:[%s8718 + $0x778] sm:$0xff]
    %v8959 = vld [vmem:[%s8718 + $0x780] sm:$0xff]
    %v8960 = vld [vmem:[%s8718 + $0x788] sm:$0xff]
    %v8961 = vld [vmem:[%s8718 + $0x790] sm:$0xff]
    %v8962 = vld [vmem:[%s8718 + $0x798] sm:$0xff]
    %v8963 = vld [vmem:[%s8718 + $0x7a0] sm:$0xff]
    %v8964 = vld [vmem:[%s8718 + $0x7a8] sm:$0xff]
    %v8965 = vld [vmem:[%s8718 + $0x7b0] sm:$0xff]
    %v8966 = vld [vmem:[%s8718 + $0x7b8] sm:$0xff]
    %v8967 = vld [vmem:[%s8718 + $0x7c0] sm:$0xff]
    %v8968 = vld [vmem:[%s8718 + $0x7c8] sm:$0xff]
    %v8969 = vld [vmem:[%s8718 + $0x7d0] sm:$0xff]
    %v8970 = vld [vmem:[%s8718 + $0x7d8] sm:$0xff]
    %v8971 = vld [vmem:[%s8718 + $0x7e0] sm:$0xff]
    %v8972 = vld [vmem:[%s8718 + $0x7e8] sm:$0xff]
    %v8973 = vld [vmem:[%s8718 + $0x7f0] sm:$0xff]
    %v8974 = vld [vmem:[%s8718 + $0x7f8] sm:$0xff]
    %s8975 = scalar_lea.vmem %s15, 1
    %v8976 = vld [vmem:[%s8975] sm:$0x1]
    %v8978 = vlaneseq
    %v8979 = vshrl.u32 %v8978, 7
    %v8980 = vsub.s32 0, %v8979
    %v8981 = vrot.slane %v8976, %v8980
    %8983 = vmatprep.subr.mxu0 0.0
    %8984 = vmatpush1.msra.mxu0 %v8719
    %8985 = vmatprep.subr.mxu0 0.0
    %8986 = vmatpush1.msra.mxu0 %v8720
    %8987 = vmatprep.subr.mxu0 0.0
    %8988 = vmatpush1.msra.mxu0 %v8721
    %8989 = vmatprep.subr.mxu0 0.0
    %8990 = vmatpush1.msra.mxu0 %v8722
    %8991 = vmatprep.subr.mxu0 0.0
    %8992 = vmatpush1.msra.mxu0 %v8723
    %8993 = vmatprep.subr.mxu0 0.0
    %8994 = vmatpush1.msra.mxu0 %v8724
    %8995 = vmatprep.subr.mxu0 0.0
    %8996 = vmatpush1.msra.mxu0 %v8725
    %8997 = vmatprep.subr.mxu0 0.0
    %8998 = vmatpush1.msra.mxu0 %v8726
    %8999 = vmatprep.subr.mxu0 0.0
    %9000 = vmatpush1.msra.mxu0 %v8727
    %9001 = vmatprep.subr.mxu0 0.0
    %9002 = vmatpush1.msra.mxu0 %v8728
    %9003 = vmatprep.subr.mxu0 0.0
    %9004 = vmatpush1.msra.mxu0 %v8729
    %9005 = vmatprep.subr.mxu0 0.0
    %9006 = vmatpush1.msra.mxu0 %v8730
    %9007 = vmatprep.subr.mxu0 0.0
    %9008 = vmatpush1.msra.mxu0 %v8731
    %9009 = vmatprep.subr.mxu0 0.0
    %9010 = vmatpush1.msra.mxu0 %v8732
    %9011 = vmatprep.subr.mxu0 0.0
    %9012 = vmatpush1.msra.mxu0 %v8733
    %9013 = vmatprep.subr.mxu0 0.0
    %9014 = vmatpush1.msra.mxu0 %v8734
    %9015 = vmatprep.subr.mxu0 0.0
    %9016 = vmatpush1.msra.mxu0 %v8735
    %9017 = vmatprep.subr.mxu0 0.0
    %9018 = vmatpush1.msra.mxu0 %v8736
    %9019 = vmatprep.subr.mxu0 0.0
    %9020 = vmatpush1.msra.mxu0 %v8737
    %9021 = vmatprep.subr.mxu0 0.0
    %9022 = vmatpush1.msra.mxu0 %v8738
    %9023 = vmatprep.subr.mxu0 0.0
    %9024 = vmatpush1.msra.mxu0 %v8739
    %9025 = vmatprep.subr.mxu0 0.0
    %9026 = vmatpush1.msra.mxu0 %v8740
    %9027 = vmatprep.subr.mxu0 0.0
    %9028 = vmatpush1.msra.mxu0 %v8741
    %9029 = vmatprep.subr.mxu0 0.0
    %9030 = vmatpush1.msra.mxu0 %v8742
    %9031 = vmatprep.subr.mxu0 0.0
    %9032 = vmatpush1.msra.mxu0 %v8743
    %9033 = vmatprep.subr.mxu0 0.0
    %9034 = vmatpush1.msra.mxu0 %v8744
    %9035 = vmatprep.subr.mxu0 0.0
    %9036 = vmatpush1.msra.mxu0 %v8745
    %9037 = vmatprep.subr.mxu0 0.0
    %9038 = vmatpush1.msra.mxu0 %v8746
    %9039 = vmatprep.subr.mxu0 0.0
    %9040 = vmatpush1.msra.mxu0 %v8747
    %9041 = vmatprep.subr.mxu0 0.0
    %9042 = vmatpush1.msra.mxu0 %v8748
    %9043 = vmatprep.subr.mxu0 0.0
    %9044 = vmatpush1.msra.mxu0 %v8749
    %9045 = vmatprep.subr.mxu0 0.0
    %9046 = vmatpush1.msra.mxu0 %v8750
    %9047 = vmatprep.mubr.f32.mxu0 %v8687
    %9048 = vmatmul.mubr.f32.gmra.mrb[0].mxu0 %v8686
    %v9049 = vpop.f32.mrb[0].mxu0
    %v9050 = vadd.f32 %v8981, %v9049
    %v9051 = vpop.f32.mrb[0].mxu0
    %9052 = vmatprep.mubr.f32.mxu0 %v8703
    %9053 = vmatmul.mubr.f32.gmra.mrb[0].mxu0 %v8702
    %v9054 = vpop.f32.mrb[0].mxu0
    %v9055 = vadd.f32 %v8981, %v9054
    %v9056 = vpop.f32.mrb[0].mxu0
    %9057 = vdwg.mxu0
    %9058 = vmatprep.subr.mxu0 0.0
    %9059 = vmatpush1.msra.mxu0 %v8751
    %9060 = vmatprep.subr.mxu0 0.0
    %9061 = vmatpush1.msra.mxu0 %v8752
    %9062 = vmatprep.subr.mxu0 0.0
    %9063 = vmatpush1.msra.mxu0 %v8753
    %9064 = vmatprep.subr.mxu0 0.0
    %9065 = vmatpush1.msra.mxu0 %v8754
    %9066 = vmatprep.subr.mxu0 0.0
    %9067 = vmatpush1.msra.mxu0 %v8755
    %9068 = vmatprep.subr.mxu0 0.0
    %9069 = vmatpush1.msra.mxu0 %v8756
    %9070 = vmatprep.subr.mxu0 0.0
    %9071 = vmatpush1.msra.mxu0 %v8757
    %9072 = vmatprep.subr.mxu0 0.0
    %9073 = vmatpush1.msra.mxu0 %v8758
    %9074 = vmatprep.subr.mxu0 0.0
    %9075 = vmatpush1.msra.mxu0 %v8759
    %9076 = vmatprep.subr.mxu0 0.0
    %9077 = vmatpush1.msra.mxu0 %v8760
    %9078 = vmatprep.subr.mxu0 0.0
    %9079 = vmatpush1.msra.mxu0 %v8761
    %9080 = vmatprep.subr.mxu0 0.0
    %9081 = vmatpush1.msra.mxu0 %v8762
    %9082 = vmatprep.subr.mxu0 0.0
    %9083 = vmatpush1.msra.mxu0 %v8763
    %9084 = vmatprep.subr.mxu0 0.0
    %9085 = vmatpush1.msra.mxu0 %v8764
    %9086 = vmatprep.subr.mxu0 0.0
    %9087 = vmatpush1.msra.mxu0 %v8765
    %9088 = vmatprep.subr.mxu0 0.0
    %9089 = vmatpush1.msra.mxu0 %v8766
    %9090 = vmatprep.subr.mxu0 0.0
    %9091 = vmatpush1.msra.mxu0 %v8767
    %9092 = vmatprep.subr.mxu0 0.0
    %9093 = vmatpush1.msra.mxu0 %v8768
    %9094 = vmatprep.subr.mxu0 0.0
    %9095 = vmatpush1.msra.mxu0 %v8769
    %9096 = vmatprep.subr.mxu0 0.0
    %9097 = vmatpush1.msra.mxu0 %v8770
    %9098 = vmatprep.subr.mxu0 0.0
    %9099 = vmatpush1.msra.mxu0 %v8771
    %9100 = vmatprep.subr.mxu0 0.0
    %9101 = vmatpush1.msra.mxu0 %v8772
    %9102 = vmatprep.subr.mxu0 0.0
    %9103 = vmatpush1.msra.mxu0 %v8773
    %9104 = vmatprep.subr.mxu0 0.0
    %9105 = vmatpush1.msra.mxu0 %v8774
    %9106 = vmatprep.subr.mxu0 0.0
    %9107 = vmatpush1.msra.mxu0 %v8775
    %9108 = vmatprep.subr.mxu0 0.0
    %9109 = vmatpush1.msra.mxu0 %v8776
    %9110 = vmatprep.subr.mxu0 0.0
    %9111 = vmatpush1.msra.mxu0 %v8777
    %9112 = vmatprep.subr.mxu0 0.0
    %9113 = vmatpush1.msra.mxu0 %v8778
    %9114 = vmatprep.subr.mxu0 0.0
    %9115 = vmatpush1.msra.mxu0 %v8779
    %9116 = vmatprep.subr.mxu0 0.0
    %9117 = vmatpush1.msra.mxu0 %v8780
    %9118 = vmatprep.subr.mxu0 0.0
    %9119 = vmatpush1.msra.mxu0 %v8781
    %9120 = vmatprep.subr.mxu0 0.0
    %9121 = vmatpush1.msra.mxu0 %v8782
    %9122 = vmatprep.mubr.f32.mxu0 %v8689
    %9123 = vmatmul.mubr.f32.gmra.mrb[0].mxu0 %v8688
    %v9124 = vpop.f32.mrb[0].mxu0
    %v9125 = vadd.f32 %v9050, %v9124
    %v9126 = vpop.f32.mrb[0].mxu0
    %9127 = vmatprep.mubr.f32.mxu0 %v8705
    %9128 = vmatmul.mubr.f32.gmra.mrb[0].mxu0 %v8704
    %v9129 = vpop.f32.mrb[0].mxu0
    %v9130 = vadd.f32 %v9055, %v9129
    %v9131 = vpop.f32.mrb[0].mxu0
    %9132 = vdwg.mxu0
    %9133 = vmatprep.subr.mxu0 0.0
    %9134 = vmatpush1.msra.mxu0 %v8783
    %9135 = vmatprep.subr.mxu0 0.0
    %9136 = vmatpush1.msra.mxu0 %v8784
    %9137 = vmatprep.subr.mxu0 0.0
    %9138 = vmatpush1.msra.mxu0 %v8785
    %9139 = vmatprep.subr.mxu0 0.0
    %9140 = vmatpush1.msra.mxu0 %v8786
    %9141 = vmatprep.subr.mxu0 0.0
    %9142 = vmatpush1.msra.mxu0 %v8787
    %9143 = vmatprep.subr.mxu0 0.0
    %9144 = vmatpush1.msra.mxu0 %v8788
    %9145 = vmatprep.subr.mxu0 0.0
    %9146 = vmatpush1.msra.mxu0 %v8789
    %9147 = vmatprep.subr.mxu0 0.0
    %9148 = vmatpush1.msra.mxu0 %v8790
    %9149 = vmatprep.subr.mxu0 0.0
    %9150 = vmatpush1.msra.mxu0 %v8791
    %9151 = vmatprep.subr.mxu0 0.0
    %9152 = vmatpush1.msra.mxu0 %v8792
    %9153 = vmatprep.subr.mxu0 0.0
    %9154 = vmatpush1.msra.mxu0 %v8793
    %9155 = vmatprep.subr.mxu0 0.0
    %9156 = vmatpush1.msra.mxu0 %v8794
    %9157 = vmatprep.subr.mxu0 0.0
    %9158 = vmatpush1.msra.mxu0 %v8795
    %9159 = vmatprep.subr.mxu0 0.0
    %9160 = vmatpush1.msra.mxu0 %v8796
    %9161 = vmatprep.subr.mxu0 0.0
    %9162 = vmatpush1.msra.mxu0 %v8797
    %9163 = vmatprep.subr.mxu0 0.0
    %9164 = vmatpush1.msra.mxu0 %v8798
    %9165 = vmatprep.subr.mxu0 0.0
    %9166 = vmatpush1.msra.mxu0 %v8799
    %9167 = vmatprep.subr.mxu0 0.0
    %9168 = vmatpush1.msra.mxu0 %v8800
    %9169 = vmatprep.subr.mxu0 0.0
    %9170 = vmatpush1.msra.mxu0 %v8801
    %9171 = vmatprep.subr.mxu0 0.0
    %9172 = vmatpush1.msra.mxu0 %v8802
    %9173 = vmatprep.subr.mxu0 0.0
    %9174 = vmatpush1.msra.mxu0 %v8803
    %9175 = vmatprep.subr.mxu0 0.0
    %9176 = vmatpush1.msra.mxu0 %v8804
    %9177 = vmatprep.subr.mxu0 0.0
    %9178 = vmatpush1.msra.mxu0 %v8805
    %9179 = vmatprep.subr.mxu0 0.0
    %9180 = vmatpush1.msra.mxu0 %v8806
    %9181 = vmatprep.subr.mxu0 0.0
    %9182 = vmatpush1.msra.mxu0 %v8807
    %9183 = vmatprep.subr.mxu0 0.0
    %9184 = vmatpush1.msra.mxu0 %v8808
    %9185 = vmatprep.subr.mxu0 0.0
    %9186 = vmatpush1.msra.mxu0 %v8809
    %9187 = vmatprep.subr.mxu0 0.0
    %9188 = vmatpush1.msra.mxu0 %v8810
    %9189 = vmatprep.subr.mxu0 0.0
    %9190 = vmatpush1.msra.mxu0 %v8811
    %9191 = vmatprep.subr.mxu0 0.0
    %9192 = vmatpush1.msra.mxu0 %v8812
    %9193 = vmatprep.subr.mxu0 0.0
    %9194 = vmatpush1.msra.mxu0 %v8813
    %9195 = vmatprep.subr.mxu0 0.0
    %9196 = vmatpush1.msra.mxu0 %v8814
    %9197 = vmatprep.mubr.f32.mxu0 %v8691
    %9198 = vmatmul.mubr.f32.gmra.mrb[0].mxu0 %v8690
    %v9199 = vpop.f32.mrb[0].mxu0
    %v9200 = vadd.f32 %v9125, %v9199
    %v9201 = vpop.f32.mrb[0].mxu0
    %9202 = vmatprep.mubr.f32.mxu0 %v8707
    %9203 = vmatmul.mubr.f32.gmra.mrb[0].mxu0 %v8706
    %v9204 = vpop.f32.mrb[0].mxu0
    %v9205 = vadd.f32 %v9130, %v9204
    %v9206 = vpop.f32.mrb[0].mxu0
    %9207 = vdwg.mxu0
    %9208 = vmatprep.subr.mxu0 0.0
    %9209 = vmatpush1.msra.mxu0 %v8815
    %9210 = vmatprep.subr.mxu0 0.0
    %9211 = vmatpush1.msra.mxu0 %v8816
    %9212 = vmatprep.subr.mxu0 0.0
    %9213 = vmatpush1.msra.mxu0 %v8817
    %9214 = vmatprep.subr.mxu0 0.0
    %9215 = vmatpush1.msra.mxu0 %v8818
    %9216 = vmatprep.subr.mxu0 0.0
    %9217 = vmatpush1.msra.mxu0 %v8819
    %9218 = vmatprep.subr.mxu0 0.0
    %9219 = vmatpush1.msra.mxu0 %v8820
    %9220 = vmatprep.subr.mxu0 0.0
    %9221 = vmatpush1.msra.mxu0 %v8821
    %9222 = vmatprep.subr.mxu0 0.0
    %9223 = vmatpush1.msra.mxu0 %v8822
    %9224 = vmatprep.subr.mxu0 0.0
    %9225 = vmatpush1.msra.mxu0 %v8823
    %9226 = vmatprep.subr.mxu0 0.0
    %9227 = vmatpush1.msra.mxu0 %v8824
    %9228 = vmatprep.subr.mxu0 0.0
    %9229 = vmatpush1.msra.mxu0 %v8825
    %9230 = vmatprep.subr.mxu0 0.0
    %9231 = vmatpush1.msra.mxu0 %v8826
    %9232 = vmatprep.subr.mxu0 0.0
    %9233 = vmatpush1.msra.mxu0 %v8827
    %9234 = vmatprep.subr.mxu0 0.0
    %9235 = vmatpush1.msra.mxu0 %v8828
    %9236 = vmatprep.subr.mxu0 0.0
    %9237 = vmatpush1.msra.mxu0 %v8829
    %9238 = vmatprep.subr.mxu0 0.0
    %9239 = vmatpush1.msra.mxu0 %v8830
    %9240 = vmatprep.subr.mxu0 0.0
    %9241 = vmatpush1.msra.mxu0 %v8831
    %9242 = vmatprep.subr.mxu0 0.0
    %9243 = vmatpush1.msra.mxu0 %v8832
    %9244 = vmatprep.subr.mxu0 0.0
    %9245 = vmatpush1.msra.mxu0 %v8833
    %9246 = vmatprep.subr.mxu0 0.0
    %9247 = vmatpush1.msra.mxu0 %v8834
    %9248 = vmatprep.subr.mxu0 0.0
    %9249 = vmatpush1.msra.mxu0 %v8835
    %9250 = vmatprep.subr.mxu0 0.0
    %9251 = vmatpush1.msra.mxu0 %v8836
    %9252 = vmatprep.subr.mxu0 0.0
    %9253 = vmatpush1.msra.mxu0 %v8837
    %9254 = vmatprep.subr.mxu0 0.0
    %9255 = vmatpush1.msra.mxu0 %v8838
    %9256 = vmatprep.subr.mxu0 0.0
    %9257 = vmatpush1.msra.mxu0 %v8839
    %9258 = vmatprep.subr.mxu0 0.0
    %9259 = vmatpush1.msra.mxu0 %v8840
    %9260 = vmatprep.subr.mxu0 0.0
    %9261 = vmatpush1.msra.mxu0 %v8841
    %9262 = vmatprep.subr.mxu0 0.0
    %9263 = vmatpush1.msra.mxu0 %v8842
    %9264 = vmatprep.subr.mxu0 0.0
    %9265 = vmatpush1.msra.mxu0 %v8843
    %9266 = vmatprep.subr.mxu0 0.0
    %9267 = vmatpush1.msra.mxu0 %v8844
    %9268 = vmatprep.subr.mxu0 0.0
    %9269 = vmatpush1.msra.mxu0 %v8845
    %9270 = vmatprep.subr.mxu0 0.0
    %9271 = vmatpush1.msra.mxu0 %v8846
    %9272 = vmatprep.mubr.f32.mxu0 %v8693
    %9273 = vmatmul.mubr.f32.gmra.mrb[0].mxu0 %v8692
    %v9274 = vpop.f32.mrb[0].mxu0
    %v9275 = vadd.f32 %v9200, %v9274
    %v9276 = vpop.f32.mrb[0].mxu0
    %9277 = vmatprep.mubr.f32.mxu0 %v8709
    %9278 = vmatmul.mubr.f32.gmra.mrb[0].mxu0 %v8708
    %v9279 = vpop.f32.mrb[0].mxu0
    %v9280 = vadd.f32 %v9205, %v9279
    %v9281 = vpop.f32.mrb[0].mxu0
    %9282 = vdwg.mxu0
    %9283 = vmatprep.subr.mxu0 0.0
    %9284 = vmatpush1.msra.mxu0 %v8847
    %9285 = vmatprep.subr.mxu0 0.0
    %9286 = vmatpush1.msra.mxu0 %v8848
    %9287 = vmatprep.subr.mxu0 0.0
    %9288 = vmatpush1.msra.mxu0 %v8849
    %9289 = vmatprep.subr.mxu0 0.0
    %9290 = vmatpush1.msra.mxu0 %v8850
    %9291 = vmatprep.subr.mxu0 0.0
    %9292 = vmatpush1.msra.mxu0 %v8851
    %9293 = vmatprep.subr.mxu0 0.0
    %9294 = vmatpush1.msra.mxu0 %v8852
    %9295 = vmatprep.subr.mxu0 0.0
    %9296 = vmatpush1.msra.mxu0 %v8853
    %9297 = vmatprep.subr.mxu0 0.0
    %9298 = vmatpush1.msra.mxu0 %v8854
    %9299 = vmatprep.subr.mxu0 0.0
    %9300 = vmatpush1.msra.mxu0 %v8855
    %9301 = vmatprep.subr.mxu0 0.0
    %9302 = vmatpush1.msra.mxu0 %v8856
    %9303 = vmatprep.subr.mxu0 0.0
    %9304 = vmatpush1.msra.mxu0 %v8857
    %9305 = vmatprep.subr.mxu0 0.0
    %9306 = vmatpush1.msra.mxu0 %v8858
    %9307 = vmatprep.subr.mxu0 0.0
    %9308 = vmatpush1.msra.mxu0 %v8859
    %9309 = vmatprep.subr.mxu0 0.0
    %9310 = vmatpush1.msra.mxu0 %v8860
    %9311 = vmatprep.subr.mxu0 0.0
    %9312 = vmatpush1.msra.mxu0 %v8861
    %9313 = vmatprep.subr.mxu0 0.0
    %9314 = vmatpush1.msra.mxu0 %v8862
    %9315 = vmatprep.subr.mxu0 0.0
    %9316 = vmatpush1.msra.mxu0 %v8863
    %9317 = vmatprep.subr.mxu0 0.0
    %9318 = vmatpush1.msra.mxu0 %v8864
    %9319 = vmatprep.subr.mxu0 0.0
    %9320 = vmatpush1.msra.mxu0 %v8865
    %9321 = vmatprep.subr.mxu0 0.0
    %9322 = vmatpush1.msra.mxu0 %v8866
    %9323 = vmatprep.subr.mxu0 0.0
    %9324 = vmatpush1.msra.mxu0 %v8867
    %9325 = vmatprep.subr.mxu0 0.0
    %9326 = vmatpush1.msra.mxu0 %v8868
    %9327 = vmatprep.subr.mxu0 0.0
    %9328 = vmatpush1.msra.mxu0 %v8869
    %9329 = vmatprep.subr.mxu0 0.0
    %9330 = vmatpush1.msra.mxu0 %v8870
    %9331 = vmatprep.subr.mxu0 0.0
    %9332 = vmatpush1.msra.mxu0 %v8871
    %9333 = vmatprep.subr.mxu0 0.0
    %9334 = vmatpush1.msra.mxu0 %v8872
    %9335 = vmatprep.subr.mxu0 0.0
    %9336 = vmatpush1.msra.mxu0 %v8873
    %9337 = vmatprep.subr.mxu0 0.0
    %9338 = vmatpush1.msra.mxu0 %v8874
    %9339 = vmatprep.subr.mxu0 0.0
    %9340 = vmatpush1.msra.mxu0 %v8875
    %9341 = vmatprep.subr.mxu0 0.0
    %9342 = vmatpush1.msra.mxu0 %v8876
    %9343 = vmatprep.subr.mxu0 0.0
    %9344 = vmatpush1.msra.mxu0 %v8877
    %9345 = vmatprep.subr.mxu0 0.0
    %9346 = vmatpush1.msra.mxu0 %v8878
    %9347 = vmatprep.mubr.f32.mxu0 %v8695
    %9348 = vmatmul.mubr.f32.gmra.mrb[0].mxu0 %v8694
    %v9349 = vpop.f32.mrb[0].mxu0
    %v9350 = vadd.f32 %v9275, %v9349
    %v9351 = vpop.f32.mrb[0].mxu0
    %9352 = vmatprep.mubr.f32.mxu0 %v8711
    %9353 = vmatmul.mubr.f32.gmra.mrb[0].mxu0 %v8710
    %v9354 = vpop.f32.mrb[0].mxu0
    %v9355 = vadd.f32 %v9280, %v9354
    %v9356 = vpop.f32.mrb[0].mxu0
    %9357 = vdwg.mxu0
    %9358 = vmatprep.subr.mxu0 0.0
    %9359 = vmatpush1.msra.mxu0 %v8879
    %9360 = vmatprep.subr.mxu0 0.0
    %9361 = vmatpush1.msra.mxu0 %v8880
    %9362 = vmatprep.subr.mxu0 0.0
    %9363 = vmatpush1.msra.mxu0 %v8881
    %9364 = vmatprep.subr.mxu0 0.0
    %9365 = vmatpush1.msra.mxu0 %v8882
    %9366 = vmatprep.subr.mxu0 0.0
    %9367 = vmatpush1.msra.mxu0 %v8883
    %9368 = vmatprep.subr.mxu0 0.0
    %9369 = vmatpush1.msra.mxu0 %v8884
    %9370 = vmatprep.subr.mxu0 0.0
    %9371 = vmatpush1.msra.mxu0 %v8885
    %9372 = vmatprep.subr.mxu0 0.0
    %9373 = vmatpush1.msra.mxu0 %v8886
    %9374 = vmatprep.subr.mxu0 0.0
    %9375 = vmatpush1.msra.mxu0 %v8887
    %9376 = vmatprep.subr.mxu0 0.0
    %9377 = vmatpush1.msra.mxu0 %v8888
    %9378 = vmatprep.subr.mxu0 0.0
    %9379 = vmatpush1.msra.mxu0 %v8889
    %9380 = vmatprep.subr.mxu0 0.0
    %9381 = vmatpush1.msra.mxu0 %v8890
    %9382 = vmatprep.subr.mxu0 0.0
    %9383 = vmatpush1.msra.mxu0 %v8891
    %9384 = vmatprep.subr.mxu0 0.0
    %9385 = vmatpush1.msra.mxu0 %v8892
    %9386 = vmatprep.subr.mxu0 0.0
    %9387 = vmatpush1.msra.mxu0 %v8893
    %9388 = vmatprep.subr.mxu0 0.0
    %9389 = vmatpush1.msra.mxu0 %v8894
    %9390 = vmatprep.subr.mxu0 0.0
    %9391 = vmatpush1.msra.mxu0 %v8895
    %9392 = vmatprep.subr.mxu0 0.0
    %9393 = vmatpush1.msra.mxu0 %v8896
    %9394 = vmatprep.subr.mxu0 0.0
    %9395 = vmatpush1.msra.mxu0 %v8897
    %9396 = vmatprep.subr.mxu0 0.0
    %9397 = vmatpush1.msra.mxu0 %v8898
    %9398 = vmatprep.subr.mxu0 0.0
    %9399 = vmatpush1.msra.mxu0 %v8899
    %9400 = vmatprep.subr.mxu0 0.0
    %9401 = vmatpush1.msra.mxu0 %v8900
    %9402 = vmatprep.subr.mxu0 0.0
    %9403 = vmatpush1.msra.mxu0 %v8901
    %9404 = vmatprep.subr.mxu0 0.0
    %9405 = vmatpush1.msra.mxu0 %v8902
    %9406 = vmatprep.subr.mxu0 0.0
    %9407 = vmatpush1.msra.mxu0 %v8903
    %9408 = vmatprep.subr.mxu0 0.0
    %9409 = vmatpush1.msra.mxu0 %v8904
    %9410 = vmatprep.subr.mxu0 0.0
    %9411 = vmatpush1.msra.mxu0 %v8905
    %9412 = vmatprep.subr.mxu0 0.0
    %9413 = vmatpush1.msra.mxu0 %v8906
    %9414 = vmatprep.subr.mxu0 0.0
    %9415 = vmatpush1.msra.mxu0 %v8907
    %9416 = vmatprep.subr.mxu0 0.0
    %9417 = vmatpush1.msra.mxu0 %v8908
    %9418 = vmatprep.subr.mxu0 0.0
    %9419 = vmatpush1.msra.mxu0 %v8909
    %9420 = vmatprep.subr.mxu0 0.0
    %9421 = vmatpush1.msra.mxu0 %v8910
    %9422 = vmatprep.mubr.f32.mxu0 %v8697
    %9423 = vmatmul.mubr.f32.gmra.mrb[0].mxu0 %v8696
    %v9424 = vpop.f32.mrb[0].mxu0
    %v9425 = vadd.f32 %v9350, %v9424
    %v9426 = vpop.f32.mrb[0].mxu0
    %9427 = vmatprep.mubr.f32.mxu0 %v8713
    %9428 = vmatmul.mubr.f32.gmra.mrb[0].mxu0 %v8712
    %v9429 = vpop.f32.mrb[0].mxu0
    %v9430 = vadd.f32 %v9355, %v9429
    %v9431 = vpop.f32.mrb[0].mxu0
    %9432 = vdwg.mxu0
    %9433 = vmatprep.subr.mxu0 0.0
    %9434 = vmatpush1.msra.mxu0 %v8911
    %9435 = vmatprep.subr.mxu0 0.0
    %9436 = vmatpush1.msra.mxu0 %v8912
    %9437 = vmatprep.subr.mxu0 0.0
    %9438 = vmatpush1.msra.mxu0 %v8913
    %9439 = vmatprep.subr.mxu0 0.0
    %9440 = vmatpush1.msra.mxu0 %v8914
    %9441 = vmatprep.subr.mxu0 0.0
    %9442 = vmatpush1.msra.mxu0 %v8915
    %9443 = vmatprep.subr.mxu0 0.0
    %9444 = vmatpush1.msra.mxu0 %v8916
    %9445 = vmatprep.subr.mxu0 0.0
    %9446 = vmatpush1.msra.mxu0 %v8917
    %9447 = vmatprep.subr.mxu0 0.0
    %9448 = vmatpush1.msra.mxu0 %v8918
    %9449 = vmatprep.subr.mxu0 0.0
    %9450 = vmatpush1.msra.mxu0 %v8919
    %9451 = vmatprep.subr.mxu0 0.0
    %9452 = vmatpush1.msra.mxu0 %v8920
    %9453 = vmatprep.subr.mxu0 0.0
    %9454 = vmatpush1.msra.mxu0 %v8921
    %9455 = vmatprep.subr.mxu0 0.0
    %9456 = vmatpush1.msra.mxu0 %v8922
    %9457 = vmatprep.subr.mxu0 0.0
    %9458 = vmatpush1.msra.mxu0 %v8923
    %9459 = vmatprep.subr.mxu0 0.0
    %9460 = vmatpush1.msra.mxu0 %v8924
    %9461 = vmatprep.subr.mxu0 0.0
    %9462 = vmatpush1.msra.mxu0 %v8925
    %9463 = vmatprep.subr.mxu0 0.0
    %9464 = vmatpush1.msra.mxu0 %v8926
    %9465 = vmatprep.subr.mxu0 0.0
    %9466 = vmatpush1.msra.mxu0 %v8927
    %9467 = vmatprep.subr.mxu0 0.0
    %9468 = vmatpush1.msra.mxu0 %v8928
    %9469 = vmatprep.subr.mxu0 0.0
    %9470 = vmatpush1.msra.mxu0 %v8929
    %9471 = vmatprep.subr.mxu0 0.0
    %9472 = vmatpush1.msra.mxu0 %v8930
    %9473 = vmatprep.subr.mxu0 0.0
    %9474 = vmatpush1.msra.mxu0 %v8931
    %9475 = vmatprep.subr.mxu0 0.0
    %9476 = vmatpush1.msra.mxu0 %v8932
    %9477 = vmatprep.subr.mxu0 0.0
    %9478 = vmatpush1.msra.mxu0 %v8933
    %9479 = vmatprep.subr.mxu0 0.0
    %9480 = vmatpush1.msra.mxu0 %v8934
    %9481 = vmatprep.subr.mxu0 0.0
    %9482 = vmatpush1.msra.mxu0 %v8935
    %9483 = vmatprep.subr.mxu0 0.0
    %9484 = vmatpush1.msra.mxu0 %v8936
    %9485 = vmatprep.subr.mxu0 0.0
    %9486 = vmatpush1.msra.mxu0 %v8937
    %9487 = vmatprep.subr.mxu0 0.0
    %9488 = vmatpush1.msra.mxu0 %v8938
    %9489 = vmatprep.subr.mxu0 0.0
    %9490 = vmatpush1.msra.mxu0 %v8939
    %9491 = vmatprep.subr.mxu0 0.0
    %9492 = vmatpush1.msra.mxu0 %v8940
    %9493 = vmatprep.subr.mxu0 0.0
    %9494 = vmatpush1.msra.mxu0 %v8941
    %9495 = vmatprep.subr.mxu0 0.0
    %9496 = vmatpush1.msra.mxu0 %v8942
    %9497 = vmatprep.mubr.f32.mxu0 %v8699
    %9498 = vmatmul.mubr.f32.gmra.mrb[0].mxu0 %v8698
    %v9499 = vpop.f32.mrb[0].mxu0
    %v9500 = vadd.f32 %v9425, %v9499
    %v9501 = vpop.f32.mrb[0].mxu0
    %9502 = vmatprep.mubr.f32.mxu0 %v8715
    %9503 = vmatmul.mubr.f32.gmra.mrb[0].mxu0 %v8714
    %v9504 = vpop.f32.mrb[0].mxu0
    %v9505 = vadd.f32 %v9430, %v9504
    %v9506 = vpop.f32.mrb[0].mxu0
    %9507 = vdwg.mxu0
    %9508 = vmatprep.subr.mxu0 0.0
    %9509 = vmatpush1.msra.mxu0 %v8943
    %9510 = vmatprep.subr.mxu0 0.0
    %9511 = vmatpush1.msra.mxu0 %v8944
    %9512 = vmatprep.subr.mxu0 0.0
    %9513 = vmatpush1.msra.mxu0 %v8945
    %9514 = vmatprep.subr.mxu0 0.0
    %9515 = vmatpush1.msra.mxu0 %v8946
    %9516 = vmatprep.subr.mxu0 0.0
    %9517 = vmatpush1.msra.mxu0 %v8947
    %9518 = vmatprep.subr.mxu0 0.0
    %9519 = vmatpush1.msra.mxu0 %v8948
    %9520 = vmatprep.subr.mxu0 0.0
    %9521 = vmatpush1.msra.mxu0 %v8949
    %9522 = vmatprep.subr.mxu0 0.0
    %9523 = vmatpush1.msra.mxu0 %v8950
    %9524 = vmatprep.subr.mxu0 0.0
    %9525 = vmatpush1.msra.mxu0 %v8951
    %9526 = vmatprep.subr.mxu0 0.0
    %9527 = vmatpush1.msra.mxu0 %v8952
    %9528 = vmatprep.subr.mxu0 0.0
    %9529 = vmatpush1.msra.mxu0 %v8953
    %9530 = vmatprep.subr.mxu0 0.0
    %9531 = vmatpush1.msra.mxu0 %v8954
    %9532 = vmatprep.subr.mxu0 0.0
    %9533 = vmatpush1.msra.mxu0 %v8955
    %9534 = vmatprep.subr.mxu0 0.0
    %9535 = vmatpush1.msra.mxu0 %v8956
    %9536 = vmatprep.subr.mxu0 0.0
    %9537 = vmatpush1.msra.mxu0 %v8957
    %9538 = vmatprep.subr.mxu0 0.0
    %9539 = vmatpush1.msra.mxu0 %v8958
    %9540 = vmatprep.subr.mxu0 0.0
    %9541 = vmatpush1.msra.mxu0 %v8959
    %9542 = vmatprep.subr.mxu0 0.0
    %9543 = vmatpush1.msra.mxu0 %v8960
    %9544 = vmatprep.subr.mxu0 0.0
    %9545 = vmatpush1.msra.mxu0 %v8961
    %9546 = vmatprep.subr.mxu0 0.0
    %9547 = vmatpush1.msra.mxu0 %v8962
    %9548 = vmatprep.subr.mxu0 0.0
    %9549 = vmatpush1.msra.mxu0 %v8963
    %9550 = vmatprep.subr.mxu0 0.0
    %9551 = vmatpush1.msra.mxu0 %v8964
    %9552 = vmatprep.subr.mxu0 0.0
    %9553 = vmatpush1.msra.mxu0 %v8965
    %9554 = vmatprep.subr.mxu0 0.0
    %9555 = vmatpush1.msra.mxu0 %v8966
    %9556 = vmatprep.subr.mxu0 0.0
    %9557 = vmatpush1.msra.mxu0 %v8967
    %9558 = vmatprep.subr.mxu0 0.0
    %9559 = vmatpush1.msra.mxu0 %v8968
    %9560 = vmatprep.subr.mxu0 0.0
    %9561 = vmatpush1.msra.mxu0 %v8969
    %9562 = vmatprep.subr.mxu0 0.0
    %9563 = vmatpush1.msra.mxu0 %v8970
    %9564 = vmatprep.subr.mxu0 0.0
    %9565 = vmatpush1.msra.mxu0 %v8971
    %9566 = vmatprep.subr.mxu0 0.0
    %9567 = vmatpush1.msra.mxu0 %v8972
    %9568 = vmatprep.subr.mxu0 0.0
    %9569 = vmatpush1.msra.mxu0 %v8973
    %9570 = vmatprep.subr.mxu0 0.0
    %9571 = vmatpush1.msra.mxu0 %v8974
    %9572 = vmatprep.mubr.f32.mxu0 %v8701
    %9573 = vmatmul.mubr.f32.gmra.mrb[0].mxu0 %v8700
    %v9574 = vpop.f32.mrb[0].mxu0
    %v9575 = vadd.f32 %v9500, %v9574
    %v9576 = vpop.f32.mrb[0].mxu0
    %9577 = vmatprep.mubr.f32.mxu0 %v8717
    %9578 = vmatmul.mubr.f32.gmra.mrb[0].mxu0 %v8716
    %v9579 = vpop.f32.mrb[0].mxu0
    %v9580 = vadd.f32 %v9505, %v9579
    %v9581 = vpop.f32.mrb[0].mxu0
    %9582 = vdwg.mxu0
    %v9583 = vadd.f32 %v7912, %v9575
    %v9584 = vadd.f32 %v7913, %v9580
    %s9585 = scalar_lea.vmem %s18, 1
    %v9586 = vld [vmem:[%s9585] sm:$0x1]
    %s9587 = scalar_lea.vmem %s19, 1
    %v9588 = vld [vmem:[%s9587] sm:$0x1]
    %v9589 = vsel %vm183, %v9583, 0.0
    %9590 = vadd.xlane.f32.xlu0 %v9589
    %v9591 = vpop.xlane.xlu0 %9590
    %v9592 = vsel %vm183, %v9584, 0.0
    %9593 = vadd.xlane.f32.xlu0 %v9592
    %v9594 = vpop.xlane.xlu0 %9593
    %v9595 = vmul.f32 %v9591, %v3147
    %v9596 = vmul.f32 %v9594, %v3147
    %v9597 = vsub.f32 %v9583, %v9595
    %v9598 = vsub.f32 %v9584, %v9596
    %v9599 = vmul.f32 %v9597, %v9597
    %v9600 = vmul.f32 %v9598, %v9598
    %v9601 = vsel %vm183, %v9599, 0.0
    %9602 = vadd.xlane.f32.xlu0 %v9601
    %v9603 = vpop.xlane.xlu0 %9602
    %v9604 = vsel %vm183, %v9600, 0.0
    %9605 = vadd.xlane.f32.xlu0 %v9604
    %v9606 = vpop.xlane.xlu0 %9605
    %v9607 = vmul.f32 %v9603, %v3147
    %v9608 = vmul.f32 %v9606, %v3147
    %v9609 = vadd.f32 %v9607, 1e-05
    %v9610 = vadd.f32 %v9608, 1e-05
    %v9611 = vrsqrt.pop %v9609
    %v9612 = vrsqrt.pop %v9610
    %v9613 = vmul.f32 %v9597, %v9611
    %v9614 = vmul.f32 %v9598, %v9612
    %v9616 = vlaneseq
    %v9617 = vshrl.u32 %v9616, 7
    %v9618 = vsub.s32 0, %v9617
    %v9619 = vrot.slane %v9586, %v9618
    %v9621 = vmul.f32 %v9613, %v9619
    %v9622 = vmul.f32 %v9614, %v9619
    %v9624 = vlaneseq
    %v9625 = vshrl.u32 %v9624, 7
    %v9626 = vsub.s32 0, %v9625
    %v9627 = vrot.slane %v9588, %v9626
    %v9629 = vadd.f32 %v9621, %v9627
    %v9630 = vadd.f32 %v9622, %v9627
    %v9631 = vld [vmem:[%s20] sm:$0xff]
    %v9632 = vld [vmem:[%s20 + $0x8] sm:$0xff]
    %v9633 = vld [vmem:[%s20 + $0x10] sm:$0xff]
    %v9634 = vld [vmem:[%s20 + $0x18] sm:$0xff]
    %v9635 = vld [vmem:[%s21] sm:$0x1]
    %v9637 = vlaneseq
    %v9638 = vshrl.u32 %v9637, 7
    %v9639 = vsub.s32 0, %v9638
    %v9640 = vrot.slane %v9635, %v9639
    %v9643 = vsel %vm183, %v9629, 0
    %v9646 = vsel %vm183, %v9630, 0
    %9648 = vmatprep.subr.mxu0 0.0
    %9649 = vmatpush1.msra.mxu0 %v9631
    %9650 = vmatprep.subr.mxu0 0.0
    %9651 = vmatpush1.msra.mxu0 %v9632
    %9652 = vmatprep.subr.mxu0 0.0
    %9653 = vmatpush1.msra.mxu0 %v9633
    %9654 = vmatprep.subr.mxu0 0.0
    %9655 = vmatpush1.msra.mxu0 %v9634
    %9656 = vmatprep.subr.mxu0 0.0
    %9657 = vmatpush1.msra.mxu0 0.0
    %9658 = vmatprep.subr.mxu0 0.0
    %9659 = vmatpush1.msra.mxu0 0.0
    %9660 = vmatprep.subr.mxu0 0.0
    %9661 = vmatpush1.msra.mxu0 0.0
    %9662 = vmatprep.subr.mxu0 0.0
    %9663 = vmatpush1.msra.mxu0 0.0
    %9664 = vmatprep.subr.mxu0 0.0
    %9665 = vmatpush1.msra.mxu0 0.0
    %9666 = vmatprep.subr.mxu0 0.0
    %9667 = vmatpush1.msra.mxu0 0.0
    %9668 = vmatprep.subr.mxu0 0.0
    %9669 = vmatpush1.msra.mxu0 0.0
    %9670 = vmatprep.subr.mxu0 0.0
    %9671 = vmatpush1.msra.mxu0 0.0
    %9672 = vmatprep.subr.mxu0 0.0
    %9673 = vmatpush1.msra.mxu0 0.0
    %9674 = vmatprep.subr.mxu0 0.0
    %9675 = vmatpush1.msra.mxu0 0.0
    %9676 = vmatprep.subr.mxu0 0.0
    %9677 = vmatpush1.msra.mxu0 0.0
    %9678 = vmatprep.subr.mxu0 0.0
    %9679 = vmatpush1.msra.mxu0 0.0
    %9680 = vmatprep.subr.mxu0 0.0
    %9681 = vmatpush1.msra.mxu0 0.0
    %9682 = vmatprep.subr.mxu0 0.0
    %9683 = vmatpush1.msra.mxu0 0.0
    %9684 = vmatprep.subr.mxu0 0.0
    %9685 = vmatpush1.msra.mxu0 0.0
    %9686 = vmatprep.subr.mxu0 0.0
    %9687 = vmatpush1.msra.mxu0 0.0
    %9688 = vmatprep.subr.mxu0 0.0
    %9689 = vmatpush1.msra.mxu0 0.0
    %9690 = vmatprep.subr.mxu0 0.0
    %9691 = vmatpush1.msra.mxu0 0.0
    %9692 = vmatprep.subr.mxu0 0.0
    %9693 = vmatpush1.msra.mxu0 0.0
    %9694 = vmatprep.subr.mxu0 0.0
    %9695 = vmatpush1.msra.mxu0 0.0
    %9696 = vmatprep.subr.mxu0 0.0
    %9697 = vmatpush1.msra.mxu0 0.0
    %9698 = vmatprep.subr.mxu0 0.0
    %9699 = vmatpush1.msra.mxu0 0.0
    %9700 = vmatprep.subr.mxu0 0.0
    %9701 = vmatpush1.msra.mxu0 0.0
    %9702 = vmatprep.subr.mxu0 0.0
    %9703 = vmatpush1.msra.mxu0 0.0
    %9704 = vmatprep.subr.mxu0 0.0
    %9705 = vmatpush1.msra.mxu0 0.0
    %9706 = vmatprep.subr.mxu0 0.0
    %9707 = vmatpush1.msra.mxu0 0.0
    %9708 = vmatprep.subr.mxu0 0.0
    %9709 = vmatpush1.msra.mxu0 0.0
    %9710 = vmatprep.subr.mxu0 0.0
    %9711 = vmatpush1.msra.mxu0 0.0
    %9712 = vmatprep.mubr.f32.mxu0 0.0
    %9713 = vmatmul.mubr.f32.gmra.mrb[0].mxu0 %v9643
    %v9714 = vpop.f32.mrb[0].mxu0
    %v9715 = vadd.f32 %v9640, %v9714
    %v9716 = vpop.f32.mrb[0].mxu0
    %9717 = vmatprep.mubr.f32.mxu0 0.0
    %9718 = vmatmul.mubr.f32.gmra.mrb[0].mxu0 %v9646
    %v9719 = vpop.f32.mrb[0].mxu0
    %v9720 = vadd.f32 %v9640, %v9719
    %v9721 = vpop.f32.mrb[0].mxu0
    %9722 = vdwg.mxu0
    %9723 = vst [vmem:[#allocation3] sm:$0xff] %v9715
    %9724 = vst [vmem:[#allocation3 + $0x8] sm:$0xff] %v9720
    // Predicated region
    $region90: #{tpu_custom_call.1} parent=1 // pred_check
      _
    $region91: #{tpu_custom_call.1} parent=1 // pred_check_branch
      %9726 = sbr.rel (0) target = $region93
    $region92: #{tpu_custom_call.1} parent=1 // pred_region
      %s9728 = ssub.s32 256, 256
      %9729 = vsyncadd [#allocation4], %s9728
      %s9730 = sshll.u32 [#allocation3], 4
      %s9731 = int_to_ptr.vmem [resolvable:$true] %s9730
      %9736 = dma.vmem_to_hbm [thread:$0]  %s9731, 256, %s22, [#allocation4], 128, 128, 8
    $region93: #{tpu_custom_call.1} parent=1 // pred_fallthru
      _
    // Predicated region
    $region94: #{tpu_custom_call.1} parent=1 // pred_check
      _
    $region95: #{tpu_custom_call.1} parent=1 // pred_check_branch
      %9738 = sbr.rel (0) target = $region97
    $region96: #{tpu_custom_call.1} parent=1 // pred_region
      %9739 = dma.done [#allocation4], 256
    $region97: #{tpu_custom_call.1} parent=1 // pred_fallthru
      _
    %9740 = vsyncpa [#allocation4], 1

</llo_original>
